<compile_context>
chip_gen: v7x
topology: tpu7x:2x2x1
jax: 0.10.0
libtpu: 0.0.40
codegen_flags: <defaults>
</compile_context>

<pallas_src>
import functools

import jax
import jax.numpy as jnp
from jax import lax
from jax.experimental import pallas as pl
from jax.experimental.pallas import tpu as pltpu

_LANES = 128  # TPU lane width; channel dims are zero-padded to a multiple of this.


def _round_up(x, m):
    return (x + m - 1) // m * m


def _pad_axis(a, axis, new_size):
    if a.shape[axis] == new_size:
        return a
    widths = [(0, 0)] * a.ndim
    widths[axis] = (0, new_size - a.shape[axis])
    return jnp.pad(a, widths)


def _basic_block_kernel(x_ref, w1_ref, s1_ref, b1_ref, w2_ref, s2_ref, b2_ref,
                        *rest, stride, has_downsample):
    """Fused BasicBlock for one batch-block (one grid step).

    x_ref  : (B, H, W, Cpi)        channel-padded NHWC input tile (compute dtype)
    w1_ref : (9, Cpi, Cpm)         conv1 weights, one (Cpi,Cpm) matrix per tap
    s1/b1  : (1, Cpm) f32          folded BN1 scale / bias (+conv bias)
    w2_ref : (9, Cpm, Cpo), s2/b2 : (1, Cpo) f32
    rest   : [wd (Cpi,Cpo), sd, bd]?  out (B,Ho,Wo,Cpo),
             scratches: xp (B,H+2,Wp2,Cpi), hp (B,Ho+2,Wop2,Cpm)
    """
    if has_downsample:
        wd_ref, sd_ref, bd_ref, out_ref, xp_ref, hp_ref = rest
    else:
        out_ref, xp_ref, hp_ref = rest

    B, H, W, Cpi = x_ref.shape
    _, Ho, Wo, Cpo = out_ref.shape
    Cpm = w1_ref.shape[2]
    f32 = jnp.float32

    # Zero the halo buffers once; the interior is overwritten on every grid
    # step and the 1-pixel halo (plus alignment columns) is never written again.
    @pl.when(pl.program_id(0) == 0)
    def _init():
        xp_ref[...] = jnp.zeros_like(xp_ref)
        hp_ref[...] = jnp.zeros_like(hp_ref)

    def tap(ref, kh, kw, ho, wo):
        if stride == 1:
            return ref[:, kh:kh + ho, kw:kw + wo, :]
        return ref[:, pl.ds(kh, ho, stride=stride),
                   pl.ds(kw, wo, stride=stride), :]

    # ---------------- conv1 (3x3, stride, pad=1) + bn1 + relu ----------------
    xp_ref[:, 1:H + 1, 1:W + 1, :] = x_ref[...]
    acc1 = jnp.zeros((B * Ho * Wo, Cpm), f32)
    for kh in range(3):
        for kw in range(3):
            t = kh * 3 + kw
            p = tap(xp_ref, kh, kw, Ho, Wo).reshape(B * Ho * Wo, Cpi)
            acc1 = acc1 + jnp.dot(p, w1_ref[t], preferred_element_type=f32)
    h = jnp.maximum(acc1 * s1_ref[...] + b1_ref[...], 0.0)       # f32

    # ---------------- conv2 (3x3, stride=1, pad=1) + bn2 ---------------------
    # h stays resident in VMEM (fused block: no HBM round-trip of h).
    hp_ref[:, 1:Ho + 1, 1:Wo + 1, :] = (
        h.reshape(B, Ho, Wo, Cpm).astype(hp_ref.dtype))
    acc2 = jnp.zeros((B * Ho * Wo, Cpo), f32)
    for kh in range(3):
        for kw in range(3):
            t = kh * 3 + kw
            p = hp_ref[:, kh:kh + Ho, kw:kw + Wo, :].reshape(B * Ho * Wo, Cpm)
            acc2 = acc2 + jnp.dot(p, w2_ref[t], preferred_element_type=f32)
    y = acc2 * s2_ref[...] + b2_ref[...]                         # f32

    # ---------------- identity + residual add + relu -------------------------
    if has_downsample:
        if stride == 1:
            xs = x_ref[...]
        else:
            xs = x_ref[:, pl.ds(0, Ho, stride=stride),
                       pl.ds(0, Wo, stride=stride), :]
        xs = xs.reshape(B * Ho * Wo, Cpi)
        ident = jnp.dot(xs, wd_ref[...], preferred_element_type=f32)
        ident = ident * sd_ref[...] + bd_ref[...]
    else:
        ident = x_ref[...].reshape(B * H * W, Cpi).astype(f32)

    out = jnp.maximum(y + ident, 0.0)
    out_ref[...] = out.reshape(B, Ho, Wo, Cpo).astype(out_ref.dtype)


def _vmem_limit_bytes(B, H, W, Ho, Wo, Cpi, Cpm, Cpo, csize, osize, downsample):
    wp2 = _round_up(W + 2, 8)
    wop2 = _round_up(Wo + 2, 8)
    est = 0
    est += 2 * B * H * W * Cpi * csize            # x blocks (double-buffered)
    est += 2 * 9 * Cpi * Cpm * csize              # conv1 weights
    est += 2 * 9 * Cpm * Cpo * csize              # conv2 weights
    est += 2 * 2 * 4 * (Cpm + Cpo)                # scales / biases (f32)
    est += 2 * B * Ho * Wo * Cpo * osize          # out blocks (double-buffered)
    est += B * (H + 2) * wp2 * Cpi * csize        # xp halo scratch
    est += B * (Ho + 2) * wop2 * Cpm * csize      # hp halo scratch
    est += 4 * B * Ho * Wo * max(Cpm, Cpo) * 4    # live f32 accumulators / temps
    if downsample:
        est += 2 * Cpi * Cpo * csize + 2 * 2 * 4 * Cpo
    # 2x headroom for Mosaic-internal copies; never below the 32 MiB default,
    # capped well under physical VMEM.
    return int(min(max(2 * est + (8 << 20), 32 << 20), 96 << 20))


def basic_block_forward(x_nchw, params, *, stride=1, downsample=False,
                        compute_dtype=jnp.bfloat16, out_dtype=jnp.float32,
                        batch_block=1, return_nhwc_padded=False, eps=1e-5):
    """BasicBlock forward. Input NCHW (PyTorch layout); output NCHW unless
    return_nhwc_padded=True (lane-padded NHWC, for chaining blocks).

    params hold conv weights in HWIO layout ([KH, KW, Cin, Cout])."""
    N, Cin, H, W = x_nchw.shape
    w1, w2 = params["w1"], params["w2"]
    KH, KW, _, Cmid = w1.shape
    Cout = w2.shape[3]
    assert (KH, KW) == (3, 3)

    if not downsample and (stride != 1 or Cin != Cout):
        raise ValueError(
            "BasicBlock without downsample requires stride=1 and "
            "in_channels == out_channels (residual shapes must match).")
    if N % batch_block != 0:
        raise ValueError("batch_block must divide the batch size.")

    Ho = (H + 2 - 3) // stride + 1
    Wo = (W + 2 - 3) // stride + 1
    B = batch_block

    Cpi = _round_up(Cin, _LANES)
    Cpm = _round_up(Cmid, _LANES)
    Cpo = _round_up(Cout, _LANES)
    wp2 = _round_up(W + 2, 8)       # sublane-aligned halo-buffer widths
    wop2 = _round_up(Wo + 2, 8)

    # NCHW -> NHWC (channels on lanes), zero-pad channels to a lane multiple.
    x = jnp.transpose(x_nchw, (0, 2, 3, 1))
    x = _pad_axis(x, 3, Cpi).astype(compute_dtype)

    def fold(g, be, m, v, cb, cpad):
        # Fold eval-mode BatchNorm (+conv bias) into per-channel scale/bias.
        # Padded entries are exactly 0 so padded lanes stay 0 through the block.
        scale = g / jnp.sqrt(v + eps)
        bias = (cb - m) * scale + be
        return (_pad_axis(scale, 0, cpad).reshape(1, cpad).astype(jnp.float32),
                _pad_axis(bias, 0, cpad).reshape(1, cpad).astype(jnp.float32))

    s1, b1 = fold(params["g1"], params["be1"], params["m1"], params["v1"],
                  params["b1"], Cpm)
    s2, b2 = fold(params["g2"], params["be2"], params["m2"], params["v2"],
                  params["b2"], Cpo)

    # Weights: pad channel dims, one (Cin, Cout) matrix per 3x3 tap.
    w1p = _pad_axis(_pad_axis(w1, 2, Cpi), 3, Cpm).reshape(9, Cpi, Cpm)
    w2p = _pad_axis(_pad_axis(w2, 2, Cpm), 3, Cpo).reshape(9, Cpm, Cpo)
    w1p = w1p.astype(compute_dtype)
    w2p = w2p.astype(compute_dtype)

    args = [x, w1p, s1, b1, w2p, s2, b2]
    in_specs = [
        pl.BlockSpec((B, H, W, Cpi), lambda n: (n, 0, 0, 0)),
        pl.BlockSpec((9, Cpi, Cpm), lambda n: (0, 0, 0)),
        pl.BlockSpec((1, Cpm), lambda n: (0, 0)),
        pl.BlockSpec((1, Cpm), lambda n: (0, 0)),
        pl.BlockSpec((9, Cpm, Cpo), lambda n: (0, 0, 0)),
        pl.BlockSpec((1, Cpo), lambda n: (0, 0)),
        pl.BlockSpec((1, Cpo), lambda n: (0, 0)),
    ]
    if downsample:
        wd = params["wd"].reshape(Cin, Cout)                 # 1x1 conv, HWIO -> IO
        wdp = _pad_axis(_pad_axis(wd, 0, Cpi), 1, Cpo).astype(compute_dtype)
        sd, bd = fold(params["gd"], params["bed"], params["md"], params["vd"],
                      params["bd"], Cpo)
        args += [wdp, sd, bd]
        in_specs += [pl.BlockSpec((Cpi, Cpo), lambda n: (0, 0)),
                     pl.BlockSpec((1, Cpo), lambda n: (0, 0)),
                     pl.BlockSpec((1, Cpo), lambda n: (0, 0))]

    kernel = functools.partial(_basic_block_kernel, stride=stride,
                               has_downsample=downsample)

    csize = jnp.dtype(compute_dtype).itemsize
    osize = jnp.dtype(out_dtype).itemsize
    vmem_limit = _vmem_limit_bytes(B, H, W, Ho, Wo, Cpi, Cpm, Cpo,
                                   csize, osize, downsample)

    out = pl.pallas_call(
        kernel,
        out_shape=jax.ShapeDtypeStruct((N, Ho, Wo, Cpo), out_dtype),
        grid_spec=pltpu.PrefetchScalarGridSpec(
            num_scalar_prefetch=0,
            grid=(N // B,),
            in_specs=in_specs,
            out_specs=pl.BlockSpec((B, Ho, Wo, Cpo), lambda n: (n, 0, 0, 0)),
            scratch_shapes=[
                pltpu.VMEM((B, H + 2, wp2, Cpi), compute_dtype),     # padded x
                pltpu.VMEM((B, Ho + 2, wop2, Cpm), compute_dtype),   # padded h
            ]),
        compiler_params=pltpu.CompilerParams(
            dimension_semantics=("parallel",),
            vmem_limit_bytes=vmem_limit),
    )(*args)

    if return_nhwc_padded:
        return out                                  # (N, Ho, Wo, Cpo) lane-dense
    out = out[..., :Cout]                           # drop channel lane-padding
    return jnp.transpose(out, (0, 3, 1, 2))         # NHWC -> NCHW


# ------------------------- reference (plain JAX) -------------------------
def _ref_conv_bn(x, w, b, g, be, m, v, stride, pad, relu, eps=1e-5):
    y = lax.conv_general_dilated(
        x, w, window_strides=(stride, stride),
        padding=[(pad, pad), (pad, pad)],
        dimension_numbers=("NHWC", "HWIO", "NHWC"))
    scale = g / jnp.sqrt(v + eps)
    y = (y + b) * scale + (be - m * scale)
    return jnp.maximum(y, 0.0) if relu else y


def _ref_basic_block(x_nchw, p, stride=1, downsample=False):
    x = jnp.transpose(x_nchw, (0, 2, 3, 1))
    h = _ref_conv_bn(x, p["w1"], p["b1"], p["g1"], p["be1"], p["m1"], p["v1"],
                     stride, 1, True)
    ident = x if not downsample else _ref_conv_bn(
        x, p["wd"], p["bd"], p["gd"], p["bed"], p["md"], p["vd"],
        stride, 0, False)
    y = _ref_conv_bn(h, p["w2"], p["b2"], p["g2"], p["be2"], p["m2"], p["v2"],
                     1, 1, False)
    return jnp.transpose(jnp.maximum(ident + y, 0.0), (0, 3, 1, 2))


def _init_params(key, in_channels, plans):
    out_channels = plans  # expansion = 1
    ks = jax.random.split(key, 18)

    def conv_w(k, cout, cin, kh, kw):
        # PyTorch stores OIHW; transpose to HWIO for the kernel / reference.
        w = jax.random.normal(k, (cout, cin, kh, kw), jnp.float32) * 0.1
        return jnp.transpose(w, (2, 3, 1, 0))

    def bn(k0, k1, k2, k3, c):
        return {
            "g": 1.0 + 0.1 * jax.random.normal(ks[k0], (c,), jnp.float32),
            "be": 0.1 * jax.random.normal(ks[k1], (c,), jnp.float32),
            "m": 0.05 * jax.random.normal(ks[k2], (c,), jnp.float32),
            "v": 1.0 + 0.1 * jax.random.uniform(ks[k3], (c,), jnp.float32),
        }

    bn1 = bn(2, 3, 4, 5, plans)
    bn2 = bn(8, 9, 10, 11, out_channels)
    bnd = bn(14, 15, 16, 17, out_channels)
    return {
        # conv1 + bn1
        "w1": conv_w(ks[0], plans, in_channels, 3, 3),
        "b1": jax.random.normal(ks[1], (plans,), jnp.float32) * 0.1,
        "g1": bn1["g"], "be1": bn1["be"], "m1": bn1["m"], "v1": bn1["v"],
        # conv2 + bn2
        "w2": conv_w(ks[6], out_channels, plans, 3, 3),
        "b2": jax.random.normal(ks[7], (out_channels,), jnp.float32) * 0.1,
        "g2": bn2["g"], "be2": bn2["be"], "m2": bn2["m"], "v2": bn2["v"],
        # downsample 1x1 conv + bn (only used when downsample=True)
        "wd": conv_w(ks[12], out_channels, in_channels, 1, 1),
        "bd": jax.random.normal(ks[13], (out_channels,), jnp.float32) * 0.1,
        "gd": bnd["g"], "bed": bnd["be"], "md": bnd["m"], "vd": bnd["v"],
    }


if __name__ == "__main__":
    key = jax.random.PRNGKey(0)
    k_x, k_p = jax.random.split(key)

    N, C, H, W = 2, 4, 16, 16      # BasicBlock(in_channels=4, plans=4)
    x = jax.random.normal(k_x, (N, C, H, W), jnp.float32)
    params = _init_params(k_p, in_channels=C, plans=C)

    # Identity residual, f32 compute path: tight check against the f32 reference.
    out = basic_block_forward(x, params, stride=1, downsample=False,
                              compute_dtype=jnp.float32, batch_block=1)
    out = jax.block_until_ready(out)
    ref = _ref_basic_block(x, params, stride=1, downsample=False)
    assert out.shape == (N, C, H, W), out.shape
    assert jnp.allclose(out, ref, atol=1e-4, rtol=1e-4), \
        float(jnp.max(jnp.abs(out - ref)))

    # Downsample path, default bf16 MXU compute, 2 images per grid step.
    out_d = basic_block_forward(x, params, stride=1, downsample=True,
                                batch_block=2)
    out_d = jax.block_until_ready(out_d)
    ref_d = _ref_basic_block(x, params, stride=1, downsample=True)
    assert out_d.shape == (N, C, H, W), out_d.shape
    assert jnp.allclose(out_d, ref_d, atol=5e-2, rtol=5e-2), \
        float(jnp.max(jnp.abs(out_d - ref_d)))

    print("KERNEL_OK")
</pallas_src>

<mosaic_0001>
module attributes {stable_mosaic.version = 11 : i64} {
  func.func @_basic_block_kernel(%arg0: i32, %arg1: memref<1x16x16x128xf32, #tpu.memory_space<vmem>>, %arg2: memref<9x128x128xf32, #tpu.memory_space<vmem>>, %arg3: memref<1x128xf32, #tpu.memory_space<vmem>>, %arg4: memref<1x128xf32, #tpu.memory_space<vmem>>, %arg5: memref<9x128x128xf32, #tpu.memory_space<vmem>>, %arg6: memref<1x128xf32, #tpu.memory_space<vmem>>, %arg7: memref<1x128xf32, #tpu.memory_space<vmem>>, %arg8: memref<1x16x16x128xf32, #tpu.memory_space<vmem>>, %arg9: memref<1x18x24x128xf32, #tpu.memory_space<vmem>>, %arg10: memref<1x18x24x128xf32, #tpu.memory_space<vmem>>) attributes {dimension_semantics = [#tpu.dimension_semantics<parallel>], iteration_bounds = array<i64: 2>, scalar_prefetch = 0 : i64, scratch_operands = 2 : i64, tpu.core_type = #tpu.core_type<tc>, window_params = [{transform_indices = @transform_0, window_bounds = array<i64: 1, 16, 16, 128>}, {pipeline_mode = #tpu.pipeline_mode<synchronous>, transform_indices = @transform_1, window_bounds = array<i64: 9, 128, 128>}, {pipeline_mode = #tpu.pipeline_mode<synchronous>, transform_indices = @transform_2, window_bounds = array<i64: 1, 128>}, {pipeline_mode = #tpu.pipeline_mode<synchronous>, transform_indices = @transform_3, window_bounds = array<i64: 1, 128>}, {pipeline_mode = #tpu.pipeline_mode<synchronous>, transform_indices = @transform_4, window_bounds = array<i64: 9, 128, 128>}, {pipeline_mode = #tpu.pipeline_mode<synchronous>, transform_indices = @transform_5, window_bounds = array<i64: 1, 128>}, {pipeline_mode = #tpu.pipeline_mode<synchronous>, transform_indices = @transform_6, window_bounds = array<i64: 1, 128>}, {transform_indices = @transform_7, window_bounds = array<i64: 1, 16, 16, 128>}]} {
    %c0_i32 = arith.constant 0 : i32
    %0 = arith.cmpi eq, %arg0, %c0_i32 : i32
    %1 = arith.extui %0 : i1 to i32
    %c0_i32_0 = arith.constant 0 : i32
    %2 = arith.cmpi ne, %1, %c0_i32_0 : i32
    scf.if %2 {
      %cst_167 = arith.constant 0.000000e+00 : f32
      %138 = vector.broadcast %cst_167 : f32 to vector<1x18x24x128xf32>
      %c0_168 = arith.constant 0 : index
      %c0_169 = arith.constant 0 : index
      %c0_170 = arith.constant 0 : index
      %c0_171 = arith.constant 0 : index
      %139 = vector.load %arg9[%c0_168, %c0_169, %c0_170, %c0_171] : memref<1x18x24x128xf32, #tpu.memory_space<vmem>>, vector<1x18x24x128xf32>
      tpu.vector_store %arg9[%c0_168, %c0_169, %c0_170, %c0_171], %138 {strides = array<i32>} : memref<1x18x24x128xf32, #tpu.memory_space<vmem>>, vector<1x18x24x128xf32>,
      %cst_172 = arith.constant 0.000000e+00 : f32
      %140 = vector.broadcast %cst_172 : f32 to vector<1x18x24x128xf32>
      %c0_173 = arith.constant 0 : index
      %c0_174 = arith.constant 0 : index
      %c0_175 = arith.constant 0 : index
      %c0_176 = arith.constant 0 : index
      %141 = vector.load %arg10[%c0_173, %c0_174, %c0_175, %c0_176] : memref<1x18x24x128xf32, #tpu.memory_space<vmem>>, vector<1x18x24x128xf32>
      tpu.vector_store %arg10[%c0_173, %c0_174, %c0_175, %c0_176], %140 {strides = array<i32>} : memref<1x18x24x128xf32, #tpu.memory_space<vmem>>, vector<1x18x24x128xf32>,
    } else {
    }
    %c0 = arith.constant 0 : index
    %c0_1 = arith.constant 0 : index
    %c0_2 = arith.constant 0 : index
    %c0_3 = arith.constant 0 : index
    %3 = vector.load %arg1[%c0, %c0_1, %c0_2, %c0_3] : memref<1x16x16x128xf32, #tpu.memory_space<vmem>>, vector<1x16x16x128xf32>
    %c0_4 = arith.constant 0 : index
    %c1 = arith.constant 1 : index
    %c1_5 = arith.constant 1 : index
    %c0_6 = arith.constant 0 : index
    %4 = vector.load %arg9[%c0_4, %c1, %c1_5, %c0_6] : memref<1x18x24x128xf32, #tpu.memory_space<vmem>>, vector<1x16x16x128xf32>
    tpu.vector_store %arg9[%c0_4, %c1, %c1_5, %c0_6], %3 {strides = array<i32>} : memref<1x18x24x128xf32, #tpu.memory_space<vmem>>, vector<1x16x16x128xf32>,
    %cst = arith.constant 0.000000e+00 : f32
    %5 = vector.broadcast %cst : f32 to vector<256x128xf32>
    %c0_7 = arith.constant 0 : index
    %c0_8 = arith.constant 0 : index
    %c0_9 = arith.constant 0 : index
    %c0_10 = arith.constant 0 : index
    %6 = vector.load %arg9[%c0_7, %c0_8, %c0_9, %c0_10] : memref<1x18x24x128xf32, #tpu.memory_space<vmem>>, vector<1x16x16x128xf32>
    %7 = vector.shape_cast %6 : vector<1x16x16x128xf32> to vector<256x128xf32>
    %c0_11 = arith.constant 0 : index
    %c0_12 = arith.constant 0 : index
    %c0_13 = arith.constant 0 : index
    %8 = vector.load %arg2[%c0_11, %c0_12, %c0_13] : memref<9x128x128xf32, #tpu.memory_space<vmem>>, vector<1x128x128xf32>
    %9 = vector.shape_cast %8 : vector<1x128x128xf32> to vector<128x128xf32>
    %cst_14 = arith.constant dense<0.000000e+00> : vector<256x128xf32>
    %10 = tpu.matmul %7, %9, %cst_14 {dimension_numbers = #tpu.dot_dimension_numbers<[1], [0], [0], [1], [0, 0, 1, 1], [], []>} : vector<256x128xf32>, vector<128x128xf32>, vector<256x128xf32> -> vector<256x128xf32>
    %11 = arith.addf %5, %10 : vector<256x128xf32>
    %c0_15 = arith.constant 0 : index
    %c0_16 = arith.constant 0 : index
    %c1_17 = arith.constant 1 : index
    %c0_18 = arith.constant 0 : index
    %12 = vector.load %arg9[%c0_15, %c0_16, %c1_17, %c0_18] : memref<1x18x24x128xf32, #tpu.memory_space<vmem>>, vector<1x16x16x128xf32>
    %13 = vector.shape_cast %12 : vector<1x16x16x128xf32> to vector<256x128xf32>
    %c1_19 = arith.constant 1 : index
    %c0_20 = arith.constant 0 : index
    %c0_21 = arith.constant 0 : index
    %14 = vector.load %arg2[%c1_19, %c0_20, %c0_21] : memref<9x128x128xf32, #tpu.memory_space<vmem>>, vector<1x128x128xf32>
    %15 = vector.shape_cast %14 : vector<1x128x128xf32> to vector<128x128xf32>
    %cst_22 = arith.constant dense<0.000000e+00> : vector<256x128xf32>
    %16 = tpu.matmul %13, %15, %cst_22 {dimension_numbers = #tpu.dot_dimension_numbers<[1], [0], [0], [1], [0, 0, 1, 1], [], []>} : vector<256x128xf32>, vector<128x128xf32>, vector<256x128xf32> -> vector<256x128xf32>
    %17 = arith.addf %11, %16 : vector<256x128xf32>
    %c0_23 = arith.constant 0 : index
    %c0_24 = arith.constant 0 : index
    %c2 = arith.constant 2 : index
    %c0_25 = arith.constant 0 : index
    %18 = vector.load %arg9[%c0_23, %c0_24, %c2, %c0_25] : memref<1x18x24x128xf32, #tpu.memory_space<vmem>>, vector<1x16x16x128xf32>
    %19 = vector.shape_cast %18 : vector<1x16x16x128xf32> to vector<256x128xf32>
    %c2_26 = arith.constant 2 : index
    %c0_27 = arith.constant 0 : index
    %c0_28 = arith.constant 0 : index
    %20 = vector.load %arg2[%c2_26, %c0_27, %c0_28] : memref<9x128x128xf32, #tpu.memory_space<vmem>>, vector<1x128x128xf32>
    %21 = vector.shape_cast %20 : vector<1x128x128xf32> to vector<128x128xf32>
    %cst_29 = arith.constant dense<0.000000e+00> : vector<256x128xf32>
    %22 = tpu.matmul %19, %21, %cst_29 {dimension_numbers = #tpu.dot_dimension_numbers<[1], [0], [0], [1], [0, 0, 1, 1], [], []>} : vector<256x128xf32>, vector<128x128xf32>, vector<256x128xf32> -> vector<256x128xf32>
    %23 = arith.addf %17, %22 : vector<256x128xf32>
    %c0_30 = arith.constant 0 : index
    %c1_31 = arith.constant 1 : index
    %c0_32 = arith.constant 0 : index
    %c0_33 = arith.constant 0 : index
    %24 = vector.load %arg9[%c0_30, %c1_31, %c0_32, %c0_33] : memref<1x18x24x128xf32, #tpu.memory_space<vmem>>, vector<1x16x16x128xf32>
    %25 = vector.shape_cast %24 : vector<1x16x16x128xf32> to vector<256x128xf32>
    %c3 = arith.constant 3 : index
    %c0_34 = arith.constant 0 : index
    %c0_35 = arith.constant 0 : index
    %26 = vector.load %arg2[%c3, %c0_34, %c0_35] : memref<9x128x128xf32, #tpu.memory_space<vmem>>, vector<1x128x128xf32>
    %27 = vector.shape_cast %26 : vector<1x128x128xf32> to vector<128x128xf32>
    %cst_36 = arith.constant dense<0.000000e+00> : vector<256x128xf32>
    %28 = tpu.matmul %25, %27, %cst_36 {dimension_numbers = #tpu.dot_dimension_numbers<[1], [0], [0], [1], [0, 0, 1, 1], [], []>} : vector<256x128xf32>, vector<128x128xf32>, vector<256x128xf32> -> vector<256x128xf32>
    %29 = arith.addf %23, %28 : vector<256x128xf32>
    %c0_37 = arith.constant 0 : index
    %c1_38 = arith.constant 1 : index
    %c1_39 = arith.constant 1 : index
    %c0_40 = arith.constant 0 : index
    %30 = vector.load %arg9[%c0_37, %c1_38, %c1_39, %c0_40] : memref<1x18x24x128xf32, #tpu.memory_space<vmem>>, vector<1x16x16x128xf32>
    %31 = vector.shape_cast %30 : vector<1x16x16x128xf32> to vector<256x128xf32>
    %c4 = arith.constant 4 : index
    %c0_41 = arith.constant 0 : index
    %c0_42 = arith.constant 0 : index
    %32 = vector.load %arg2[%c4, %c0_41, %c0_42] : memref<9x128x128xf32, #tpu.memory_space<vmem>>, vector<1x128x128xf32>
    %33 = vector.shape_cast %32 : vector<1x128x128xf32> to vector<128x128xf32>
    %cst_43 = arith.constant dense<0.000000e+00> : vector<256x128xf32>
    %34 = tpu.matmul %31, %33, %cst_43 {dimension_numbers = #tpu.dot_dimension_numbers<[1], [0], [0], [1], [0, 0, 1, 1], [], []>} : vector<256x128xf32>, vector<128x128xf32>, vector<256x128xf32> -> vector<256x128xf32>
    %35 = arith.addf %29, %34 : vector<256x128xf32>
    %c0_44 = arith.constant 0 : index
    %c1_45 = arith.constant 1 : index
    %c2_46 = arith.constant 2 : index
    %c0_47 = arith.constant 0 : index
    %36 = vector.load %arg9[%c0_44, %c1_45, %c2_46, %c0_47] : memref<1x18x24x128xf32, #tpu.memory_space<vmem>>, vector<1x16x16x128xf32>
    %37 = vector.shape_cast %36 : vector<1x16x16x128xf32> to vector<256x128xf32>
    %c5 = arith.constant 5 : index
    %c0_48 = arith.constant 0 : index
    %c0_49 = arith.constant 0 : index
    %38 = vector.load %arg2[%c5, %c0_48, %c0_49] : memref<9x128x128xf32, #tpu.memory_space<vmem>>, vector<1x128x128xf32>
    %39 = vector.shape_cast %38 : vector<1x128x128xf32> to vector<128x128xf32>
    %cst_50 = arith.constant dense<0.000000e+00> : vector<256x128xf32>
    %40 = tpu.matmul %37, %39, %cst_50 {dimension_numbers = #tpu.dot_dimension_numbers<[1], [0], [0], [1], [0, 0, 1, 1], [], []>} : vector<256x128xf32>, vector<128x128xf32>, vector<256x128xf32> -> vector<256x128xf32>
    %41 = arith.addf %35, %40 : vector<256x128xf32>
    %c0_51 = arith.constant 0 : index
    %c2_52 = arith.constant 2 : index
    %c0_53 = arith.constant 0 : index
    %c0_54 = arith.constant 0 : index
    %42 = vector.load %arg9[%c0_51, %c2_52, %c0_53, %c0_54] : memref<1x18x24x128xf32, #tpu.memory_space<vmem>>, vector<1x16x16x128xf32>
    %43 = vector.shape_cast %42 : vector<1x16x16x128xf32> to vector<256x128xf32>
    %c6 = arith.constant 6 : index
    %c0_55 = arith.constant 0 : index
    %c0_56 = arith.constant 0 : index
    %44 = vector.load %arg2[%c6, %c0_55, %c0_56] : memref<9x128x128xf32, #tpu.memory_space<vmem>>, vector<1x128x128xf32>
    %45 = vector.shape_cast %44 : vector<1x128x128xf32> to vector<128x128xf32>
    %cst_57 = arith.constant dense<0.000000e+00> : vector<256x128xf32>
    %46 = tpu.matmul %43, %45, %cst_57 {dimension_numbers = #tpu.dot_dimension_numbers<[1], [0], [0], [1], [0, 0, 1, 1], [], []>} : vector<256x128xf32>, vector<128x128xf32>, vector<256x128xf32> -> vector<256x128xf32>
    %47 = arith.addf %41, %46 : vector<256x128xf32>
    %c0_58 = arith.constant 0 : index
    %c2_59 = arith.constant 2 : index
    %c1_60 = arith.constant 1 : index
    %c0_61 = arith.constant 0 : index
    %48 = vector.load %arg9[%c0_58, %c2_59, %c1_60, %c0_61] : memref<1x18x24x128xf32, #tpu.memory_space<vmem>>, vector<1x16x16x128xf32>
    %49 = vector.shape_cast %48 : vector<1x16x16x128xf32> to vector<256x128xf32>
    %c7 = arith.constant 7 : index
    %c0_62 = arith.constant 0 : index
    %c0_63 = arith.constant 0 : index
    %50 = vector.load %arg2[%c7, %c0_62, %c0_63] : memref<9x128x128xf32, #tpu.memory_space<vmem>>, vector<1x128x128xf32>
    %51 = vector.shape_cast %50 : vector<1x128x128xf32> to vector<128x128xf32>
    %cst_64 = arith.constant dense<0.000000e+00> : vector<256x128xf32>
    %52 = tpu.matmul %49, %51, %cst_64 {dimension_numbers = #tpu.dot_dimension_numbers<[1], [0], [0], [1], [0, 0, 1, 1], [], []>} : vector<256x128xf32>, vector<128x128xf32>, vector<256x128xf32> -> vector<256x128xf32>
    %53 = arith.addf %47, %52 : vector<256x128xf32>
    %c0_65 = arith.constant 0 : index
    %c2_66 = arith.constant 2 : index
    %c2_67 = arith.constant 2 : index
    %c0_68 = arith.constant 0 : index
    %54 = vector.load %arg9[%c0_65, %c2_66, %c2_67, %c0_68] : memref<1x18x24x128xf32, #tpu.memory_space<vmem>>, vector<1x16x16x128xf32>
    %55 = vector.shape_cast %54 : vector<1x16x16x128xf32> to vector<256x128xf32>
    %c8 = arith.constant 8 : index
    %c0_69 = arith.constant 0 : index
    %c0_70 = arith.constant 0 : index
    %56 = vector.load %arg2[%c8, %c0_69, %c0_70] : memref<9x128x128xf32, #tpu.memory_space<vmem>>, vector<1x128x128xf32>
    %57 = vector.shape_cast %56 : vector<1x128x128xf32> to vector<128x128xf32>
    %cst_71 = arith.constant dense<0.000000e+00> : vector<256x128xf32>
    %58 = tpu.matmul %55, %57, %cst_71 {dimension_numbers = #tpu.dot_dimension_numbers<[1], [0], [0], [1], [0, 0, 1, 1], [], []>} : vector<256x128xf32>, vector<128x128xf32>, vector<256x128xf32> -> vector<256x128xf32>
    %59 = arith.addf %53, %58 : vector<256x128xf32>
    %c0_72 = arith.constant 0 : index
    %c0_73 = arith.constant 0 : index
    %60 = vector.load %arg3[%c0_72, %c0_73] : memref<1x128xf32, #tpu.memory_space<vmem>>, vector<1x128xf32>
    %61 = vector.broadcast %60 : vector<1x128xf32> to vector<256x128xf32>
    %62 = arith.mulf %59, %61 : vector<256x128xf32>
    %c0_74 = arith.constant 0 : index
    %c0_75 = arith.constant 0 : index
    %63 = vector.load %arg4[%c0_74, %c0_75] : memref<1x128xf32, #tpu.memory_space<vmem>>, vector<1x128xf32>
    %64 = vector.broadcast %63 : vector<1x128xf32> to vector<256x128xf32>
    %65 = arith.addf %62, %64 : vector<256x128xf32>
    %cst_76 = arith.constant 0.000000e+00 : f32
    %66 = vector.broadcast %cst_76 : f32 to vector<256x128xf32>
    %67 = arith.maximumf %65, %66 : vector<256x128xf32>
    %68 = vector.shape_cast %67 : vector<256x128xf32> to vector<1x16x16x128xf32>
    %c0_77 = arith.constant 0 : index
    %c1_78 = arith.constant 1 : index
    %c1_79 = arith.constant 1 : index
    %c0_80 = arith.constant 0 : index
    %69 = vector.load %arg10[%c0_77, %c1_78, %c1_79, %c0_80] : memref<1x18x24x128xf32, #tpu.memory_space<vmem>>, vector<1x16x16x128xf32>
    tpu.vector_store %arg10[%c0_77, %c1_78, %c1_79, %c0_80], %68 {strides = array<i32>} : memref<1x18x24x128xf32, #tpu.memory_space<vmem>>, vector<1x16x16x128xf32>,
    %cst_81 = arith.constant 0.000000e+00 : f32
    %70 = vector.broadcast %cst_81 : f32 to vector<256x128xf32>
    %c0_82 = arith.constant 0 : index
    %c0_83 = arith.constant 0 : index
    %c0_84 = arith.constant 0 : index
    %c0_85 = arith.constant 0 : index
    %71 = vector.load %arg10[%c0_82, %c0_83, %c0_84, %c0_85] : memref<1x18x24x128xf32, #tpu.memory_space<vmem>>, vector<1x16x16x128xf32>
    %72 = vector.shape_cast %71 : vector<1x16x16x128xf32> to vector<256x128xf32>
    %c0_86 = arith.constant 0 : index
    %c0_87 = arith.constant 0 : index
    %c0_88 = arith.constant 0 : index
    %73 = vector.load %arg5[%c0_86, %c0_87, %c0_88] : memref<9x128x128xf32, #tpu.memory_space<vmem>>, vector<1x128x128xf32>
    %74 = vector.shape_cast %73 : vector<1x128x128xf32> to vector<128x128xf32>
    %cst_89 = arith.constant dense<0.000000e+00> : vector<256x128xf32>
    %75 = tpu.matmul %72, %74, %cst_89 {dimension_numbers = #tpu.dot_dimension_numbers<[1], [0], [0], [1], [0, 0, 1, 1], [], []>} : vector<256x128xf32>, vector<128x128xf32>, vector<256x128xf32> -> vector<256x128xf32>
    %76 = arith.addf %70, %75 : vector<256x128xf32>
    %c0_90 = arith.constant 0 : index
    %c0_91 = arith.constant 0 : index
    %c1_92 = arith.constant 1 : index
    %c0_93 = arith.constant 0 : index
    %77 = vector.load %arg10[%c0_90, %c0_91, %c1_92, %c0_93] : memref<1x18x24x128xf32, #tpu.memory_space<vmem>>, vector<1x16x16x128xf32>
    %78 = vector.shape_cast %77 : vector<1x16x16x128xf32> to vector<256x128xf32>
    %c1_94 = arith.constant 1 : index
    %c0_95 = arith.constant 0 : index
    %c0_96 = arith.constant 0 : index
    %79 = vector.load %arg5[%c1_94, %c0_95, %c0_96] : memref<9x128x128xf32, #tpu.memory_space<vmem>>, vector<1x128x128xf32>
    %80 = vector.shape_cast %79 : vector<1x128x128xf32> to vector<128x128xf32>
    %cst_97 = arith.constant dense<0.000000e+00> : vector<256x128xf32>
    %81 = tpu.matmul %78, %80, %cst_97 {dimension_numbers = #tpu.dot_dimension_numbers<[1], [0], [0], [1], [0, 0, 1, 1], [], []>} : vector<256x128xf32>, vector<128x128xf32>, vector<256x128xf32> -> vector<256x128xf32>
    %82 = arith.addf %76, %81 : vector<256x128xf32>
    %c0_98 = arith.constant 0 : index
    %c0_99 = arith.constant 0 : index
    %c2_100 = arith.constant 2 : index
    %c0_101 = arith.constant 0 : index
    %83 = vector.load %arg10[%c0_98, %c0_99, %c2_100, %c0_101] : memref<1x18x24x128xf32, #tpu.memory_space<vmem>>, vector<1x16x16x128xf32>
    %84 = vector.shape_cast %83 : vector<1x16x16x128xf32> to vector<256x128xf32>
    %c2_102 = arith.constant 2 : index
    %c0_103 = arith.constant 0 : index
    %c0_104 = arith.constant 0 : index
    %85 = vector.load %arg5[%c2_102, %c0_103, %c0_104] : memref<9x128x128xf32, #tpu.memory_space<vmem>>, vector<1x128x128xf32>
    %86 = vector.shape_cast %85 : vector<1x128x128xf32> to vector<128x128xf32>
    %cst_105 = arith.constant dense<0.000000e+00> : vector<256x128xf32>
    %87 = tpu.matmul %84, %86, %cst_105 {dimension_numbers = #tpu.dot_dimension_numbers<[1], [0], [0], [1], [0, 0, 1, 1], [], []>} : vector<256x128xf32>, vector<128x128xf32>, vector<256x128xf32> -> vector<256x128xf32>
    %88 = arith.addf %82, %87 : vector<256x128xf32>
    %c0_106 = arith.constant 0 : index
    %c1_107 = arith.constant 1 : index
    %c0_108 = arith.constant 0 : index
    %c0_109 = arith.constant 0 : index
    %89 = vector.load %arg10[%c0_106, %c1_107, %c0_108, %c0_109] : memref<1x18x24x128xf32, #tpu.memory_space<vmem>>, vector<1x16x16x128xf32>
    %90 = vector.shape_cast %89 : vector<1x16x16x128xf32> to vector<256x128xf32>
    %c3_110 = arith.constant 3 : index
    %c0_111 = arith.constant 0 : index
    %c0_112 = arith.constant 0 : index
    %91 = vector.load %arg5[%c3_110, %c0_111, %c0_112] : memref<9x128x128xf32, #tpu.memory_space<vmem>>, vector<1x128x128xf32>
    %92 = vector.shape_cast %91 : vector<1x128x128xf32> to vector<128x128xf32>
    %cst_113 = arith.constant dense<0.000000e+00> : vector<256x128xf32>
    %93 = tpu.matmul %90, %92, %cst_113 {dimension_numbers = #tpu.dot_dimension_numbers<[1], [0], [0], [1], [0, 0, 1, 1], [], []>} : vector<256x128xf32>, vector<128x128xf32>, vector<256x128xf32> -> vector<256x128xf32>
    %94 = arith.addf %88, %93 : vector<256x128xf32>
    %c0_114 = arith.constant 0 : index
    %c1_115 = arith.constant 1 : index
    %c1_116 = arith.constant 1 : index
    %c0_117 = arith.constant 0 : index
    %95 = vector.load %arg10[%c0_114, %c1_115, %c1_116, %c0_117] : memref<1x18x24x128xf32, #tpu.memory_space<vmem>>, vector<1x16x16x128xf32>
    %96 = vector.shape_cast %95 : vector<1x16x16x128xf32> to vector<256x128xf32>
    %c4_118 = arith.constant 4 : index
    %c0_119 = arith.constant 0 : index
    %c0_120 = arith.constant 0 : index
    %97 = vector.load %arg5[%c4_118, %c0_119, %c0_120] : memref<9x128x128xf32, #tpu.memory_space<vmem>>, vector<1x128x128xf32>
    %98 = vector.shape_cast %97 : vector<1x128x128xf32> to vector<128x128xf32>
    %cst_121 = arith.constant dense<0.000000e+00> : vector<256x128xf32>
    %99 = tpu.matmul %96, %98, %cst_121 {dimension_numbers = #tpu.dot_dimension_numbers<[1], [0], [0], [1], [0, 0, 1, 1], [], []>} : vector<256x128xf32>, vector<128x128xf32>, vector<256x128xf32> -> vector<256x128xf32>
    %100 = arith.addf %94, %99 : vector<256x128xf32>
    %c0_122 = arith.constant 0 : index
    %c1_123 = arith.constant 1 : index
    %c2_124 = arith.constant 2 : index
    %c0_125 = arith.constant 0 : index
    %101 = vector.load %arg10[%c0_122, %c1_123, %c2_124, %c0_125] : memref<1x18x24x128xf32, #tpu.memory_space<vmem>>, vector<1x16x16x128xf32>
    %102 = vector.shape_cast %101 : vector<1x16x16x128xf32> to vector<256x128xf32>
    %c5_126 = arith.constant 5 : index
    %c0_127 = arith.constant 0 : index
    %c0_128 = arith.constant 0 : index
    %103 = vector.load %arg5[%c5_126, %c0_127, %c0_128] : memref<9x128x128xf32, #tpu.memory_space<vmem>>, vector<1x128x128xf32>
    %104 = vector.shape_cast %103 : vector<1x128x128xf32> to vector<128x128xf32>
    %cst_129 = arith.constant dense<0.000000e+00> : vector<256x128xf32>
    %105 = tpu.matmul %102, %104, %cst_129 {dimension_numbers = #tpu.dot_dimension_numbers<[1], [0], [0], [1], [0, 0, 1, 1], [], []>} : vector<256x128xf32>, vector<128x128xf32>, vector<256x128xf32> -> vector<256x128xf32>
    %106 = arith.addf %100, %105 : vector<256x128xf32>
    %c0_130 = arith.constant 0 : index
    %c2_131 = arith.constant 2 : index
    %c0_132 = arith.constant 0 : index
    %c0_133 = arith.constant 0 : index
    %107 = vector.load %arg10[%c0_130, %c2_131, %c0_132, %c0_133] : memref<1x18x24x128xf32, #tpu.memory_space<vmem>>, vector<1x16x16x128xf32>
    %108 = vector.shape_cast %107 : vector<1x16x16x128xf32> to vector<256x128xf32>
    %c6_134 = arith.constant 6 : index
    %c0_135 = arith.constant 0 : index
    %c0_136 = arith.constant 0 : index
    %109 = vector.load %arg5[%c6_134, %c0_135, %c0_136] : memref<9x128x128xf32, #tpu.memory_space<vmem>>, vector<1x128x128xf32>
    %110 = vector.shape_cast %109 : vector<1x128x128xf32> to vector<128x128xf32>
    %cst_137 = arith.constant dense<0.000000e+00> : vector<256x128xf32>
    %111 = tpu.matmul %108, %110, %cst_137 {dimension_numbers = #tpu.dot_dimension_numbers<[1], [0], [0], [1], [0, 0, 1, 1], [], []>} : vector<256x128xf32>, vector<128x128xf32>, vector<256x128xf32> -> vector<256x128xf32>
    %112 = arith.addf %106, %111 : vector<256x128xf32>
    %c0_138 = arith.constant 0 : index
    %c2_139 = arith.constant 2 : index
    %c1_140 = arith.constant 1 : index
    %c0_141 = arith.constant 0 : index
    %113 = vector.load %arg10[%c0_138, %c2_139, %c1_140, %c0_141] : memref<1x18x24x128xf32, #tpu.memory_space<vmem>>, vector<1x16x16x128xf32>
    %114 = vector.shape_cast %113 : vector<1x16x16x128xf32> to vector<256x128xf32>
    %c7_142 = arith.constant 7 : index
    %c0_143 = arith.constant 0 : index
    %c0_144 = arith.constant 0 : index
    %115 = vector.load %arg5[%c7_142, %c0_143, %c0_144] : memref<9x128x128xf32, #tpu.memory_space<vmem>>, vector<1x128x128xf32>
    %116 = vector.shape_cast %115 : vector<1x128x128xf32> to vector<128x128xf32>
    %cst_145 = arith.constant dense<0.000000e+00> : vector<256x128xf32>
    %117 = tpu.matmul %114, %116, %cst_145 {dimension_numbers = #tpu.dot_dimension_numbers<[1], [0], [0], [1], [0, 0, 1, 1], [], []>} : vector<256x128xf32>, vector<128x128xf32>, vector<256x128xf32> -> vector<256x128xf32>
    %118 = arith.addf %112, %117 : vector<256x128xf32>
    %c0_146 = arith.constant 0 : index
    %c2_147 = arith.constant 2 : index
    %c2_148 = arith.constant 2 : index
    %c0_149 = arith.constant 0 : index
    %119 = vector.load %arg10[%c0_146, %c2_147, %c2_148, %c0_149] : memref<1x18x24x128xf32, #tpu.memory_space<vmem>>, vector<1x16x16x128xf32>
    %120 = vector.shape_cast %119 : vector<1x16x16x128xf32> to vector<256x128xf32>
    %c8_150 = arith.constant 8 : index
    %c0_151 = arith.constant 0 : index
    %c0_152 = arith.constant 0 : index
    %121 = vector.load %arg5[%c8_150, %c0_151, %c0_152] : memref<9x128x128xf32, #tpu.memory_space<vmem>>, vector<1x128x128xf32>
    %122 = vector.shape_cast %121 : vector<1x128x128xf32> to vector<128x128xf32>
    %cst_153 = arith.constant dense<0.000000e+00> : vector<256x128xf32>
    %123 = tpu.matmul %120, %122, %cst_153 {dimension_numbers = #tpu.dot_dimension_numbers<[1], [0], [0], [1], [0, 0, 1, 1], [], []>} : vector<256x128xf32>, vector<128x128xf32>, vector<256x128xf32> -> vector<256x128xf32>
    %124 = arith.addf %118, %123 : vector<256x128xf32>
    %c0_154 = arith.constant 0 : index
    %c0_155 = arith.constant 0 : index
    %125 = vector.load %arg6[%c0_154, %c0_155] : memref<1x128xf32, #tpu.memory_space<vmem>>, vector<1x128xf32>
    %126 = vector.broadcast %125 : vector<1x128xf32> to vector<256x128xf32>
    %127 = arith.mulf %124, %126 : vector<256x128xf32>
    %c0_156 = arith.constant 0 : index
    %c0_157 = arith.constant 0 : index
    %128 = vector.load %arg7[%c0_156, %c0_157] : memref<1x128xf32, #tpu.memory_space<vmem>>, vector<1x128xf32>
    %129 = vector.broadcast %128 : vector<1x128xf32> to vector<256x128xf32>
    %130 = arith.addf %127, %129 : vector<256x128xf32>
    %c0_158 = arith.constant 0 : index
    %c0_159 = arith.constant 0 : index
    %c0_160 = arith.constant 0 : index
    %c0_161 = arith.constant 0 : index
    %131 = vector.load %arg1[%c0_158, %c0_159, %c0_160, %c0_161] : memref<1x16x16x128xf32, #tpu.memory_space<vmem>>, vector<1x16x16x128xf32>
    %132 = vector.shape_cast %131 : vector<1x16x16x128xf32> to vector<256x128xf32>
    %133 = arith.addf %130, %132 : vector<256x128xf32>
    %cst_162 = arith.constant 0.000000e+00 : f32
    %134 = vector.broadcast %cst_162 : f32 to vector<256x128xf32>
    %135 = arith.maximumf %133, %134 : vector<256x128xf32>
    %136 = vector.shape_cast %135 : vector<256x128xf32> to vector<1x16x16x128xf32>
    %c0_163 = arith.constant 0 : index
    %c0_164 = arith.constant 0 : index
    %c0_165 = arith.constant 0 : index
    %c0_166 = arith.constant 0 : index
    %137 = vector.load %arg8[%c0_163, %c0_164, %c0_165, %c0_166] : memref<1x16x16x128xf32, #tpu.memory_space<vmem>>, vector<1x16x16x128xf32>
    tpu.vector_store %arg8[%c0_163, %c0_164, %c0_165, %c0_166], %136 {strides = array<i32>} : memref<1x16x16x128xf32, #tpu.memory_space<vmem>>, vector<1x16x16x128xf32>,
    return
  }
  func.func @transform_0(%arg0: i32) -> (i32, i32, i32, i32) {
    %c0_i32 = arith.constant 0 : i32
    %c0_i32_0 = arith.constant 0 : i32
    %c0_i32_1 = arith.constant 0 : i32
    %c0_i32_2 = arith.constant 0 : i32
    return %arg0, %c0_i32, %c0_i32_0, %c0_i32_1 : i32, i32, i32, i32
  }
  func.func @transform_1(%arg0: i32) -> (i32, i32, i32) {
    %c0_i32 = arith.constant 0 : i32
    %c0_i32_0 = arith.constant 0 : i32
    %c0_i32_1 = arith.constant 0 : i32
    %c0_i32_2 = arith.constant 0 : i32
    return %c0_i32, %c0_i32_0, %c0_i32_1 : i32, i32, i32
  }
  func.func @transform_2(%arg0: i32) -> (i32, i32) {
    %c0_i32 = arith.constant 0 : i32
    %c0_i32_0 = arith.constant 0 : i32
    %c0_i32_1 = arith.constant 0 : i32
    return %c0_i32, %c0_i32_0 : i32, i32
  }
  func.func @transform_3(%arg0: i32) -> (i32, i32) {
    %c0_i32 = arith.constant 0 : i32
    %c0_i32_0 = arith.constant 0 : i32
    %c0_i32_1 = arith.constant 0 : i32
    return %c0_i32, %c0_i32_0 : i32, i32
  }
  func.func @transform_4(%arg0: i32) -> (i32, i32, i32) {
    %c0_i32 = arith.constant 0 : i32
    %c0_i32_0 = arith.constant 0 : i32
    %c0_i32_1 = arith.constant 0 : i32
    %c0_i32_2 = arith.constant 0 : i32
    return %c0_i32, %c0_i32_0, %c0_i32_1 : i32, i32, i32
  }
  func.func @transform_5(%arg0: i32) -> (i32, i32) {
    %c0_i32 = arith.constant 0 : i32
    %c0_i32_0 = arith.constant 0 : i32
    %c0_i32_1 = arith.constant 0 : i32
    return %c0_i32, %c0_i32_0 : i32, i32
  }
  func.func @transform_6(%arg0: i32) -> (i32, i32) {
    %c0_i32 = arith.constant 0 : i32
    %c0_i32_0 = arith.constant 0 : i32
    %c0_i32_1 = arith.constant 0 : i32
    return %c0_i32, %c0_i32_0 : i32, i32
  }
  func.func @transform_7(%arg0: i32) -> (i32, i32, i32, i32) {
    %c0_i32 = arith.constant 0 : i32
    %c0_i32_0 = arith.constant 0 : i32
    %c0_i32_1 = arith.constant 0 : i32
    %c0_i32_2 = arith.constant 0 : i32
    return %arg0, %c0_i32, %c0_i32_0, %c0_i32_1 : i32, i32, i32, i32
  }
}

</mosaic_0001>

<llo_original>
// kernel: tpu_custom_call.1
$region0: #{tpu_custom_call.1}
  #allocation0 [shape = 'u32[]', space=smem, size = 0x4, offset = 0x4, fixed_abs, tag = 'smem constant byte address 0x4 - core index']
  #allocation1 [shape = 'u32[144,128]{1,0:T(1,128)}', space=vmem, size = 0x12000, scoped, tag = 'internal scratch']
  #allocation2 [shape = 'f32[1,18,24,128]{3,2,1,0:T(8,128)}', space=vmem, size = 0x36000, scoped, tag = 'scratch operand']
  #allocation3 [shape = 'f32[1,18,24,128]{3,2,1,0:T(8,128)}', space=vmem, size = 0x36000, scoped, tag = 'scratch operand']
  %s0 = inlined_call_operand.hbm [shape: f32[2,16,16,128], index: 0, kind: input, shape index: {}]
  %s1 = inlined_call_operand.hbm [shape: f32[9,128,128], index: 1, kind: input, shape index: {}]
  %s2 = inlined_call_operand.vmem [shape: f32[1,128], index: 2, kind: input, shape index: {}]
  %s3 = inlined_call_operand.vmem [shape: f32[1,128], index: 3, kind: input, shape index: {}]
  %s4 = inlined_call_operand.hbm [shape: f32[9,128,128], index: 4, kind: input, shape index: {}]
  %s5 = inlined_call_operand.vmem [shape: f32[1,128], index: 5, kind: input, shape index: {}]
  %s6 = inlined_call_operand.vmem [shape: f32[1,128], index: 6, kind: input, shape index: {}]
  %s7 = inlined_call_operand.hbm [shape: f32[2,16,16,128], index: 7, kind: output, shape index: {}]
  %s8 = sld [smem:[#allocation0]]
  $region77: #{tpu_custom_call.1} parent=0
    _
  %s10 = ssub.s32 1, %s8
  %s11 = scalar_select 0, %s10, %s8
  $region1: #{tpu_custom_call.1} parent=0
    #allocation4 [shape = 'u8[262144]{0}', space=vmem, size = 0x40000, scoped, tag = 'input window, operand 0']
    #allocation5 [shape = 's32[2]{0}', space=sflag, size = 0x8, scoped, tag = 'scoped memory for tpu_custom_call.1']
    #allocation6 [shape = 's32[2]{0}', space=sflag, size = 0x8, scoped, tag = 'scoped memory for tpu_custom_call.1']
    #allocation7 [shape = 'u8[589824]{0}', space=vmem, size = 0x90000, scoped, tag = 'input window, operand 1, single buffered']
    #allocation8 [shape = 's32[1]{0}', space=sflag, size = 0x4, scoped, tag = 'scoped memory for tpu_custom_call.1']
    #allocation9 [shape = 'u8[589824]{0}', space=vmem, size = 0x90000, scoped, tag = 'input window, operand 4, single buffered']
    #allocation10 [shape = 'u8[262144]{0}', space=vmem, size = 0x40000, scoped, tag = 'output window, operand 0']
    %12 = vsyncpa [#allocation5], 0
    %s13 = scalar_lea.sflag [#allocation5], 1
    %14 = vsyncpa %s13, 0
    %15 = vsyncpa [#allocation8], 0
    %16 = vsyncpa [#allocation6], 0
    %s17 = scalar_lea.sflag [#allocation6], 1
    %18 = vsyncpa %s17, 0
    loop: start=0, step=1, limit=4
    $region2: #{tpu_custom_call.1} parent=1 // loop_pre_header
      _
    $region3: #{tpu_custom_call.1} parent=1 // loop_header
      %s20 = sphi 0, %s24
      %p21 = scmp.ge.s32.totalorder %s20, 4
      %s30 = sphi 0, %s32
      %s33 = sphi 0, %s30
      %s34 = sphi 0, %s33
      %s50 = sphi 0, %s34
      %s54 = sphi 0, %s54
      %s56 = sphi 0, %s54
      %s57 = sphi 0, %s56
      %s71 = sphi 0, %s57
      %s75 = sphi 0, %s75
      %s77 = sphi 0, %s75
      %s78 = sphi 0, %s77
      %s92 = sphi 0, %s78
      %s96 = sphi 0, %s96
      %s98 = sphi 0, %s96
      %s99 = sphi 0, %s98
      %s113 = sphi 0, %s99
      %s117 = sphi 0, %s117
      %s119 = sphi 0, %s117
      %s120 = sphi 0, %s119
      %s134 = sphi 0, %s120
      %s138 = sphi 0, %s138
      %s140 = sphi 0, %s138
      %s141 = sphi 0, %s140
      %s155 = sphi 0, %s141
      %s159 = sphi 0, %s159
      %s161 = sphi 0, %s159
      %s162 = sphi 0, %s161
      %s176 = sphi 0, %s162
      %s182 = sphi 0, %s184
      %s185 = sphi 0, %s182
      %s186 = sphi 0, %s185
      %s202 = sphi 0, %s186
    $region4: #{tpu_custom_call.1} parent=1 // loop_header_branch
      %23 = sbr.rel (%p21) target = $region8
    $region5: #{tpu_custom_call.1} parent=1 // loop_body
      %s25 = ssub.s32 %s20, 1
      %s26 = ssub.s32 %s20, 2
      %s27 = sadd.s32 %s20, 1
      %s28 = ssub.s32 %s20, %s27
      %p29 = scmp.eq.s32.totalorder %s28, 0
      %s31 = sadd.s32 %s30, 1
      %s32 = scalar_select %p29, %s30, %s31
      %p35 = pneg %p29
      %p36 = scmp.eq.s32.totalorder %s20, 1
      %p37 = por %p35, %p36
      %p38 = scmp.ne.s32.totalorder %s30, %s33
      %p39 = scmp.eq.s32.totalorder %s20, 0
      %p40 = por %p38, %p39
      %p41 = scmp.ne.s32.totalorder %s30, %s33
      %p42 = scmp.eq.s32.totalorder %s25, 1
      %p43 = por %p41, %p42
      %p44 = scmp.ne.s32.totalorder %s33, %s34
      %p45 = scmp.eq.s32.totalorder %s25, 0
      %p46 = por %p44, %p45
      %p47 = scmp.ne.s32.totalorder %s33, %s34
      %p48 = scmp.eq.s32.totalorder %s26, 1
      %p49 = por %p47, %p48
      %p51 = scmp.ne.s32.totalorder %s34, %s50
      %p52 = scmp.eq.s32.totalorder %s26, 0
      %p53 = por %p51, %p52
      %s55 = sadd.s32 %s54, 1
      %p58 = scmp.eq.s32.totalorder %s20, 1
      %p59 = scmp.ne.s32.totalorder %s54, %s56
      %p60 = scmp.eq.s32.totalorder %s20, 0
      %p61 = por %p59, %p60
      %p62 = scmp.ne.s32.totalorder %s54, %s56
      %p63 = scmp.eq.s32.totalorder %s25, 1
      %p64 = por %p62, %p63
      %p65 = scmp.ne.s32.totalorder %s56, %s57
      %p66 = scmp.eq.s32.totalorder %s25, 0
      %p67 = por %p65, %p66
      %p68 = scmp.ne.s32.totalorder %s56, %s57
      %p69 = scmp.eq.s32.totalorder %s26, 1
      %p70 = por %p68, %p69
      %p72 = scmp.ne.s32.totalorder %s57, %s71
      %p73 = scmp.eq.s32.totalorder %s26, 0
      %p74 = por %p72, %p73
      %s76 = sadd.s32 %s75, 1
      %p79 = scmp.eq.s32.totalorder %s20, 1
      %p80 = scmp.ne.s32.totalorder %s75, %s77
      %p81 = scmp.eq.s32.totalorder %s20, 0
      %p82 = por %p80, %p81
      %p83 = scmp.ne.s32.totalorder %s75, %s77
      %p84 = scmp.eq.s32.totalorder %s25, 1
      %p85 = por %p83, %p84
      %p86 = scmp.ne.s32.totalorder %s77, %s78
      %p87 = scmp.eq.s32.totalorder %s25, 0
      %p88 = por %p86, %p87
      %p89 = scmp.ne.s32.totalorder %s77, %s78
      %p90 = scmp.eq.s32.totalorder %s26, 1
      %p91 = por %p89, %p90
      %p93 = scmp.ne.s32.totalorder %s78, %s92
      %p94 = scmp.eq.s32.totalorder %s26, 0
      %p95 = por %p93, %p94
      %s97 = sadd.s32 %s96, 1
      %p100 = scmp.eq.s32.totalorder %s20, 1
      %p101 = scmp.ne.s32.totalorder %s96, %s98
      %p102 = scmp.eq.s32.totalorder %s20, 0
      %p103 = por %p101, %p102
      %p104 = scmp.ne.s32.totalorder %s96, %s98
      %p105 = scmp.eq.s32.totalorder %s25, 1
      %p106 = por %p104, %p105
      %p107 = scmp.ne.s32.totalorder %s98, %s99
      %p108 = scmp.eq.s32.totalorder %s25, 0
      %p109 = por %p107, %p108
      %p110 = scmp.ne.s32.totalorder %s98, %s99
      %p111 = scmp.eq.s32.totalorder %s26, 1
      %p112 = por %p110, %p111
      %p114 = scmp.ne.s32.totalorder %s99, %s113
      %p115 = scmp.eq.s32.totalorder %s26, 0
      %p116 = por %p114, %p115
      %s118 = sadd.s32 %s117, 1
      %p121 = scmp.eq.s32.totalorder %s20, 1
      %p122 = scmp.ne.s32.totalorder %s117, %s119
      %p123 = scmp.eq.s32.totalorder %s20, 0
      %p124 = por %p122, %p123
      %p125 = scmp.ne.s32.totalorder %s117, %s119
      %p126 = scmp.eq.s32.totalorder %s25, 1
      %p127 = por %p125, %p126
      %p128 = scmp.ne.s32.totalorder %s119, %s120
      %p129 = scmp.eq.s32.totalorder %s25, 0
      %p130 = por %p128, %p129
      %p131 = scmp.ne.s32.totalorder %s119, %s120
      %p132 = scmp.eq.s32.totalorder %s26, 1
      %p133 = por %p131, %p132
      %p135 = scmp.ne.s32.totalorder %s120, %s134
      %p136 = scmp.eq.s32.totalorder %s26, 0
      %p137 = por %p135, %p136
      %s139 = sadd.s32 %s138, 1
      %p142 = scmp.eq.s32.totalorder %s20, 1
      %p143 = scmp.ne.s32.totalorder %s138, %s140
      %p144 = scmp.eq.s32.totalorder %s20, 0
      %p145 = por %p143, %p144
      %p146 = scmp.ne.s32.totalorder %s138, %s140
      %p147 = scmp.eq.s32.totalorder %s25, 1
      %p148 = por %p146, %p147
      %p149 = scmp.ne.s32.totalorder %s140, %s141
      %p150 = scmp.eq.s32.totalorder %s25, 0
      %p151 = por %p149, %p150
      %p152 = scmp.ne.s32.totalorder %s140, %s141
      %p153 = scmp.eq.s32.totalorder %s26, 1
      %p154 = por %p152, %p153
      %p156 = scmp.ne.s32.totalorder %s141, %s155
      %p157 = scmp.eq.s32.totalorder %s26, 0
      %p158 = por %p156, %p157
      %s160 = sadd.s32 %s159, 1
      %p163 = scmp.eq.s32.totalorder %s20, 1
      %p164 = scmp.ne.s32.totalorder %s159, %s161
      %p165 = scmp.eq.s32.totalorder %s20, 0
      %p166 = por %p164, %p165
      %p167 = scmp.ne.s32.totalorder %s159, %s161
      %p168 = scmp.eq.s32.totalorder %s25, 1
      %p169 = por %p167, %p168
      %p170 = scmp.ne.s32.totalorder %s161, %s162
      %p171 = scmp.eq.s32.totalorder %s25, 0
      %p172 = por %p170, %p171
      %p173 = scmp.ne.s32.totalorder %s161, %s162
      %p174 = scmp.eq.s32.totalorder %s26, 1
      %p175 = por %p173, %p174
      %p177 = scmp.ne.s32.totalorder %s162, %s176
      %p178 = scmp.eq.s32.totalorder %s26, 0
      %p179 = por %p177, %p178
      %s180 = ssub.s32 %s20, %s27
      %p181 = scmp.eq.s32.totalorder %s180, 0
      %s183 = sadd.s32 %s182, 1
      %s184 = scalar_select %p181, %s182, %s183
      %p187 = pneg %p181
      %p188 = scmp.eq.s32.totalorder %s20, 1
      %p189 = por %p187, %p188
      %p190 = scmp.ne.s32.totalorder %s182, %s185
      %p191 = scmp.eq.s32.totalorder %s20, 0
      %p192 = por %p190, %p191
      %p193 = scmp.ne.s32.totalorder %s182, %s185
      %p194 = scmp.eq.s32.totalorder %s25, 1
      %p195 = por %p193, %p194
      %p196 = scmp.ne.s32.totalorder %s185, %s186
      %p197 = scmp.eq.s32.totalorder %s25, 0
      %p198 = por %p196, %p197
      %p199 = scmp.ne.s32.totalorder %s185, %s186
      %p200 = scmp.eq.s32.totalorder %s26, 1
      %p201 = por %p199, %p200
      %p203 = scmp.ne.s32.totalorder %s186, %s202
      %p204 = scmp.eq.s32.totalorder %s26, 0
      %p205 = por %p203, %p204
      %p206 = scmp.le.s32.totalorder 1, %s20
      %p207 = scmp.lt.s32.totalorder %s20, 3
      %p208 = pnand %p206, %p207
      %p209 = pneg %p208
      // Predicated region
      $region9: #{tpu_custom_call.1} parent=5 // pred_check
        _
      $region10: #{tpu_custom_call.1} parent=5 // pred_check_branch
        %211 = sbr.rel (%p208) target = $region12
      $region11: #{tpu_custom_call.1} parent=5 // pred_region
        %s212 = ssub.s32 %s20, 1
        // Predicated region
        $region13: #{tpu_custom_call.1} parent=11 // pred_check
          %p213 = pneg %p67
        $region14: #{tpu_custom_call.1} parent=11 // pred_check_branch
          %215 = sbr.rel (%p213) target = $region16
        $region15: #{tpu_custom_call.1} parent=11 // pred_region
          %s217 = ssub.s32 18432, 18432
          %218 = vsyncadd [#allocation8], %s217
          %s219 = sshll.u32 [#allocation7], 4
          %s220 = int_to_ptr.vmem [resolvable:$true] %s219
          %225 = dma.hbm_to_vmem [thread:$0]  %s1, 18432, %s220, [#allocation8], 128, 128, 8
        $region16: #{tpu_custom_call.1} parent=11 // pred_fallthru
          _
        // Predicated region
        $region17: #{tpu_custom_call.1} parent=11 // pred_check
          %p226 = pneg %p88
        $region18: #{tpu_custom_call.1} parent=11 // pred_check_branch
          %228 = sbr.rel (%p226) target = $region20
        $region19: #{tpu_custom_call.1} parent=11 // pred_region
          _
        $region20: #{tpu_custom_call.1} parent=11 // pred_fallthru
          _
        // Predicated region
        $region21: #{tpu_custom_call.1} parent=11 // pred_check
          %p229 = pneg %p109
        $region22: #{tpu_custom_call.1} parent=11 // pred_check_branch
          %231 = sbr.rel (%p229) target = $region24
        $region23: #{tpu_custom_call.1} parent=11 // pred_region
          _
        $region24: #{tpu_custom_call.1} parent=11 // pred_fallthru
          _
        // Predicated region
        $region25: #{tpu_custom_call.1} parent=11 // pred_check
          %p232 = pneg %p130
        $region26: #{tpu_custom_call.1} parent=11 // pred_check_branch
          %234 = sbr.rel (%p232) target = $region28
        $region27: #{tpu_custom_call.1} parent=11 // pred_region
          %s236 = ssub.s32 18432, 18432
          %237 = vsyncadd [#allocation8], %s236
          %s238 = sshll.u32 [#allocation9], 4
          %s239 = int_to_ptr.vmem [resolvable:$true] %s238
          %244 = dma.hbm_to_vmem [thread:$0]  %s4, 18432, %s239, [#allocation8], 128, 128, 8
        $region28: #{tpu_custom_call.1} parent=11 // pred_fallthru
          _
        // Predicated region
        $region29: #{tpu_custom_call.1} parent=11 // pred_check
          %p245 = pneg %p151
        $region30: #{tpu_custom_call.1} parent=11 // pred_check_branch
          %247 = sbr.rel (%p245) target = $region32
        $region31: #{tpu_custom_call.1} parent=11 // pred_region
          _
        $region32: #{tpu_custom_call.1} parent=11 // pred_fallthru
          _
        // Predicated region
        $region33: #{tpu_custom_call.1} parent=11 // pred_check
          %p248 = pneg %p172
        $region34: #{tpu_custom_call.1} parent=11 // pred_check_branch
          %250 = sbr.rel (%p248) target = $region36
        $region35: #{tpu_custom_call.1} parent=11 // pred_region
          _
        $region36: #{tpu_custom_call.1} parent=11 // pred_fallthru
          _
      $region12: #{tpu_custom_call.1} parent=5 // pred_fallthru
        _
      %p251 = scmp.lt.s32.totalorder %s20, 2
      // Predicated region
      $region37: #{tpu_custom_call.1} parent=5 // pred_check
        %p252 = pneg %p251
      $region38: #{tpu_custom_call.1} parent=5 // pred_check_branch
        %254 = sbr.rel (%p252) target = $region40
      $region39: #{tpu_custom_call.1} parent=5 // pred_region
        // Predicated region
        $region41: #{tpu_custom_call.1} parent=39 // pred_check
          %p255 = pneg %p40
        $region42: #{tpu_custom_call.1} parent=39 // pred_check_branch
          %257 = sbr.rel (%p255) target = $region44
        $region43: #{tpu_custom_call.1} parent=39 // pred_region
          %s258 = sand.u32 %s30, 1
          %s259 = scalar_lea.sflag [#allocation5], %s258
          %s260 = sand.u32 %s30, 1
          %s261 = smul.addr %s260, 256
          %s262 = scalar_lea.vmem [#allocation4], %s261
          %s264 = ssub.s32 4096, 4096
          %265 = vsyncadd %s259, %s264
          %s266 = smul.addr %s20, 32
          %s267 = smul.addr %s266, 128
          %s268 = scalar_lea.hbm %s0, %s267
          %s269 = sshll.u32 %s262, 4
          %s270 = int_to_ptr.vmem [resolvable:$true] %s269
          %275 = dma.hbm_to_vmem [thread:$0]  %s268, 4096, %s270, %s259, 128, 128, 8
        $region44: #{tpu_custom_call.1} parent=39 // pred_fallthru
          _
      $region40: #{tpu_custom_call.1} parent=5 // pred_fallthru
        _
      %p276 = scmp.le.s32.totalorder 1, %s20
      %p277 = scmp.lt.s32.totalorder %s20, 3
      %p278 = pnand %p276, %p277
      %p279 = pneg %p278
      // Predicated region
      $region45: #{tpu_custom_call.1} parent=5 // pred_check
        _
      $region46: #{tpu_custom_call.1} parent=5 // pred_check_branch
        %281 = sbr.rel (%p278) target = $region48
      $region47: #{tpu_custom_call.1} parent=5 // pred_region
        %s282 = ssub.s32 %s20, 1
        %s283 = sand.u32 %s33, 1
        %s284 = scalar_lea.sflag [#allocation5], %s283
        %s285 = sand.u32 %s33, 1
        %s286 = smul.addr %s285, 256
        %s287 = scalar_lea.vmem [#allocation4], %s286
        // Predicated region
        $region49: #{tpu_custom_call.1} parent=47 // pred_check
          %p288 = pneg %p46
        $region50: #{tpu_custom_call.1} parent=47 // pred_check_branch
          %290 = sbr.rel (%p288) target = $region52
        $region51: #{tpu_custom_call.1} parent=47 // pred_region
          %291 = dma.done %s284, 4096
        $region52: #{tpu_custom_call.1} parent=47 // pred_fallthru
          _
        // Predicated region
        $region53: #{tpu_custom_call.1} parent=47 // pred_check
          %p292 = pneg %p67
        $region54: #{tpu_custom_call.1} parent=47 // pred_check_branch
          %294 = sbr.rel (%p292) target = $region56
        $region55: #{tpu_custom_call.1} parent=47 // pred_region
          %295 = dma.done [#allocation8], 18432
        $region56: #{tpu_custom_call.1} parent=47 // pred_fallthru
          _
        // Predicated region
        $region57: #{tpu_custom_call.1} parent=47 // pred_check
          %p296 = pneg %p130
        $region58: #{tpu_custom_call.1} parent=47 // pred_check_branch
          %298 = sbr.rel (%p296) target = $region60
        $region59: #{tpu_custom_call.1} parent=47 // pred_region
          %299 = dma.done [#allocation8], 18432
        $region60: #{tpu_custom_call.1} parent=47 // pred_fallthru
          _
        %s300 = sand.u32 %s33, 1
        %s301 = scalar_lea.sflag [#allocation5], %s300
        %s302 = sand.u32 %s33, 1
        %s303 = smul.addr %s302, 256
        %s304 = scalar_lea.vmem [#allocation4], %s303
        %p305 = pneg %p46
        %p306 = pneg %p43
        %p307 = pneg %p67
        %p308 = pneg %p64
        %p309 = pneg %p88
        %p310 = pneg %p85
        %p311 = pneg %p109
        %p312 = pneg %p106
        %p313 = pneg %p130
        %p314 = pneg %p127
        %p315 = pneg %p151
        %p316 = pneg %p148
        %p317 = pneg %p172
        %p318 = pneg %p169
        %p319 = pneg %p198
        %p320 = pneg %p195
        %s321 = sand.u32 %s185, 1
        %s322 = scalar_lea.sflag [#allocation6], %s321
        %s323 = sand.u32 %s185, 1
        %s324 = smul.addr %s323, 256
        %s325 = scalar_lea.vmem [#allocation10], %s324
        %p326 = scmp.eq.s32.totalorder %s25, 0
        // Predicated region
        $region61: #{tpu_custom_call.1} parent=47 // pred_check
          %p327 = pneg %p326
        $region62: #{tpu_custom_call.1} parent=47 // pred_check_branch
          %329 = sbr.rel (%p327) target = $region64
        $region63: #{tpu_custom_call.1} parent=47 // pred_region
          %330 = vst [vmem:[#allocation2] sm:$0xff] 0.0
          %331 = vst [vmem:[#allocation2 + $0x8] sm:$0xff] 0.0
          %332 = vst [vmem:[#allocation2 + $0x10] sm:$0xff] 0.0
          %333 = vst [vmem:[#allocation2 + $0x18] sm:$0xff] 0.0
          %334 = vst [vmem:[#allocation2 + $0x20] sm:$0xff] 0.0
          %335 = vst [vmem:[#allocation2 + $0x28] sm:$0xff] 0.0
          %336 = vst [vmem:[#allocation2 + $0x30] sm:$0xff] 0.0
          %337 = vst [vmem:[#allocation2 + $0x38] sm:$0xff] 0.0
          %338 = vst [vmem:[#allocation2 + $0x40] sm:$0xff] 0.0
          %339 = vst [vmem:[#allocation2 + $0x48] sm:$0xff] 0.0
          %340 = vst [vmem:[#allocation2 + $0x50] sm:$0xff] 0.0
          %341 = vst [vmem:[#allocation2 + $0x58] sm:$0xff] 0.0
          %342 = vst [vmem:[#allocation2 + $0x60] sm:$0xff] 0.0
          %343 = vst [vmem:[#allocation2 + $0x68] sm:$0xff] 0.0
          %344 = vst [vmem:[#allocation2 + $0x70] sm:$0xff] 0.0
          %345 = vst [vmem:[#allocation2 + $0x78] sm:$0xff] 0.0
          %346 = vst [vmem:[#allocation2 + $0x80] sm:$0xff] 0.0
          %347 = vst [vmem:[#allocation2 + $0x88] sm:$0xff] 0.0
          %348 = vst [vmem:[#allocation2 + $0x90] sm:$0xff] 0.0
          %349 = vst [vmem:[#allocation2 + $0x98] sm:$0xff] 0.0
          %350 = vst [vmem:[#allocation2 + $0xa0] sm:$0xff] 0.0
          %351 = vst [vmem:[#allocation2 + $0xa8] sm:$0xff] 0.0
          %352 = vst [vmem:[#allocation2 + $0xb0] sm:$0xff] 0.0
          %353 = vst [vmem:[#allocation2 + $0xb8] sm:$0xff] 0.0
          %354 = vst [vmem:[#allocation2 + $0xc0] sm:$0xff] 0.0
          %355 = vst [vmem:[#allocation2 + $0xc8] sm:$0xff] 0.0
          %356 = vst [vmem:[#allocation2 + $0xd0] sm:$0xff] 0.0
          %357 = vst [vmem:[#allocation2 + $0xd8] sm:$0xff] 0.0
          %358 = vst [vmem:[#allocation2 + $0xe0] sm:$0xff] 0.0
          %359 = vst [vmem:[#allocation2 + $0xe8] sm:$0xff] 0.0
          %360 = vst [vmem:[#allocation2 + $0xf0] sm:$0xff] 0.0
          %361 = vst [vmem:[#allocation2 + $0xf8] sm:$0xff] 0.0
          %362 = vst [vmem:[#allocation2 + $0x100] sm:$0xff] 0.0
          %363 = vst [vmem:[#allocation2 + $0x108] sm:$0xff] 0.0
          %364 = vst [vmem:[#allocation2 + $0x110] sm:$0xff] 0.0
          %365 = vst [vmem:[#allocation2 + $0x118] sm:$0xff] 0.0
          %366 = vst [vmem:[#allocation2 + $0x120] sm:$0xff] 0.0
          %367 = vst [vmem:[#allocation2 + $0x128] sm:$0xff] 0.0
          %368 = vst [vmem:[#allocation2 + $0x130] sm:$0xff] 0.0
          %369 = vst [vmem:[#allocation2 + $0x138] sm:$0xff] 0.0
          %370 = vst [vmem:[#allocation2 + $0x140] sm:$0xff] 0.0
          %371 = vst [vmem:[#allocation2 + $0x148] sm:$0xff] 0.0
          %372 = vst [vmem:[#allocation2 + $0x150] sm:$0xff] 0.0
          %373 = vst [vmem:[#allocation2 + $0x158] sm:$0xff] 0.0
          %374 = vst [vmem:[#allocation2 + $0x160] sm:$0xff] 0.0
          %375 = vst [vmem:[#allocation2 + $0x168] sm:$0xff] 0.0
          %376 = vst [vmem:[#allocation2 + $0x170] sm:$0xff] 0.0
          %377 = vst [vmem:[#allocation2 + $0x178] sm:$0xff] 0.0
          %378 = vst [vmem:[#allocation2 + $0x180] sm:$0xff] 0.0
          %379 = vst [vmem:[#allocation2 + $0x188] sm:$0xff] 0.0
          %380 = vst [vmem:[#allocation2 + $0x190] sm:$0xff] 0.0
          %381 = vst [vmem:[#allocation2 + $0x198] sm:$0xff] 0.0
          %382 = vst [vmem:[#allocation2 + $0x1a0] sm:$0xff] 0.0
          %383 = vst [vmem:[#allocation2 + $0x1a8] sm:$0xff] 0.0
          %384 = vst [vmem:[#allocation3] sm:$0xff] 0.0
          %385 = vst [vmem:[#allocation3 + $0x8] sm:$0xff] 0.0
          %386 = vst [vmem:[#allocation3 + $0x10] sm:$0xff] 0.0
          %387 = vst [vmem:[#allocation3 + $0x18] sm:$0xff] 0.0
          %388 = vst [vmem:[#allocation3 + $0x20] sm:$0xff] 0.0
          %389 = vst [vmem:[#allocation3 + $0x28] sm:$0xff] 0.0
          %390 = vst [vmem:[#allocation3 + $0x30] sm:$0xff] 0.0
          %391 = vst [vmem:[#allocation3 + $0x38] sm:$0xff] 0.0
          %392 = vst [vmem:[#allocation3 + $0x40] sm:$0xff] 0.0
          %393 = vst [vmem:[#allocation3 + $0x48] sm:$0xff] 0.0
          %394 = vst [vmem:[#allocation3 + $0x50] sm:$0xff] 0.0
          %395 = vst [vmem:[#allocation3 + $0x58] sm:$0xff] 0.0
          %396 = vst [vmem:[#allocation3 + $0x60] sm:$0xff] 0.0
          %397 = vst [vmem:[#allocation3 + $0x68] sm:$0xff] 0.0
          %398 = vst [vmem:[#allocation3 + $0x70] sm:$0xff] 0.0
          %399 = vst [vmem:[#allocation3 + $0x78] sm:$0xff] 0.0
          %400 = vst [vmem:[#allocation3 + $0x80] sm:$0xff] 0.0
          %401 = vst [vmem:[#allocation3 + $0x88] sm:$0xff] 0.0
          %402 = vst [vmem:[#allocation3 + $0x90] sm:$0xff] 0.0
          %403 = vst [vmem:[#allocation3 + $0x98] sm:$0xff] 0.0
          %404 = vst [vmem:[#allocation3 + $0xa0] sm:$0xff] 0.0
          %405 = vst [vmem:[#allocation3 + $0xa8] sm:$0xff] 0.0
          %406 = vst [vmem:[#allocation3 + $0xb0] sm:$0xff] 0.0
          %407 = vst [vmem:[#allocation3 + $0xb8] sm:$0xff] 0.0
          %408 = vst [vmem:[#allocation3 + $0xc0] sm:$0xff] 0.0
          %409 = vst [vmem:[#allocation3 + $0xc8] sm:$0xff] 0.0
          %410 = vst [vmem:[#allocation3 + $0xd0] sm:$0xff] 0.0
          %411 = vst [vmem:[#allocation3 + $0xd8] sm:$0xff] 0.0
          %412 = vst [vmem:[#allocation3 + $0xe0] sm:$0xff] 0.0
          %413 = vst [vmem:[#allocation3 + $0xe8] sm:$0xff] 0.0
          %414 = vst [vmem:[#allocation3 + $0xf0] sm:$0xff] 0.0
          %415 = vst [vmem:[#allocation3 + $0xf8] sm:$0xff] 0.0
          %416 = vst [vmem:[#allocation3 + $0x100] sm:$0xff] 0.0
          %417 = vst [vmem:[#allocation3 + $0x108] sm:$0xff] 0.0
          %418 = vst [vmem:[#allocation3 + $0x110] sm:$0xff] 0.0
          %419 = vst [vmem:[#allocation3 + $0x118] sm:$0xff] 0.0
          %420 = vst [vmem:[#allocation3 + $0x120] sm:$0xff] 0.0
          %421 = vst [vmem:[#allocation3 + $0x128] sm:$0xff] 0.0
          %422 = vst [vmem:[#allocation3 + $0x130] sm:$0xff] 0.0
          %423 = vst [vmem:[#allocation3 + $0x138] sm:$0xff] 0.0
          %424 = vst [vmem:[#allocation3 + $0x140] sm:$0xff] 0.0
          %425 = vst [vmem:[#allocation3 + $0x148] sm:$0xff] 0.0
          %426 = vst [vmem:[#allocation3 + $0x150] sm:$0xff] 0.0
          %427 = vst [vmem:[#allocation3 + $0x158] sm:$0xff] 0.0
          %428 = vst [vmem:[#allocation3 + $0x160] sm:$0xff] 0.0
          %429 = vst [vmem:[#allocation3 + $0x168] sm:$0xff] 0.0
          %430 = vst [vmem:[#allocation3 + $0x170] sm:$0xff] 0.0
          %431 = vst [vmem:[#allocation3 + $0x178] sm:$0xff] 0.0
          %432 = vst [vmem:[#allocation3 + $0x180] sm:$0xff] 0.0
          %433 = vst [vmem:[#allocation3 + $0x188] sm:$0xff] 0.0
          %434 = vst [vmem:[#allocation3 + $0x190] sm:$0xff] 0.0
          %435 = vst [vmem:[#allocation3 + $0x198] sm:$0xff] 0.0
          %436 = vst [vmem:[#allocation3 + $0x1a0] sm:$0xff] 0.0
          %437 = vst [vmem:[#allocation3 + $0x1a8] sm:$0xff] 0.0
        $region64: #{tpu_custom_call.1} parent=47 // pred_fallthru
          _
        %v438 = vld [vmem:[%s287] sm:$0xff]
        %v439 = vld [vmem:[%s287 + $0x8] sm:$0xff]
        %v440 = vld [vmem:[%s287 + $0x10] sm:$0xff]
        %v441 = vld [vmem:[%s287 + $0x18] sm:$0xff]
        %v442 = vld [vmem:[%s287 + $0x20] sm:$0xff]
        %v443 = vld [vmem:[%s287 + $0x28] sm:$0xff]
        %v444 = vld [vmem:[%s287 + $0x30] sm:$0xff]
        %v445 = vld [vmem:[%s287 + $0x38] sm:$0xff]
        %v446 = vld [vmem:[%s287 + $0x40] sm:$0xff]
        %v447 = vld [vmem:[%s287 + $0x48] sm:$0xff]
        %v448 = vld [vmem:[%s287 + $0x50] sm:$0xff]
        %v449 = vld [vmem:[%s287 + $0x58] sm:$0xff]
        %v450 = vld [vmem:[%s287 + $0x60] sm:$0xff]
        %v451 = vld [vmem:[%s287 + $0x68] sm:$0xff]
        %v452 = vld [vmem:[%s287 + $0x70] sm:$0xff]
        %v453 = vld [vmem:[%s287 + $0x78] sm:$0xff]
        %v454 = vld [vmem:[%s287 + $0x80] sm:$0xff]
        %v455 = vld [vmem:[%s287 + $0x88] sm:$0xff]
        %v456 = vld [vmem:[%s287 + $0x90] sm:$0xff]
        %v457 = vld [vmem:[%s287 + $0x98] sm:$0xff]
        %v458 = vld [vmem:[%s287 + $0xa0] sm:$0xff]
        %v459 = vld [vmem:[%s287 + $0xa8] sm:$0xff]
        %v460 = vld [vmem:[%s287 + $0xb0] sm:$0xff]
        %v461 = vld [vmem:[%s287 + $0xb8] sm:$0xff]
        %v462 = vld [vmem:[%s287 + $0xc0] sm:$0xff]
        %v463 = vld [vmem:[%s287 + $0xc8] sm:$0xff]
        %v464 = vld [vmem:[%s287 + $0xd0] sm:$0xff]
        %v465 = vld [vmem:[%s287 + $0xd8] sm:$0xff]
        %v466 = vld [vmem:[%s287 + $0xe0] sm:$0xff]
        %v467 = vld [vmem:[%s287 + $0xe8] sm:$0xff]
        %v468 = vld [vmem:[%s287 + $0xf0] sm:$0xff]
        %v469 = vld [vmem:[%s287 + $0xf8] sm:$0xff]
        %s470 = scalar_lea.vmem [#allocation2], 24
        %471 = vst [vmem:[%s470 + $0x1] sm:$0xff] %v438
        %472 = vst [vmem:[%s470 + $0x9] sm:$0xff] %v439
        %473 = vst [vmem:[%s470 + $0x19] sm:$0xff] %v440
        %474 = vst [vmem:[%s470 + $0x21] sm:$0xff] %v441
        %475 = vst [vmem:[%s470 + $0x31] sm:$0xff] %v442
        %476 = vst [vmem:[%s470 + $0x39] sm:$0xff] %v443
        %477 = vst [vmem:[%s470 + $0x49] sm:$0xff] %v444
        %478 = vst [vmem:[%s470 + $0x51] sm:$0xff] %v445
        %479 = vst [vmem:[%s470 + $0x61] sm:$0xff] %v446
        %480 = vst [vmem:[%s470 + $0x69] sm:$0xff] %v447
        %481 = vst [vmem:[%s470 + $0x79] sm:$0xff] %v448
        %482 = vst [vmem:[%s470 + $0x81] sm:$0xff] %v449
        %483 = vst [vmem:[%s470 + $0x91] sm:$0xff] %v450
        %484 = vst [vmem:[%s470 + $0x99] sm:$0xff] %v451
        %485 = vst [vmem:[%s470 + $0xa9] sm:$0xff] %v452
        %486 = vst [vmem:[%s470 + $0xb1] sm:$0xff] %v453
        %487 = vst [vmem:[%s470 + $0xc1] sm:$0xff] %v454
        %488 = vst [vmem:[%s470 + $0xc9] sm:$0xff] %v455
        %489 = vst [vmem:[%s470 + $0xd9] sm:$0xff] %v456
        %490 = vst [vmem:[%s470 + $0xe1] sm:$0xff] %v457
        %491 = vst [vmem:[%s470 + $0xf1] sm:$0xff] %v458
        %492 = vst [vmem:[%s470 + $0xf9] sm:$0xff] %v459
        %493 = vst [vmem:[%s470 + $0x109] sm:$0xff] %v460
        %494 = vst [vmem:[%s470 + $0x111] sm:$0xff] %v461
        %495 = vst [vmem:[%s470 + $0x121] sm:$0xff] %v462
        %496 = vst [vmem:[%s470 + $0x129] sm:$0xff] %v463
        %497 = vst [vmem:[%s470 + $0x139] sm:$0xff] %v464
        %498 = vst [vmem:[%s470 + $0x141] sm:$0xff] %v465
        %499 = vst [vmem:[%s470 + $0x151] sm:$0xff] %v466
        %500 = vst [vmem:[%s470 + $0x159] sm:$0xff] %v467
        %501 = vst [vmem:[%s470 + $0x169] sm:$0xff] %v468
        %502 = vst [vmem:[%s470 + $0x171] sm:$0xff] %v469
        %v503 = vld [vmem:[#allocation2] sm:$0xff]
        %v504 = vld [vmem:[#allocation2 + $0x8] sm:$0xff]
        %v505 = vld [vmem:[#allocation2 + $0x18] sm:$0xff]
        %v506 = vld [vmem:[#allocation2 + $0x20] sm:$0xff]
        %v507 = vld [vmem:[#allocation2 + $0x30] sm:$0xff]
        %v508 = vld [vmem:[#allocation2 + $0x38] sm:$0xff]
        %v509 = vld [vmem:[#allocation2 + $0x48] sm:$0xff]
        %v510 = vld [vmem:[#allocation2 + $0x50] sm:$0xff]
        %v511 = vld [vmem:[#allocation2 + $0x60] sm:$0xff]
        %v512 = vld [vmem:[#allocation2 + $0x68] sm:$0xff]
        %v513 = vld [vmem:[#allocation2 + $0x78] sm:$0xff]
        %v514 = vld [vmem:[#allocation2 + $0x80] sm:$0xff]
        %v515 = vld [vmem:[#allocation2 + $0x90] sm:$0xff]
        %v516 = vld [vmem:[#allocation2 + $0x98] sm:$0xff]
        %v517 = vld [vmem:[#allocation2 + $0xa8] sm:$0xff]
        %v518 = vld [vmem:[#allocation2 + $0xb0] sm:$0xff]
        %v519 = vld [vmem:[#allocation2 + $0xc0] sm:$0xff]
        %v520 = vld [vmem:[#allocation2 + $0xc8] sm:$0xff]
        %v521 = vld [vmem:[#allocation2 + $0xd8] sm:$0xff]
        %v522 = vld [vmem:[#allocation2 + $0xe0] sm:$0xff]
        %v523 = vld [vmem:[#allocation2 + $0xf0] sm:$0xff]
        %v524 = vld [vmem:[#allocation2 + $0xf8] sm:$0xff]
        %v525 = vld [vmem:[#allocation2 + $0x108] sm:$0xff]
        %v526 = vld [vmem:[#allocation2 + $0x110] sm:$0xff]
        %v527 = vld [vmem:[#allocation2 + $0x120] sm:$0xff]
        %v528 = vld [vmem:[#allocation2 + $0x128] sm:$0xff]
        %v529 = vld [vmem:[#allocation2 + $0x138] sm:$0xff]
        %v530 = vld [vmem:[#allocation2 + $0x140] sm:$0xff]
        %v531 = vld [vmem:[#allocation2 + $0x150] sm:$0xff]
        %v532 = vld [vmem:[#allocation2 + $0x158] sm:$0xff]
        %v533 = vld [vmem:[#allocation2 + $0x168] sm:$0xff]
        %v534 = vld [vmem:[#allocation2 + $0x170] sm:$0xff]
        %v535 = vld [vmem:[#allocation7] sm:$0xff]
        %v536 = vld [vmem:[#allocation7 + $0x8] sm:$0xff]
        %v537 = vld [vmem:[#allocation7 + $0x10] sm:$0xff]
        %v538 = vld [vmem:[#allocation7 + $0x18] sm:$0xff]
        %v539 = vld [vmem:[#allocation7 + $0x20] sm:$0xff]
        %v540 = vld [vmem:[#allocation7 + $0x28] sm:$0xff]
        %v541 = vld [vmem:[#allocation7 + $0x30] sm:$0xff]
        %v542 = vld [vmem:[#allocation7 + $0x38] sm:$0xff]
        %v543 = vld [vmem:[#allocation7 + $0x40] sm:$0xff]
        %v544 = vld [vmem:[#allocation7 + $0x48] sm:$0xff]
        %v545 = vld [vmem:[#allocation7 + $0x50] sm:$0xff]
        %v546 = vld [vmem:[#allocation7 + $0x58] sm:$0xff]
        %v547 = vld [vmem:[#allocation7 + $0x60] sm:$0xff]
        %v548 = vld [vmem:[#allocation7 + $0x68] sm:$0xff]
        %v549 = vld [vmem:[#allocation7 + $0x70] sm:$0xff]
        %v550 = vld [vmem:[#allocation7 + $0x78] sm:$0xff]
        %v551 = vld [vmem:[#allocation2 + $0x1] sm:$0xff]
        %v552 = vld [vmem:[#allocation2 + $0x9] sm:$0xff]
        %v553 = vld [vmem:[#allocation2 + $0x19] sm:$0xff]
        %v554 = vld [vmem:[#allocation2 + $0x21] sm:$0xff]
        %v555 = vld [vmem:[#allocation2 + $0x31] sm:$0xff]
        %v556 = vld [vmem:[#allocation2 + $0x39] sm:$0xff]
        %v557 = vld [vmem:[#allocation2 + $0x49] sm:$0xff]
        %v558 = vld [vmem:[#allocation2 + $0x51] sm:$0xff]
        %v559 = vld [vmem:[#allocation2 + $0x61] sm:$0xff]
        %v560 = vld [vmem:[#allocation2 + $0x69] sm:$0xff]
        %v561 = vld [vmem:[#allocation2 + $0x79] sm:$0xff]
        %v562 = vld [vmem:[#allocation2 + $0x81] sm:$0xff]
        %v563 = vld [vmem:[#allocation2 + $0x91] sm:$0xff]
        %v564 = vld [vmem:[#allocation2 + $0x99] sm:$0xff]
        %v565 = vld [vmem:[#allocation2 + $0xa9] sm:$0xff]
        %v566 = vld [vmem:[#allocation2 + $0xb1] sm:$0xff]
        %v567 = vld [vmem:[#allocation2 + $0xc1] sm:$0xff]
        %v568 = vld [vmem:[#allocation2 + $0xc9] sm:$0xff]
        %v569 = vld [vmem:[#allocation2 + $0xd9] sm:$0xff]
        %v570 = vld [vmem:[#allocation2 + $0xe1] sm:$0xff]
        %v571 = vld [vmem:[#allocation2 + $0xf1] sm:$0xff]
        %v572 = vld [vmem:[#allocation2 + $0xf9] sm:$0xff]
        %v573 = vld [vmem:[#allocation2 + $0x109] sm:$0xff]
        %v574 = vld [vmem:[#allocation2 + $0x111] sm:$0xff]
        %v575 = vld [vmem:[#allocation2 + $0x121] sm:$0xff]
        %v576 = vld [vmem:[#allocation2 + $0x129] sm:$0xff]
        %v577 = vld [vmem:[#allocation2 + $0x139] sm:$0xff]
        %v578 = vld [vmem:[#allocation2 + $0x141] sm:$0xff]
        %v579 = vld [vmem:[#allocation2 + $0x151] sm:$0xff]
        %v580 = vld [vmem:[#allocation2 + $0x159] sm:$0xff]
        %v581 = vld [vmem:[#allocation2 + $0x169] sm:$0xff]
        %v582 = vld [vmem:[#allocation2 + $0x171] sm:$0xff]
        %s583 = scalar_lea.vmem [#allocation7], 128
        %v584 = vld [vmem:[%s583] sm:$0xff]
        %v585 = vld [vmem:[%s583 + $0x8] sm:$0xff]
        %v586 = vld [vmem:[%s583 + $0x10] sm:$0xff]
        %v587 = vld [vmem:[%s583 + $0x18] sm:$0xff]
        %v588 = vld [vmem:[%s583 + $0x20] sm:$0xff]
        %v589 = vld [vmem:[%s583 + $0x28] sm:$0xff]
        %v590 = vld [vmem:[%s583 + $0x30] sm:$0xff]
        %v591 = vld [vmem:[%s583 + $0x38] sm:$0xff]
        %v592 = vld [vmem:[%s583 + $0x40] sm:$0xff]
        %v593 = vld [vmem:[%s583 + $0x48] sm:$0xff]
        %v594 = vld [vmem:[%s583 + $0x50] sm:$0xff]
        %v595 = vld [vmem:[%s583 + $0x58] sm:$0xff]
        %v596 = vld [vmem:[%s583 + $0x60] sm:$0xff]
        %v597 = vld [vmem:[%s583 + $0x68] sm:$0xff]
        %v598 = vld [vmem:[%s583 + $0x70] sm:$0xff]
        %v599 = vld [vmem:[%s583 + $0x78] sm:$0xff]
        %600 = vmatprep.subr.mxu0 0.0
        %601 = vmatpush1.msra.mxu0 %v584
        %602 = vmatprep.subr.mxu0 0.0
        %603 = vmatpush1.msra.mxu0 %v585
        %604 = vmatprep.subr.mxu0 0.0
        %605 = vmatpush1.msra.mxu0 %v586
        %606 = vmatprep.subr.mxu0 0.0
        %607 = vmatpush1.msra.mxu0 %v587
        %608 = vmatprep.subr.mxu0 0.0
        %609 = vmatpush1.msra.mxu0 %v588
        %610 = vmatprep.subr.mxu0 0.0
        %611 = vmatpush1.msra.mxu0 %v589
        %612 = vmatprep.subr.mxu0 0.0
        %613 = vmatpush1.msra.mxu0 %v590
        %614 = vmatprep.subr.mxu0 0.0
        %615 = vmatpush1.msra.mxu0 %v591
        %616 = vmatprep.subr.mxu0 0.0
        %617 = vmatpush1.msra.mxu0 %v592
        %618 = vmatprep.subr.mxu0 0.0
        %619 = vmatpush1.msra.mxu0 %v593
        %620 = vmatprep.subr.mxu0 0.0
        %621 = vmatpush1.msra.mxu0 %v594
        %622 = vmatprep.subr.mxu0 0.0
        %623 = vmatpush1.msra.mxu0 %v595
        %624 = vmatprep.subr.mxu0 0.0
        %625 = vmatpush1.msra.mxu0 %v596
        %626 = vmatprep.subr.mxu0 0.0
        %627 = vmatpush1.msra.mxu0 %v597
        %628 = vmatprep.subr.mxu0 0.0
        %629 = vmatpush1.msra.mxu0 %v598
        %630 = vmatprep.subr.mxu0 0.0
        %631 = vmatpush1.msra.mxu0 %v599
        %632 = vmatprep.subr.mxu0 0.0
        %633 = vmatpush1.msra.mxu0 0.0
        %634 = vmatprep.subr.mxu0 0.0
        %635 = vmatpush1.msra.mxu0 0.0
        %636 = vmatprep.subr.mxu0 0.0
        %637 = vmatpush1.msra.mxu0 0.0
        %638 = vmatprep.subr.mxu0 0.0
        %639 = vmatpush1.msra.mxu0 0.0
        %640 = vmatprep.subr.mxu0 0.0
        %641 = vmatpush1.msra.mxu0 0.0
        %642 = vmatprep.subr.mxu0 0.0
        %643 = vmatpush1.msra.mxu0 0.0
        %644 = vmatprep.subr.mxu0 0.0
        %645 = vmatpush1.msra.mxu0 0.0
        %646 = vmatprep.subr.mxu0 0.0
        %647 = vmatpush1.msra.mxu0 0.0
        %648 = vmatprep.subr.mxu0 0.0
        %649 = vmatpush1.msra.mxu0 0.0
        %650 = vmatprep.subr.mxu0 0.0
        %651 = vmatpush1.msra.mxu0 0.0
        %652 = vmatprep.subr.mxu0 0.0
        %653 = vmatpush1.msra.mxu0 0.0
        %654 = vmatprep.subr.mxu0 0.0
        %655 = vmatpush1.msra.mxu0 0.0
        %656 = vmatprep.subr.mxu0 0.0
        %657 = vmatpush1.msra.mxu0 0.0
        %658 = vmatprep.subr.mxu0 0.0
        %659 = vmatpush1.msra.mxu0 0.0
        %660 = vmatprep.subr.mxu0 0.0
        %661 = vmatpush1.msra.mxu0 0.0
        %662 = vmatprep.subr.mxu0 0.0
        %663 = vmatpush1.msra.mxu0 0.0
        %664 = vmatprep.mubr.f32.mxu0 0.0
        %665 = vmatmul.mubr.f32.gmra.mrb[0].mxu0 %v551
        %v666 = vpop.f32.mrb[0].mxu0
        %v667 = vadd.f32 0.0, %v666
        %v668 = vpop.f32.mrb[0].mxu0
        %669 = vmatprep.mubr.f32.mxu0 0.0
        %670 = vmatmul.mubr.f32.gmra.mrb[0].mxu0 %v552
        %v671 = vpop.f32.mrb[0].mxu0
        %v672 = vadd.f32 0.0, %v671
        %v673 = vpop.f32.mrb[0].mxu0
        %674 = vmatprep.mubr.f32.mxu0 0.0
        %675 = vmatmul.mubr.f32.gmra.mrb[0].mxu0 %v553
        %v676 = vpop.f32.mrb[0].mxu0
        %v677 = vadd.f32 0.0, %v676
        %v678 = vpop.f32.mrb[0].mxu0
        %679 = vmatprep.mubr.f32.mxu0 0.0
        %680 = vmatmul.mubr.f32.gmra.mrb[0].mxu0 %v554
        %v681 = vpop.f32.mrb[0].mxu0
        %v682 = vadd.f32 0.0, %v681
        %v683 = vpop.f32.mrb[0].mxu0
        %684 = vmatprep.mubr.f32.mxu0 0.0
        %685 = vmatmul.mubr.f32.gmra.mrb[0].mxu0 %v555
        %v686 = vpop.f32.mrb[0].mxu0
        %v687 = vadd.f32 0.0, %v686
        %v688 = vpop.f32.mrb[0].mxu0
        %689 = vmatprep.mubr.f32.mxu0 0.0
        %690 = vmatmul.mubr.f32.gmra.mrb[0].mxu0 %v556
        %v691 = vpop.f32.mrb[0].mxu0
        %v692 = vadd.f32 0.0, %v691
        %v693 = vpop.f32.mrb[0].mxu0
        %694 = vmatprep.mubr.f32.mxu0 0.0
        %695 = vmatmul.mubr.f32.gmra.mrb[0].mxu0 %v557
        %v696 = vpop.f32.mrb[0].mxu0
        %v697 = vadd.f32 0.0, %v696
        %v698 = vpop.f32.mrb[0].mxu0
        %699 = vmatprep.mubr.f32.mxu0 0.0
        %700 = vmatmul.mubr.f32.gmra.mrb[0].mxu0 %v558
        %v701 = vpop.f32.mrb[0].mxu0
        %v702 = vadd.f32 0.0, %v701
        %v703 = vpop.f32.mrb[0].mxu0
        %704 = vmatprep.mubr.f32.mxu0 0.0
        %705 = vmatmul.mubr.f32.gmra.mrb[0].mxu0 %v559
        %v706 = vpop.f32.mrb[0].mxu0
        %v707 = vadd.f32 0.0, %v706
        %v708 = vpop.f32.mrb[0].mxu0
        %709 = vmatprep.mubr.f32.mxu0 0.0
        %710 = vmatmul.mubr.f32.gmra.mrb[0].mxu0 %v560
        %v711 = vpop.f32.mrb[0].mxu0
        %v712 = vadd.f32 0.0, %v711
        %v713 = vpop.f32.mrb[0].mxu0
        %714 = vmatprep.mubr.f32.mxu0 0.0
        %715 = vmatmul.mubr.f32.gmra.mrb[0].mxu0 %v561
        %v716 = vpop.f32.mrb[0].mxu0
        %v717 = vadd.f32 0.0, %v716
        %v718 = vpop.f32.mrb[0].mxu0
        %719 = vmatprep.mubr.f32.mxu0 0.0
        %720 = vmatmul.mubr.f32.gmra.mrb[0].mxu0 %v562
        %v721 = vpop.f32.mrb[0].mxu0
        %v722 = vadd.f32 0.0, %v721
        %v723 = vpop.f32.mrb[0].mxu0
        %724 = vmatprep.mubr.f32.mxu0 0.0
        %725 = vmatmul.mubr.f32.gmra.mrb[0].mxu0 %v563
        %v726 = vpop.f32.mrb[0].mxu0
        %v727 = vadd.f32 0.0, %v726
        %v728 = vpop.f32.mrb[0].mxu0
        %729 = vmatprep.mubr.f32.mxu0 0.0
        %730 = vmatmul.mubr.f32.gmra.mrb[0].mxu0 %v564
        %v731 = vpop.f32.mrb[0].mxu0
        %v732 = vadd.f32 0.0, %v731
        %v733 = vpop.f32.mrb[0].mxu0
        %734 = vmatprep.mubr.f32.mxu0 0.0
        %735 = vmatmul.mubr.f32.gmra.mrb[0].mxu0 %v565
        %v736 = vpop.f32.mrb[0].mxu0
        %v737 = vadd.f32 0.0, %v736
        %v738 = vpop.f32.mrb[0].mxu0
        %739 = vmatprep.mubr.f32.mxu0 0.0
        %740 = vmatmul.mubr.f32.gmra.mrb[0].mxu0 %v566
        %v741 = vpop.f32.mrb[0].mxu0
        %v742 = vadd.f32 0.0, %v741
        %v743 = vpop.f32.mrb[0].mxu0
        %744 = vmatprep.mubr.f32.mxu0 0.0
        %745 = vmatmul.mubr.f32.gmra.mrb[0].mxu0 %v567
        %v746 = vpop.f32.mrb[0].mxu0
        %v747 = vadd.f32 0.0, %v746
        %v748 = vpop.f32.mrb[0].mxu0
        %749 = vmatprep.mubr.f32.mxu0 0.0
        %750 = vmatmul.mubr.f32.gmra.mrb[0].mxu0 %v568
        %v751 = vpop.f32.mrb[0].mxu0
        %v752 = vadd.f32 0.0, %v751
        %v753 = vpop.f32.mrb[0].mxu0
        %754 = vmatprep.mubr.f32.mxu0 0.0
        %755 = vmatmul.mubr.f32.gmra.mrb[0].mxu0 %v569
        %v756 = vpop.f32.mrb[0].mxu0
        %v757 = vadd.f32 0.0, %v756
        %v758 = vpop.f32.mrb[0].mxu0
        %759 = vmatprep.mubr.f32.mxu0 0.0
        %760 = vmatmul.mubr.f32.gmra.mrb[0].mxu0 %v570
        %v761 = vpop.f32.mrb[0].mxu0
        %v762 = vadd.f32 0.0, %v761
        %v763 = vpop.f32.mrb[0].mxu0
        %764 = vmatprep.mubr.f32.mxu0 0.0
        %765 = vmatmul.mubr.f32.gmra.mrb[0].mxu0 %v571
        %v766 = vpop.f32.mrb[0].mxu0
        %v767 = vadd.f32 0.0, %v766
        %v768 = vpop.f32.mrb[0].mxu0
        %769 = vmatprep.mubr.f32.mxu0 0.0
        %770 = vmatmul.mubr.f32.gmra.mrb[0].mxu0 %v572
        %v771 = vpop.f32.mrb[0].mxu0
        %v772 = vadd.f32 0.0, %v771
        %v773 = vpop.f32.mrb[0].mxu0
        %774 = vmatprep.mubr.f32.mxu0 0.0
        %775 = vmatmul.mubr.f32.gmra.mrb[0].mxu0 %v573
        %v776 = vpop.f32.mrb[0].mxu0
        %v777 = vadd.f32 0.0, %v776
        %v778 = vpop.f32.mrb[0].mxu0
        %779 = vmatprep.mubr.f32.mxu0 0.0
        %780 = vmatmul.mubr.f32.gmra.mrb[0].mxu0 %v574
        %v781 = vpop.f32.mrb[0].mxu0
        %v782 = vadd.f32 0.0, %v781
        %v783 = vpop.f32.mrb[0].mxu0
        %784 = vmatprep.mubr.f32.mxu0 0.0
        %785 = vmatmul.mubr.f32.gmra.mrb[0].mxu0 %v575
        %v786 = vpop.f32.mrb[0].mxu0
        %v787 = vadd.f32 0.0, %v786
        %v788 = vpop.f32.mrb[0].mxu0
        %789 = vmatprep.mubr.f32.mxu0 0.0
        %790 = vmatmul.mubr.f32.gmra.mrb[0].mxu0 %v576
        %v791 = vpop.f32.mrb[0].mxu0
        %v792 = vadd.f32 0.0, %v791
        %v793 = vpop.f32.mrb[0].mxu0
        %794 = vmatprep.mubr.f32.mxu0 0.0
        %795 = vmatmul.mubr.f32.gmra.mrb[0].mxu0 %v577
        %v796 = vpop.f32.mrb[0].mxu0
        %v797 = vadd.f32 0.0, %v796
        %v798 = vpop.f32.mrb[0].mxu0
        %799 = vmatprep.mubr.f32.mxu0 0.0
        %800 = vmatmul.mubr.f32.gmra.mrb[0].mxu0 %v578
        %v801 = vpop.f32.mrb[0].mxu0
        %v802 = vadd.f32 0.0, %v801
        %v803 = vpop.f32.mrb[0].mxu0
        %804 = vmatprep.mubr.f32.mxu0 0.0
        %805 = vmatmul.mubr.f32.gmra.mrb[0].mxu0 %v579
        %v806 = vpop.f32.mrb[0].mxu0
        %v807 = vadd.f32 0.0, %v806
        %v808 = vpop.f32.mrb[0].mxu0
        %809 = vmatprep.mubr.f32.mxu0 0.0
        %810 = vmatmul.mubr.f32.gmra.mrb[0].mxu0 %v580
        %v811 = vpop.f32.mrb[0].mxu0
        %v812 = vadd.f32 0.0, %v811
        %v813 = vpop.f32.mrb[0].mxu0
        %814 = vmatprep.mubr.f32.mxu0 0.0
        %815 = vmatmul.mubr.f32.gmra.mrb[0].mxu0 %v581
        %v816 = vpop.f32.mrb[0].mxu0
        %v817 = vadd.f32 0.0, %v816
        %v818 = vpop.f32.mrb[0].mxu0
        %819 = vmatprep.mubr.f32.mxu0 0.0
        %820 = vmatmul.mubr.f32.gmra.mrb[0].mxu0 %v582
        %v821 = vpop.f32.mrb[0].mxu0
        %v822 = vadd.f32 0.0, %v821
        %v823 = vpop.f32.mrb[0].mxu0
        %824 = vdwg.mxu0
        %825 = vmatprep.subr.mxu0 0.0
        %826 = vmatpush1.msra.mxu0 %v535
        %827 = vmatprep.subr.mxu0 0.0
        %828 = vmatpush1.msra.mxu0 %v536
        %829 = vmatprep.subr.mxu0 0.0
        %830 = vmatpush1.msra.mxu0 %v537
        %831 = vmatprep.subr.mxu0 0.0
        %832 = vmatpush1.msra.mxu0 %v538
        %833 = vmatprep.subr.mxu0 0.0
        %834 = vmatpush1.msra.mxu0 %v539
        %835 = vmatprep.subr.mxu0 0.0
        %836 = vmatpush1.msra.mxu0 %v540
        %837 = vmatprep.subr.mxu0 0.0
        %838 = vmatpush1.msra.mxu0 %v541
        %839 = vmatprep.subr.mxu0 0.0
        %840 = vmatpush1.msra.mxu0 %v542
        %841 = vmatprep.subr.mxu0 0.0
        %842 = vmatpush1.msra.mxu0 %v543
        %843 = vmatprep.subr.mxu0 0.0
        %844 = vmatpush1.msra.mxu0 %v544
        %845 = vmatprep.subr.mxu0 0.0
        %846 = vmatpush1.msra.mxu0 %v545
        %847 = vmatprep.subr.mxu0 0.0
        %848 = vmatpush1.msra.mxu0 %v546
        %849 = vmatprep.subr.mxu0 0.0
        %850 = vmatpush1.msra.mxu0 %v547
        %851 = vmatprep.subr.mxu0 0.0
        %852 = vmatpush1.msra.mxu0 %v548
        %853 = vmatprep.subr.mxu0 0.0
        %854 = vmatpush1.msra.mxu0 %v549
        %855 = vmatprep.subr.mxu0 0.0
        %856 = vmatpush1.msra.mxu0 %v550
        %857 = vmatprep.subr.mxu0 0.0
        %858 = vmatpush1.msra.mxu0 0.0
        %859 = vmatprep.subr.mxu0 0.0
        %860 = vmatpush1.msra.mxu0 0.0
        %861 = vmatprep.subr.mxu0 0.0
        %862 = vmatpush1.msra.mxu0 0.0
        %863 = vmatprep.subr.mxu0 0.0
        %864 = vmatpush1.msra.mxu0 0.0
        %865 = vmatprep.subr.mxu0 0.0
        %866 = vmatpush1.msra.mxu0 0.0
        %867 = vmatprep.subr.mxu0 0.0
        %868 = vmatpush1.msra.mxu0 0.0
        %869 = vmatprep.subr.mxu0 0.0
        %870 = vmatpush1.msra.mxu0 0.0
        %871 = vmatprep.subr.mxu0 0.0
        %872 = vmatpush1.msra.mxu0 0.0
        %873 = vmatprep.subr.mxu0 0.0
        %874 = vmatpush1.msra.mxu0 0.0
        %875 = vmatprep.subr.mxu0 0.0
        %876 = vmatpush1.msra.mxu0 0.0
        %877 = vmatprep.subr.mxu0 0.0
        %878 = vmatpush1.msra.mxu0 0.0
        %879 = vmatprep.subr.mxu0 0.0
        %880 = vmatpush1.msra.mxu0 0.0
        %881 = vmatprep.subr.mxu0 0.0
        %882 = vmatpush1.msra.mxu0 0.0
        %883 = vmatprep.subr.mxu0 0.0
        %884 = vmatpush1.msra.mxu0 0.0
        %885 = vmatprep.subr.mxu0 0.0
        %886 = vmatpush1.msra.mxu0 0.0
        %887 = vmatprep.subr.mxu0 0.0
        %888 = vmatpush1.msra.mxu0 0.0
        %889 = vmatprep.mubr.f32.mxu0 0.0
        %890 = vmatmul.mubr.f32.gmra.mrb[0].mxu0 %v503
        %v891 = vpop.f32.mrb[0].mxu0
        %v892 = vadd.f32 %v667, %v891
        %v893 = vpop.f32.mrb[0].mxu0
        %894 = vmatprep.mubr.f32.mxu0 0.0
        %895 = vmatmul.mubr.f32.gmra.mrb[0].mxu0 %v504
        %v896 = vpop.f32.mrb[0].mxu0
        %v897 = vadd.f32 %v672, %v896
        %v898 = vpop.f32.mrb[0].mxu0
        %899 = vmatprep.mubr.f32.mxu0 0.0
        %900 = vmatmul.mubr.f32.gmra.mrb[0].mxu0 %v505
        %v901 = vpop.f32.mrb[0].mxu0
        %v902 = vadd.f32 %v677, %v901
        %v903 = vpop.f32.mrb[0].mxu0
        %904 = vmatprep.mubr.f32.mxu0 0.0
        %905 = vmatmul.mubr.f32.gmra.mrb[0].mxu0 %v506
        %v906 = vpop.f32.mrb[0].mxu0
        %v907 = vadd.f32 %v682, %v906
        %v908 = vpop.f32.mrb[0].mxu0
        %909 = vmatprep.mubr.f32.mxu0 0.0
        %910 = vmatmul.mubr.f32.gmra.mrb[0].mxu0 %v507
        %v911 = vpop.f32.mrb[0].mxu0
        %v912 = vadd.f32 %v687, %v911
        %v913 = vpop.f32.mrb[0].mxu0
        %914 = vmatprep.mubr.f32.mxu0 0.0
        %915 = vmatmul.mubr.f32.gmra.mrb[0].mxu0 %v508
        %v916 = vpop.f32.mrb[0].mxu0
        %v917 = vadd.f32 %v692, %v916
        %v918 = vpop.f32.mrb[0].mxu0
        %919 = vmatprep.mubr.f32.mxu0 0.0
        %920 = vmatmul.mubr.f32.gmra.mrb[0].mxu0 %v509
        %v921 = vpop.f32.mrb[0].mxu0
        %v922 = vadd.f32 %v697, %v921
        %v923 = vpop.f32.mrb[0].mxu0
        %924 = vmatprep.mubr.f32.mxu0 0.0
        %925 = vmatmul.mubr.f32.gmra.mrb[0].mxu0 %v510
        %v926 = vpop.f32.mrb[0].mxu0
        %v927 = vadd.f32 %v702, %v926
        %v928 = vpop.f32.mrb[0].mxu0
        %929 = vmatprep.mubr.f32.mxu0 0.0
        %930 = vmatmul.mubr.f32.gmra.mrb[0].mxu0 %v511
        %v931 = vpop.f32.mrb[0].mxu0
        %v932 = vadd.f32 %v707, %v931
        %v933 = vpop.f32.mrb[0].mxu0
        %934 = vmatprep.mubr.f32.mxu0 0.0
        %935 = vmatmul.mubr.f32.gmra.mrb[0].mxu0 %v512
        %v936 = vpop.f32.mrb[0].mxu0
        %v937 = vadd.f32 %v712, %v936
        %v938 = vpop.f32.mrb[0].mxu0
        %939 = vmatprep.mubr.f32.mxu0 0.0
        %940 = vmatmul.mubr.f32.gmra.mrb[0].mxu0 %v513
        %v941 = vpop.f32.mrb[0].mxu0
        %v942 = vadd.f32 %v717, %v941
        %v943 = vpop.f32.mrb[0].mxu0
        %944 = vmatprep.mubr.f32.mxu0 0.0
        %945 = vmatmul.mubr.f32.gmra.mrb[0].mxu0 %v514
        %v946 = vpop.f32.mrb[0].mxu0
        %v947 = vadd.f32 %v722, %v946
        %v948 = vpop.f32.mrb[0].mxu0
        %949 = vmatprep.mubr.f32.mxu0 0.0
        %950 = vmatmul.mubr.f32.gmra.mrb[0].mxu0 %v515
        %v951 = vpop.f32.mrb[0].mxu0
        %v952 = vadd.f32 %v727, %v951
        %v953 = vpop.f32.mrb[0].mxu0
        %954 = vmatprep.mubr.f32.mxu0 0.0
        %955 = vmatmul.mubr.f32.gmra.mrb[0].mxu0 %v516
        %v956 = vpop.f32.mrb[0].mxu0
        %v957 = vadd.f32 %v732, %v956
        %v958 = vpop.f32.mrb[0].mxu0
        %959 = vmatprep.mubr.f32.mxu0 0.0
        %960 = vmatmul.mubr.f32.gmra.mrb[0].mxu0 %v517
        %v961 = vpop.f32.mrb[0].mxu0
        %v962 = vadd.f32 %v737, %v961
        %v963 = vpop.f32.mrb[0].mxu0
        %964 = vmatprep.mubr.f32.mxu0 0.0
        %965 = vmatmul.mubr.f32.gmra.mrb[0].mxu0 %v518
        %v966 = vpop.f32.mrb[0].mxu0
        %v967 = vadd.f32 %v742, %v966
        %v968 = vpop.f32.mrb[0].mxu0
        %969 = vmatprep.mubr.f32.mxu0 0.0
        %970 = vmatmul.mubr.f32.gmra.mrb[0].mxu0 %v519
        %v971 = vpop.f32.mrb[0].mxu0
        %v972 = vadd.f32 %v747, %v971
        %v973 = vpop.f32.mrb[0].mxu0
        %974 = vmatprep.mubr.f32.mxu0 0.0
        %975 = vmatmul.mubr.f32.gmra.mrb[0].mxu0 %v520
        %v976 = vpop.f32.mrb[0].mxu0
        %v977 = vadd.f32 %v752, %v976
        %v978 = vpop.f32.mrb[0].mxu0
        %979 = vmatprep.mubr.f32.mxu0 0.0
        %980 = vmatmul.mubr.f32.gmra.mrb[0].mxu0 %v521
        %v981 = vpop.f32.mrb[0].mxu0
        %v982 = vadd.f32 %v757, %v981
        %v983 = vpop.f32.mrb[0].mxu0
        %984 = vmatprep.mubr.f32.mxu0 0.0
        %985 = vmatmul.mubr.f32.gmra.mrb[0].mxu0 %v522
        %v986 = vpop.f32.mrb[0].mxu0
        %v987 = vadd.f32 %v762, %v986
        %v988 = vpop.f32.mrb[0].mxu0
        %989 = vmatprep.mubr.f32.mxu0 0.0
        %990 = vmatmul.mubr.f32.gmra.mrb[0].mxu0 %v523
        %v991 = vpop.f32.mrb[0].mxu0
        %v992 = vadd.f32 %v767, %v991
        %v993 = vpop.f32.mrb[0].mxu0
        %994 = vmatprep.mubr.f32.mxu0 0.0
        %995 = vmatmul.mubr.f32.gmra.mrb[0].mxu0 %v524
        %v996 = vpop.f32.mrb[0].mxu0
        %v997 = vadd.f32 %v772, %v996
        %v998 = vpop.f32.mrb[0].mxu0
        %999 = vmatprep.mubr.f32.mxu0 0.0
        %1000 = vmatmul.mubr.f32.gmra.mrb[0].mxu0 %v525
        %v1001 = vpop.f32.mrb[0].mxu0
        %v1002 = vadd.f32 %v777, %v1001
        %v1003 = vpop.f32.mrb[0].mxu0
        %1004 = vmatprep.mubr.f32.mxu0 0.0
        %1005 = vmatmul.mubr.f32.gmra.mrb[0].mxu0 %v526
        %v1006 = vpop.f32.mrb[0].mxu0
        %v1007 = vadd.f32 %v782, %v1006
        %v1008 = vpop.f32.mrb[0].mxu0
        %1009 = vmatprep.mubr.f32.mxu0 0.0
        %1010 = vmatmul.mubr.f32.gmra.mrb[0].mxu0 %v527
        %v1011 = vpop.f32.mrb[0].mxu0
        %v1012 = vadd.f32 %v787, %v1011
        %v1013 = vpop.f32.mrb[0].mxu0
        %1014 = vmatprep.mubr.f32.mxu0 0.0
        %1015 = vmatmul.mubr.f32.gmra.mrb[0].mxu0 %v528
        %v1016 = vpop.f32.mrb[0].mxu0
        %v1017 = vadd.f32 %v792, %v1016
        %v1018 = vpop.f32.mrb[0].mxu0
        %1019 = vmatprep.mubr.f32.mxu0 0.0
        %1020 = vmatmul.mubr.f32.gmra.mrb[0].mxu0 %v529
        %v1021 = vpop.f32.mrb[0].mxu0
        %v1022 = vadd.f32 %v797, %v1021
        %v1023 = vpop.f32.mrb[0].mxu0
        %1024 = vmatprep.mubr.f32.mxu0 0.0
        %1025 = vmatmul.mubr.f32.gmra.mrb[0].mxu0 %v530
        %v1026 = vpop.f32.mrb[0].mxu0
        %v1027 = vadd.f32 %v802, %v1026
        %v1028 = vpop.f32.mrb[0].mxu0
        %1029 = vmatprep.mubr.f32.mxu0 0.0
        %1030 = vmatmul.mubr.f32.gmra.mrb[0].mxu0 %v531
        %v1031 = vpop.f32.mrb[0].mxu0
        %v1032 = vadd.f32 %v807, %v1031
        %v1033 = vpop.f32.mrb[0].mxu0
        %1034 = vmatprep.mubr.f32.mxu0 0.0
        %1035 = vmatmul.mubr.f32.gmra.mrb[0].mxu0 %v532
        %v1036 = vpop.f32.mrb[0].mxu0
        %v1037 = vadd.f32 %v812, %v1036
        %v1038 = vpop.f32.mrb[0].mxu0
        %1039 = vmatprep.mubr.f32.mxu0 0.0
        %1040 = vmatmul.mubr.f32.gmra.mrb[0].mxu0 %v533
        %v1041 = vpop.f32.mrb[0].mxu0
        %v1042 = vadd.f32 %v817, %v1041
        %v1043 = vpop.f32.mrb[0].mxu0
        %1044 = vmatprep.mubr.f32.mxu0 0.0
        %1045 = vmatmul.mubr.f32.gmra.mrb[0].mxu0 %v534
        %v1046 = vpop.f32.mrb[0].mxu0
        %v1047 = vadd.f32 %v822, %v1046
        %v1048 = vpop.f32.mrb[0].mxu0
        %1049 = vdwg.mxu0
        %v1050 = vld [vmem:[#allocation2 + $0x2] sm:$0xff]
        %v1051 = vld [vmem:[#allocation2 + $0xa] sm:$0xff]
        %v1052 = vld [vmem:[#allocation2 + $0x1a] sm:$0xff]
        %v1053 = vld [vmem:[#allocation2 + $0x22] sm:$0xff]
        %v1054 = vld [vmem:[#allocation2 + $0x32] sm:$0xff]
        %v1055 = vld [vmem:[#allocation2 + $0x3a] sm:$0xff]
        %v1056 = vld [vmem:[#allocation2 + $0x4a] sm:$0xff]
        %v1057 = vld [vmem:[#allocation2 + $0x52] sm:$0xff]
        %v1058 = vld [vmem:[#allocation2 + $0x62] sm:$0xff]
        %v1059 = vld [vmem:[#allocation2 + $0x6a] sm:$0xff]
        %v1060 = vld [vmem:[#allocation2 + $0x7a] sm:$0xff]
        %v1061 = vld [vmem:[#allocation2 + $0x82] sm:$0xff]
        %v1062 = vld [vmem:[#allocation2 + $0x92] sm:$0xff]
        %v1063 = vld [vmem:[#allocation2 + $0x9a] sm:$0xff]
        %v1064 = vld [vmem:[#allocation2 + $0xaa] sm:$0xff]
        %v1065 = vld [vmem:[#allocation2 + $0xb2] sm:$0xff]
        %v1066 = vld [vmem:[#allocation2 + $0xc2] sm:$0xff]
        %v1067 = vld [vmem:[#allocation2 + $0xca] sm:$0xff]
        %v1068 = vld [vmem:[#allocation2 + $0xda] sm:$0xff]
        %v1069 = vld [vmem:[#allocation2 + $0xe2] sm:$0xff]
        %v1070 = vld [vmem:[#allocation2 + $0xf2] sm:$0xff]
        %v1071 = vld [vmem:[#allocation2 + $0xfa] sm:$0xff]
        %v1072 = vld [vmem:[#allocation2 + $0x10a] sm:$0xff]
        %v1073 = vld [vmem:[#allocation2 + $0x112] sm:$0xff]
        %v1074 = vld [vmem:[#allocation2 + $0x122] sm:$0xff]
        %v1075 = vld [vmem:[#allocation2 + $0x12a] sm:$0xff]
        %v1076 = vld [vmem:[#allocation2 + $0x13a] sm:$0xff]
        %v1077 = vld [vmem:[#allocation2 + $0x142] sm:$0xff]
        %v1078 = vld [vmem:[#allocation2 + $0x152] sm:$0xff]
        %v1079 = vld [vmem:[#allocation2 + $0x15a] sm:$0xff]
        %v1080 = vld [vmem:[#allocation2 + $0x16a] sm:$0xff]
        %v1081 = vld [vmem:[#allocation2 + $0x172] sm:$0xff]
        %s1082 = scalar_lea.vmem [#allocation7], 256
        %v1083 = vld [vmem:[%s1082] sm:$0xff]
        %v1084 = vld [vmem:[%s1082 + $0x8] sm:$0xff]
        %v1085 = vld [vmem:[%s1082 + $0x10] sm:$0xff]
        %v1086 = vld [vmem:[%s1082 + $0x18] sm:$0xff]
        %v1087 = vld [vmem:[%s1082 + $0x20] sm:$0xff]
        %v1088 = vld [vmem:[%s1082 + $0x28] sm:$0xff]
        %v1089 = vld [vmem:[%s1082 + $0x30] sm:$0xff]
        %v1090 = vld [vmem:[%s1082 + $0x38] sm:$0xff]
        %v1091 = vld [vmem:[%s1082 + $0x40] sm:$0xff]
        %v1092 = vld [vmem:[%s1082 + $0x48] sm:$0xff]
        %v1093 = vld [vmem:[%s1082 + $0x50] sm:$0xff]
        %v1094 = vld [vmem:[%s1082 + $0x58] sm:$0xff]
        %v1095 = vld [vmem:[%s1082 + $0x60] sm:$0xff]
        %v1096 = vld [vmem:[%s1082 + $0x68] sm:$0xff]
        %v1097 = vld [vmem:[%s1082 + $0x70] sm:$0xff]
        %v1098 = vld [vmem:[%s1082 + $0x78] sm:$0xff]
        %1099 = vmatprep.subr.mxu0 0.0
        %1100 = vmatpush1.msra.mxu0 %v1083
        %1101 = vmatprep.subr.mxu0 0.0
        %1102 = vmatpush1.msra.mxu0 %v1084
        %1103 = vmatprep.subr.mxu0 0.0
        %1104 = vmatpush1.msra.mxu0 %v1085
        %1105 = vmatprep.subr.mxu0 0.0
        %1106 = vmatpush1.msra.mxu0 %v1086
        %1107 = vmatprep.subr.mxu0 0.0
        %1108 = vmatpush1.msra.mxu0 %v1087
        %1109 = vmatprep.subr.mxu0 0.0
        %1110 = vmatpush1.msra.mxu0 %v1088
        %1111 = vmatprep.subr.mxu0 0.0
        %1112 = vmatpush1.msra.mxu0 %v1089
        %1113 = vmatprep.subr.mxu0 0.0
        %1114 = vmatpush1.msra.mxu0 %v1090
        %1115 = vmatprep.subr.mxu0 0.0
        %1116 = vmatpush1.msra.mxu0 %v1091
        %1117 = vmatprep.subr.mxu0 0.0
        %1118 = vmatpush1.msra.mxu0 %v1092
        %1119 = vmatprep.subr.mxu0 0.0
        %1120 = vmatpush1.msra.mxu0 %v1093
        %1121 = vmatprep.subr.mxu0 0.0
        %1122 = vmatpush1.msra.mxu0 %v1094
        %1123 = vmatprep.subr.mxu0 0.0
        %1124 = vmatpush1.msra.mxu0 %v1095
        %1125 = vmatprep.subr.mxu0 0.0
        %1126 = vmatpush1.msra.mxu0 %v1096
        %1127 = vmatprep.subr.mxu0 0.0
        %1128 = vmatpush1.msra.mxu0 %v1097
        %1129 = vmatprep.subr.mxu0 0.0
        %1130 = vmatpush1.msra.mxu0 %v1098
        %1131 = vmatprep.subr.mxu0 0.0
        %1132 = vmatpush1.msra.mxu0 0.0
        %1133 = vmatprep.subr.mxu0 0.0
        %1134 = vmatpush1.msra.mxu0 0.0
        %1135 = vmatprep.subr.mxu0 0.0
        %1136 = vmatpush1.msra.mxu0 0.0
        %1137 = vmatprep.subr.mxu0 0.0
        %1138 = vmatpush1.msra.mxu0 0.0
        %1139 = vmatprep.subr.mxu0 0.0
        %1140 = vmatpush1.msra.mxu0 0.0
        %1141 = vmatprep.subr.mxu0 0.0
        %1142 = vmatpush1.msra.mxu0 0.0
        %1143 = vmatprep.subr.mxu0 0.0
        %1144 = vmatpush1.msra.mxu0 0.0
        %1145 = vmatprep.subr.mxu0 0.0
        %1146 = vmatpush1.msra.mxu0 0.0
        %1147 = vmatprep.subr.mxu0 0.0
        %1148 = vmatpush1.msra.mxu0 0.0
        %1149 = vmatprep.subr.mxu0 0.0
        %1150 = vmatpush1.msra.mxu0 0.0
        %1151 = vmatprep.subr.mxu0 0.0
        %1152 = vmatpush1.msra.mxu0 0.0
        %1153 = vmatprep.subr.mxu0 0.0
        %1154 = vmatpush1.msra.mxu0 0.0
        %1155 = vmatprep.subr.mxu0 0.0
        %1156 = vmatpush1.msra.mxu0 0.0
        %1157 = vmatprep.subr.mxu0 0.0
        %1158 = vmatpush1.msra.mxu0 0.0
        %1159 = vmatprep.subr.mxu0 0.0
        %1160 = vmatpush1.msra.mxu0 0.0
        %1161 = vmatprep.subr.mxu0 0.0
        %1162 = vmatpush1.msra.mxu0 0.0
        %1163 = vmatprep.mubr.f32.mxu0 0.0
        %1164 = vmatmul.mubr.f32.gmra.mrb[0].mxu0 %v1050
        %v1165 = vpop.f32.mrb[0].mxu0
        %v1166 = vadd.f32 0.0, %v1165
        %v1167 = vpop.f32.mrb[0].mxu0
        %1168 = vmatprep.mubr.f32.mxu0 0.0
        %1169 = vmatmul.mubr.f32.gmra.mrb[0].mxu0 %v1051
        %v1170 = vpop.f32.mrb[0].mxu0
        %v1171 = vadd.f32 0.0, %v1170
        %v1172 = vpop.f32.mrb[0].mxu0
        %1173 = vmatprep.mubr.f32.mxu0 0.0
        %1174 = vmatmul.mubr.f32.gmra.mrb[0].mxu0 %v1052
        %v1175 = vpop.f32.mrb[0].mxu0
        %v1176 = vadd.f32 0.0, %v1175
        %v1177 = vpop.f32.mrb[0].mxu0
        %1178 = vmatprep.mubr.f32.mxu0 0.0
        %1179 = vmatmul.mubr.f32.gmra.mrb[0].mxu0 %v1053
        %v1180 = vpop.f32.mrb[0].mxu0
        %v1181 = vadd.f32 0.0, %v1180
        %v1182 = vpop.f32.mrb[0].mxu0
        %1183 = vmatprep.mubr.f32.mxu0 0.0
        %1184 = vmatmul.mubr.f32.gmra.mrb[0].mxu0 %v1054
        %v1185 = vpop.f32.mrb[0].mxu0
        %v1186 = vadd.f32 0.0, %v1185
        %v1187 = vpop.f32.mrb[0].mxu0
        %1188 = vmatprep.mubr.f32.mxu0 0.0
        %1189 = vmatmul.mubr.f32.gmra.mrb[0].mxu0 %v1055
        %v1190 = vpop.f32.mrb[0].mxu0
        %v1191 = vadd.f32 0.0, %v1190
        %v1192 = vpop.f32.mrb[0].mxu0
        %1193 = vmatprep.mubr.f32.mxu0 0.0
        %1194 = vmatmul.mubr.f32.gmra.mrb[0].mxu0 %v1056
        %v1195 = vpop.f32.mrb[0].mxu0
        %v1196 = vadd.f32 0.0, %v1195
        %v1197 = vpop.f32.mrb[0].mxu0
        %1198 = vmatprep.mubr.f32.mxu0 0.0
        %1199 = vmatmul.mubr.f32.gmra.mrb[0].mxu0 %v1057
        %v1200 = vpop.f32.mrb[0].mxu0
        %v1201 = vadd.f32 0.0, %v1200
        %v1202 = vpop.f32.mrb[0].mxu0
        %1203 = vmatprep.mubr.f32.mxu0 0.0
        %1204 = vmatmul.mubr.f32.gmra.mrb[0].mxu0 %v1058
        %v1205 = vpop.f32.mrb[0].mxu0
        %v1206 = vadd.f32 0.0, %v1205
        %v1207 = vpop.f32.mrb[0].mxu0
        %1208 = vmatprep.mubr.f32.mxu0 0.0
        %1209 = vmatmul.mubr.f32.gmra.mrb[0].mxu0 %v1059
        %v1210 = vpop.f32.mrb[0].mxu0
        %v1211 = vadd.f32 0.0, %v1210
        %v1212 = vpop.f32.mrb[0].mxu0
        %1213 = vmatprep.mubr.f32.mxu0 0.0
        %1214 = vmatmul.mubr.f32.gmra.mrb[0].mxu0 %v1060
        %v1215 = vpop.f32.mrb[0].mxu0
        %v1216 = vadd.f32 0.0, %v1215
        %v1217 = vpop.f32.mrb[0].mxu0
        %1218 = vmatprep.mubr.f32.mxu0 0.0
        %1219 = vmatmul.mubr.f32.gmra.mrb[0].mxu0 %v1061
        %v1220 = vpop.f32.mrb[0].mxu0
        %v1221 = vadd.f32 0.0, %v1220
        %v1222 = vpop.f32.mrb[0].mxu0
        %1223 = vmatprep.mubr.f32.mxu0 0.0
        %1224 = vmatmul.mubr.f32.gmra.mrb[0].mxu0 %v1062
        %v1225 = vpop.f32.mrb[0].mxu0
        %v1226 = vadd.f32 0.0, %v1225
        %v1227 = vpop.f32.mrb[0].mxu0
        %1228 = vmatprep.mubr.f32.mxu0 0.0
        %1229 = vmatmul.mubr.f32.gmra.mrb[0].mxu0 %v1063
        %v1230 = vpop.f32.mrb[0].mxu0
        %v1231 = vadd.f32 0.0, %v1230
        %v1232 = vpop.f32.mrb[0].mxu0
        %1233 = vmatprep.mubr.f32.mxu0 0.0
        %1234 = vmatmul.mubr.f32.gmra.mrb[0].mxu0 %v1064
        %v1235 = vpop.f32.mrb[0].mxu0
        %v1236 = vadd.f32 0.0, %v1235
        %v1237 = vpop.f32.mrb[0].mxu0
        %1238 = vmatprep.mubr.f32.mxu0 0.0
        %1239 = vmatmul.mubr.f32.gmra.mrb[0].mxu0 %v1065
        %v1240 = vpop.f32.mrb[0].mxu0
        %v1241 = vadd.f32 0.0, %v1240
        %v1242 = vpop.f32.mrb[0].mxu0
        %1243 = vmatprep.mubr.f32.mxu0 0.0
        %1244 = vmatmul.mubr.f32.gmra.mrb[0].mxu0 %v1066
        %v1245 = vpop.f32.mrb[0].mxu0
        %v1246 = vadd.f32 0.0, %v1245
        %v1247 = vpop.f32.mrb[0].mxu0
        %1248 = vmatprep.mubr.f32.mxu0 0.0
        %1249 = vmatmul.mubr.f32.gmra.mrb[0].mxu0 %v1067
        %v1250 = vpop.f32.mrb[0].mxu0
        %v1251 = vadd.f32 0.0, %v1250
        %v1252 = vpop.f32.mrb[0].mxu0
        %1253 = vmatprep.mubr.f32.mxu0 0.0
        %1254 = vmatmul.mubr.f32.gmra.mrb[0].mxu0 %v1068
        %v1255 = vpop.f32.mrb[0].mxu0
        %v1256 = vadd.f32 0.0, %v1255
        %v1257 = vpop.f32.mrb[0].mxu0
        %1258 = vmatprep.mubr.f32.mxu0 0.0
        %1259 = vmatmul.mubr.f32.gmra.mrb[0].mxu0 %v1069
        %v1260 = vpop.f32.mrb[0].mxu0
        %v1261 = vadd.f32 0.0, %v1260
        %v1262 = vpop.f32.mrb[0].mxu0
        %1263 = vmatprep.mubr.f32.mxu0 0.0
        %1264 = vmatmul.mubr.f32.gmra.mrb[0].mxu0 %v1070
        %v1265 = vpop.f32.mrb[0].mxu0
        %v1266 = vadd.f32 0.0, %v1265
        %v1267 = vpop.f32.mrb[0].mxu0
        %1268 = vmatprep.mubr.f32.mxu0 0.0
        %1269 = vmatmul.mubr.f32.gmra.mrb[0].mxu0 %v1071
        %v1270 = vpop.f32.mrb[0].mxu0
        %v1271 = vadd.f32 0.0, %v1270
        %v1272 = vpop.f32.mrb[0].mxu0
        %1273 = vmatprep.mubr.f32.mxu0 0.0
        %1274 = vmatmul.mubr.f32.gmra.mrb[0].mxu0 %v1072
        %v1275 = vpop.f32.mrb[0].mxu0
        %v1276 = vadd.f32 0.0, %v1275
        %v1277 = vpop.f32.mrb[0].mxu0
        %1278 = vmatprep.mubr.f32.mxu0 0.0
        %1279 = vmatmul.mubr.f32.gmra.mrb[0].mxu0 %v1073
        %v1280 = vpop.f32.mrb[0].mxu0
        %v1281 = vadd.f32 0.0, %v1280
        %v1282 = vpop.f32.mrb[0].mxu0
        %1283 = vmatprep.mubr.f32.mxu0 0.0
        %1284 = vmatmul.mubr.f32.gmra.mrb[0].mxu0 %v1074
        %v1285 = vpop.f32.mrb[0].mxu0
        %v1286 = vadd.f32 0.0, %v1285
        %v1287 = vpop.f32.mrb[0].mxu0
        %1288 = vmatprep.mubr.f32.mxu0 0.0
        %1289 = vmatmul.mubr.f32.gmra.mrb[0].mxu0 %v1075
        %v1290 = vpop.f32.mrb[0].mxu0
        %v1291 = vadd.f32 0.0, %v1290
        %v1292 = vpop.f32.mrb[0].mxu0
        %1293 = vmatprep.mubr.f32.mxu0 0.0
        %1294 = vmatmul.mubr.f32.gmra.mrb[0].mxu0 %v1076
        %v1295 = vpop.f32.mrb[0].mxu0
        %v1296 = vadd.f32 0.0, %v1295
        %v1297 = vpop.f32.mrb[0].mxu0
        %1298 = vmatprep.mubr.f32.mxu0 0.0
        %1299 = vmatmul.mubr.f32.gmra.mrb[0].mxu0 %v1077
        %v1300 = vpop.f32.mrb[0].mxu0
        %v1301 = vadd.f32 0.0, %v1300
        %v1302 = vpop.f32.mrb[0].mxu0
        %1303 = vmatprep.mubr.f32.mxu0 0.0
        %1304 = vmatmul.mubr.f32.gmra.mrb[0].mxu0 %v1078
        %v1305 = vpop.f32.mrb[0].mxu0
        %v1306 = vadd.f32 0.0, %v1305
        %v1307 = vpop.f32.mrb[0].mxu0
        %1308 = vmatprep.mubr.f32.mxu0 0.0
        %1309 = vmatmul.mubr.f32.gmra.mrb[0].mxu0 %v1079
        %v1310 = vpop.f32.mrb[0].mxu0
        %v1311 = vadd.f32 0.0, %v1310
        %v1312 = vpop.f32.mrb[0].mxu0
        %1313 = vmatprep.mubr.f32.mxu0 0.0
        %1314 = vmatmul.mubr.f32.gmra.mrb[0].mxu0 %v1080
        %v1315 = vpop.f32.mrb[0].mxu0
        %v1316 = vadd.f32 0.0, %v1315
        %v1317 = vpop.f32.mrb[0].mxu0
        %1318 = vmatprep.mubr.f32.mxu0 0.0
        %1319 = vmatmul.mubr.f32.gmra.mrb[0].mxu0 %v1081
        %v1320 = vpop.f32.mrb[0].mxu0
        %v1321 = vadd.f32 0.0, %v1320
        %v1322 = vpop.f32.mrb[0].mxu0
        %1323 = vdwg.mxu0
        %v1324 = vadd.f32 %v892, %v1166
        %v1325 = vadd.f32 %v897, %v1171
        %v1326 = vadd.f32 %v902, %v1176
        %v1327 = vadd.f32 %v907, %v1181
        %v1328 = vadd.f32 %v912, %v1186
        %v1329 = vadd.f32 %v917, %v1191
        %v1330 = vadd.f32 %v922, %v1196
        %v1331 = vadd.f32 %v927, %v1201
        %v1332 = vadd.f32 %v932, %v1206
        %v1333 = vadd.f32 %v937, %v1211
        %v1334 = vadd.f32 %v942, %v1216
        %v1335 = vadd.f32 %v947, %v1221
        %v1336 = vadd.f32 %v952, %v1226
        %v1337 = vadd.f32 %v957, %v1231
        %v1338 = vadd.f32 %v962, %v1236
        %v1339 = vadd.f32 %v967, %v1241
        %v1340 = vadd.f32 %v972, %v1246
        %v1341 = vadd.f32 %v977, %v1251
        %v1342 = vadd.f32 %v982, %v1256
        %v1343 = vadd.f32 %v987, %v1261
        %v1344 = vadd.f32 %v992, %v1266
        %v1345 = vadd.f32 %v997, %v1271
        %v1346 = vadd.f32 %v1002, %v1276
        %v1347 = vadd.f32 %v1007, %v1281
        %v1348 = vadd.f32 %v1012, %v1286
        %v1349 = vadd.f32 %v1017, %v1291
        %v1350 = vadd.f32 %v1022, %v1296
        %v1351 = vadd.f32 %v1027, %v1301
        %v1352 = vadd.f32 %v1032, %v1306
        %v1353 = vadd.f32 %v1037, %v1311
        %v1354 = vadd.f32 %v1042, %v1316
        %v1355 = vadd.f32 %v1047, %v1321
        %v1356 = vld [vmem:[%s470] sm:$0xff]
        %v1357 = vld [vmem:[%s470 + $0x8] sm:$0xff]
        %v1358 = vld [vmem:[%s470 + $0x18] sm:$0xff]
        %v1359 = vld [vmem:[%s470 + $0x20] sm:$0xff]
        %v1360 = vld [vmem:[%s470 + $0x30] sm:$0xff]
        %v1361 = vld [vmem:[%s470 + $0x38] sm:$0xff]
        %v1362 = vld [vmem:[%s470 + $0x48] sm:$0xff]
        %v1363 = vld [vmem:[%s470 + $0x50] sm:$0xff]
        %v1364 = vld [vmem:[%s470 + $0x60] sm:$0xff]
        %v1365 = vld [vmem:[%s470 + $0x68] sm:$0xff]
        %v1366 = vld [vmem:[%s470 + $0x78] sm:$0xff]
        %v1367 = vld [vmem:[%s470 + $0x80] sm:$0xff]
        %v1368 = vld [vmem:[%s470 + $0x90] sm:$0xff]
        %v1369 = vld [vmem:[%s470 + $0x98] sm:$0xff]
        %v1370 = vld [vmem:[%s470 + $0xa8] sm:$0xff]
        %v1371 = vld [vmem:[%s470 + $0xb0] sm:$0xff]
        %v1372 = vld [vmem:[%s470 + $0xc0] sm:$0xff]
        %v1373 = vld [vmem:[%s470 + $0xc8] sm:$0xff]
        %v1374 = vld [vmem:[%s470 + $0xd8] sm:$0xff]
        %v1375 = vld [vmem:[%s470 + $0xe0] sm:$0xff]
        %v1376 = vld [vmem:[%s470 + $0xf0] sm:$0xff]
        %v1377 = vld [vmem:[%s470 + $0xf8] sm:$0xff]
        %v1378 = vld [vmem:[%s470 + $0x108] sm:$0xff]
        %v1379 = vld [vmem:[%s470 + $0x110] sm:$0xff]
        %v1380 = vld [vmem:[%s470 + $0x120] sm:$0xff]
        %v1381 = vld [vmem:[%s470 + $0x128] sm:$0xff]
        %v1382 = vld [vmem:[%s470 + $0x138] sm:$0xff]
        %v1383 = vld [vmem:[%s470 + $0x140] sm:$0xff]
        %v1384 = vld [vmem:[%s470 + $0x150] sm:$0xff]
        %v1385 = vld [vmem:[%s470 + $0x158] sm:$0xff]
        %v1386 = vld [vmem:[%s470 + $0x168] sm:$0xff]
        %v1387 = vld [vmem:[%s470 + $0x170] sm:$0xff]
        %s1388 = scalar_lea.vmem [#allocation7], 384
        %v1389 = vld [vmem:[%s1388] sm:$0xff]
        %v1390 = vld [vmem:[%s1388 + $0x8] sm:$0xff]
        %v1391 = vld [vmem:[%s1388 + $0x10] sm:$0xff]
        %v1392 = vld [vmem:[%s1388 + $0x18] sm:$0xff]
        %v1393 = vld [vmem:[%s1388 + $0x20] sm:$0xff]
        %v1394 = vld [vmem:[%s1388 + $0x28] sm:$0xff]
        %v1395 = vld [vmem:[%s1388 + $0x30] sm:$0xff]
        %v1396 = vld [vmem:[%s1388 + $0x38] sm:$0xff]
        %v1397 = vld [vmem:[%s1388 + $0x40] sm:$0xff]
        %v1398 = vld [vmem:[%s1388 + $0x48] sm:$0xff]
        %v1399 = vld [vmem:[%s1388 + $0x50] sm:$0xff]
        %v1400 = vld [vmem:[%s1388 + $0x58] sm:$0xff]
        %v1401 = vld [vmem:[%s1388 + $0x60] sm:$0xff]
        %v1402 = vld [vmem:[%s1388 + $0x68] sm:$0xff]
        %v1403 = vld [vmem:[%s1388 + $0x70] sm:$0xff]
        %v1404 = vld [vmem:[%s1388 + $0x78] sm:$0xff]
        %1405 = vmatprep.subr.mxu0 0.0
        %1406 = vmatpush1.msra.mxu0 %v1389
        %1407 = vmatprep.subr.mxu0 0.0
        %1408 = vmatpush1.msra.mxu0 %v1390
        %1409 = vmatprep.subr.mxu0 0.0
        %1410 = vmatpush1.msra.mxu0 %v1391
        %1411 = vmatprep.subr.mxu0 0.0
        %1412 = vmatpush1.msra.mxu0 %v1392
        %1413 = vmatprep.subr.mxu0 0.0
        %1414 = vmatpush1.msra.mxu0 %v1393
        %1415 = vmatprep.subr.mxu0 0.0
        %1416 = vmatpush1.msra.mxu0 %v1394
        %1417 = vmatprep.subr.mxu0 0.0
        %1418 = vmatpush1.msra.mxu0 %v1395
        %1419 = vmatprep.subr.mxu0 0.0
        %1420 = vmatpush1.msra.mxu0 %v1396
        %1421 = vmatprep.subr.mxu0 0.0
        %1422 = vmatpush1.msra.mxu0 %v1397
        %1423 = vmatprep.subr.mxu0 0.0
        %1424 = vmatpush1.msra.mxu0 %v1398
        %1425 = vmatprep.subr.mxu0 0.0
        %1426 = vmatpush1.msra.mxu0 %v1399
        %1427 = vmatprep.subr.mxu0 0.0
        %1428 = vmatpush1.msra.mxu0 %v1400
        %1429 = vmatprep.subr.mxu0 0.0
        %1430 = vmatpush1.msra.mxu0 %v1401
        %1431 = vmatprep.subr.mxu0 0.0
        %1432 = vmatpush1.msra.mxu0 %v1402
        %1433 = vmatprep.subr.mxu0 0.0
        %1434 = vmatpush1.msra.mxu0 %v1403
        %1435 = vmatprep.subr.mxu0 0.0
        %1436 = vmatpush1.msra.mxu0 %v1404
        %1437 = vmatprep.subr.mxu0 0.0
        %1438 = vmatpush1.msra.mxu0 0.0
        %1439 = vmatprep.subr.mxu0 0.0
        %1440 = vmatpush1.msra.mxu0 0.0
        %1441 = vmatprep.subr.mxu0 0.0
        %1442 = vmatpush1.msra.mxu0 0.0
        %1443 = vmatprep.subr.mxu0 0.0
        %1444 = vmatpush1.msra.mxu0 0.0
        %1445 = vmatprep.subr.mxu0 0.0
        %1446 = vmatpush1.msra.mxu0 0.0
        %1447 = vmatprep.subr.mxu0 0.0
        %1448 = vmatpush1.msra.mxu0 0.0
        %1449 = vmatprep.subr.mxu0 0.0
        %1450 = vmatpush1.msra.mxu0 0.0
        %1451 = vmatprep.subr.mxu0 0.0
        %1452 = vmatpush1.msra.mxu0 0.0
        %1453 = vmatprep.subr.mxu0 0.0
        %1454 = vmatpush1.msra.mxu0 0.0
        %1455 = vmatprep.subr.mxu0 0.0
        %1456 = vmatpush1.msra.mxu0 0.0
        %1457 = vmatprep.subr.mxu0 0.0
        %1458 = vmatpush1.msra.mxu0 0.0
        %1459 = vmatprep.subr.mxu0 0.0
        %1460 = vmatpush1.msra.mxu0 0.0
        %1461 = vmatprep.subr.mxu0 0.0
        %1462 = vmatpush1.msra.mxu0 0.0
        %1463 = vmatprep.subr.mxu0 0.0
        %1464 = vmatpush1.msra.mxu0 0.0
        %1465 = vmatprep.subr.mxu0 0.0
        %1466 = vmatpush1.msra.mxu0 0.0
        %1467 = vmatprep.subr.mxu0 0.0
        %1468 = vmatpush1.msra.mxu0 0.0
        %1469 = vmatprep.mubr.f32.mxu0 0.0
        %1470 = vmatmul.mubr.f32.gmra.mrb[0].mxu0 %v1356
        %v1471 = vpop.f32.mrb[0].mxu0
        %v1472 = vadd.f32 0.0, %v1471
        %v1473 = vpop.f32.mrb[0].mxu0
        %1474 = vmatprep.mubr.f32.mxu0 0.0
        %1475 = vmatmul.mubr.f32.gmra.mrb[0].mxu0 %v1357
        %v1476 = vpop.f32.mrb[0].mxu0
        %v1477 = vadd.f32 0.0, %v1476
        %v1478 = vpop.f32.mrb[0].mxu0
        %1479 = vmatprep.mubr.f32.mxu0 0.0
        %1480 = vmatmul.mubr.f32.gmra.mrb[0].mxu0 %v1358
        %v1481 = vpop.f32.mrb[0].mxu0
        %v1482 = vadd.f32 0.0, %v1481
        %v1483 = vpop.f32.mrb[0].mxu0
        %1484 = vmatprep.mubr.f32.mxu0 0.0
        %1485 = vmatmul.mubr.f32.gmra.mrb[0].mxu0 %v1359
        %v1486 = vpop.f32.mrb[0].mxu0
        %v1487 = vadd.f32 0.0, %v1486
        %v1488 = vpop.f32.mrb[0].mxu0
        %1489 = vmatprep.mubr.f32.mxu0 0.0
        %1490 = vmatmul.mubr.f32.gmra.mrb[0].mxu0 %v1360
        %v1491 = vpop.f32.mrb[0].mxu0
        %v1492 = vadd.f32 0.0, %v1491
        %v1493 = vpop.f32.mrb[0].mxu0
        %1494 = vmatprep.mubr.f32.mxu0 0.0
        %1495 = vmatmul.mubr.f32.gmra.mrb[0].mxu0 %v1361
        %v1496 = vpop.f32.mrb[0].mxu0
        %v1497 = vadd.f32 0.0, %v1496
        %v1498 = vpop.f32.mrb[0].mxu0
        %1499 = vmatprep.mubr.f32.mxu0 0.0
        %1500 = vmatmul.mubr.f32.gmra.mrb[0].mxu0 %v1362
        %v1501 = vpop.f32.mrb[0].mxu0
        %v1502 = vadd.f32 0.0, %v1501
        %v1503 = vpop.f32.mrb[0].mxu0
        %1504 = vmatprep.mubr.f32.mxu0 0.0
        %1505 = vmatmul.mubr.f32.gmra.mrb[0].mxu0 %v1363
        %v1506 = vpop.f32.mrb[0].mxu0
        %v1507 = vadd.f32 0.0, %v1506
        %v1508 = vpop.f32.mrb[0].mxu0
        %1509 = vmatprep.mubr.f32.mxu0 0.0
        %1510 = vmatmul.mubr.f32.gmra.mrb[0].mxu0 %v1364
        %v1511 = vpop.f32.mrb[0].mxu0
        %v1512 = vadd.f32 0.0, %v1511
        %v1513 = vpop.f32.mrb[0].mxu0
        %1514 = vmatprep.mubr.f32.mxu0 0.0
        %1515 = vmatmul.mubr.f32.gmra.mrb[0].mxu0 %v1365
        %v1516 = vpop.f32.mrb[0].mxu0
        %v1517 = vadd.f32 0.0, %v1516
        %v1518 = vpop.f32.mrb[0].mxu0
        %1519 = vmatprep.mubr.f32.mxu0 0.0
        %1520 = vmatmul.mubr.f32.gmra.mrb[0].mxu0 %v1366
        %v1521 = vpop.f32.mrb[0].mxu0
        %v1522 = vadd.f32 0.0, %v1521
        %v1523 = vpop.f32.mrb[0].mxu0
        %1524 = vmatprep.mubr.f32.mxu0 0.0
        %1525 = vmatmul.mubr.f32.gmra.mrb[0].mxu0 %v1367
        %v1526 = vpop.f32.mrb[0].mxu0
        %v1527 = vadd.f32 0.0, %v1526
        %v1528 = vpop.f32.mrb[0].mxu0
        %1529 = vmatprep.mubr.f32.mxu0 0.0
        %1530 = vmatmul.mubr.f32.gmra.mrb[0].mxu0 %v1368
        %v1531 = vpop.f32.mrb[0].mxu0
        %v1532 = vadd.f32 0.0, %v1531
        %v1533 = vpop.f32.mrb[0].mxu0
        %1534 = vmatprep.mubr.f32.mxu0 0.0
        %1535 = vmatmul.mubr.f32.gmra.mrb[0].mxu0 %v1369
        %v1536 = vpop.f32.mrb[0].mxu0
        %v1537 = vadd.f32 0.0, %v1536
        %v1538 = vpop.f32.mrb[0].mxu0
        %1539 = vmatprep.mubr.f32.mxu0 0.0
        %1540 = vmatmul.mubr.f32.gmra.mrb[0].mxu0 %v1370
        %v1541 = vpop.f32.mrb[0].mxu0
        %v1542 = vadd.f32 0.0, %v1541
        %v1543 = vpop.f32.mrb[0].mxu0
        %1544 = vmatprep.mubr.f32.mxu0 0.0
        %1545 = vmatmul.mubr.f32.gmra.mrb[0].mxu0 %v1371
        %v1546 = vpop.f32.mrb[0].mxu0
        %v1547 = vadd.f32 0.0, %v1546
        %v1548 = vpop.f32.mrb[0].mxu0
        %1549 = vmatprep.mubr.f32.mxu0 0.0
        %1550 = vmatmul.mubr.f32.gmra.mrb[0].mxu0 %v1372
        %v1551 = vpop.f32.mrb[0].mxu0
        %v1552 = vadd.f32 0.0, %v1551
        %v1553 = vpop.f32.mrb[0].mxu0
        %1554 = vmatprep.mubr.f32.mxu0 0.0
        %1555 = vmatmul.mubr.f32.gmra.mrb[0].mxu0 %v1373
        %v1556 = vpop.f32.mrb[0].mxu0
        %v1557 = vadd.f32 0.0, %v1556
        %v1558 = vpop.f32.mrb[0].mxu0
        %1559 = vmatprep.mubr.f32.mxu0 0.0
        %1560 = vmatmul.mubr.f32.gmra.mrb[0].mxu0 %v1374
        %v1561 = vpop.f32.mrb[0].mxu0
        %v1562 = vadd.f32 0.0, %v1561
        %v1563 = vpop.f32.mrb[0].mxu0
        %1564 = vmatprep.mubr.f32.mxu0 0.0
        %1565 = vmatmul.mubr.f32.gmra.mrb[0].mxu0 %v1375
        %v1566 = vpop.f32.mrb[0].mxu0
        %v1567 = vadd.f32 0.0, %v1566
        %v1568 = vpop.f32.mrb[0].mxu0
        %1569 = vmatprep.mubr.f32.mxu0 0.0
        %1570 = vmatmul.mubr.f32.gmra.mrb[0].mxu0 %v1376
        %v1571 = vpop.f32.mrb[0].mxu0
        %v1572 = vadd.f32 0.0, %v1571
        %v1573 = vpop.f32.mrb[0].mxu0
        %1574 = vmatprep.mubr.f32.mxu0 0.0
        %1575 = vmatmul.mubr.f32.gmra.mrb[0].mxu0 %v1377
        %v1576 = vpop.f32.mrb[0].mxu0
        %v1577 = vadd.f32 0.0, %v1576
        %v1578 = vpop.f32.mrb[0].mxu0
        %1579 = vmatprep.mubr.f32.mxu0 0.0
        %1580 = vmatmul.mubr.f32.gmra.mrb[0].mxu0 %v1378
        %v1581 = vpop.f32.mrb[0].mxu0
        %v1582 = vadd.f32 0.0, %v1581
        %v1583 = vpop.f32.mrb[0].mxu0
        %1584 = vmatprep.mubr.f32.mxu0 0.0
        %1585 = vmatmul.mubr.f32.gmra.mrb[0].mxu0 %v1379
        %v1586 = vpop.f32.mrb[0].mxu0
        %v1587 = vadd.f32 0.0, %v1586
        %v1588 = vpop.f32.mrb[0].mxu0
        %1589 = vmatprep.mubr.f32.mxu0 0.0
        %1590 = vmatmul.mubr.f32.gmra.mrb[0].mxu0 %v1380
        %v1591 = vpop.f32.mrb[0].mxu0
        %v1592 = vadd.f32 0.0, %v1591
        %v1593 = vpop.f32.mrb[0].mxu0
        %1594 = vmatprep.mubr.f32.mxu0 0.0
        %1595 = vmatmul.mubr.f32.gmra.mrb[0].mxu0 %v1381
        %v1596 = vpop.f32.mrb[0].mxu0
        %v1597 = vadd.f32 0.0, %v1596
        %v1598 = vpop.f32.mrb[0].mxu0
        %1599 = vmatprep.mubr.f32.mxu0 0.0
        %1600 = vmatmul.mubr.f32.gmra.mrb[0].mxu0 %v1382
        %v1601 = vpop.f32.mrb[0].mxu0
        %v1602 = vadd.f32 0.0, %v1601
        %v1603 = vpop.f32.mrb[0].mxu0
        %1604 = vmatprep.mubr.f32.mxu0 0.0
        %1605 = vmatmul.mubr.f32.gmra.mrb[0].mxu0 %v1383
        %v1606 = vpop.f32.mrb[0].mxu0
        %v1607 = vadd.f32 0.0, %v1606
        %v1608 = vpop.f32.mrb[0].mxu0
        %1609 = vmatprep.mubr.f32.mxu0 0.0
        %1610 = vmatmul.mubr.f32.gmra.mrb[0].mxu0 %v1384
        %v1611 = vpop.f32.mrb[0].mxu0
        %v1612 = vadd.f32 0.0, %v1611
        %v1613 = vpop.f32.mrb[0].mxu0
        %1614 = vmatprep.mubr.f32.mxu0 0.0
        %1615 = vmatmul.mubr.f32.gmra.mrb[0].mxu0 %v1385
        %v1616 = vpop.f32.mrb[0].mxu0
        %v1617 = vadd.f32 0.0, %v1616
        %v1618 = vpop.f32.mrb[0].mxu0
        %1619 = vmatprep.mubr.f32.mxu0 0.0
        %1620 = vmatmul.mubr.f32.gmra.mrb[0].mxu0 %v1386
        %v1621 = vpop.f32.mrb[0].mxu0
        %v1622 = vadd.f32 0.0, %v1621
        %v1623 = vpop.f32.mrb[0].mxu0
        %1624 = vmatprep.mubr.f32.mxu0 0.0
        %1625 = vmatmul.mubr.f32.gmra.mrb[0].mxu0 %v1387
        %v1626 = vpop.f32.mrb[0].mxu0
        %v1627 = vadd.f32 0.0, %v1626
        %v1628 = vpop.f32.mrb[0].mxu0
        %1629 = vdwg.mxu0
        %v1630 = vadd.f32 %v1324, %v1472
        %v1631 = vadd.f32 %v1325, %v1477
        %v1632 = vadd.f32 %v1326, %v1482
        %v1633 = vadd.f32 %v1327, %v1487
        %v1634 = vadd.f32 %v1328, %v1492
        %v1635 = vadd.f32 %v1329, %v1497
        %v1636 = vadd.f32 %v1330, %v1502
        %v1637 = vadd.f32 %v1331, %v1507
        %v1638 = vadd.f32 %v1332, %v1512
        %v1639 = vadd.f32 %v1333, %v1517
        %v1640 = vadd.f32 %v1334, %v1522
        %v1641 = vadd.f32 %v1335, %v1527
        %v1642 = vadd.f32 %v1336, %v1532
        %v1643 = vadd.f32 %v1337, %v1537
        %v1644 = vadd.f32 %v1338, %v1542
        %v1645 = vadd.f32 %v1339, %v1547
        %v1646 = vadd.f32 %v1340, %v1552
        %v1647 = vadd.f32 %v1341, %v1557
        %v1648 = vadd.f32 %v1342, %v1562
        %v1649 = vadd.f32 %v1343, %v1567
        %v1650 = vadd.f32 %v1344, %v1572
        %v1651 = vadd.f32 %v1345, %v1577
        %v1652 = vadd.f32 %v1346, %v1582
        %v1653 = vadd.f32 %v1347, %v1587
        %v1654 = vadd.f32 %v1348, %v1592
        %v1655 = vadd.f32 %v1349, %v1597
        %v1656 = vadd.f32 %v1350, %v1602
        %v1657 = vadd.f32 %v1351, %v1607
        %v1658 = vadd.f32 %v1352, %v1612
        %v1659 = vadd.f32 %v1353, %v1617
        %v1660 = vadd.f32 %v1354, %v1622
        %v1661 = vadd.f32 %v1355, %v1627
        %v1662 = vld [vmem:[%s470 + $0x1] sm:$0xff]
        %v1663 = vld [vmem:[%s470 + $0x9] sm:$0xff]
        %v1664 = vld [vmem:[%s470 + $0x19] sm:$0xff]
        %v1665 = vld [vmem:[%s470 + $0x21] sm:$0xff]
        %v1666 = vld [vmem:[%s470 + $0x31] sm:$0xff]
        %v1667 = vld [vmem:[%s470 + $0x39] sm:$0xff]
        %v1668 = vld [vmem:[%s470 + $0x49] sm:$0xff]
        %v1669 = vld [vmem:[%s470 + $0x51] sm:$0xff]
        %v1670 = vld [vmem:[%s470 + $0x61] sm:$0xff]
        %v1671 = vld [vmem:[%s470 + $0x69] sm:$0xff]
        %v1672 = vld [vmem:[%s470 + $0x79] sm:$0xff]
        %v1673 = vld [vmem:[%s470 + $0x81] sm:$0xff]
        %v1674 = vld [vmem:[%s470 + $0x91] sm:$0xff]
        %v1675 = vld [vmem:[%s470 + $0x99] sm:$0xff]
        %v1676 = vld [vmem:[%s470 + $0xa9] sm:$0xff]
        %v1677 = vld [vmem:[%s470 + $0xb1] sm:$0xff]
        %v1678 = vld [vmem:[%s470 + $0xc1] sm:$0xff]
        %v1679 = vld [vmem:[%s470 + $0xc9] sm:$0xff]
        %v1680 = vld [vmem:[%s470 + $0xd9] sm:$0xff]
        %v1681 = vld [vmem:[%s470 + $0xe1] sm:$0xff]
        %v1682 = vld [vmem:[%s470 + $0xf1] sm:$0xff]
        %v1683 = vld [vmem:[%s470 + $0xf9] sm:$0xff]
        %v1684 = vld [vmem:[%s470 + $0x109] sm:$0xff]
        %v1685 = vld [vmem:[%s470 + $0x111] sm:$0xff]
        %v1686 = vld [vmem:[%s470 + $0x121] sm:$0xff]
        %v1687 = vld [vmem:[%s470 + $0x129] sm:$0xff]
        %v1688 = vld [vmem:[%s470 + $0x139] sm:$0xff]
        %v1689 = vld [vmem:[%s470 + $0x141] sm:$0xff]
        %v1690 = vld [vmem:[%s470 + $0x151] sm:$0xff]
        %v1691 = vld [vmem:[%s470 + $0x159] sm:$0xff]
        %v1692 = vld [vmem:[%s470 + $0x169] sm:$0xff]
        %v1693 = vld [vmem:[%s470 + $0x171] sm:$0xff]
        %s1694 = scalar_lea.vmem [#allocation7], 512
        %v1695 = vld [vmem:[%s1694] sm:$0xff]
        %v1696 = vld [vmem:[%s1694 + $0x8] sm:$0xff]
        %v1697 = vld [vmem:[%s1694 + $0x10] sm:$0xff]
        %v1698 = vld [vmem:[%s1694 + $0x18] sm:$0xff]
        %v1699 = vld [vmem:[%s1694 + $0x20] sm:$0xff]
        %v1700 = vld [vmem:[%s1694 + $0x28] sm:$0xff]
        %v1701 = vld [vmem:[%s1694 + $0x30] sm:$0xff]
        %v1702 = vld [vmem:[%s1694 + $0x38] sm:$0xff]
        %v1703 = vld [vmem:[%s1694 + $0x40] sm:$0xff]
        %v1704 = vld [vmem:[%s1694 + $0x48] sm:$0xff]
        %v1705 = vld [vmem:[%s1694 + $0x50] sm:$0xff]
        %v1706 = vld [vmem:[%s1694 + $0x58] sm:$0xff]
        %v1707 = vld [vmem:[%s1694 + $0x60] sm:$0xff]
        %v1708 = vld [vmem:[%s1694 + $0x68] sm:$0xff]
        %v1709 = vld [vmem:[%s1694 + $0x70] sm:$0xff]
        %v1710 = vld [vmem:[%s1694 + $0x78] sm:$0xff]
        %1711 = vmatprep.subr.mxu0 0.0
        %1712 = vmatpush1.msra.mxu0 %v1695
        %1713 = vmatprep.subr.mxu0 0.0
        %1714 = vmatpush1.msra.mxu0 %v1696
        %1715 = vmatprep.subr.mxu0 0.0
        %1716 = vmatpush1.msra.mxu0 %v1697
        %1717 = vmatprep.subr.mxu0 0.0
        %1718 = vmatpush1.msra.mxu0 %v1698
        %1719 = vmatprep.subr.mxu0 0.0
        %1720 = vmatpush1.msra.mxu0 %v1699
        %1721 = vmatprep.subr.mxu0 0.0
        %1722 = vmatpush1.msra.mxu0 %v1700
        %1723 = vmatprep.subr.mxu0 0.0
        %1724 = vmatpush1.msra.mxu0 %v1701
        %1725 = vmatprep.subr.mxu0 0.0
        %1726 = vmatpush1.msra.mxu0 %v1702
        %1727 = vmatprep.subr.mxu0 0.0
        %1728 = vmatpush1.msra.mxu0 %v1703
        %1729 = vmatprep.subr.mxu0 0.0
        %1730 = vmatpush1.msra.mxu0 %v1704
        %1731 = vmatprep.subr.mxu0 0.0
        %1732 = vmatpush1.msra.mxu0 %v1705
        %1733 = vmatprep.subr.mxu0 0.0
        %1734 = vmatpush1.msra.mxu0 %v1706
        %1735 = vmatprep.subr.mxu0 0.0
        %1736 = vmatpush1.msra.mxu0 %v1707
        %1737 = vmatprep.subr.mxu0 0.0
        %1738 = vmatpush1.msra.mxu0 %v1708
        %1739 = vmatprep.subr.mxu0 0.0
        %1740 = vmatpush1.msra.mxu0 %v1709
        %1741 = vmatprep.subr.mxu0 0.0
        %1742 = vmatpush1.msra.mxu0 %v1710
        %1743 = vmatprep.subr.mxu0 0.0
        %1744 = vmatpush1.msra.mxu0 0.0
        %1745 = vmatprep.subr.mxu0 0.0
        %1746 = vmatpush1.msra.mxu0 0.0
        %1747 = vmatprep.subr.mxu0 0.0
        %1748 = vmatpush1.msra.mxu0 0.0
        %1749 = vmatprep.subr.mxu0 0.0
        %1750 = vmatpush1.msra.mxu0 0.0
        %1751 = vmatprep.subr.mxu0 0.0
        %1752 = vmatpush1.msra.mxu0 0.0
        %1753 = vmatprep.subr.mxu0 0.0
        %1754 = vmatpush1.msra.mxu0 0.0
        %1755 = vmatprep.subr.mxu0 0.0
        %1756 = vmatpush1.msra.mxu0 0.0
        %1757 = vmatprep.subr.mxu0 0.0
        %1758 = vmatpush1.msra.mxu0 0.0
        %1759 = vmatprep.subr.mxu0 0.0
        %1760 = vmatpush1.msra.mxu0 0.0
        %1761 = vmatprep.subr.mxu0 0.0
        %1762 = vmatpush1.msra.mxu0 0.0
        %1763 = vmatprep.subr.mxu0 0.0
        %1764 = vmatpush1.msra.mxu0 0.0
        %1765 = vmatprep.subr.mxu0 0.0
        %1766 = vmatpush1.msra.mxu0 0.0
        %1767 = vmatprep.subr.mxu0 0.0
        %1768 = vmatpush1.msra.mxu0 0.0
        %1769 = vmatprep.subr.mxu0 0.0
        %1770 = vmatpush1.msra.mxu0 0.0
        %1771 = vmatprep.subr.mxu0 0.0
        %1772 = vmatpush1.msra.mxu0 0.0
        %1773 = vmatprep.subr.mxu0 0.0
        %1774 = vmatpush1.msra.mxu0 0.0
        %1775 = vmatprep.mubr.f32.mxu0 0.0
        %1776 = vmatmul.mubr.f32.gmra.mrb[0].mxu0 %v1662
        %v1777 = vpop.f32.mrb[0].mxu0
        %v1778 = vadd.f32 0.0, %v1777
        %v1779 = vpop.f32.mrb[0].mxu0
        %1780 = vmatprep.mubr.f32.mxu0 0.0
        %1781 = vmatmul.mubr.f32.gmra.mrb[0].mxu0 %v1663
        %v1782 = vpop.f32.mrb[0].mxu0
        %v1783 = vadd.f32 0.0, %v1782
        %v1784 = vpop.f32.mrb[0].mxu0
        %1785 = vmatprep.mubr.f32.mxu0 0.0
        %1786 = vmatmul.mubr.f32.gmra.mrb[0].mxu0 %v1664
        %v1787 = vpop.f32.mrb[0].mxu0
        %v1788 = vadd.f32 0.0, %v1787
        %v1789 = vpop.f32.mrb[0].mxu0
        %1790 = vmatprep.mubr.f32.mxu0 0.0
        %1791 = vmatmul.mubr.f32.gmra.mrb[0].mxu0 %v1665
        %v1792 = vpop.f32.mrb[0].mxu0
        %v1793 = vadd.f32 0.0, %v1792
        %v1794 = vpop.f32.mrb[0].mxu0
        %1795 = vmatprep.mubr.f32.mxu0 0.0
        %1796 = vmatmul.mubr.f32.gmra.mrb[0].mxu0 %v1666
        %v1797 = vpop.f32.mrb[0].mxu0
        %v1798 = vadd.f32 0.0, %v1797
        %v1799 = vpop.f32.mrb[0].mxu0
        %1800 = vmatprep.mubr.f32.mxu0 0.0
        %1801 = vmatmul.mubr.f32.gmra.mrb[0].mxu0 %v1667
        %v1802 = vpop.f32.mrb[0].mxu0
        %v1803 = vadd.f32 0.0, %v1802
        %v1804 = vpop.f32.mrb[0].mxu0
        %1805 = vmatprep.mubr.f32.mxu0 0.0
        %1806 = vmatmul.mubr.f32.gmra.mrb[0].mxu0 %v1668
        %v1807 = vpop.f32.mrb[0].mxu0
        %v1808 = vadd.f32 0.0, %v1807
        %v1809 = vpop.f32.mrb[0].mxu0
        %1810 = vmatprep.mubr.f32.mxu0 0.0
        %1811 = vmatmul.mubr.f32.gmra.mrb[0].mxu0 %v1669
        %v1812 = vpop.f32.mrb[0].mxu0
        %v1813 = vadd.f32 0.0, %v1812
        %v1814 = vpop.f32.mrb[0].mxu0
        %1815 = vmatprep.mubr.f32.mxu0 0.0
        %1816 = vmatmul.mubr.f32.gmra.mrb[0].mxu0 %v1670
        %v1817 = vpop.f32.mrb[0].mxu0
        %v1818 = vadd.f32 0.0, %v1817
        %v1819 = vpop.f32.mrb[0].mxu0
        %1820 = vmatprep.mubr.f32.mxu0 0.0
        %1821 = vmatmul.mubr.f32.gmra.mrb[0].mxu0 %v1671
        %v1822 = vpop.f32.mrb[0].mxu0
        %v1823 = vadd.f32 0.0, %v1822
        %v1824 = vpop.f32.mrb[0].mxu0
        %1825 = vmatprep.mubr.f32.mxu0 0.0
        %1826 = vmatmul.mubr.f32.gmra.mrb[0].mxu0 %v1672
        %v1827 = vpop.f32.mrb[0].mxu0
        %v1828 = vadd.f32 0.0, %v1827
        %v1829 = vpop.f32.mrb[0].mxu0
        %1830 = vmatprep.mubr.f32.mxu0 0.0
        %1831 = vmatmul.mubr.f32.gmra.mrb[0].mxu0 %v1673
        %v1832 = vpop.f32.mrb[0].mxu0
        %v1833 = vadd.f32 0.0, %v1832
        %v1834 = vpop.f32.mrb[0].mxu0
        %1835 = vmatprep.mubr.f32.mxu0 0.0
        %1836 = vmatmul.mubr.f32.gmra.mrb[0].mxu0 %v1674
        %v1837 = vpop.f32.mrb[0].mxu0
        %v1838 = vadd.f32 0.0, %v1837
        %v1839 = vpop.f32.mrb[0].mxu0
        %1840 = vmatprep.mubr.f32.mxu0 0.0
        %1841 = vmatmul.mubr.f32.gmra.mrb[0].mxu0 %v1675
        %v1842 = vpop.f32.mrb[0].mxu0
        %v1843 = vadd.f32 0.0, %v1842
        %v1844 = vpop.f32.mrb[0].mxu0
        %1845 = vmatprep.mubr.f32.mxu0 0.0
        %1846 = vmatmul.mubr.f32.gmra.mrb[0].mxu0 %v1676
        %v1847 = vpop.f32.mrb[0].mxu0
        %v1848 = vadd.f32 0.0, %v1847
        %v1849 = vpop.f32.mrb[0].mxu0
        %1850 = vmatprep.mubr.f32.mxu0 0.0
        %1851 = vmatmul.mubr.f32.gmra.mrb[0].mxu0 %v1677
        %v1852 = vpop.f32.mrb[0].mxu0
        %v1853 = vadd.f32 0.0, %v1852
        %v1854 = vpop.f32.mrb[0].mxu0
        %1855 = vmatprep.mubr.f32.mxu0 0.0
        %1856 = vmatmul.mubr.f32.gmra.mrb[0].mxu0 %v1678
        %v1857 = vpop.f32.mrb[0].mxu0
        %v1858 = vadd.f32 0.0, %v1857
        %v1859 = vpop.f32.mrb[0].mxu0
        %1860 = vmatprep.mubr.f32.mxu0 0.0
        %1861 = vmatmul.mubr.f32.gmra.mrb[0].mxu0 %v1679
        %v1862 = vpop.f32.mrb[0].mxu0
        %v1863 = vadd.f32 0.0, %v1862
        %v1864 = vpop.f32.mrb[0].mxu0
        %1865 = vmatprep.mubr.f32.mxu0 0.0
        %1866 = vmatmul.mubr.f32.gmra.mrb[0].mxu0 %v1680
        %v1867 = vpop.f32.mrb[0].mxu0
        %v1868 = vadd.f32 0.0, %v1867
        %v1869 = vpop.f32.mrb[0].mxu0
        %1870 = vmatprep.mubr.f32.mxu0 0.0
        %1871 = vmatmul.mubr.f32.gmra.mrb[0].mxu0 %v1681
        %v1872 = vpop.f32.mrb[0].mxu0
        %v1873 = vadd.f32 0.0, %v1872
        %v1874 = vpop.f32.mrb[0].mxu0
        %1875 = vmatprep.mubr.f32.mxu0 0.0
        %1876 = vmatmul.mubr.f32.gmra.mrb[0].mxu0 %v1682
        %v1877 = vpop.f32.mrb[0].mxu0
        %v1878 = vadd.f32 0.0, %v1877
        %v1879 = vpop.f32.mrb[0].mxu0
        %1880 = vmatprep.mubr.f32.mxu0 0.0
        %1881 = vmatmul.mubr.f32.gmra.mrb[0].mxu0 %v1683
        %v1882 = vpop.f32.mrb[0].mxu0
        %v1883 = vadd.f32 0.0, %v1882
        %v1884 = vpop.f32.mrb[0].mxu0
        %1885 = vmatprep.mubr.f32.mxu0 0.0
        %1886 = vmatmul.mubr.f32.gmra.mrb[0].mxu0 %v1684
        %v1887 = vpop.f32.mrb[0].mxu0
        %v1888 = vadd.f32 0.0, %v1887
        %v1889 = vpop.f32.mrb[0].mxu0
        %1890 = vmatprep.mubr.f32.mxu0 0.0
        %1891 = vmatmul.mubr.f32.gmra.mrb[0].mxu0 %v1685
        %v1892 = vpop.f32.mrb[0].mxu0
        %v1893 = vadd.f32 0.0, %v1892
        %v1894 = vpop.f32.mrb[0].mxu0
        %1895 = vmatprep.mubr.f32.mxu0 0.0
        %1896 = vmatmul.mubr.f32.gmra.mrb[0].mxu0 %v1686
        %v1897 = vpop.f32.mrb[0].mxu0
        %v1898 = vadd.f32 0.0, %v1897
        %v1899 = vpop.f32.mrb[0].mxu0
        %1900 = vmatprep.mubr.f32.mxu0 0.0
        %1901 = vmatmul.mubr.f32.gmra.mrb[0].mxu0 %v1687
        %v1902 = vpop.f32.mrb[0].mxu0
        %v1903 = vadd.f32 0.0, %v1902
        %v1904 = vpop.f32.mrb[0].mxu0
        %1905 = vmatprep.mubr.f32.mxu0 0.0
        %1906 = vmatmul.mubr.f32.gmra.mrb[0].mxu0 %v1688
        %v1907 = vpop.f32.mrb[0].mxu0
        %v1908 = vadd.f32 0.0, %v1907
        %v1909 = vpop.f32.mrb[0].mxu0
        %1910 = vmatprep.mubr.f32.mxu0 0.0
        %1911 = vmatmul.mubr.f32.gmra.mrb[0].mxu0 %v1689
        %v1912 = vpop.f32.mrb[0].mxu0
        %v1913 = vadd.f32 0.0, %v1912
        %v1914 = vpop.f32.mrb[0].mxu0
        %1915 = vmatprep.mubr.f32.mxu0 0.0
        %1916 = vmatmul.mubr.f32.gmra.mrb[0].mxu0 %v1690
        %v1917 = vpop.f32.mrb[0].mxu0
        %v1918 = vadd.f32 0.0, %v1917
        %v1919 = vpop.f32.mrb[0].mxu0
        %1920 = vmatprep.mubr.f32.mxu0 0.0
        %1921 = vmatmul.mubr.f32.gmra.mrb[0].mxu0 %v1691
        %v1922 = vpop.f32.mrb[0].mxu0
        %v1923 = vadd.f32 0.0, %v1922
        %v1924 = vpop.f32.mrb[0].mxu0
        %1925 = vmatprep.mubr.f32.mxu0 0.0
        %1926 = vmatmul.mubr.f32.gmra.mrb[0].mxu0 %v1692
        %v1927 = vpop.f32.mrb[0].mxu0
        %v1928 = vadd.f32 0.0, %v1927
        %v1929 = vpop.f32.mrb[0].mxu0
        %1930 = vmatprep.mubr.f32.mxu0 0.0
        %1931 = vmatmul.mubr.f32.gmra.mrb[0].mxu0 %v1693
        %v1932 = vpop.f32.mrb[0].mxu0
        %v1933 = vadd.f32 0.0, %v1932
        %v1934 = vpop.f32.mrb[0].mxu0
        %1935 = vdwg.mxu0
        %v1936 = vadd.f32 %v1630, %v1778
        %v1937 = vadd.f32 %v1631, %v1783
        %v1938 = vadd.f32 %v1632, %v1788
        %v1939 = vadd.f32 %v1633, %v1793
        %v1940 = vadd.f32 %v1634, %v1798
        %v1941 = vadd.f32 %v1635, %v1803
        %v1942 = vadd.f32 %v1636, %v1808
        %v1943 = vadd.f32 %v1637, %v1813
        %v1944 = vadd.f32 %v1638, %v1818
        %v1945 = vadd.f32 %v1639, %v1823
        %v1946 = vadd.f32 %v1640, %v1828
        %v1947 = vadd.f32 %v1641, %v1833
        %v1948 = vadd.f32 %v1642, %v1838
        %v1949 = vadd.f32 %v1643, %v1843
        %v1950 = vadd.f32 %v1644, %v1848
        %v1951 = vadd.f32 %v1645, %v1853
        %v1952 = vadd.f32 %v1646, %v1858
        %v1953 = vadd.f32 %v1647, %v1863
        %v1954 = vadd.f32 %v1648, %v1868
        %v1955 = vadd.f32 %v1649, %v1873
        %v1956 = vadd.f32 %v1650, %v1878
        %v1957 = vadd.f32 %v1651, %v1883
        %v1958 = vadd.f32 %v1652, %v1888
        %v1959 = vadd.f32 %v1653, %v1893
        %v1960 = vadd.f32 %v1654, %v1898
        %v1961 = vadd.f32 %v1655, %v1903
        %v1962 = vadd.f32 %v1656, %v1908
        %v1963 = vadd.f32 %v1657, %v1913
        %v1964 = vadd.f32 %v1658, %v1918
        %v1965 = vadd.f32 %v1659, %v1923
        %v1966 = vadd.f32 %v1660, %v1928
        %v1967 = vadd.f32 %v1661, %v1933
        %v1968 = vld [vmem:[%s470 + $0x2] sm:$0xff]
        %v1969 = vld [vmem:[%s470 + $0xa] sm:$0xff]
        %v1970 = vld [vmem:[%s470 + $0x1a] sm:$0xff]
        %v1971 = vld [vmem:[%s470 + $0x22] sm:$0xff]
        %v1972 = vld [vmem:[%s470 + $0x32] sm:$0xff]
        %v1973 = vld [vmem:[%s470 + $0x3a] sm:$0xff]
        %v1974 = vld [vmem:[%s470 + $0x4a] sm:$0xff]
        %v1975 = vld [vmem:[%s470 + $0x52] sm:$0xff]
        %v1976 = vld [vmem:[%s470 + $0x62] sm:$0xff]
        %v1977 = vld [vmem:[%s470 + $0x6a] sm:$0xff]
        %v1978 = vld [vmem:[%s470 + $0x7a] sm:$0xff]
        %v1979 = vld [vmem:[%s470 + $0x82] sm:$0xff]
        %v1980 = vld [vmem:[%s470 + $0x92] sm:$0xff]
        %v1981 = vld [vmem:[%s470 + $0x9a] sm:$0xff]
        %v1982 = vld [vmem:[%s470 + $0xaa] sm:$0xff]
        %v1983 = vld [vmem:[%s470 + $0xb2] sm:$0xff]
        %v1984 = vld [vmem:[%s470 + $0xc2] sm:$0xff]
        %v1985 = vld [vmem:[%s470 + $0xca] sm:$0xff]
        %v1986 = vld [vmem:[%s470 + $0xda] sm:$0xff]
        %v1987 = vld [vmem:[%s470 + $0xe2] sm:$0xff]
        %v1988 = vld [vmem:[%s470 + $0xf2] sm:$0xff]
        %v1989 = vld [vmem:[%s470 + $0xfa] sm:$0xff]
        %v1990 = vld [vmem:[%s470 + $0x10a] sm:$0xff]
        %v1991 = vld [vmem:[%s470 + $0x112] sm:$0xff]
        %v1992 = vld [vmem:[%s470 + $0x122] sm:$0xff]
        %v1993 = vld [vmem:[%s470 + $0x12a] sm:$0xff]
        %v1994 = vld [vmem:[%s470 + $0x13a] sm:$0xff]
        %v1995 = vld [vmem:[%s470 + $0x142] sm:$0xff]
        %v1996 = vld [vmem:[%s470 + $0x152] sm:$0xff]
        %v1997 = vld [vmem:[%s470 + $0x15a] sm:$0xff]
        %v1998 = vld [vmem:[%s470 + $0x16a] sm:$0xff]
        %v1999 = vld [vmem:[%s470 + $0x172] sm:$0xff]
        %s2000 = scalar_lea.vmem [#allocation7], 640
        %v2001 = vld [vmem:[%s2000] sm:$0xff]
        %v2002 = vld [vmem:[%s2000 + $0x8] sm:$0xff]
        %v2003 = vld [vmem:[%s2000 + $0x10] sm:$0xff]
        %v2004 = vld [vmem:[%s2000 + $0x18] sm:$0xff]
        %v2005 = vld [vmem:[%s2000 + $0x20] sm:$0xff]
        %v2006 = vld [vmem:[%s2000 + $0x28] sm:$0xff]
        %v2007 = vld [vmem:[%s2000 + $0x30] sm:$0xff]
        %v2008 = vld [vmem:[%s2000 + $0x38] sm:$0xff]
        %v2009 = vld [vmem:[%s2000 + $0x40] sm:$0xff]
        %v2010 = vld [vmem:[%s2000 + $0x48] sm:$0xff]
        %v2011 = vld [vmem:[%s2000 + $0x50] sm:$0xff]
        %v2012 = vld [vmem:[%s2000 + $0x58] sm:$0xff]
        %v2013 = vld [vmem:[%s2000 + $0x60] sm:$0xff]
        %v2014 = vld [vmem:[%s2000 + $0x68] sm:$0xff]
        %v2015 = vld [vmem:[%s2000 + $0x70] sm:$0xff]
        %v2016 = vld [vmem:[%s2000 + $0x78] sm:$0xff]
        %2017 = vmatprep.subr.mxu0 0.0
        %2018 = vmatpush1.msra.mxu0 %v2001
        %2019 = vmatprep.subr.mxu0 0.0
        %2020 = vmatpush1.msra.mxu0 %v2002
        %2021 = vmatprep.subr.mxu0 0.0
        %2022 = vmatpush1.msra.mxu0 %v2003
        %2023 = vmatprep.subr.mxu0 0.0
        %2024 = vmatpush1.msra.mxu0 %v2004
        %2025 = vmatprep.subr.mxu0 0.0
        %2026 = vmatpush1.msra.mxu0 %v2005
        %2027 = vmatprep.subr.mxu0 0.0
        %2028 = vmatpush1.msra.mxu0 %v2006
        %2029 = vmatprep.subr.mxu0 0.0
        %2030 = vmatpush1.msra.mxu0 %v2007
        %2031 = vmatprep.subr.mxu0 0.0
        %2032 = vmatpush1.msra.mxu0 %v2008
        %2033 = vmatprep.subr.mxu0 0.0
        %2034 = vmatpush1.msra.mxu0 %v2009
        %2035 = vmatprep.subr.mxu0 0.0
        %2036 = vmatpush1.msra.mxu0 %v2010
        %2037 = vmatprep.subr.mxu0 0.0
        %2038 = vmatpush1.msra.mxu0 %v2011
        %2039 = vmatprep.subr.mxu0 0.0
        %2040 = vmatpush1.msra.mxu0 %v2012
        %2041 = vmatprep.subr.mxu0 0.0
        %2042 = vmatpush1.msra.mxu0 %v2013
        %2043 = vmatprep.subr.mxu0 0.0
        %2044 = vmatpush1.msra.mxu0 %v2014
        %2045 = vmatprep.subr.mxu0 0.0
        %2046 = vmatpush1.msra.mxu0 %v2015
        %2047 = vmatprep.subr.mxu0 0.0
        %2048 = vmatpush1.msra.mxu0 %v2016
        %2049 = vmatprep.subr.mxu0 0.0
        %2050 = vmatpush1.msra.mxu0 0.0
        %2051 = vmatprep.subr.mxu0 0.0
        %2052 = vmatpush1.msra.mxu0 0.0
        %2053 = vmatprep.subr.mxu0 0.0
        %2054 = vmatpush1.msra.mxu0 0.0
        %2055 = vmatprep.subr.mxu0 0.0
        %2056 = vmatpush1.msra.mxu0 0.0
        %2057 = vmatprep.subr.mxu0 0.0
        %2058 = vmatpush1.msra.mxu0 0.0
        %2059 = vmatprep.subr.mxu0 0.0
        %2060 = vmatpush1.msra.mxu0 0.0
        %2061 = vmatprep.subr.mxu0 0.0
        %2062 = vmatpush1.msra.mxu0 0.0
        %2063 = vmatprep.subr.mxu0 0.0
        %2064 = vmatpush1.msra.mxu0 0.0
        %2065 = vmatprep.subr.mxu0 0.0
        %2066 = vmatpush1.msra.mxu0 0.0
        %2067 = vmatprep.subr.mxu0 0.0
        %2068 = vmatpush1.msra.mxu0 0.0
        %2069 = vmatprep.subr.mxu0 0.0
        %2070 = vmatpush1.msra.mxu0 0.0
        %2071 = vmatprep.subr.mxu0 0.0
        %2072 = vmatpush1.msra.mxu0 0.0
        %2073 = vmatprep.subr.mxu0 0.0
        %2074 = vmatpush1.msra.mxu0 0.0
        %2075 = vmatprep.subr.mxu0 0.0
        %2076 = vmatpush1.msra.mxu0 0.0
        %2077 = vmatprep.subr.mxu0 0.0
        %2078 = vmatpush1.msra.mxu0 0.0
        %2079 = vmatprep.subr.mxu0 0.0
        %2080 = vmatpush1.msra.mxu0 0.0
        %2081 = vmatprep.mubr.f32.mxu0 0.0
        %2082 = vmatmul.mubr.f32.gmra.mrb[0].mxu0 %v1968
        %v2083 = vpop.f32.mrb[0].mxu0
        %v2084 = vadd.f32 0.0, %v2083
        %v2085 = vpop.f32.mrb[0].mxu0
        %2086 = vmatprep.mubr.f32.mxu0 0.0
        %2087 = vmatmul.mubr.f32.gmra.mrb[0].mxu0 %v1969
        %v2088 = vpop.f32.mrb[0].mxu0
        %v2089 = vadd.f32 0.0, %v2088
        %v2090 = vpop.f32.mrb[0].mxu0
        %2091 = vmatprep.mubr.f32.mxu0 0.0
        %2092 = vmatmul.mubr.f32.gmra.mrb[0].mxu0 %v1970
        %v2093 = vpop.f32.mrb[0].mxu0
        %v2094 = vadd.f32 0.0, %v2093
        %v2095 = vpop.f32.mrb[0].mxu0
        %2096 = vmatprep.mubr.f32.mxu0 0.0
        %2097 = vmatmul.mubr.f32.gmra.mrb[0].mxu0 %v1971
        %v2098 = vpop.f32.mrb[0].mxu0
        %v2099 = vadd.f32 0.0, %v2098
        %v2100 = vpop.f32.mrb[0].mxu0
        %2101 = vmatprep.mubr.f32.mxu0 0.0
        %2102 = vmatmul.mubr.f32.gmra.mrb[0].mxu0 %v1972
        %v2103 = vpop.f32.mrb[0].mxu0
        %v2104 = vadd.f32 0.0, %v2103
        %v2105 = vpop.f32.mrb[0].mxu0
        %2106 = vmatprep.mubr.f32.mxu0 0.0
        %2107 = vmatmul.mubr.f32.gmra.mrb[0].mxu0 %v1973
        %v2108 = vpop.f32.mrb[0].mxu0
        %v2109 = vadd.f32 0.0, %v2108
        %v2110 = vpop.f32.mrb[0].mxu0
        %2111 = vmatprep.mubr.f32.mxu0 0.0
        %2112 = vmatmul.mubr.f32.gmra.mrb[0].mxu0 %v1974
        %v2113 = vpop.f32.mrb[0].mxu0
        %v2114 = vadd.f32 0.0, %v2113
        %v2115 = vpop.f32.mrb[0].mxu0
        %2116 = vmatprep.mubr.f32.mxu0 0.0
        %2117 = vmatmul.mubr.f32.gmra.mrb[0].mxu0 %v1975
        %v2118 = vpop.f32.mrb[0].mxu0
        %v2119 = vadd.f32 0.0, %v2118
        %v2120 = vpop.f32.mrb[0].mxu0
        %2121 = vmatprep.mubr.f32.mxu0 0.0
        %2122 = vmatmul.mubr.f32.gmra.mrb[0].mxu0 %v1976
        %v2123 = vpop.f32.mrb[0].mxu0
        %v2124 = vadd.f32 0.0, %v2123
        %v2125 = vpop.f32.mrb[0].mxu0
        %2126 = vmatprep.mubr.f32.mxu0 0.0
        %2127 = vmatmul.mubr.f32.gmra.mrb[0].mxu0 %v1977
        %v2128 = vpop.f32.mrb[0].mxu0
        %v2129 = vadd.f32 0.0, %v2128
        %v2130 = vpop.f32.mrb[0].mxu0
        %2131 = vmatprep.mubr.f32.mxu0 0.0
        %2132 = vmatmul.mubr.f32.gmra.mrb[0].mxu0 %v1978
        %v2133 = vpop.f32.mrb[0].mxu0
        %v2134 = vadd.f32 0.0, %v2133
        %v2135 = vpop.f32.mrb[0].mxu0
        %2136 = vmatprep.mubr.f32.mxu0 0.0
        %2137 = vmatmul.mubr.f32.gmra.mrb[0].mxu0 %v1979
        %v2138 = vpop.f32.mrb[0].mxu0
        %v2139 = vadd.f32 0.0, %v2138
        %v2140 = vpop.f32.mrb[0].mxu0
        %2141 = vmatprep.mubr.f32.mxu0 0.0
        %2142 = vmatmul.mubr.f32.gmra.mrb[0].mxu0 %v1980
        %v2143 = vpop.f32.mrb[0].mxu0
        %v2144 = vadd.f32 0.0, %v2143
        %v2145 = vpop.f32.mrb[0].mxu0
        %2146 = vmatprep.mubr.f32.mxu0 0.0
        %2147 = vmatmul.mubr.f32.gmra.mrb[0].mxu0 %v1981
        %v2148 = vpop.f32.mrb[0].mxu0
        %v2149 = vadd.f32 0.0, %v2148
        %v2150 = vpop.f32.mrb[0].mxu0
        %2151 = vmatprep.mubr.f32.mxu0 0.0
        %2152 = vmatmul.mubr.f32.gmra.mrb[0].mxu0 %v1982
        %v2153 = vpop.f32.mrb[0].mxu0
        %v2154 = vadd.f32 0.0, %v2153
        %v2155 = vpop.f32.mrb[0].mxu0
        %2156 = vmatprep.mubr.f32.mxu0 0.0
        %2157 = vmatmul.mubr.f32.gmra.mrb[0].mxu0 %v1983
        %v2158 = vpop.f32.mrb[0].mxu0
        %v2159 = vadd.f32 0.0, %v2158
        %v2160 = vpop.f32.mrb[0].mxu0
        %2161 = vmatprep.mubr.f32.mxu0 0.0
        %2162 = vmatmul.mubr.f32.gmra.mrb[0].mxu0 %v1984
        %v2163 = vpop.f32.mrb[0].mxu0
        %v2164 = vadd.f32 0.0, %v2163
        %v2165 = vpop.f32.mrb[0].mxu0
        %2166 = vmatprep.mubr.f32.mxu0 0.0
        %2167 = vmatmul.mubr.f32.gmra.mrb[0].mxu0 %v1985
        %v2168 = vpop.f32.mrb[0].mxu0
        %v2169 = vadd.f32 0.0, %v2168
        %v2170 = vpop.f32.mrb[0].mxu0
        %2171 = vmatprep.mubr.f32.mxu0 0.0
        %2172 = vmatmul.mubr.f32.gmra.mrb[0].mxu0 %v1986
        %v2173 = vpop.f32.mrb[0].mxu0
        %v2174 = vadd.f32 0.0, %v2173
        %v2175 = vpop.f32.mrb[0].mxu0
        %2176 = vmatprep.mubr.f32.mxu0 0.0
        %2177 = vmatmul.mubr.f32.gmra.mrb[0].mxu0 %v1987
        %v2178 = vpop.f32.mrb[0].mxu0
        %v2179 = vadd.f32 0.0, %v2178
        %v2180 = vpop.f32.mrb[0].mxu0
        %2181 = vmatprep.mubr.f32.mxu0 0.0
        %2182 = vmatmul.mubr.f32.gmra.mrb[0].mxu0 %v1988
        %v2183 = vpop.f32.mrb[0].mxu0
        %v2184 = vadd.f32 0.0, %v2183
        %v2185 = vpop.f32.mrb[0].mxu0
        %2186 = vmatprep.mubr.f32.mxu0 0.0
        %2187 = vmatmul.mubr.f32.gmra.mrb[0].mxu0 %v1989
        %v2188 = vpop.f32.mrb[0].mxu0
        %v2189 = vadd.f32 0.0, %v2188
        %v2190 = vpop.f32.mrb[0].mxu0
        %2191 = vmatprep.mubr.f32.mxu0 0.0
        %2192 = vmatmul.mubr.f32.gmra.mrb[0].mxu0 %v1990
        %v2193 = vpop.f32.mrb[0].mxu0
        %v2194 = vadd.f32 0.0, %v2193
        %v2195 = vpop.f32.mrb[0].mxu0
        %2196 = vmatprep.mubr.f32.mxu0 0.0
        %2197 = vmatmul.mubr.f32.gmra.mrb[0].mxu0 %v1991
        %v2198 = vpop.f32.mrb[0].mxu0
        %v2199 = vadd.f32 0.0, %v2198
        %v2200 = vpop.f32.mrb[0].mxu0
        %2201 = vmatprep.mubr.f32.mxu0 0.0
        %2202 = vmatmul.mubr.f32.gmra.mrb[0].mxu0 %v1992
        %v2203 = vpop.f32.mrb[0].mxu0
        %v2204 = vadd.f32 0.0, %v2203
        %v2205 = vpop.f32.mrb[0].mxu0
        %2206 = vmatprep.mubr.f32.mxu0 0.0
        %2207 = vmatmul.mubr.f32.gmra.mrb[0].mxu0 %v1993
        %v2208 = vpop.f32.mrb[0].mxu0
        %v2209 = vadd.f32 0.0, %v2208
        %v2210 = vpop.f32.mrb[0].mxu0
        %2211 = vmatprep.mubr.f32.mxu0 0.0
        %2212 = vmatmul.mubr.f32.gmra.mrb[0].mxu0 %v1994
        %v2213 = vpop.f32.mrb[0].mxu0
        %v2214 = vadd.f32 0.0, %v2213
        %v2215 = vpop.f32.mrb[0].mxu0
        %2216 = vmatprep.mubr.f32.mxu0 0.0
        %2217 = vmatmul.mubr.f32.gmra.mrb[0].mxu0 %v1995
        %v2218 = vpop.f32.mrb[0].mxu0
        %v2219 = vadd.f32 0.0, %v2218
        %v2220 = vpop.f32.mrb[0].mxu0
        %2221 = vmatprep.mubr.f32.mxu0 0.0
        %2222 = vmatmul.mubr.f32.gmra.mrb[0].mxu0 %v1996
        %v2223 = vpop.f32.mrb[0].mxu0
        %v2224 = vadd.f32 0.0, %v2223
        %v2225 = vpop.f32.mrb[0].mxu0
        %2226 = vmatprep.mubr.f32.mxu0 0.0
        %2227 = vmatmul.mubr.f32.gmra.mrb[0].mxu0 %v1997
        %v2228 = vpop.f32.mrb[0].mxu0
        %v2229 = vadd.f32 0.0, %v2228
        %v2230 = vpop.f32.mrb[0].mxu0
        %2231 = vmatprep.mubr.f32.mxu0 0.0
        %2232 = vmatmul.mubr.f32.gmra.mrb[0].mxu0 %v1998
        %v2233 = vpop.f32.mrb[0].mxu0
        %v2234 = vadd.f32 0.0, %v2233
        %v2235 = vpop.f32.mrb[0].mxu0
        %2236 = vmatprep.mubr.f32.mxu0 0.0
        %2237 = vmatmul.mubr.f32.gmra.mrb[0].mxu0 %v1999
        %v2238 = vpop.f32.mrb[0].mxu0
        %v2239 = vadd.f32 0.0, %v2238
        %v2240 = vpop.f32.mrb[0].mxu0
        %2241 = vdwg.mxu0
        %v2242 = vadd.f32 %v1936, %v2084
        %v2243 = vadd.f32 %v1937, %v2089
        %v2244 = vadd.f32 %v1938, %v2094
        %v2245 = vadd.f32 %v1939, %v2099
        %v2246 = vadd.f32 %v1940, %v2104
        %v2247 = vadd.f32 %v1941, %v2109
        %v2248 = vadd.f32 %v1942, %v2114
        %v2249 = vadd.f32 %v1943, %v2119
        %v2250 = vadd.f32 %v1944, %v2124
        %v2251 = vadd.f32 %v1945, %v2129
        %v2252 = vadd.f32 %v1946, %v2134
        %v2253 = vadd.f32 %v1947, %v2139
        %v2254 = vadd.f32 %v1948, %v2144
        %v2255 = vadd.f32 %v1949, %v2149
        %v2256 = vadd.f32 %v1950, %v2154
        %v2257 = vadd.f32 %v1951, %v2159
        %v2258 = vadd.f32 %v1952, %v2164
        %v2259 = vadd.f32 %v1953, %v2169
        %v2260 = vadd.f32 %v1954, %v2174
        %v2261 = vadd.f32 %v1955, %v2179
        %v2262 = vadd.f32 %v1956, %v2184
        %v2263 = vadd.f32 %v1957, %v2189
        %v2264 = vadd.f32 %v1958, %v2194
        %v2265 = vadd.f32 %v1959, %v2199
        %v2266 = vadd.f32 %v1960, %v2204
        %v2267 = vadd.f32 %v1961, %v2209
        %v2268 = vadd.f32 %v1962, %v2214
        %v2269 = vadd.f32 %v1963, %v2219
        %v2270 = vadd.f32 %v1964, %v2224
        %v2271 = vadd.f32 %v1965, %v2229
        %v2272 = vadd.f32 %v1966, %v2234
        %v2273 = vadd.f32 %v1967, %v2239
        %s2274 = scalar_lea.vmem [#allocation2], 48
        %v2275 = vld [vmem:[%s2274] sm:$0xff]
        %v2276 = vld [vmem:[%s2274 + $0x8] sm:$0xff]
        %v2277 = vld [vmem:[%s2274 + $0x18] sm:$0xff]
        %v2278 = vld [vmem:[%s2274 + $0x20] sm:$0xff]
        %v2279 = vld [vmem:[%s2274 + $0x30] sm:$0xff]
        %v2280 = vld [vmem:[%s2274 + $0x38] sm:$0xff]
        %v2281 = vld [vmem:[%s2274 + $0x48] sm:$0xff]
        %v2282 = vld [vmem:[%s2274 + $0x50] sm:$0xff]
        %v2283 = vld [vmem:[%s2274 + $0x60] sm:$0xff]
        %v2284 = vld [vmem:[%s2274 + $0x68] sm:$0xff]
        %v2285 = vld [vmem:[%s2274 + $0x78] sm:$0xff]
        %v2286 = vld [vmem:[%s2274 + $0x80] sm:$0xff]
        %v2287 = vld [vmem:[%s2274 + $0x90] sm:$0xff]
        %v2288 = vld [vmem:[%s2274 + $0x98] sm:$0xff]
        %v2289 = vld [vmem:[%s2274 + $0xa8] sm:$0xff]
        %v2290 = vld [vmem:[%s2274 + $0xb0] sm:$0xff]
        %v2291 = vld [vmem:[%s2274 + $0xc0] sm:$0xff]
        %v2292 = vld [vmem:[%s2274 + $0xc8] sm:$0xff]
        %v2293 = vld [vmem:[%s2274 + $0xd8] sm:$0xff]
        %v2294 = vld [vmem:[%s2274 + $0xe0] sm:$0xff]
        %v2295 = vld [vmem:[%s2274 + $0xf0] sm:$0xff]
        %v2296 = vld [vmem:[%s2274 + $0xf8] sm:$0xff]
        %v2297 = vld [vmem:[%s2274 + $0x108] sm:$0xff]
        %v2298 = vld [vmem:[%s2274 + $0x110] sm:$0xff]
        %v2299 = vld [vmem:[%s2274 + $0x120] sm:$0xff]
        %v2300 = vld [vmem:[%s2274 + $0x128] sm:$0xff]
        %v2301 = vld [vmem:[%s2274 + $0x138] sm:$0xff]
        %v2302 = vld [vmem:[%s2274 + $0x140] sm:$0xff]
        %v2303 = vld [vmem:[%s2274 + $0x150] sm:$0xff]
        %v2304 = vld [vmem:[%s2274 + $0x158] sm:$0xff]
        %v2305 = vld [vmem:[%s2274 + $0x168] sm:$0xff]
        %v2306 = vld [vmem:[%s2274 + $0x170] sm:$0xff]
        %s2307 = scalar_lea.vmem [#allocation7], 768
        %v2308 = vld [vmem:[%s2307] sm:$0xff]
        %v2309 = vld [vmem:[%s2307 + $0x8] sm:$0xff]
        %v2310 = vld [vmem:[%s2307 + $0x10] sm:$0xff]
        %v2311 = vld [vmem:[%s2307 + $0x18] sm:$0xff]
        %v2312 = vld [vmem:[%s2307 + $0x20] sm:$0xff]
        %v2313 = vld [vmem:[%s2307 + $0x28] sm:$0xff]
        %v2314 = vld [vmem:[%s2307 + $0x30] sm:$0xff]
        %v2315 = vld [vmem:[%s2307 + $0x38] sm:$0xff]
        %v2316 = vld [vmem:[%s2307 + $0x40] sm:$0xff]
        %v2317 = vld [vmem:[%s2307 + $0x48] sm:$0xff]
        %v2318 = vld [vmem:[%s2307 + $0x50] sm:$0xff]
        %v2319 = vld [vmem:[%s2307 + $0x58] sm:$0xff]
        %v2320 = vld [vmem:[%s2307 + $0x60] sm:$0xff]
        %v2321 = vld [vmem:[%s2307 + $0x68] sm:$0xff]
        %v2322 = vld [vmem:[%s2307 + $0x70] sm:$0xff]
        %v2323 = vld [vmem:[%s2307 + $0x78] sm:$0xff]
        %2324 = vmatprep.subr.mxu0 0.0
        %2325 = vmatpush1.msra.mxu0 %v2308
        %2326 = vmatprep.subr.mxu0 0.0
        %2327 = vmatpush1.msra.mxu0 %v2309
        %2328 = vmatprep.subr.mxu0 0.0
        %2329 = vmatpush1.msra.mxu0 %v2310
        %2330 = vmatprep.subr.mxu0 0.0
        %2331 = vmatpush1.msra.mxu0 %v2311
        %2332 = vmatprep.subr.mxu0 0.0
        %2333 = vmatpush1.msra.mxu0 %v2312
        %2334 = vmatprep.subr.mxu0 0.0
        %2335 = vmatpush1.msra.mxu0 %v2313
        %2336 = vmatprep.subr.mxu0 0.0
        %2337 = vmatpush1.msra.mxu0 %v2314
        %2338 = vmatprep.subr.mxu0 0.0
        %2339 = vmatpush1.msra.mxu0 %v2315
        %2340 = vmatprep.subr.mxu0 0.0
        %2341 = vmatpush1.msra.mxu0 %v2316
        %2342 = vmatprep.subr.mxu0 0.0
        %2343 = vmatpush1.msra.mxu0 %v2317
        %2344 = vmatprep.subr.mxu0 0.0
        %2345 = vmatpush1.msra.mxu0 %v2318
        %2346 = vmatprep.subr.mxu0 0.0
        %2347 = vmatpush1.msra.mxu0 %v2319
        %2348 = vmatprep.subr.mxu0 0.0
        %2349 = vmatpush1.msra.mxu0 %v2320
        %2350 = vmatprep.subr.mxu0 0.0
        %2351 = vmatpush1.msra.mxu0 %v2321
        %2352 = vmatprep.subr.mxu0 0.0
        %2353 = vmatpush1.msra.mxu0 %v2322
        %2354 = vmatprep.subr.mxu0 0.0
        %2355 = vmatpush1.msra.mxu0 %v2323
        %2356 = vmatprep.subr.mxu0 0.0
        %2357 = vmatpush1.msra.mxu0 0.0
        %2358 = vmatprep.subr.mxu0 0.0
        %2359 = vmatpush1.msra.mxu0 0.0
        %2360 = vmatprep.subr.mxu0 0.0
        %2361 = vmatpush1.msra.mxu0 0.0
        %2362 = vmatprep.subr.mxu0 0.0
        %2363 = vmatpush1.msra.mxu0 0.0
        %2364 = vmatprep.subr.mxu0 0.0
        %2365 = vmatpush1.msra.mxu0 0.0
        %2366 = vmatprep.subr.mxu0 0.0
        %2367 = vmatpush1.msra.mxu0 0.0
        %2368 = vmatprep.subr.mxu0 0.0
        %2369 = vmatpush1.msra.mxu0 0.0
        %2370 = vmatprep.subr.mxu0 0.0
        %2371 = vmatpush1.msra.mxu0 0.0
        %2372 = vmatprep.subr.mxu0 0.0
        %2373 = vmatpush1.msra.mxu0 0.0
        %2374 = vmatprep.subr.mxu0 0.0
        %2375 = vmatpush1.msra.mxu0 0.0
        %2376 = vmatprep.subr.mxu0 0.0
        %2377 = vmatpush1.msra.mxu0 0.0
        %2378 = vmatprep.subr.mxu0 0.0
        %2379 = vmatpush1.msra.mxu0 0.0
        %2380 = vmatprep.subr.mxu0 0.0
        %2381 = vmatpush1.msra.mxu0 0.0
        %2382 = vmatprep.subr.mxu0 0.0
        %2383 = vmatpush1.msra.mxu0 0.0
        %2384 = vmatprep.subr.mxu0 0.0
        %2385 = vmatpush1.msra.mxu0 0.0
        %2386 = vmatprep.subr.mxu0 0.0
        %2387 = vmatpush1.msra.mxu0 0.0
        %2388 = vmatprep.mubr.f32.mxu0 0.0
        %2389 = vmatmul.mubr.f32.gmra.mrb[0].mxu0 %v2275
        %v2390 = vpop.f32.mrb[0].mxu0
        %v2391 = vadd.f32 0.0, %v2390
        %v2392 = vpop.f32.mrb[0].mxu0
        %2393 = vmatprep.mubr.f32.mxu0 0.0
        %2394 = vmatmul.mubr.f32.gmra.mrb[0].mxu0 %v2276
        %v2395 = vpop.f32.mrb[0].mxu0
        %v2396 = vadd.f32 0.0, %v2395
        %v2397 = vpop.f32.mrb[0].mxu0
        %2398 = vmatprep.mubr.f32.mxu0 0.0
        %2399 = vmatmul.mubr.f32.gmra.mrb[0].mxu0 %v2277
        %v2400 = vpop.f32.mrb[0].mxu0
        %v2401 = vadd.f32 0.0, %v2400
        %v2402 = vpop.f32.mrb[0].mxu0
        %2403 = vmatprep.mubr.f32.mxu0 0.0
        %2404 = vmatmul.mubr.f32.gmra.mrb[0].mxu0 %v2278
        %v2405 = vpop.f32.mrb[0].mxu0
        %v2406 = vadd.f32 0.0, %v2405
        %v2407 = vpop.f32.mrb[0].mxu0
        %2408 = vmatprep.mubr.f32.mxu0 0.0
        %2409 = vmatmul.mubr.f32.gmra.mrb[0].mxu0 %v2279
        %v2410 = vpop.f32.mrb[0].mxu0
        %v2411 = vadd.f32 0.0, %v2410
        %v2412 = vpop.f32.mrb[0].mxu0
        %2413 = vmatprep.mubr.f32.mxu0 0.0
        %2414 = vmatmul.mubr.f32.gmra.mrb[0].mxu0 %v2280
        %v2415 = vpop.f32.mrb[0].mxu0
        %v2416 = vadd.f32 0.0, %v2415
        %v2417 = vpop.f32.mrb[0].mxu0
        %2418 = vmatprep.mubr.f32.mxu0 0.0
        %2419 = vmatmul.mubr.f32.gmra.mrb[0].mxu0 %v2281
        %v2420 = vpop.f32.mrb[0].mxu0
        %v2421 = vadd.f32 0.0, %v2420
        %v2422 = vpop.f32.mrb[0].mxu0
        %2423 = vmatprep.mubr.f32.mxu0 0.0
        %2424 = vmatmul.mubr.f32.gmra.mrb[0].mxu0 %v2282
        %v2425 = vpop.f32.mrb[0].mxu0
        %v2426 = vadd.f32 0.0, %v2425
        %v2427 = vpop.f32.mrb[0].mxu0
        %2428 = vmatprep.mubr.f32.mxu0 0.0
        %2429 = vmatmul.mubr.f32.gmra.mrb[0].mxu0 %v2283
        %v2430 = vpop.f32.mrb[0].mxu0
        %v2431 = vadd.f32 0.0, %v2430
        %v2432 = vpop.f32.mrb[0].mxu0
        %2433 = vmatprep.mubr.f32.mxu0 0.0
        %2434 = vmatmul.mubr.f32.gmra.mrb[0].mxu0 %v2284
        %v2435 = vpop.f32.mrb[0].mxu0
        %v2436 = vadd.f32 0.0, %v2435
        %v2437 = vpop.f32.mrb[0].mxu0
        %2438 = vmatprep.mubr.f32.mxu0 0.0
        %2439 = vmatmul.mubr.f32.gmra.mrb[0].mxu0 %v2285
        %v2440 = vpop.f32.mrb[0].mxu0
        %v2441 = vadd.f32 0.0, %v2440
        %v2442 = vpop.f32.mrb[0].mxu0
        %2443 = vmatprep.mubr.f32.mxu0 0.0
        %2444 = vmatmul.mubr.f32.gmra.mrb[0].mxu0 %v2286
        %v2445 = vpop.f32.mrb[0].mxu0
        %v2446 = vadd.f32 0.0, %v2445
        %v2447 = vpop.f32.mrb[0].mxu0
        %2448 = vmatprep.mubr.f32.mxu0 0.0
        %2449 = vmatmul.mubr.f32.gmra.mrb[0].mxu0 %v2287
        %v2450 = vpop.f32.mrb[0].mxu0
        %v2451 = vadd.f32 0.0, %v2450
        %v2452 = vpop.f32.mrb[0].mxu0
        %2453 = vmatprep.mubr.f32.mxu0 0.0
        %2454 = vmatmul.mubr.f32.gmra.mrb[0].mxu0 %v2288
        %v2455 = vpop.f32.mrb[0].mxu0
        %v2456 = vadd.f32 0.0, %v2455
        %v2457 = vpop.f32.mrb[0].mxu0
        %2458 = vmatprep.mubr.f32.mxu0 0.0
        %2459 = vmatmul.mubr.f32.gmra.mrb[0].mxu0 %v2289
        %v2460 = vpop.f32.mrb[0].mxu0
        %v2461 = vadd.f32 0.0, %v2460
        %v2462 = vpop.f32.mrb[0].mxu0
        %2463 = vmatprep.mubr.f32.mxu0 0.0
        %2464 = vmatmul.mubr.f32.gmra.mrb[0].mxu0 %v2290
        %v2465 = vpop.f32.mrb[0].mxu0
        %v2466 = vadd.f32 0.0, %v2465
        %v2467 = vpop.f32.mrb[0].mxu0
        %2468 = vmatprep.mubr.f32.mxu0 0.0
        %2469 = vmatmul.mubr.f32.gmra.mrb[0].mxu0 %v2291
        %v2470 = vpop.f32.mrb[0].mxu0
        %v2471 = vadd.f32 0.0, %v2470
        %v2472 = vpop.f32.mrb[0].mxu0
        %2473 = vmatprep.mubr.f32.mxu0 0.0
        %2474 = vmatmul.mubr.f32.gmra.mrb[0].mxu0 %v2292
        %v2475 = vpop.f32.mrb[0].mxu0
        %v2476 = vadd.f32 0.0, %v2475
        %v2477 = vpop.f32.mrb[0].mxu0
        %2478 = vmatprep.mubr.f32.mxu0 0.0
        %2479 = vmatmul.mubr.f32.gmra.mrb[0].mxu0 %v2293
        %v2480 = vpop.f32.mrb[0].mxu0
        %v2481 = vadd.f32 0.0, %v2480
        %v2482 = vpop.f32.mrb[0].mxu0
        %2483 = vmatprep.mubr.f32.mxu0 0.0
        %2484 = vmatmul.mubr.f32.gmra.mrb[0].mxu0 %v2294
        %v2485 = vpop.f32.mrb[0].mxu0
        %v2486 = vadd.f32 0.0, %v2485
        %v2487 = vpop.f32.mrb[0].mxu0
        %2488 = vmatprep.mubr.f32.mxu0 0.0
        %2489 = vmatmul.mubr.f32.gmra.mrb[0].mxu0 %v2295
        %v2490 = vpop.f32.mrb[0].mxu0
        %v2491 = vadd.f32 0.0, %v2490
        %v2492 = vpop.f32.mrb[0].mxu0
        %2493 = vmatprep.mubr.f32.mxu0 0.0
        %2494 = vmatmul.mubr.f32.gmra.mrb[0].mxu0 %v2296
        %v2495 = vpop.f32.mrb[0].mxu0
        %v2496 = vadd.f32 0.0, %v2495
        %v2497 = vpop.f32.mrb[0].mxu0
        %2498 = vmatprep.mubr.f32.mxu0 0.0
        %2499 = vmatmul.mubr.f32.gmra.mrb[0].mxu0 %v2297
        %v2500 = vpop.f32.mrb[0].mxu0
        %v2501 = vadd.f32 0.0, %v2500
        %v2502 = vpop.f32.mrb[0].mxu0
        %2503 = vmatprep.mubr.f32.mxu0 0.0
        %2504 = vmatmul.mubr.f32.gmra.mrb[0].mxu0 %v2298
        %v2505 = vpop.f32.mrb[0].mxu0
        %v2506 = vadd.f32 0.0, %v2505
        %v2507 = vpop.f32.mrb[0].mxu0
        %2508 = vmatprep.mubr.f32.mxu0 0.0
        %2509 = vmatmul.mubr.f32.gmra.mrb[0].mxu0 %v2299
        %v2510 = vpop.f32.mrb[0].mxu0
        %v2511 = vadd.f32 0.0, %v2510
        %v2512 = vpop.f32.mrb[0].mxu0
        %2513 = vmatprep.mubr.f32.mxu0 0.0
        %2514 = vmatmul.mubr.f32.gmra.mrb[0].mxu0 %v2300
        %v2515 = vpop.f32.mrb[0].mxu0
        %v2516 = vadd.f32 0.0, %v2515
        %v2517 = vpop.f32.mrb[0].mxu0
        %2518 = vmatprep.mubr.f32.mxu0 0.0
        %2519 = vmatmul.mubr.f32.gmra.mrb[0].mxu0 %v2301
        %v2520 = vpop.f32.mrb[0].mxu0
        %v2521 = vadd.f32 0.0, %v2520
        %v2522 = vpop.f32.mrb[0].mxu0
        %2523 = vmatprep.mubr.f32.mxu0 0.0
        %2524 = vmatmul.mubr.f32.gmra.mrb[0].mxu0 %v2302
        %v2525 = vpop.f32.mrb[0].mxu0
        %v2526 = vadd.f32 0.0, %v2525
        %v2527 = vpop.f32.mrb[0].mxu0
        %2528 = vmatprep.mubr.f32.mxu0 0.0
        %2529 = vmatmul.mubr.f32.gmra.mrb[0].mxu0 %v2303
        %v2530 = vpop.f32.mrb[0].mxu0
        %v2531 = vadd.f32 0.0, %v2530
        %v2532 = vpop.f32.mrb[0].mxu0
        %2533 = vmatprep.mubr.f32.mxu0 0.0
        %2534 = vmatmul.mubr.f32.gmra.mrb[0].mxu0 %v2304
        %v2535 = vpop.f32.mrb[0].mxu0
        %v2536 = vadd.f32 0.0, %v2535
        %v2537 = vpop.f32.mrb[0].mxu0
        %2538 = vmatprep.mubr.f32.mxu0 0.0
        %2539 = vmatmul.mubr.f32.gmra.mrb[0].mxu0 %v2305
        %v2540 = vpop.f32.mrb[0].mxu0
        %v2541 = vadd.f32 0.0, %v2540
        %v2542 = vpop.f32.mrb[0].mxu0
        %2543 = vmatprep.mubr.f32.mxu0 0.0
        %2544 = vmatmul.mubr.f32.gmra.mrb[0].mxu0 %v2306
        %v2545 = vpop.f32.mrb[0].mxu0
        %v2546 = vadd.f32 0.0, %v2545
        %v2547 = vpop.f32.mrb[0].mxu0
        %2548 = vdwg.mxu0
        %v2549 = vadd.f32 %v2242, %v2391
        %v2550 = vadd.f32 %v2243, %v2396
        %v2551 = vadd.f32 %v2244, %v2401
        %v2552 = vadd.f32 %v2245, %v2406
        %v2553 = vadd.f32 %v2246, %v2411
        %v2554 = vadd.f32 %v2247, %v2416
        %v2555 = vadd.f32 %v2248, %v2421
        %v2556 = vadd.f32 %v2249, %v2426
        %v2557 = vadd.f32 %v2250, %v2431
        %v2558 = vadd.f32 %v2251, %v2436
        %v2559 = vadd.f32 %v2252, %v2441
        %v2560 = vadd.f32 %v2253, %v2446
        %v2561 = vadd.f32 %v2254, %v2451
        %v2562 = vadd.f32 %v2255, %v2456
        %v2563 = vadd.f32 %v2256, %v2461
        %v2564 = vadd.f32 %v2257, %v2466
        %v2565 = vadd.f32 %v2258, %v2471
        %v2566 = vadd.f32 %v2259, %v2476
        %v2567 = vadd.f32 %v2260, %v2481
        %v2568 = vadd.f32 %v2261, %v2486
        %v2569 = vadd.f32 %v2262, %v2491
        %v2570 = vadd.f32 %v2263, %v2496
        %v2571 = vadd.f32 %v2264, %v2501
        %v2572 = vadd.f32 %v2265, %v2506
        %v2573 = vadd.f32 %v2266, %v2511
        %v2574 = vadd.f32 %v2267, %v2516
        %v2575 = vadd.f32 %v2268, %v2521
        %v2576 = vadd.f32 %v2269, %v2526
        %v2577 = vadd.f32 %v2270, %v2531
        %v2578 = vadd.f32 %v2271, %v2536
        %v2579 = vadd.f32 %v2272, %v2541
        %v2580 = vadd.f32 %v2273, %v2546
        %v2581 = vld [vmem:[%s2274 + $0x1] sm:$0xff]
        %v2582 = vld [vmem:[%s2274 + $0x9] sm:$0xff]
        %v2583 = vld [vmem:[%s2274 + $0x19] sm:$0xff]
        %v2584 = vld [vmem:[%s2274 + $0x21] sm:$0xff]
        %v2585 = vld [vmem:[%s2274 + $0x31] sm:$0xff]
        %v2586 = vld [vmem:[%s2274 + $0x39] sm:$0xff]
        %v2587 = vld [vmem:[%s2274 + $0x49] sm:$0xff]
        %v2588 = vld [vmem:[%s2274 + $0x51] sm:$0xff]
        %v2589 = vld [vmem:[%s2274 + $0x61] sm:$0xff]
        %v2590 = vld [vmem:[%s2274 + $0x69] sm:$0xff]
        %v2591 = vld [vmem:[%s2274 + $0x79] sm:$0xff]
        %v2592 = vld [vmem:[%s2274 + $0x81] sm:$0xff]
        %v2593 = vld [vmem:[%s2274 + $0x91] sm:$0xff]
        %v2594 = vld [vmem:[%s2274 + $0x99] sm:$0xff]
        %v2595 = vld [vmem:[%s2274 + $0xa9] sm:$0xff]
        %v2596 = vld [vmem:[%s2274 + $0xb1] sm:$0xff]
        %v2597 = vld [vmem:[%s2274 + $0xc1] sm:$0xff]
        %v2598 = vld [vmem:[%s2274 + $0xc9] sm:$0xff]
        %v2599 = vld [vmem:[%s2274 + $0xd9] sm:$0xff]
        %v2600 = vld [vmem:[%s2274 + $0xe1] sm:$0xff]
        %v2601 = vld [vmem:[%s2274 + $0xf1] sm:$0xff]
        %v2602 = vld [vmem:[%s2274 + $0xf9] sm:$0xff]
        %v2603 = vld [vmem:[%s2274 + $0x109] sm:$0xff]
        %v2604 = vld [vmem:[%s2274 + $0x111] sm:$0xff]
        %v2605 = vld [vmem:[%s2274 + $0x121] sm:$0xff]
        %v2606 = vld [vmem:[%s2274 + $0x129] sm:$0xff]
        %v2607 = vld [vmem:[%s2274 + $0x139] sm:$0xff]
        %v2608 = vld [vmem:[%s2274 + $0x141] sm:$0xff]
        %v2609 = vld [vmem:[%s2274 + $0x151] sm:$0xff]
        %v2610 = vld [vmem:[%s2274 + $0x159] sm:$0xff]
        %v2611 = vld [vmem:[%s2274 + $0x169] sm:$0xff]
        %v2612 = vld [vmem:[%s2274 + $0x171] sm:$0xff]
        %s2613 = scalar_lea.vmem [#allocation7], 896
        %v2614 = vld [vmem:[%s2613] sm:$0xff]
        %v2615 = vld [vmem:[%s2613 + $0x8] sm:$0xff]
        %v2616 = vld [vmem:[%s2613 + $0x10] sm:$0xff]
        %v2617 = vld [vmem:[%s2613 + $0x18] sm:$0xff]
        %v2618 = vld [vmem:[%s2613 + $0x20] sm:$0xff]
        %v2619 = vld [vmem:[%s2613 + $0x28] sm:$0xff]
        %v2620 = vld [vmem:[%s2613 + $0x30] sm:$0xff]
        %v2621 = vld [vmem:[%s2613 + $0x38] sm:$0xff]
        %v2622 = vld [vmem:[%s2613 + $0x40] sm:$0xff]
        %v2623 = vld [vmem:[%s2613 + $0x48] sm:$0xff]
        %v2624 = vld [vmem:[%s2613 + $0x50] sm:$0xff]
        %v2625 = vld [vmem:[%s2613 + $0x58] sm:$0xff]
        %v2626 = vld [vmem:[%s2613 + $0x60] sm:$0xff]
        %v2627 = vld [vmem:[%s2613 + $0x68] sm:$0xff]
        %v2628 = vld [vmem:[%s2613 + $0x70] sm:$0xff]
        %v2629 = vld [vmem:[%s2613 + $0x78] sm:$0xff]
        %2630 = vmatprep.subr.mxu0 0.0
        %2631 = vmatpush1.msra.mxu0 %v2614
        %2632 = vmatprep.subr.mxu0 0.0
        %2633 = vmatpush1.msra.mxu0 %v2615
        %2634 = vmatprep.subr.mxu0 0.0
        %2635 = vmatpush1.msra.mxu0 %v2616
        %2636 = vmatprep.subr.mxu0 0.0
        %2637 = vmatpush1.msra.mxu0 %v2617
        %2638 = vmatprep.subr.mxu0 0.0
        %2639 = vmatpush1.msra.mxu0 %v2618
        %2640 = vmatprep.subr.mxu0 0.0
        %2641 = vmatpush1.msra.mxu0 %v2619
        %2642 = vmatprep.subr.mxu0 0.0
        %2643 = vmatpush1.msra.mxu0 %v2620
        %2644 = vmatprep.subr.mxu0 0.0
        %2645 = vmatpush1.msra.mxu0 %v2621
        %2646 = vmatprep.subr.mxu0 0.0
        %2647 = vmatpush1.msra.mxu0 %v2622
        %2648 = vmatprep.subr.mxu0 0.0
        %2649 = vmatpush1.msra.mxu0 %v2623
        %2650 = vmatprep.subr.mxu0 0.0
        %2651 = vmatpush1.msra.mxu0 %v2624
        %2652 = vmatprep.subr.mxu0 0.0
        %2653 = vmatpush1.msra.mxu0 %v2625
        %2654 = vmatprep.subr.mxu0 0.0
        %2655 = vmatpush1.msra.mxu0 %v2626
        %2656 = vmatprep.subr.mxu0 0.0
        %2657 = vmatpush1.msra.mxu0 %v2627
        %2658 = vmatprep.subr.mxu0 0.0
        %2659 = vmatpush1.msra.mxu0 %v2628
        %2660 = vmatprep.subr.mxu0 0.0
        %2661 = vmatpush1.msra.mxu0 %v2629
        %2662 = vmatprep.subr.mxu0 0.0
        %2663 = vmatpush1.msra.mxu0 0.0
        %2664 = vmatprep.subr.mxu0 0.0
        %2665 = vmatpush1.msra.mxu0 0.0
        %2666 = vmatprep.subr.mxu0 0.0
        %2667 = vmatpush1.msra.mxu0 0.0
        %2668 = vmatprep.subr.mxu0 0.0
        %2669 = vmatpush1.msra.mxu0 0.0
        %2670 = vmatprep.subr.mxu0 0.0
        %2671 = vmatpush1.msra.mxu0 0.0
        %2672 = vmatprep.subr.mxu0 0.0
        %2673 = vmatpush1.msra.mxu0 0.0
        %2674 = vmatprep.subr.mxu0 0.0
        %2675 = vmatpush1.msra.mxu0 0.0
        %2676 = vmatprep.subr.mxu0 0.0
        %2677 = vmatpush1.msra.mxu0 0.0
        %2678 = vmatprep.subr.mxu0 0.0
        %2679 = vmatpush1.msra.mxu0 0.0
        %2680 = vmatprep.subr.mxu0 0.0
        %2681 = vmatpush1.msra.mxu0 0.0
        %2682 = vmatprep.subr.mxu0 0.0
        %2683 = vmatpush1.msra.mxu0 0.0
        %2684 = vmatprep.subr.mxu0 0.0
        %2685 = vmatpush1.msra.mxu0 0.0
        %2686 = vmatprep.subr.mxu0 0.0
        %2687 = vmatpush1.msra.mxu0 0.0
        %2688 = vmatprep.subr.mxu0 0.0
        %2689 = vmatpush1.msra.mxu0 0.0
        %2690 = vmatprep.subr.mxu0 0.0
        %2691 = vmatpush1.msra.mxu0 0.0
        %2692 = vmatprep.subr.mxu0 0.0
        %2693 = vmatpush1.msra.mxu0 0.0
        %2694 = vmatprep.mubr.f32.mxu0 0.0
        %2695 = vmatmul.mubr.f32.gmra.mrb[0].mxu0 %v2581
        %v2696 = vpop.f32.mrb[0].mxu0
        %v2697 = vadd.f32 0.0, %v2696
        %v2698 = vpop.f32.mrb[0].mxu0
        %2699 = vmatprep.mubr.f32.mxu0 0.0
        %2700 = vmatmul.mubr.f32.gmra.mrb[0].mxu0 %v2582
        %v2701 = vpop.f32.mrb[0].mxu0
        %v2702 = vadd.f32 0.0, %v2701
        %v2703 = vpop.f32.mrb[0].mxu0
        %2704 = vmatprep.mubr.f32.mxu0 0.0
        %2705 = vmatmul.mubr.f32.gmra.mrb[0].mxu0 %v2583
        %v2706 = vpop.f32.mrb[0].mxu0
        %v2707 = vadd.f32 0.0, %v2706
        %v2708 = vpop.f32.mrb[0].mxu0
        %2709 = vmatprep.mubr.f32.mxu0 0.0
        %2710 = vmatmul.mubr.f32.gmra.mrb[0].mxu0 %v2584
        %v2711 = vpop.f32.mrb[0].mxu0
        %v2712 = vadd.f32 0.0, %v2711
        %v2713 = vpop.f32.mrb[0].mxu0
        %2714 = vmatprep.mubr.f32.mxu0 0.0
        %2715 = vmatmul.mubr.f32.gmra.mrb[0].mxu0 %v2585
        %v2716 = vpop.f32.mrb[0].mxu0
        %v2717 = vadd.f32 0.0, %v2716
        %v2718 = vpop.f32.mrb[0].mxu0
        %2719 = vmatprep.mubr.f32.mxu0 0.0
        %2720 = vmatmul.mubr.f32.gmra.mrb[0].mxu0 %v2586
        %v2721 = vpop.f32.mrb[0].mxu0
        %v2722 = vadd.f32 0.0, %v2721
        %v2723 = vpop.f32.mrb[0].mxu0
        %2724 = vmatprep.mubr.f32.mxu0 0.0
        %2725 = vmatmul.mubr.f32.gmra.mrb[0].mxu0 %v2587
        %v2726 = vpop.f32.mrb[0].mxu0
        %v2727 = vadd.f32 0.0, %v2726
        %v2728 = vpop.f32.mrb[0].mxu0
        %2729 = vmatprep.mubr.f32.mxu0 0.0
        %2730 = vmatmul.mubr.f32.gmra.mrb[0].mxu0 %v2588
        %v2731 = vpop.f32.mrb[0].mxu0
        %v2732 = vadd.f32 0.0, %v2731
        %v2733 = vpop.f32.mrb[0].mxu0
        %2734 = vmatprep.mubr.f32.mxu0 0.0
        %2735 = vmatmul.mubr.f32.gmra.mrb[0].mxu0 %v2589
        %v2736 = vpop.f32.mrb[0].mxu0
        %v2737 = vadd.f32 0.0, %v2736
        %v2738 = vpop.f32.mrb[0].mxu0
        %2739 = vmatprep.mubr.f32.mxu0 0.0
        %2740 = vmatmul.mubr.f32.gmra.mrb[0].mxu0 %v2590
        %v2741 = vpop.f32.mrb[0].mxu0
        %v2742 = vadd.f32 0.0, %v2741
        %v2743 = vpop.f32.mrb[0].mxu0
        %2744 = vmatprep.mubr.f32.mxu0 0.0
        %2745 = vmatmul.mubr.f32.gmra.mrb[0].mxu0 %v2591
        %v2746 = vpop.f32.mrb[0].mxu0
        %v2747 = vadd.f32 0.0, %v2746
        %v2748 = vpop.f32.mrb[0].mxu0
        %2749 = vmatprep.mubr.f32.mxu0 0.0
        %2750 = vmatmul.mubr.f32.gmra.mrb[0].mxu0 %v2592
        %v2751 = vpop.f32.mrb[0].mxu0
        %v2752 = vadd.f32 0.0, %v2751
        %v2753 = vpop.f32.mrb[0].mxu0
        %2754 = vmatprep.mubr.f32.mxu0 0.0
        %2755 = vmatmul.mubr.f32.gmra.mrb[0].mxu0 %v2593
        %v2756 = vpop.f32.mrb[0].mxu0
        %v2757 = vadd.f32 0.0, %v2756
        %v2758 = vpop.f32.mrb[0].mxu0
        %2759 = vmatprep.mubr.f32.mxu0 0.0
        %2760 = vmatmul.mubr.f32.gmra.mrb[0].mxu0 %v2594
        %v2761 = vpop.f32.mrb[0].mxu0
        %v2762 = vadd.f32 0.0, %v2761
        %v2763 = vpop.f32.mrb[0].mxu0
        %2764 = vmatprep.mubr.f32.mxu0 0.0
        %2765 = vmatmul.mubr.f32.gmra.mrb[0].mxu0 %v2595
        %v2766 = vpop.f32.mrb[0].mxu0
        %v2767 = vadd.f32 0.0, %v2766
        %v2768 = vpop.f32.mrb[0].mxu0
        %2769 = vmatprep.mubr.f32.mxu0 0.0
        %2770 = vmatmul.mubr.f32.gmra.mrb[0].mxu0 %v2596
        %v2771 = vpop.f32.mrb[0].mxu0
        %v2772 = vadd.f32 0.0, %v2771
        %v2773 = vpop.f32.mrb[0].mxu0
        %2774 = vmatprep.mubr.f32.mxu0 0.0
        %2775 = vmatmul.mubr.f32.gmra.mrb[0].mxu0 %v2597
        %v2776 = vpop.f32.mrb[0].mxu0
        %v2777 = vadd.f32 0.0, %v2776
        %v2778 = vpop.f32.mrb[0].mxu0
        %2779 = vmatprep.mubr.f32.mxu0 0.0
        %2780 = vmatmul.mubr.f32.gmra.mrb[0].mxu0 %v2598
        %v2781 = vpop.f32.mrb[0].mxu0
        %v2782 = vadd.f32 0.0, %v2781
        %v2783 = vpop.f32.mrb[0].mxu0
        %2784 = vmatprep.mubr.f32.mxu0 0.0
        %2785 = vmatmul.mubr.f32.gmra.mrb[0].mxu0 %v2599
        %v2786 = vpop.f32.mrb[0].mxu0
        %v2787 = vadd.f32 0.0, %v2786
        %v2788 = vpop.f32.mrb[0].mxu0
        %2789 = vmatprep.mubr.f32.mxu0 0.0
        %2790 = vmatmul.mubr.f32.gmra.mrb[0].mxu0 %v2600
        %v2791 = vpop.f32.mrb[0].mxu0
        %v2792 = vadd.f32 0.0, %v2791
        %v2793 = vpop.f32.mrb[0].mxu0
        %2794 = vmatprep.mubr.f32.mxu0 0.0
        %2795 = vmatmul.mubr.f32.gmra.mrb[0].mxu0 %v2601
        %v2796 = vpop.f32.mrb[0].mxu0
        %v2797 = vadd.f32 0.0, %v2796
        %v2798 = vpop.f32.mrb[0].mxu0
        %2799 = vmatprep.mubr.f32.mxu0 0.0
        %2800 = vmatmul.mubr.f32.gmra.mrb[0].mxu0 %v2602
        %v2801 = vpop.f32.mrb[0].mxu0
        %v2802 = vadd.f32 0.0, %v2801
        %v2803 = vpop.f32.mrb[0].mxu0
        %2804 = vmatprep.mubr.f32.mxu0 0.0
        %2805 = vmatmul.mubr.f32.gmra.mrb[0].mxu0 %v2603
        %v2806 = vpop.f32.mrb[0].mxu0
        %v2807 = vadd.f32 0.0, %v2806
        %v2808 = vpop.f32.mrb[0].mxu0
        %2809 = vmatprep.mubr.f32.mxu0 0.0
        %2810 = vmatmul.mubr.f32.gmra.mrb[0].mxu0 %v2604
        %v2811 = vpop.f32.mrb[0].mxu0
        %v2812 = vadd.f32 0.0, %v2811
        %v2813 = vpop.f32.mrb[0].mxu0
        %2814 = vmatprep.mubr.f32.mxu0 0.0
        %2815 = vmatmul.mubr.f32.gmra.mrb[0].mxu0 %v2605
        %v2816 = vpop.f32.mrb[0].mxu0
        %v2817 = vadd.f32 0.0, %v2816
        %v2818 = vpop.f32.mrb[0].mxu0
        %2819 = vmatprep.mubr.f32.mxu0 0.0
        %2820 = vmatmul.mubr.f32.gmra.mrb[0].mxu0 %v2606
        %v2821 = vpop.f32.mrb[0].mxu0
        %v2822 = vadd.f32 0.0, %v2821
        %v2823 = vpop.f32.mrb[0].mxu0
        %2824 = vmatprep.mubr.f32.mxu0 0.0
        %2825 = vmatmul.mubr.f32.gmra.mrb[0].mxu0 %v2607
        %v2826 = vpop.f32.mrb[0].mxu0
        %v2827 = vadd.f32 0.0, %v2826
        %v2828 = vpop.f32.mrb[0].mxu0
        %2829 = vmatprep.mubr.f32.mxu0 0.0
        %2830 = vmatmul.mubr.f32.gmra.mrb[0].mxu0 %v2608
        %v2831 = vpop.f32.mrb[0].mxu0
        %v2832 = vadd.f32 0.0, %v2831
        %v2833 = vpop.f32.mrb[0].mxu0
        %2834 = vmatprep.mubr.f32.mxu0 0.0
        %2835 = vmatmul.mubr.f32.gmra.mrb[0].mxu0 %v2609
        %v2836 = vpop.f32.mrb[0].mxu0
        %v2837 = vadd.f32 0.0, %v2836
        %v2838 = vpop.f32.mrb[0].mxu0
        %2839 = vmatprep.mubr.f32.mxu0 0.0
        %2840 = vmatmul.mubr.f32.gmra.mrb[0].mxu0 %v2610
        %v2841 = vpop.f32.mrb[0].mxu0
        %v2842 = vadd.f32 0.0, %v2841
        %v2843 = vpop.f32.mrb[0].mxu0
        %2844 = vmatprep.mubr.f32.mxu0 0.0
        %2845 = vmatmul.mubr.f32.gmra.mrb[0].mxu0 %v2611
        %v2846 = vpop.f32.mrb[0].mxu0
        %v2847 = vadd.f32 0.0, %v2846
        %v2848 = vpop.f32.mrb[0].mxu0
        %2849 = vmatprep.mubr.f32.mxu0 0.0
        %2850 = vmatmul.mubr.f32.gmra.mrb[0].mxu0 %v2612
        %v2851 = vpop.f32.mrb[0].mxu0
        %v2852 = vadd.f32 0.0, %v2851
        %v2853 = vpop.f32.mrb[0].mxu0
        %2854 = vdwg.mxu0
        %v2855 = vadd.f32 %v2549, %v2697
        %v2856 = vadd.f32 %v2550, %v2702
        %v2857 = vadd.f32 %v2551, %v2707
        %v2858 = vadd.f32 %v2552, %v2712
        %v2859 = vadd.f32 %v2553, %v2717
        %v2860 = vadd.f32 %v2554, %v2722
        %v2861 = vadd.f32 %v2555, %v2727
        %v2862 = vadd.f32 %v2556, %v2732
        %v2863 = vadd.f32 %v2557, %v2737
        %v2864 = vadd.f32 %v2558, %v2742
        %v2865 = vadd.f32 %v2559, %v2747
        %v2866 = vadd.f32 %v2560, %v2752
        %v2867 = vadd.f32 %v2561, %v2757
        %v2868 = vadd.f32 %v2562, %v2762
        %v2869 = vadd.f32 %v2563, %v2767
        %v2870 = vadd.f32 %v2564, %v2772
        %v2871 = vadd.f32 %v2565, %v2777
        %v2872 = vadd.f32 %v2566, %v2782
        %v2873 = vadd.f32 %v2567, %v2787
        %v2874 = vadd.f32 %v2568, %v2792
        %v2875 = vadd.f32 %v2569, %v2797
        %v2876 = vadd.f32 %v2570, %v2802
        %v2877 = vadd.f32 %v2571, %v2807
        %v2878 = vadd.f32 %v2572, %v2812
        %v2879 = vadd.f32 %v2573, %v2817
        %v2880 = vadd.f32 %v2574, %v2822
        %v2881 = vadd.f32 %v2575, %v2827
        %v2882 = vadd.f32 %v2576, %v2832
        %v2883 = vadd.f32 %v2577, %v2837
        %v2884 = vadd.f32 %v2578, %v2842
        %v2885 = vadd.f32 %v2579, %v2847
        %v2886 = vadd.f32 %v2580, %v2852
        %v2887 = vld [vmem:[%s2274 + $0x2] sm:$0xff]
        %v2888 = vld [vmem:[%s2274 + $0xa] sm:$0xff]
        %v2889 = vld [vmem:[%s2274 + $0x1a] sm:$0xff]
        %v2890 = vld [vmem:[%s2274 + $0x22] sm:$0xff]
        %v2891 = vld [vmem:[%s2274 + $0x32] sm:$0xff]
        %v2892 = vld [vmem:[%s2274 + $0x3a] sm:$0xff]
        %v2893 = vld [vmem:[%s2274 + $0x4a] sm:$0xff]
        %v2894 = vld [vmem:[%s2274 + $0x52] sm:$0xff]
        %v2895 = vld [vmem:[%s2274 + $0x62] sm:$0xff]
        %v2896 = vld [vmem:[%s2274 + $0x6a] sm:$0xff]
        %v2897 = vld [vmem:[%s2274 + $0x7a] sm:$0xff]
        %v2898 = vld [vmem:[%s2274 + $0x82] sm:$0xff]
        %v2899 = vld [vmem:[%s2274 + $0x92] sm:$0xff]
        %v2900 = vld [vmem:[%s2274 + $0x9a] sm:$0xff]
        %v2901 = vld [vmem:[%s2274 + $0xaa] sm:$0xff]
        %v2902 = vld [vmem:[%s2274 + $0xb2] sm:$0xff]
        %v2903 = vld [vmem:[%s2274 + $0xc2] sm:$0xff]
        %v2904 = vld [vmem:[%s2274 + $0xca] sm:$0xff]
        %v2905 = vld [vmem:[%s2274 + $0xda] sm:$0xff]
        %v2906 = vld [vmem:[%s2274 + $0xe2] sm:$0xff]
        %v2907 = vld [vmem:[%s2274 + $0xf2] sm:$0xff]
        %v2908 = vld [vmem:[%s2274 + $0xfa] sm:$0xff]
        %v2909 = vld [vmem:[%s2274 + $0x10a] sm:$0xff]
        %v2910 = vld [vmem:[%s2274 + $0x112] sm:$0xff]
        %v2911 = vld [vmem:[%s2274 + $0x122] sm:$0xff]
        %v2912 = vld [vmem:[%s2274 + $0x12a] sm:$0xff]
        %v2913 = vld [vmem:[%s2274 + $0x13a] sm:$0xff]
        %v2914 = vld [vmem:[%s2274 + $0x142] sm:$0xff]
        %v2915 = vld [vmem:[%s2274 + $0x152] sm:$0xff]
        %v2916 = vld [vmem:[%s2274 + $0x15a] sm:$0xff]
        %v2917 = vld [vmem:[%s2274 + $0x16a] sm:$0xff]
        %v2918 = vld [vmem:[%s2274 + $0x172] sm:$0xff]
        %s2919 = scalar_lea.vmem [#allocation7], 1024
        %v2920 = vld [vmem:[%s2919] sm:$0xff]
        %v2921 = vld [vmem:[%s2919 + $0x8] sm:$0xff]
        %v2922 = vld [vmem:[%s2919 + $0x10] sm:$0xff]
        %v2923 = vld [vmem:[%s2919 + $0x18] sm:$0xff]
        %v2924 = vld [vmem:[%s2919 + $0x20] sm:$0xff]
        %v2925 = vld [vmem:[%s2919 + $0x28] sm:$0xff]
        %v2926 = vld [vmem:[%s2919 + $0x30] sm:$0xff]
        %v2927 = vld [vmem:[%s2919 + $0x38] sm:$0xff]
        %v2928 = vld [vmem:[%s2919 + $0x40] sm:$0xff]
        %v2929 = vld [vmem:[%s2919 + $0x48] sm:$0xff]
        %v2930 = vld [vmem:[%s2919 + $0x50] sm:$0xff]
        %v2931 = vld [vmem:[%s2919 + $0x58] sm:$0xff]
        %v2932 = vld [vmem:[%s2919 + $0x60] sm:$0xff]
        %v2933 = vld [vmem:[%s2919 + $0x68] sm:$0xff]
        %v2934 = vld [vmem:[%s2919 + $0x70] sm:$0xff]
        %v2935 = vld [vmem:[%s2919 + $0x78] sm:$0xff]
        %2936 = vmatprep.subr.mxu0 0.0
        %2937 = vmatpush1.msra.mxu0 %v2920
        %2938 = vmatprep.subr.mxu0 0.0
        %2939 = vmatpush1.msra.mxu0 %v2921
        %2940 = vmatprep.subr.mxu0 0.0
        %2941 = vmatpush1.msra.mxu0 %v2922
        %2942 = vmatprep.subr.mxu0 0.0
        %2943 = vmatpush1.msra.mxu0 %v2923
        %2944 = vmatprep.subr.mxu0 0.0
        %2945 = vmatpush1.msra.mxu0 %v2924
        %2946 = vmatprep.subr.mxu0 0.0
        %2947 = vmatpush1.msra.mxu0 %v2925
        %2948 = vmatprep.subr.mxu0 0.0
        %2949 = vmatpush1.msra.mxu0 %v2926
        %2950 = vmatprep.subr.mxu0 0.0
        %2951 = vmatpush1.msra.mxu0 %v2927
        %2952 = vmatprep.subr.mxu0 0.0
        %2953 = vmatpush1.msra.mxu0 %v2928
        %2954 = vmatprep.subr.mxu0 0.0
        %2955 = vmatpush1.msra.mxu0 %v2929
        %2956 = vmatprep.subr.mxu0 0.0
        %2957 = vmatpush1.msra.mxu0 %v2930
        %2958 = vmatprep.subr.mxu0 0.0
        %2959 = vmatpush1.msra.mxu0 %v2931
        %2960 = vmatprep.subr.mxu0 0.0
        %2961 = vmatpush1.msra.mxu0 %v2932
        %2962 = vmatprep.subr.mxu0 0.0
        %2963 = vmatpush1.msra.mxu0 %v2933
        %2964 = vmatprep.subr.mxu0 0.0
        %2965 = vmatpush1.msra.mxu0 %v2934
        %2966 = vmatprep.subr.mxu0 0.0
        %2967 = vmatpush1.msra.mxu0 %v2935
        %2968 = vmatprep.subr.mxu0 0.0
        %2969 = vmatpush1.msra.mxu0 0.0
        %2970 = vmatprep.subr.mxu0 0.0
        %2971 = vmatpush1.msra.mxu0 0.0
        %2972 = vmatprep.subr.mxu0 0.0
        %2973 = vmatpush1.msra.mxu0 0.0
        %2974 = vmatprep.subr.mxu0 0.0
        %2975 = vmatpush1.msra.mxu0 0.0
        %2976 = vmatprep.subr.mxu0 0.0
        %2977 = vmatpush1.msra.mxu0 0.0
        %2978 = vmatprep.subr.mxu0 0.0
        %2979 = vmatpush1.msra.mxu0 0.0
        %2980 = vmatprep.subr.mxu0 0.0
        %2981 = vmatpush1.msra.mxu0 0.0
        %2982 = vmatprep.subr.mxu0 0.0
        %2983 = vmatpush1.msra.mxu0 0.0
        %2984 = vmatprep.subr.mxu0 0.0
        %2985 = vmatpush1.msra.mxu0 0.0
        %2986 = vmatprep.subr.mxu0 0.0
        %2987 = vmatpush1.msra.mxu0 0.0
        %2988 = vmatprep.subr.mxu0 0.0
        %2989 = vmatpush1.msra.mxu0 0.0
        %2990 = vmatprep.subr.mxu0 0.0
        %2991 = vmatpush1.msra.mxu0 0.0
        %2992 = vmatprep.subr.mxu0 0.0
        %2993 = vmatpush1.msra.mxu0 0.0
        %2994 = vmatprep.subr.mxu0 0.0
        %2995 = vmatpush1.msra.mxu0 0.0
        %2996 = vmatprep.subr.mxu0 0.0
        %2997 = vmatpush1.msra.mxu0 0.0
        %2998 = vmatprep.subr.mxu0 0.0
        %2999 = vmatpush1.msra.mxu0 0.0
        %3000 = vmatprep.mubr.f32.mxu0 0.0
        %3001 = vmatmul.mubr.f32.gmra.mrb[0].mxu0 %v2887
        %v3002 = vpop.f32.mrb[0].mxu0
        %v3003 = vadd.f32 0.0, %v3002
        %v3004 = vpop.f32.mrb[0].mxu0
        %3005 = vmatprep.mubr.f32.mxu0 0.0
        %3006 = vmatmul.mubr.f32.gmra.mrb[0].mxu0 %v2888
        %v3007 = vpop.f32.mrb[0].mxu0
        %v3008 = vadd.f32 0.0, %v3007
        %v3009 = vpop.f32.mrb[0].mxu0
        %3010 = vmatprep.mubr.f32.mxu0 0.0
        %3011 = vmatmul.mubr.f32.gmra.mrb[0].mxu0 %v2889
        %v3012 = vpop.f32.mrb[0].mxu0
        %v3013 = vadd.f32 0.0, %v3012
        %v3014 = vpop.f32.mrb[0].mxu0
        %3015 = vmatprep.mubr.f32.mxu0 0.0
        %3016 = vmatmul.mubr.f32.gmra.mrb[0].mxu0 %v2890
        %v3017 = vpop.f32.mrb[0].mxu0
        %v3018 = vadd.f32 0.0, %v3017
        %v3019 = vpop.f32.mrb[0].mxu0
        %3020 = vmatprep.mubr.f32.mxu0 0.0
        %3021 = vmatmul.mubr.f32.gmra.mrb[0].mxu0 %v2891
        %v3022 = vpop.f32.mrb[0].mxu0
        %v3023 = vadd.f32 0.0, %v3022
        %v3024 = vpop.f32.mrb[0].mxu0
        %3025 = vmatprep.mubr.f32.mxu0 0.0
        %3026 = vmatmul.mubr.f32.gmra.mrb[0].mxu0 %v2892
        %v3027 = vpop.f32.mrb[0].mxu0
        %v3028 = vadd.f32 0.0, %v3027
        %v3029 = vpop.f32.mrb[0].mxu0
        %3030 = vmatprep.mubr.f32.mxu0 0.0
        %3031 = vmatmul.mubr.f32.gmra.mrb[0].mxu0 %v2893
        %v3032 = vpop.f32.mrb[0].mxu0
        %v3033 = vadd.f32 0.0, %v3032
        %v3034 = vpop.f32.mrb[0].mxu0
        %3035 = vmatprep.mubr.f32.mxu0 0.0
        %3036 = vmatmul.mubr.f32.gmra.mrb[0].mxu0 %v2894
        %v3037 = vpop.f32.mrb[0].mxu0
        %v3038 = vadd.f32 0.0, %v3037
        %v3039 = vpop.f32.mrb[0].mxu0
        %3040 = vmatprep.mubr.f32.mxu0 0.0
        %3041 = vmatmul.mubr.f32.gmra.mrb[0].mxu0 %v2895
        %v3042 = vpop.f32.mrb[0].mxu0
        %v3043 = vadd.f32 0.0, %v3042
        %v3044 = vpop.f32.mrb[0].mxu0
        %3045 = vmatprep.mubr.f32.mxu0 0.0
        %3046 = vmatmul.mubr.f32.gmra.mrb[0].mxu0 %v2896
        %v3047 = vpop.f32.mrb[0].mxu0
        %v3048 = vadd.f32 0.0, %v3047
        %v3049 = vpop.f32.mrb[0].mxu0
        %3050 = vmatprep.mubr.f32.mxu0 0.0
        %3051 = vmatmul.mubr.f32.gmra.mrb[0].mxu0 %v2897
        %v3052 = vpop.f32.mrb[0].mxu0
        %v3053 = vadd.f32 0.0, %v3052
        %v3054 = vpop.f32.mrb[0].mxu0
        %3055 = vmatprep.mubr.f32.mxu0 0.0
        %3056 = vmatmul.mubr.f32.gmra.mrb[0].mxu0 %v2898
        %v3057 = vpop.f32.mrb[0].mxu0
        %v3058 = vadd.f32 0.0, %v3057
        %v3059 = vpop.f32.mrb[0].mxu0
        %3060 = vmatprep.mubr.f32.mxu0 0.0
        %3061 = vmatmul.mubr.f32.gmra.mrb[0].mxu0 %v2899
        %v3062 = vpop.f32.mrb[0].mxu0
        %v3063 = vadd.f32 0.0, %v3062
        %v3064 = vpop.f32.mrb[0].mxu0
        %3065 = vmatprep.mubr.f32.mxu0 0.0
        %3066 = vmatmul.mubr.f32.gmra.mrb[0].mxu0 %v2900
        %v3067 = vpop.f32.mrb[0].mxu0
        %v3068 = vadd.f32 0.0, %v3067
        %v3069 = vpop.f32.mrb[0].mxu0
        %3070 = vmatprep.mubr.f32.mxu0 0.0
        %3071 = vmatmul.mubr.f32.gmra.mrb[0].mxu0 %v2901
        %v3072 = vpop.f32.mrb[0].mxu0
        %v3073 = vadd.f32 0.0, %v3072
        %v3074 = vpop.f32.mrb[0].mxu0
        %3075 = vmatprep.mubr.f32.mxu0 0.0
        %3076 = vmatmul.mubr.f32.gmra.mrb[0].mxu0 %v2902
        %v3077 = vpop.f32.mrb[0].mxu0
        %v3078 = vadd.f32 0.0, %v3077
        %v3079 = vpop.f32.mrb[0].mxu0
        %3080 = vmatprep.mubr.f32.mxu0 0.0
        %3081 = vmatmul.mubr.f32.gmra.mrb[0].mxu0 %v2903
        %v3082 = vpop.f32.mrb[0].mxu0
        %v3083 = vadd.f32 0.0, %v3082
        %v3084 = vpop.f32.mrb[0].mxu0
        %3085 = vmatprep.mubr.f32.mxu0 0.0
        %3086 = vmatmul.mubr.f32.gmra.mrb[0].mxu0 %v2904
        %v3087 = vpop.f32.mrb[0].mxu0
        %v3088 = vadd.f32 0.0, %v3087
        %v3089 = vpop.f32.mrb[0].mxu0
        %3090 = vmatprep.mubr.f32.mxu0 0.0
        %3091 = vmatmul.mubr.f32.gmra.mrb[0].mxu0 %v2905
        %v3092 = vpop.f32.mrb[0].mxu0
        %v3093 = vadd.f32 0.0, %v3092
        %v3094 = vpop.f32.mrb[0].mxu0
        %3095 = vmatprep.mubr.f32.mxu0 0.0
        %3096 = vmatmul.mubr.f32.gmra.mrb[0].mxu0 %v2906
        %v3097 = vpop.f32.mrb[0].mxu0
        %v3098 = vadd.f32 0.0, %v3097
        %v3099 = vpop.f32.mrb[0].mxu0
        %3100 = vmatprep.mubr.f32.mxu0 0.0
        %3101 = vmatmul.mubr.f32.gmra.mrb[0].mxu0 %v2907
        %v3102 = vpop.f32.mrb[0].mxu0
        %v3103 = vadd.f32 0.0, %v3102
        %v3104 = vpop.f32.mrb[0].mxu0
        %3105 = vmatprep.mubr.f32.mxu0 0.0
        %3106 = vmatmul.mubr.f32.gmra.mrb[0].mxu0 %v2908
        %v3107 = vpop.f32.mrb[0].mxu0
        %v3108 = vadd.f32 0.0, %v3107
        %v3109 = vpop.f32.mrb[0].mxu0
        %3110 = vmatprep.mubr.f32.mxu0 0.0
        %3111 = vmatmul.mubr.f32.gmra.mrb[0].mxu0 %v2909
        %v3112 = vpop.f32.mrb[0].mxu0
        %v3113 = vadd.f32 0.0, %v3112
        %v3114 = vpop.f32.mrb[0].mxu0
        %3115 = vmatprep.mubr.f32.mxu0 0.0
        %3116 = vmatmul.mubr.f32.gmra.mrb[0].mxu0 %v2910
        %v3117 = vpop.f32.mrb[0].mxu0
        %v3118 = vadd.f32 0.0, %v3117
        %v3119 = vpop.f32.mrb[0].mxu0
        %3120 = vmatprep.mubr.f32.mxu0 0.0
        %3121 = vmatmul.mubr.f32.gmra.mrb[0].mxu0 %v2911
        %v3122 = vpop.f32.mrb[0].mxu0
        %v3123 = vadd.f32 0.0, %v3122
        %v3124 = vpop.f32.mrb[0].mxu0
        %3125 = vmatprep.mubr.f32.mxu0 0.0
        %3126 = vmatmul.mubr.f32.gmra.mrb[0].mxu0 %v2912
        %v3127 = vpop.f32.mrb[0].mxu0
        %v3128 = vadd.f32 0.0, %v3127
        %v3129 = vpop.f32.mrb[0].mxu0
        %3130 = vmatprep.mubr.f32.mxu0 0.0
        %3131 = vmatmul.mubr.f32.gmra.mrb[0].mxu0 %v2913
        %v3132 = vpop.f32.mrb[0].mxu0
        %v3133 = vadd.f32 0.0, %v3132
        %v3134 = vpop.f32.mrb[0].mxu0
        %3135 = vmatprep.mubr.f32.mxu0 0.0
        %3136 = vmatmul.mubr.f32.gmra.mrb[0].mxu0 %v2914
        %v3137 = vpop.f32.mrb[0].mxu0
        %v3138 = vadd.f32 0.0, %v3137
        %v3139 = vpop.f32.mrb[0].mxu0
        %3140 = vmatprep.mubr.f32.mxu0 0.0
        %3141 = vmatmul.mubr.f32.gmra.mrb[0].mxu0 %v2915
        %v3142 = vpop.f32.mrb[0].mxu0
        %v3143 = vadd.f32 0.0, %v3142
        %v3144 = vpop.f32.mrb[0].mxu0
        %3145 = vmatprep.mubr.f32.mxu0 0.0
        %3146 = vmatmul.mubr.f32.gmra.mrb[0].mxu0 %v2916
        %v3147 = vpop.f32.mrb[0].mxu0
        %v3148 = vadd.f32 0.0, %v3147
        %v3149 = vpop.f32.mrb[0].mxu0
        %3150 = vmatprep.mubr.f32.mxu0 0.0
        %3151 = vmatmul.mubr.f32.gmra.mrb[0].mxu0 %v2917
        %v3152 = vpop.f32.mrb[0].mxu0
        %v3153 = vadd.f32 0.0, %v3152
        %v3154 = vpop.f32.mrb[0].mxu0
        %3155 = vmatprep.mubr.f32.mxu0 0.0
        %3156 = vmatmul.mubr.f32.gmra.mrb[0].mxu0 %v2918
        %v3157 = vpop.f32.mrb[0].mxu0
        %v3158 = vadd.f32 0.0, %v3157
        %v3159 = vpop.f32.mrb[0].mxu0
        %3160 = vdwg.mxu0
        %v3161 = vadd.f32 %v2855, %v3003
        %v3162 = vadd.f32 %v2856, %v3008
        %v3163 = vadd.f32 %v2857, %v3013
        %v3164 = vadd.f32 %v2858, %v3018
        %v3165 = vadd.f32 %v2859, %v3023
        %v3166 = vadd.f32 %v2860, %v3028
        %v3167 = vadd.f32 %v2861, %v3033
        %v3168 = vadd.f32 %v2862, %v3038
        %v3169 = vadd.f32 %v2863, %v3043
        %v3170 = vadd.f32 %v2864, %v3048
        %v3171 = vadd.f32 %v2865, %v3053
        %v3172 = vadd.f32 %v2866, %v3058
        %v3173 = vadd.f32 %v2867, %v3063
        %v3174 = vadd.f32 %v2868, %v3068
        %v3175 = vadd.f32 %v2869, %v3073
        %v3176 = vadd.f32 %v2870, %v3078
        %v3177 = vadd.f32 %v2871, %v3083
        %v3178 = vadd.f32 %v2872, %v3088
        %v3179 = vadd.f32 %v2873, %v3093
        %v3180 = vadd.f32 %v2874, %v3098
        %v3181 = vadd.f32 %v2875, %v3103
        %v3182 = vadd.f32 %v2876, %v3108
        %v3183 = vadd.f32 %v2877, %v3113
        %v3184 = vadd.f32 %v2878, %v3118
        %v3185 = vadd.f32 %v2879, %v3123
        %v3186 = vadd.f32 %v2880, %v3128
        %v3187 = vadd.f32 %v2881, %v3133
        %v3188 = vadd.f32 %v2882, %v3138
        %v3189 = vadd.f32 %v2883, %v3143
        %v3190 = vadd.f32 %v2884, %v3148
        %v3191 = vadd.f32 %v2885, %v3153
        %v3192 = vadd.f32 %v2886, %v3158
        %v3193 = vld [vmem:[%s2] sm:$0x1]
        %v3195 = vlaneseq
        %v3196 = vshrl.u32 %v3195, 7
        %v3197 = vsub.s32 0, %v3196
        %v3198 = vrot.slane %v3193, %v3197
        %v3200 = vmul.f32 %v3161, %v3198
        %v3201 = vmul.f32 %v3162, %v3198
        %v3202 = vmul.f32 %v3163, %v3198
        %v3203 = vmul.f32 %v3164, %v3198
        %v3204 = vmul.f32 %v3165, %v3198
        %v3205 = vmul.f32 %v3166, %v3198
        %v3206 = vmul.f32 %v3167, %v3198
        %v3207 = vmul.f32 %v3168, %v3198
        %v3208 = vmul.f32 %v3169, %v3198
        %v3209 = vmul.f32 %v3170, %v3198
        %v3210 = vmul.f32 %v3171, %v3198
        %v3211 = vmul.f32 %v3172, %v3198
        %v3212 = vmul.f32 %v3173, %v3198
        %v3213 = vmul.f32 %v3174, %v3198
        %v3214 = vmul.f32 %v3175, %v3198
        %v3215 = vmul.f32 %v3176, %v3198
        %v3216 = vmul.f32 %v3177, %v3198
        %v3217 = vmul.f32 %v3178, %v3198
        %v3218 = vmul.f32 %v3179, %v3198
        %v3219 = vmul.f32 %v3180, %v3198
        %v3220 = vmul.f32 %v3181, %v3198
        %v3221 = vmul.f32 %v3182, %v3198
        %v3222 = vmul.f32 %v3183, %v3198
        %v3223 = vmul.f32 %v3184, %v3198
        %v3224 = vmul.f32 %v3185, %v3198
        %v3225 = vmul.f32 %v3186, %v3198
        %v3226 = vmul.f32 %v3187, %v3198
        %v3227 = vmul.f32 %v3188, %v3198
        %v3228 = vmul.f32 %v3189, %v3198
        %v3229 = vmul.f32 %v3190, %v3198
        %v3230 = vmul.f32 %v3191, %v3198
        %v3231 = vmul.f32 %v3192, %v3198
        %v3232 = vld [vmem:[%s3] sm:$0x1]
        %v3234 = vlaneseq
        %v3235 = vshrl.u32 %v3234, 7
        %v3236 = vsub.s32 0, %v3235
        %v3237 = vrot.slane %v3232, %v3236
        %v3239 = vadd.f32 %v3200, %v3237
        %v3240 = vadd.f32 %v3201, %v3237
        %v3241 = vadd.f32 %v3202, %v3237
        %v3242 = vadd.f32 %v3203, %v3237
        %v3243 = vadd.f32 %v3204, %v3237
        %v3244 = vadd.f32 %v3205, %v3237
        %v3245 = vadd.f32 %v3206, %v3237
        %v3246 = vadd.f32 %v3207, %v3237
        %v3247 = vadd.f32 %v3208, %v3237
        %v3248 = vadd.f32 %v3209, %v3237
        %v3249 = vadd.f32 %v3210, %v3237
        %v3250 = vadd.f32 %v3211, %v3237
        %v3251 = vadd.f32 %v3212, %v3237
        %v3252 = vadd.f32 %v3213, %v3237
        %v3253 = vadd.f32 %v3214, %v3237
        %v3254 = vadd.f32 %v3215, %v3237
        %v3255 = vadd.f32 %v3216, %v3237
        %v3256 = vadd.f32 %v3217, %v3237
        %v3257 = vadd.f32 %v3218, %v3237
        %v3258 = vadd.f32 %v3219, %v3237
        %v3259 = vadd.f32 %v3220, %v3237
        %v3260 = vadd.f32 %v3221, %v3237
        %v3261 = vadd.f32 %v3222, %v3237
        %v3262 = vadd.f32 %v3223, %v3237
        %v3263 = vadd.f32 %v3224, %v3237
        %v3264 = vadd.f32 %v3225, %v3237
        %v3265 = vadd.f32 %v3226, %v3237
        %v3266 = vadd.f32 %v3227, %v3237
        %v3267 = vadd.f32 %v3228, %v3237
        %v3268 = vadd.f32 %v3229, %v3237
        %v3269 = vadd.f32 %v3230, %v3237
        %v3270 = vadd.f32 %v3231, %v3237
        %v3271 = vmax.f32 %v3239, 0.0
        %v3272 = vmax.f32 %v3240, 0.0
        %v3273 = vmax.f32 %v3241, 0.0
        %v3274 = vmax.f32 %v3242, 0.0
        %v3275 = vmax.f32 %v3243, 0.0
        %v3276 = vmax.f32 %v3244, 0.0
        %v3277 = vmax.f32 %v3245, 0.0
        %v3278 = vmax.f32 %v3246, 0.0
        %v3279 = vmax.f32 %v3247, 0.0
        %v3280 = vmax.f32 %v3248, 0.0
        %v3281 = vmax.f32 %v3249, 0.0
        %v3282 = vmax.f32 %v3250, 0.0
        %v3283 = vmax.f32 %v3251, 0.0
        %v3284 = vmax.f32 %v3252, 0.0
        %v3285 = vmax.f32 %v3253, 0.0
        %v3286 = vmax.f32 %v3254, 0.0
        %v3287 = vmax.f32 %v3255, 0.0
        %v3288 = vmax.f32 %v3256, 0.0
        %v3289 = vmax.f32 %v3257, 0.0
        %v3290 = vmax.f32 %v3258, 0.0
        %v3291 = vmax.f32 %v3259, 0.0
        %v3292 = vmax.f32 %v3260, 0.0
        %v3293 = vmax.f32 %v3261, 0.0
        %v3294 = vmax.f32 %v3262, 0.0
        %v3295 = vmax.f32 %v3263, 0.0
        %v3296 = vmax.f32 %v3264, 0.0
        %v3297 = vmax.f32 %v3265, 0.0
        %v3298 = vmax.f32 %v3266, 0.0
        %v3299 = vmax.f32 %v3267, 0.0
        %v3300 = vmax.f32 %v3268, 0.0
        %v3301 = vmax.f32 %v3269, 0.0
        %v3302 = vmax.f32 %v3270, 0.0
        %s3303 = scalar_lea.vmem [#allocation3], 24
        %3304 = vst [vmem:[%s3303 + $0x1] sm:$0xff] %v3271
        %3305 = vst [vmem:[%s3303 + $0x9] sm:$0xff] %v3272
        %3306 = vst [vmem:[%s3303 + $0x19] sm:$0xff] %v3273
        %3307 = vst [vmem:[%s3303 + $0x21] sm:$0xff] %v3274
        %3308 = vst [vmem:[%s3303 + $0x31] sm:$0xff] %v3275
        %3309 = vst [vmem:[%s3303 + $0x39] sm:$0xff] %v3276
        %3310 = vst [vmem:[%s3303 + $0x49] sm:$0xff] %v3277
        %3311 = vst [vmem:[%s3303 + $0x51] sm:$0xff] %v3278
        %3312 = vst [vmem:[%s3303 + $0x61] sm:$0xff] %v3279
        %3313 = vst [vmem:[%s3303 + $0x69] sm:$0xff] %v3280
        %3314 = vst [vmem:[%s3303 + $0x79] sm:$0xff] %v3281
        %3315 = vst [vmem:[%s3303 + $0x81] sm:$0xff] %v3282
        %3316 = vst [vmem:[%s3303 + $0x91] sm:$0xff] %v3283
        %3317 = vst [vmem:[%s3303 + $0x99] sm:$0xff] %v3284
        %3318 = vst [vmem:[%s3303 + $0xa9] sm:$0xff] %v3285
        %3319 = vst [vmem:[%s3303 + $0xb1] sm:$0xff] %v3286
        %3320 = vst [vmem:[%s3303 + $0xc1] sm:$0xff] %v3287
        %3321 = vst [vmem:[%s3303 + $0xc9] sm:$0xff] %v3288
        %3322 = vst [vmem:[%s3303 + $0xd9] sm:$0xff] %v3289
        %3323 = vst [vmem:[%s3303 + $0xe1] sm:$0xff] %v3290
        %3324 = vst [vmem:[%s3303 + $0xf1] sm:$0xff] %v3291
        %3325 = vst [vmem:[%s3303 + $0xf9] sm:$0xff] %v3292
        %3326 = vst [vmem:[%s3303 + $0x109] sm:$0xff] %v3293
        %3327 = vst [vmem:[%s3303 + $0x111] sm:$0xff] %v3294
        %3328 = vst [vmem:[%s3303 + $0x121] sm:$0xff] %v3295
        %3329 = vst [vmem:[%s3303 + $0x129] sm:$0xff] %v3296
        %3330 = vst [vmem:[%s3303 + $0x139] sm:$0xff] %v3297
        %3331 = vst [vmem:[%s3303 + $0x141] sm:$0xff] %v3298
        %3332 = vst [vmem:[%s3303 + $0x151] sm:$0xff] %v3299
        %3333 = vst [vmem:[%s3303 + $0x159] sm:$0xff] %v3300
        %3334 = vst [vmem:[%s3303 + $0x169] sm:$0xff] %v3301
        %3335 = vst [vmem:[%s3303 + $0x171] sm:$0xff] %v3302
        %v3336 = vld [vmem:[#allocation3] sm:$0xff]
        %v3337 = vld [vmem:[#allocation3 + $0x8] sm:$0xff]
        %v3338 = vld [vmem:[#allocation3 + $0x18] sm:$0xff]
        %v3339 = vld [vmem:[#allocation3 + $0x20] sm:$0xff]
        %v3340 = vld [vmem:[#allocation3 + $0x30] sm:$0xff]
        %v3341 = vld [vmem:[#allocation3 + $0x38] sm:$0xff]
        %v3342 = vld [vmem:[#allocation3 + $0x48] sm:$0xff]
        %v3343 = vld [vmem:[#allocation3 + $0x50] sm:$0xff]
        %v3344 = vld [vmem:[#allocation3 + $0x60] sm:$0xff]
        %v3345 = vld [vmem:[#allocation3 + $0x68] sm:$0xff]
        %v3346 = vld [vmem:[#allocation3 + $0x78] sm:$0xff]
        %v3347 = vld [vmem:[#allocation3 + $0x80] sm:$0xff]
        %v3348 = vld [vmem:[#allocation3 + $0x90] sm:$0xff]
        %v3349 = vld [vmem:[#allocation3 + $0x98] sm:$0xff]
        %v3350 = vld [vmem:[#allocation3 + $0xa8] sm:$0xff]
        %v3351 = vld [vmem:[#allocation3 + $0xb0] sm:$0xff]
        %v3352 = vld [vmem:[#allocation3 + $0xc0] sm:$0xff]
        %v3353 = vld [vmem:[#allocation3 + $0xc8] sm:$0xff]
        %v3354 = vld [vmem:[#allocation3 + $0xd8] sm:$0xff]
        %v3355 = vld [vmem:[#allocation3 + $0xe0] sm:$0xff]
        %v3356 = vld [vmem:[#allocation3 + $0xf0] sm:$0xff]
        %v3357 = vld [vmem:[#allocation3 + $0xf8] sm:$0xff]
        %v3358 = vld [vmem:[#allocation3 + $0x108] sm:$0xff]
        %v3359 = vld [vmem:[#allocation3 + $0x110] sm:$0xff]
        %v3360 = vld [vmem:[#allocation3 + $0x120] sm:$0xff]
        %v3361 = vld [vmem:[#allocation3 + $0x128] sm:$0xff]
        %v3362 = vld [vmem:[#allocation3 + $0x138] sm:$0xff]
        %v3363 = vld [vmem:[#allocation3 + $0x140] sm:$0xff]
        %v3364 = vld [vmem:[#allocation3 + $0x150] sm:$0xff]
        %v3365 = vld [vmem:[#allocation3 + $0x158] sm:$0xff]
        %v3366 = vld [vmem:[#allocation3 + $0x168] sm:$0xff]
        %v3367 = vld [vmem:[#allocation3 + $0x170] sm:$0xff]
        %v3368 = vld [vmem:[#allocation9] sm:$0xff]
        %v3369 = vld [vmem:[#allocation9 + $0x8] sm:$0xff]
        %v3370 = vld [vmem:[#allocation9 + $0x10] sm:$0xff]
        %v3371 = vld [vmem:[#allocation9 + $0x18] sm:$0xff]
        %v3372 = vld [vmem:[#allocation9 + $0x20] sm:$0xff]
        %v3373 = vld [vmem:[#allocation9 + $0x28] sm:$0xff]
        %v3374 = vld [vmem:[#allocation9 + $0x30] sm:$0xff]
        %v3375 = vld [vmem:[#allocation9 + $0x38] sm:$0xff]
        %v3376 = vld [vmem:[#allocation9 + $0x40] sm:$0xff]
        %v3377 = vld [vmem:[#allocation9 + $0x48] sm:$0xff]
        %v3378 = vld [vmem:[#allocation9 + $0x50] sm:$0xff]
        %v3379 = vld [vmem:[#allocation9 + $0x58] sm:$0xff]
        %v3380 = vld [vmem:[#allocation9 + $0x60] sm:$0xff]
        %v3381 = vld [vmem:[#allocation9 + $0x68] sm:$0xff]
        %v3382 = vld [vmem:[#allocation9 + $0x70] sm:$0xff]
        %v3383 = vld [vmem:[#allocation9 + $0x78] sm:$0xff]
        %v3384 = vld [vmem:[#allocation3 + $0x1] sm:$0xff]
        %v3385 = vld [vmem:[#allocation3 + $0x9] sm:$0xff]
        %v3386 = vld [vmem:[#allocation3 + $0x19] sm:$0xff]
        %v3387 = vld [vmem:[#allocation3 + $0x21] sm:$0xff]
        %v3388 = vld [vmem:[#allocation3 + $0x31] sm:$0xff]
        %v3389 = vld [vmem:[#allocation3 + $0x39] sm:$0xff]
        %v3390 = vld [vmem:[#allocation3 + $0x49] sm:$0xff]
        %v3391 = vld [vmem:[#allocation3 + $0x51] sm:$0xff]
        %v3392 = vld [vmem:[#allocation3 + $0x61] sm:$0xff]
        %v3393 = vld [vmem:[#allocation3 + $0x69] sm:$0xff]
        %v3394 = vld [vmem:[#allocation3 + $0x79] sm:$0xff]
        %v3395 = vld [vmem:[#allocation3 + $0x81] sm:$0xff]
        %v3396 = vld [vmem:[#allocation3 + $0x91] sm:$0xff]
        %v3397 = vld [vmem:[#allocation3 + $0x99] sm:$0xff]
        %v3398 = vld [vmem:[#allocation3 + $0xa9] sm:$0xff]
        %v3399 = vld [vmem:[#allocation3 + $0xb1] sm:$0xff]
        %v3400 = vld [vmem:[#allocation3 + $0xc1] sm:$0xff]
        %v3401 = vld [vmem:[#allocation3 + $0xc9] sm:$0xff]
        %v3402 = vld [vmem:[#allocation3 + $0xd9] sm:$0xff]
        %v3403 = vld [vmem:[#allocation3 + $0xe1] sm:$0xff]
        %v3404 = vld [vmem:[#allocation3 + $0xf1] sm:$0xff]
        %v3405 = vld [vmem:[#allocation3 + $0xf9] sm:$0xff]
        %v3406 = vld [vmem:[#allocation3 + $0x109] sm:$0xff]
        %v3407 = vld [vmem:[#allocation3 + $0x111] sm:$0xff]
        %v3408 = vld [vmem:[#allocation3 + $0x121] sm:$0xff]
        %v3409 = vld [vmem:[#allocation3 + $0x129] sm:$0xff]
        %v3410 = vld [vmem:[#allocation3 + $0x139] sm:$0xff]
        %v3411 = vld [vmem:[#allocation3 + $0x141] sm:$0xff]
        %v3412 = vld [vmem:[#allocation3 + $0x151] sm:$0xff]
        %v3413 = vld [vmem:[#allocation3 + $0x159] sm:$0xff]
        %v3414 = vld [vmem:[#allocation3 + $0x169] sm:$0xff]
        %v3415 = vld [vmem:[#allocation3 + $0x171] sm:$0xff]
        %s3416 = scalar_lea.vmem [#allocation9], 128
        %v3417 = vld [vmem:[%s3416] sm:$0xff]
        %v3418 = vld [vmem:[%s3416 + $0x8] sm:$0xff]
        %v3419 = vld [vmem:[%s3416 + $0x10] sm:$0xff]
        %v3420 = vld [vmem:[%s3416 + $0x18] sm:$0xff]
        %v3421 = vld [vmem:[%s3416 + $0x20] sm:$0xff]
        %v3422 = vld [vmem:[%s3416 + $0x28] sm:$0xff]
        %v3423 = vld [vmem:[%s3416 + $0x30] sm:$0xff]
        %v3424 = vld [vmem:[%s3416 + $0x38] sm:$0xff]
        %v3425 = vld [vmem:[%s3416 + $0x40] sm:$0xff]
        %v3426 = vld [vmem:[%s3416 + $0x48] sm:$0xff]
        %v3427 = vld [vmem:[%s3416 + $0x50] sm:$0xff]
        %v3428 = vld [vmem:[%s3416 + $0x58] sm:$0xff]
        %v3429 = vld [vmem:[%s3416 + $0x60] sm:$0xff]
        %v3430 = vld [vmem:[%s3416 + $0x68] sm:$0xff]
        %v3431 = vld [vmem:[%s3416 + $0x70] sm:$0xff]
        %v3432 = vld [vmem:[%s3416 + $0x78] sm:$0xff]
        %3433 = vmatprep.subr.mxu0 0.0
        %3434 = vmatpush1.msra.mxu0 %v3417
        %3435 = vmatprep.subr.mxu0 0.0
        %3436 = vmatpush1.msra.mxu0 %v3418
        %3437 = vmatprep.subr.mxu0 0.0
        %3438 = vmatpush1.msra.mxu0 %v3419
        %3439 = vmatprep.subr.mxu0 0.0
        %3440 = vmatpush1.msra.mxu0 %v3420
        %3441 = vmatprep.subr.mxu0 0.0
        %3442 = vmatpush1.msra.mxu0 %v3421
        %3443 = vmatprep.subr.mxu0 0.0
        %3444 = vmatpush1.msra.mxu0 %v3422
        %3445 = vmatprep.subr.mxu0 0.0
        %3446 = vmatpush1.msra.mxu0 %v3423
        %3447 = vmatprep.subr.mxu0 0.0
        %3448 = vmatpush1.msra.mxu0 %v3424
        %3449 = vmatprep.subr.mxu0 0.0
        %3450 = vmatpush1.msra.mxu0 %v3425
        %3451 = vmatprep.subr.mxu0 0.0
        %3452 = vmatpush1.msra.mxu0 %v3426
        %3453 = vmatprep.subr.mxu0 0.0
        %3454 = vmatpush1.msra.mxu0 %v3427
        %3455 = vmatprep.subr.mxu0 0.0
        %3456 = vmatpush1.msra.mxu0 %v3428
        %3457 = vmatprep.subr.mxu0 0.0
        %3458 = vmatpush1.msra.mxu0 %v3429
        %3459 = vmatprep.subr.mxu0 0.0
        %3460 = vmatpush1.msra.mxu0 %v3430
        %3461 = vmatprep.subr.mxu0 0.0
        %3462 = vmatpush1.msra.mxu0 %v3431
        %3463 = vmatprep.subr.mxu0 0.0
        %3464 = vmatpush1.msra.mxu0 %v3432
        %3465 = vmatprep.subr.mxu0 0.0
        %3466 = vmatpush1.msra.mxu0 0.0
        %3467 = vmatprep.subr.mxu0 0.0
        %3468 = vmatpush1.msra.mxu0 0.0
        %3469 = vmatprep.subr.mxu0 0.0
        %3470 = vmatpush1.msra.mxu0 0.0
        %3471 = vmatprep.subr.mxu0 0.0
        %3472 = vmatpush1.msra.mxu0 0.0
        %3473 = vmatprep.subr.mxu0 0.0
        %3474 = vmatpush1.msra.mxu0 0.0
        %3475 = vmatprep.subr.mxu0 0.0
        %3476 = vmatpush1.msra.mxu0 0.0
        %3477 = vmatprep.subr.mxu0 0.0
        %3478 = vmatpush1.msra.mxu0 0.0
        %3479 = vmatprep.subr.mxu0 0.0
        %3480 = vmatpush1.msra.mxu0 0.0
        %3481 = vmatprep.subr.mxu0 0.0
        %3482 = vmatpush1.msra.mxu0 0.0
        %3483 = vmatprep.subr.mxu0 0.0
        %3484 = vmatpush1.msra.mxu0 0.0
        %3485 = vmatprep.subr.mxu0 0.0
        %3486 = vmatpush1.msra.mxu0 0.0
        %3487 = vmatprep.subr.mxu0 0.0
        %3488 = vmatpush1.msra.mxu0 0.0
        %3489 = vmatprep.subr.mxu0 0.0
        %3490 = vmatpush1.msra.mxu0 0.0
        %3491 = vmatprep.subr.mxu0 0.0
        %3492 = vmatpush1.msra.mxu0 0.0
        %3493 = vmatprep.subr.mxu0 0.0
        %3494 = vmatpush1.msra.mxu0 0.0
        %3495 = vmatprep.subr.mxu0 0.0
        %3496 = vmatpush1.msra.mxu0 0.0
        %3497 = vmatprep.mubr.f32.mxu0 0.0
        %3498 = vmatmul.mubr.f32.gmra.mrb[0].mxu0 %v3384
        %v3499 = vpop.f32.mrb[0].mxu0
        %v3500 = vadd.f32 0.0, %v3499
        %v3501 = vpop.f32.mrb[0].mxu0
        %3502 = vmatprep.mubr.f32.mxu0 0.0
        %3503 = vmatmul.mubr.f32.gmra.mrb[0].mxu0 %v3385
        %v3504 = vpop.f32.mrb[0].mxu0
        %v3505 = vadd.f32 0.0, %v3504
        %v3506 = vpop.f32.mrb[0].mxu0
        %3507 = vmatprep.mubr.f32.mxu0 0.0
        %3508 = vmatmul.mubr.f32.gmra.mrb[0].mxu0 %v3386
        %v3509 = vpop.f32.mrb[0].mxu0
        %v3510 = vadd.f32 0.0, %v3509
        %v3511 = vpop.f32.mrb[0].mxu0
        %3512 = vmatprep.mubr.f32.mxu0 0.0
        %3513 = vmatmul.mubr.f32.gmra.mrb[0].mxu0 %v3387
        %v3514 = vpop.f32.mrb[0].mxu0
        %v3515 = vadd.f32 0.0, %v3514
        %v3516 = vpop.f32.mrb[0].mxu0
        %3517 = vmatprep.mubr.f32.mxu0 0.0
        %3518 = vmatmul.mubr.f32.gmra.mrb[0].mxu0 %v3388
        %v3519 = vpop.f32.mrb[0].mxu0
        %v3520 = vadd.f32 0.0, %v3519
        %v3521 = vpop.f32.mrb[0].mxu0
        %3522 = vmatprep.mubr.f32.mxu0 0.0
        %3523 = vmatmul.mubr.f32.gmra.mrb[0].mxu0 %v3389
        %v3524 = vpop.f32.mrb[0].mxu0
        %v3525 = vadd.f32 0.0, %v3524
        %v3526 = vpop.f32.mrb[0].mxu0
        %3527 = vmatprep.mubr.f32.mxu0 0.0
        %3528 = vmatmul.mubr.f32.gmra.mrb[0].mxu0 %v3390
        %v3529 = vpop.f32.mrb[0].mxu0
        %v3530 = vadd.f32 0.0, %v3529
        %v3531 = vpop.f32.mrb[0].mxu0
        %3532 = vmatprep.mubr.f32.mxu0 0.0
        %3533 = vmatmul.mubr.f32.gmra.mrb[0].mxu0 %v3391
        %v3534 = vpop.f32.mrb[0].mxu0
        %v3535 = vadd.f32 0.0, %v3534
        %v3536 = vpop.f32.mrb[0].mxu0
        %3537 = vmatprep.mubr.f32.mxu0 0.0
        %3538 = vmatmul.mubr.f32.gmra.mrb[0].mxu0 %v3392
        %v3539 = vpop.f32.mrb[0].mxu0
        %v3540 = vadd.f32 0.0, %v3539
        %v3541 = vpop.f32.mrb[0].mxu0
        %3542 = vmatprep.mubr.f32.mxu0 0.0
        %3543 = vmatmul.mubr.f32.gmra.mrb[0].mxu0 %v3393
        %v3544 = vpop.f32.mrb[0].mxu0
        %v3545 = vadd.f32 0.0, %v3544
        %v3546 = vpop.f32.mrb[0].mxu0
        %3547 = vmatprep.mubr.f32.mxu0 0.0
        %3548 = vmatmul.mubr.f32.gmra.mrb[0].mxu0 %v3394
        %v3549 = vpop.f32.mrb[0].mxu0
        %v3550 = vadd.f32 0.0, %v3549
        %v3551 = vpop.f32.mrb[0].mxu0
        %3552 = vmatprep.mubr.f32.mxu0 0.0
        %3553 = vmatmul.mubr.f32.gmra.mrb[0].mxu0 %v3395
        %v3554 = vpop.f32.mrb[0].mxu0
        %v3555 = vadd.f32 0.0, %v3554
        %v3556 = vpop.f32.mrb[0].mxu0
        %3557 = vmatprep.mubr.f32.mxu0 0.0
        %3558 = vmatmul.mubr.f32.gmra.mrb[0].mxu0 %v3396
        %v3559 = vpop.f32.mrb[0].mxu0
        %v3560 = vadd.f32 0.0, %v3559
        %v3561 = vpop.f32.mrb[0].mxu0
        %3562 = vmatprep.mubr.f32.mxu0 0.0
        %3563 = vmatmul.mubr.f32.gmra.mrb[0].mxu0 %v3397
        %v3564 = vpop.f32.mrb[0].mxu0
        %v3565 = vadd.f32 0.0, %v3564
        %v3566 = vpop.f32.mrb[0].mxu0
        %3567 = vmatprep.mubr.f32.mxu0 0.0
        %3568 = vmatmul.mubr.f32.gmra.mrb[0].mxu0 %v3398
        %v3569 = vpop.f32.mrb[0].mxu0
        %v3570 = vadd.f32 0.0, %v3569
        %v3571 = vpop.f32.mrb[0].mxu0
        %3572 = vmatprep.mubr.f32.mxu0 0.0
        %3573 = vmatmul.mubr.f32.gmra.mrb[0].mxu0 %v3399
        %v3574 = vpop.f32.mrb[0].mxu0
        %v3575 = vadd.f32 0.0, %v3574
        %v3576 = vpop.f32.mrb[0].mxu0
        %3577 = vmatprep.mubr.f32.mxu0 0.0
        %3578 = vmatmul.mubr.f32.gmra.mrb[0].mxu0 %v3400
        %v3579 = vpop.f32.mrb[0].mxu0
        %v3580 = vadd.f32 0.0, %v3579
        %v3581 = vpop.f32.mrb[0].mxu0
        %3582 = vmatprep.mubr.f32.mxu0 0.0
        %3583 = vmatmul.mubr.f32.gmra.mrb[0].mxu0 %v3401
        %v3584 = vpop.f32.mrb[0].mxu0
        %v3585 = vadd.f32 0.0, %v3584
        %v3586 = vpop.f32.mrb[0].mxu0
        %3587 = vmatprep.mubr.f32.mxu0 0.0
        %3588 = vmatmul.mubr.f32.gmra.mrb[0].mxu0 %v3402
        %v3589 = vpop.f32.mrb[0].mxu0
        %v3590 = vadd.f32 0.0, %v3589
        %v3591 = vpop.f32.mrb[0].mxu0
        %3592 = vmatprep.mubr.f32.mxu0 0.0
        %3593 = vmatmul.mubr.f32.gmra.mrb[0].mxu0 %v3403
        %v3594 = vpop.f32.mrb[0].mxu0
        %v3595 = vadd.f32 0.0, %v3594
        %v3596 = vpop.f32.mrb[0].mxu0
        %3597 = vmatprep.mubr.f32.mxu0 0.0
        %3598 = vmatmul.mubr.f32.gmra.mrb[0].mxu0 %v3404
        %v3599 = vpop.f32.mrb[0].mxu0
        %v3600 = vadd.f32 0.0, %v3599
        %v3601 = vpop.f32.mrb[0].mxu0
        %3602 = vmatprep.mubr.f32.mxu0 0.0
        %3603 = vmatmul.mubr.f32.gmra.mrb[0].mxu0 %v3405
        %v3604 = vpop.f32.mrb[0].mxu0
        %v3605 = vadd.f32 0.0, %v3604
        %v3606 = vpop.f32.mrb[0].mxu0
        %3607 = vmatprep.mubr.f32.mxu0 0.0
        %3608 = vmatmul.mubr.f32.gmra.mrb[0].mxu0 %v3406
        %v3609 = vpop.f32.mrb[0].mxu0
        %v3610 = vadd.f32 0.0, %v3609
        %v3611 = vpop.f32.mrb[0].mxu0
        %3612 = vmatprep.mubr.f32.mxu0 0.0
        %3613 = vmatmul.mubr.f32.gmra.mrb[0].mxu0 %v3407
        %v3614 = vpop.f32.mrb[0].mxu0
        %v3615 = vadd.f32 0.0, %v3614
        %v3616 = vpop.f32.mrb[0].mxu0
        %3617 = vmatprep.mubr.f32.mxu0 0.0
        %3618 = vmatmul.mubr.f32.gmra.mrb[0].mxu0 %v3408
        %v3619 = vpop.f32.mrb[0].mxu0
        %v3620 = vadd.f32 0.0, %v3619
        %v3621 = vpop.f32.mrb[0].mxu0
        %3622 = vmatprep.mubr.f32.mxu0 0.0
        %3623 = vmatmul.mubr.f32.gmra.mrb[0].mxu0 %v3409
        %v3624 = vpop.f32.mrb[0].mxu0
        %v3625 = vadd.f32 0.0, %v3624
        %v3626 = vpop.f32.mrb[0].mxu0
        %3627 = vmatprep.mubr.f32.mxu0 0.0
        %3628 = vmatmul.mubr.f32.gmra.mrb[0].mxu0 %v3410
        %v3629 = vpop.f32.mrb[0].mxu0
        %v3630 = vadd.f32 0.0, %v3629
        %v3631 = vpop.f32.mrb[0].mxu0
        %3632 = vmatprep.mubr.f32.mxu0 0.0
        %3633 = vmatmul.mubr.f32.gmra.mrb[0].mxu0 %v3411
        %v3634 = vpop.f32.mrb[0].mxu0
        %v3635 = vadd.f32 0.0, %v3634
        %v3636 = vpop.f32.mrb[0].mxu0
        %3637 = vmatprep.mubr.f32.mxu0 0.0
        %3638 = vmatmul.mubr.f32.gmra.mrb[0].mxu0 %v3412
        %v3639 = vpop.f32.mrb[0].mxu0
        %v3640 = vadd.f32 0.0, %v3639
        %v3641 = vpop.f32.mrb[0].mxu0
        %3642 = vmatprep.mubr.f32.mxu0 0.0
        %3643 = vmatmul.mubr.f32.gmra.mrb[0].mxu0 %v3413
        %v3644 = vpop.f32.mrb[0].mxu0
        %v3645 = vadd.f32 0.0, %v3644
        %v3646 = vpop.f32.mrb[0].mxu0
        %3647 = vmatprep.mubr.f32.mxu0 0.0
        %3648 = vmatmul.mubr.f32.gmra.mrb[0].mxu0 %v3414
        %v3649 = vpop.f32.mrb[0].mxu0
        %v3650 = vadd.f32 0.0, %v3649
        %v3651 = vpop.f32.mrb[0].mxu0
        %3652 = vmatprep.mubr.f32.mxu0 0.0
        %3653 = vmatmul.mubr.f32.gmra.mrb[0].mxu0 %v3415
        %v3654 = vpop.f32.mrb[0].mxu0
        %v3655 = vadd.f32 0.0, %v3654
        %v3656 = vpop.f32.mrb[0].mxu0
        %3657 = vdwg.mxu0
        %3658 = vmatprep.subr.mxu0 0.0
        %3659 = vmatpush1.msra.mxu0 %v3368
        %3660 = vmatprep.subr.mxu0 0.0
        %3661 = vmatpush1.msra.mxu0 %v3369
        %3662 = vmatprep.subr.mxu0 0.0
        %3663 = vmatpush1.msra.mxu0 %v3370
        %3664 = vmatprep.subr.mxu0 0.0
        %3665 = vmatpush1.msra.mxu0 %v3371
        %3666 = vmatprep.subr.mxu0 0.0
        %3667 = vmatpush1.msra.mxu0 %v3372
        %3668 = vmatprep.subr.mxu0 0.0
        %3669 = vmatpush1.msra.mxu0 %v3373
        %3670 = vmatprep.subr.mxu0 0.0
        %3671 = vmatpush1.msra.mxu0 %v3374
        %3672 = vmatprep.subr.mxu0 0.0
        %3673 = vmatpush1.msra.mxu0 %v3375
        %3674 = vmatprep.subr.mxu0 0.0
        %3675 = vmatpush1.msra.mxu0 %v3376
        %3676 = vmatprep.subr.mxu0 0.0
        %3677 = vmatpush1.msra.mxu0 %v3377
        %3678 = vmatprep.subr.mxu0 0.0
        %3679 = vmatpush1.msra.mxu0 %v3378
        %3680 = vmatprep.subr.mxu0 0.0
        %3681 = vmatpush1.msra.mxu0 %v3379
        %3682 = vmatprep.subr.mxu0 0.0
        %3683 = vmatpush1.msra.mxu0 %v3380
        %3684 = vmatprep.subr.mxu0 0.0
        %3685 = vmatpush1.msra.mxu0 %v3381
        %3686 = vmatprep.subr.mxu0 0.0
        %3687 = vmatpush1.msra.mxu0 %v3382
        %3688 = vmatprep.subr.mxu0 0.0
        %3689 = vmatpush1.msra.mxu0 %v3383
        %3690 = vmatprep.subr.mxu0 0.0
        %3691 = vmatpush1.msra.mxu0 0.0
        %3692 = vmatprep.subr.mxu0 0.0
        %3693 = vmatpush1.msra.mxu0 0.0
        %3694 = vmatprep.subr.mxu0 0.0
        %3695 = vmatpush1.msra.mxu0 0.0
        %3696 = vmatprep.subr.mxu0 0.0
        %3697 = vmatpush1.msra.mxu0 0.0
        %3698 = vmatprep.subr.mxu0 0.0
        %3699 = vmatpush1.msra.mxu0 0.0
        %3700 = vmatprep.subr.mxu0 0.0
        %3701 = vmatpush1.msra.mxu0 0.0
        %3702 = vmatprep.subr.mxu0 0.0
        %3703 = vmatpush1.msra.mxu0 0.0
        %3704 = vmatprep.subr.mxu0 0.0
        %3705 = vmatpush1.msra.mxu0 0.0
        %3706 = vmatprep.subr.mxu0 0.0
        %3707 = vmatpush1.msra.mxu0 0.0
        %3708 = vmatprep.subr.mxu0 0.0
        %3709 = vmatpush1.msra.mxu0 0.0
        %3710 = vmatprep.subr.mxu0 0.0
        %3711 = vmatpush1.msra.mxu0 0.0
        %3712 = vmatprep.subr.mxu0 0.0
        %3713 = vmatpush1.msra.mxu0 0.0
        %3714 = vmatprep.subr.mxu0 0.0
        %3715 = vmatpush1.msra.mxu0 0.0
        %3716 = vmatprep.subr.mxu0 0.0
        %3717 = vmatpush1.msra.mxu0 0.0
        %3718 = vmatprep.subr.mxu0 0.0
        %3719 = vmatpush1.msra.mxu0 0.0
        %3720 = vmatprep.subr.mxu0 0.0
        %3721 = vmatpush1.msra.mxu0 0.0
        %3722 = vmatprep.mubr.f32.mxu0 0.0
        %3723 = vmatmul.mubr.f32.gmra.mrb[0].mxu0 %v3336
        %v3724 = vpop.f32.mrb[0].mxu0
        %v3725 = vadd.f32 %v3500, %v3724
        %v3726 = vpop.f32.mrb[0].mxu0
        %3727 = vmatprep.mubr.f32.mxu0 0.0
        %3728 = vmatmul.mubr.f32.gmra.mrb[0].mxu0 %v3337
        %v3729 = vpop.f32.mrb[0].mxu0
        %v3730 = vadd.f32 %v3505, %v3729
        %v3731 = vpop.f32.mrb[0].mxu0
        %3732 = vmatprep.mubr.f32.mxu0 0.0
        %3733 = vmatmul.mubr.f32.gmra.mrb[0].mxu0 %v3338
        %v3734 = vpop.f32.mrb[0].mxu0
        %v3735 = vadd.f32 %v3510, %v3734
        %v3736 = vpop.f32.mrb[0].mxu0
        %3737 = vmatprep.mubr.f32.mxu0 0.0
        %3738 = vmatmul.mubr.f32.gmra.mrb[0].mxu0 %v3339
        %v3739 = vpop.f32.mrb[0].mxu0
        %v3740 = vadd.f32 %v3515, %v3739
        %v3741 = vpop.f32.mrb[0].mxu0
        %3742 = vmatprep.mubr.f32.mxu0 0.0
        %3743 = vmatmul.mubr.f32.gmra.mrb[0].mxu0 %v3340
        %v3744 = vpop.f32.mrb[0].mxu0
        %v3745 = vadd.f32 %v3520, %v3744
        %v3746 = vpop.f32.mrb[0].mxu0
        %3747 = vmatprep.mubr.f32.mxu0 0.0
        %3748 = vmatmul.mubr.f32.gmra.mrb[0].mxu0 %v3341
        %v3749 = vpop.f32.mrb[0].mxu0
        %v3750 = vadd.f32 %v3525, %v3749
        %v3751 = vpop.f32.mrb[0].mxu0
        %3752 = vmatprep.mubr.f32.mxu0 0.0
        %3753 = vmatmul.mubr.f32.gmra.mrb[0].mxu0 %v3342
        %v3754 = vpop.f32.mrb[0].mxu0
        %v3755 = vadd.f32 %v3530, %v3754
        %v3756 = vpop.f32.mrb[0].mxu0
        %3757 = vmatprep.mubr.f32.mxu0 0.0
        %3758 = vmatmul.mubr.f32.gmra.mrb[0].mxu0 %v3343
        %v3759 = vpop.f32.mrb[0].mxu0
        %v3760 = vadd.f32 %v3535, %v3759
        %v3761 = vpop.f32.mrb[0].mxu0
        %3762 = vmatprep.mubr.f32.mxu0 0.0
        %3763 = vmatmul.mubr.f32.gmra.mrb[0].mxu0 %v3344
        %v3764 = vpop.f32.mrb[0].mxu0
        %v3765 = vadd.f32 %v3540, %v3764
        %v3766 = vpop.f32.mrb[0].mxu0
        %3767 = vmatprep.mubr.f32.mxu0 0.0
        %3768 = vmatmul.mubr.f32.gmra.mrb[0].mxu0 %v3345
        %v3769 = vpop.f32.mrb[0].mxu0
        %v3770 = vadd.f32 %v3545, %v3769
        %v3771 = vpop.f32.mrb[0].mxu0
        %3772 = vmatprep.mubr.f32.mxu0 0.0
        %3773 = vmatmul.mubr.f32.gmra.mrb[0].mxu0 %v3346
        %v3774 = vpop.f32.mrb[0].mxu0
        %v3775 = vadd.f32 %v3550, %v3774
        %v3776 = vpop.f32.mrb[0].mxu0
        %3777 = vmatprep.mubr.f32.mxu0 0.0
        %3778 = vmatmul.mubr.f32.gmra.mrb[0].mxu0 %v3347
        %v3779 = vpop.f32.mrb[0].mxu0
        %v3780 = vadd.f32 %v3555, %v3779
        %v3781 = vpop.f32.mrb[0].mxu0
        %3782 = vmatprep.mubr.f32.mxu0 0.0
        %3783 = vmatmul.mubr.f32.gmra.mrb[0].mxu0 %v3348
        %v3784 = vpop.f32.mrb[0].mxu0
        %v3785 = vadd.f32 %v3560, %v3784
        %v3786 = vpop.f32.mrb[0].mxu0
        %3787 = vmatprep.mubr.f32.mxu0 0.0
        %3788 = vmatmul.mubr.f32.gmra.mrb[0].mxu0 %v3349
        %v3789 = vpop.f32.mrb[0].mxu0
        %v3790 = vadd.f32 %v3565, %v3789
        %v3791 = vpop.f32.mrb[0].mxu0
        %3792 = vmatprep.mubr.f32.mxu0 0.0
        %3793 = vmatmul.mubr.f32.gmra.mrb[0].mxu0 %v3350
        %v3794 = vpop.f32.mrb[0].mxu0
        %v3795 = vadd.f32 %v3570, %v3794
        %v3796 = vpop.f32.mrb[0].mxu0
        %3797 = vmatprep.mubr.f32.mxu0 0.0
        %3798 = vmatmul.mubr.f32.gmra.mrb[0].mxu0 %v3351
        %v3799 = vpop.f32.mrb[0].mxu0
        %v3800 = vadd.f32 %v3575, %v3799
        %v3801 = vpop.f32.mrb[0].mxu0
        %3802 = vmatprep.mubr.f32.mxu0 0.0
        %3803 = vmatmul.mubr.f32.gmra.mrb[0].mxu0 %v3352
        %v3804 = vpop.f32.mrb[0].mxu0
        %v3805 = vadd.f32 %v3580, %v3804
        %v3806 = vpop.f32.mrb[0].mxu0
        %3807 = vmatprep.mubr.f32.mxu0 0.0
        %3808 = vmatmul.mubr.f32.gmra.mrb[0].mxu0 %v3353
        %v3809 = vpop.f32.mrb[0].mxu0
        %v3810 = vadd.f32 %v3585, %v3809
        %v3811 = vpop.f32.mrb[0].mxu0
        %3812 = vmatprep.mubr.f32.mxu0 0.0
        %3813 = vmatmul.mubr.f32.gmra.mrb[0].mxu0 %v3354
        %v3814 = vpop.f32.mrb[0].mxu0
        %v3815 = vadd.f32 %v3590, %v3814
        %v3816 = vpop.f32.mrb[0].mxu0
        %3817 = vmatprep.mubr.f32.mxu0 0.0
        %3818 = vmatmul.mubr.f32.gmra.mrb[0].mxu0 %v3355
        %v3819 = vpop.f32.mrb[0].mxu0
        %v3820 = vadd.f32 %v3595, %v3819
        %v3821 = vpop.f32.mrb[0].mxu0
        %3822 = vmatprep.mubr.f32.mxu0 0.0
        %3823 = vmatmul.mubr.f32.gmra.mrb[0].mxu0 %v3356
        %v3824 = vpop.f32.mrb[0].mxu0
        %v3825 = vadd.f32 %v3600, %v3824
        %v3826 = vpop.f32.mrb[0].mxu0
        %3827 = vmatprep.mubr.f32.mxu0 0.0
        %3828 = vmatmul.mubr.f32.gmra.mrb[0].mxu0 %v3357
        %v3829 = vpop.f32.mrb[0].mxu0
        %v3830 = vadd.f32 %v3605, %v3829
        %v3831 = vpop.f32.mrb[0].mxu0
        %3832 = vmatprep.mubr.f32.mxu0 0.0
        %3833 = vmatmul.mubr.f32.gmra.mrb[0].mxu0 %v3358
        %v3834 = vpop.f32.mrb[0].mxu0
        %v3835 = vadd.f32 %v3610, %v3834
        %v3836 = vpop.f32.mrb[0].mxu0
        %3837 = vmatprep.mubr.f32.mxu0 0.0
        %3838 = vmatmul.mubr.f32.gmra.mrb[0].mxu0 %v3359
        %v3839 = vpop.f32.mrb[0].mxu0
        %v3840 = vadd.f32 %v3615, %v3839
        %v3841 = vpop.f32.mrb[0].mxu0
        %3842 = vmatprep.mubr.f32.mxu0 0.0
        %3843 = vmatmul.mubr.f32.gmra.mrb[0].mxu0 %v3360
        %v3844 = vpop.f32.mrb[0].mxu0
        %v3845 = vadd.f32 %v3620, %v3844
        %v3846 = vpop.f32.mrb[0].mxu0
        %3847 = vmatprep.mubr.f32.mxu0 0.0
        %3848 = vmatmul.mubr.f32.gmra.mrb[0].mxu0 %v3361
        %v3849 = vpop.f32.mrb[0].mxu0
        %v3850 = vadd.f32 %v3625, %v3849
        %v3851 = vpop.f32.mrb[0].mxu0
        %3852 = vmatprep.mubr.f32.mxu0 0.0
        %3853 = vmatmul.mubr.f32.gmra.mrb[0].mxu0 %v3362
        %v3854 = vpop.f32.mrb[0].mxu0
        %v3855 = vadd.f32 %v3630, %v3854
        %v3856 = vpop.f32.mrb[0].mxu0
        %3857 = vmatprep.mubr.f32.mxu0 0.0
        %3858 = vmatmul.mubr.f32.gmra.mrb[0].mxu0 %v3363
        %v3859 = vpop.f32.mrb[0].mxu0
        %v3860 = vadd.f32 %v3635, %v3859
        %v3861 = vpop.f32.mrb[0].mxu0
        %3862 = vmatprep.mubr.f32.mxu0 0.0
        %3863 = vmatmul.mubr.f32.gmra.mrb[0].mxu0 %v3364
        %v3864 = vpop.f32.mrb[0].mxu0
        %v3865 = vadd.f32 %v3640, %v3864
        %v3866 = vpop.f32.mrb[0].mxu0
        %3867 = vmatprep.mubr.f32.mxu0 0.0
        %3868 = vmatmul.mubr.f32.gmra.mrb[0].mxu0 %v3365
        %v3869 = vpop.f32.mrb[0].mxu0
        %v3870 = vadd.f32 %v3645, %v3869
        %v3871 = vpop.f32.mrb[0].mxu0
        %3872 = vmatprep.mubr.f32.mxu0 0.0
        %3873 = vmatmul.mubr.f32.gmra.mrb[0].mxu0 %v3366
        %v3874 = vpop.f32.mrb[0].mxu0
        %v3875 = vadd.f32 %v3650, %v3874
        %v3876 = vpop.f32.mrb[0].mxu0
        %3877 = vmatprep.mubr.f32.mxu0 0.0
        %3878 = vmatmul.mubr.f32.gmra.mrb[0].mxu0 %v3367
        %v3879 = vpop.f32.mrb[0].mxu0
        %v3880 = vadd.f32 %v3655, %v3879
        %v3881 = vpop.f32.mrb[0].mxu0
        %3882 = vdwg.mxu0
        %v3883 = vld [vmem:[#allocation3 + $0x2] sm:$0xff]
        %v3884 = vld [vmem:[#allocation3 + $0xa] sm:$0xff]
        %v3885 = vld [vmem:[#allocation3 + $0x1a] sm:$0xff]
        %v3886 = vld [vmem:[#allocation3 + $0x22] sm:$0xff]
        %v3887 = vld [vmem:[#allocation3 + $0x32] sm:$0xff]
        %v3888 = vld [vmem:[#allocation3 + $0x3a] sm:$0xff]
        %v3889 = vld [vmem:[#allocation3 + $0x4a] sm:$0xff]
        %v3890 = vld [vmem:[#allocation3 + $0x52] sm:$0xff]
        %v3891 = vld [vmem:[#allocation3 + $0x62] sm:$0xff]
        %v3892 = vld [vmem:[#allocation3 + $0x6a] sm:$0xff]
        %v3893 = vld [vmem:[#allocation3 + $0x7a] sm:$0xff]
        %v3894 = vld [vmem:[#allocation3 + $0x82] sm:$0xff]
        %v3895 = vld [vmem:[#allocation3 + $0x92] sm:$0xff]
        %v3896 = vld [vmem:[#allocation3 + $0x9a] sm:$0xff]
        %v3897 = vld [vmem:[#allocation3 + $0xaa] sm:$0xff]
        %v3898 = vld [vmem:[#allocation3 + $0xb2] sm:$0xff]
        %v3899 = vld [vmem:[#allocation3 + $0xc2] sm:$0xff]
        %v3900 = vld [vmem:[#allocation3 + $0xca] sm:$0xff]
        %v3901 = vld [vmem:[#allocation3 + $0xda] sm:$0xff]
        %v3902 = vld [vmem:[#allocation3 + $0xe2] sm:$0xff]
        %v3903 = vld [vmem:[#allocation3 + $0xf2] sm:$0xff]
        %v3904 = vld [vmem:[#allocation3 + $0xfa] sm:$0xff]
        %v3905 = vld [vmem:[#allocation3 + $0x10a] sm:$0xff]
        %v3906 = vld [vmem:[#allocation3 + $0x112] sm:$0xff]
        %v3907 = vld [vmem:[#allocation3 + $0x122] sm:$0xff]
        %v3908 = vld [vmem:[#allocation3 + $0x12a] sm:$0xff]
        %v3909 = vld [vmem:[#allocation3 + $0x13a] sm:$0xff]
        %v3910 = vld [vmem:[#allocation3 + $0x142] sm:$0xff]
        %v3911 = vld [vmem:[#allocation3 + $0x152] sm:$0xff]
        %v3912 = vld [vmem:[#allocation3 + $0x15a] sm:$0xff]
        %v3913 = vld [vmem:[#allocation3 + $0x16a] sm:$0xff]
        %v3914 = vld [vmem:[#allocation3 + $0x172] sm:$0xff]
        %s3915 = scalar_lea.vmem [#allocation9], 256
        %v3916 = vld [vmem:[%s3915] sm:$0xff]
        %v3917 = vld [vmem:[%s3915 + $0x8] sm:$0xff]
        %v3918 = vld [vmem:[%s3915 + $0x10] sm:$0xff]
        %v3919 = vld [vmem:[%s3915 + $0x18] sm:$0xff]
        %v3920 = vld [vmem:[%s3915 + $0x20] sm:$0xff]
        %v3921 = vld [vmem:[%s3915 + $0x28] sm:$0xff]
        %v3922 = vld [vmem:[%s3915 + $0x30] sm:$0xff]
        %v3923 = vld [vmem:[%s3915 + $0x38] sm:$0xff]
        %v3924 = vld [vmem:[%s3915 + $0x40] sm:$0xff]
        %v3925 = vld [vmem:[%s3915 + $0x48] sm:$0xff]
        %v3926 = vld [vmem:[%s3915 + $0x50] sm:$0xff]
        %v3927 = vld [vmem:[%s3915 + $0x58] sm:$0xff]
        %v3928 = vld [vmem:[%s3915 + $0x60] sm:$0xff]
        %v3929 = vld [vmem:[%s3915 + $0x68] sm:$0xff]
        %v3930 = vld [vmem:[%s3915 + $0x70] sm:$0xff]
        %v3931 = vld [vmem:[%s3915 + $0x78] sm:$0xff]
        %3932 = vmatprep.subr.mxu0 0.0
        %3933 = vmatpush1.msra.mxu0 %v3916
        %3934 = vmatprep.subr.mxu0 0.0
        %3935 = vmatpush1.msra.mxu0 %v3917
        %3936 = vmatprep.subr.mxu0 0.0
        %3937 = vmatpush1.msra.mxu0 %v3918
        %3938 = vmatprep.subr.mxu0 0.0
        %3939 = vmatpush1.msra.mxu0 %v3919
        %3940 = vmatprep.subr.mxu0 0.0
        %3941 = vmatpush1.msra.mxu0 %v3920
        %3942 = vmatprep.subr.mxu0 0.0
        %3943 = vmatpush1.msra.mxu0 %v3921
        %3944 = vmatprep.subr.mxu0 0.0
        %3945 = vmatpush1.msra.mxu0 %v3922
        %3946 = vmatprep.subr.mxu0 0.0
        %3947 = vmatpush1.msra.mxu0 %v3923
        %3948 = vmatprep.subr.mxu0 0.0
        %3949 = vmatpush1.msra.mxu0 %v3924
        %3950 = vmatprep.subr.mxu0 0.0
        %3951 = vmatpush1.msra.mxu0 %v3925
        %3952 = vmatprep.subr.mxu0 0.0
        %3953 = vmatpush1.msra.mxu0 %v3926
        %3954 = vmatprep.subr.mxu0 0.0
        %3955 = vmatpush1.msra.mxu0 %v3927
        %3956 = vmatprep.subr.mxu0 0.0
        %3957 = vmatpush1.msra.mxu0 %v3928
        %3958 = vmatprep.subr.mxu0 0.0
        %3959 = vmatpush1.msra.mxu0 %v3929
        %3960 = vmatprep.subr.mxu0 0.0
        %3961 = vmatpush1.msra.mxu0 %v3930
        %3962 = vmatprep.subr.mxu0 0.0
        %3963 = vmatpush1.msra.mxu0 %v3931
        %3964 = vmatprep.subr.mxu0 0.0
        %3965 = vmatpush1.msra.mxu0 0.0
        %3966 = vmatprep.subr.mxu0 0.0
        %3967 = vmatpush1.msra.mxu0 0.0
        %3968 = vmatprep.subr.mxu0 0.0
        %3969 = vmatpush1.msra.mxu0 0.0
        %3970 = vmatprep.subr.mxu0 0.0
        %3971 = vmatpush1.msra.mxu0 0.0
        %3972 = vmatprep.subr.mxu0 0.0
        %3973 = vmatpush1.msra.mxu0 0.0
        %3974 = vmatprep.subr.mxu0 0.0
        %3975 = vmatpush1.msra.mxu0 0.0
        %3976 = vmatprep.subr.mxu0 0.0
        %3977 = vmatpush1.msra.mxu0 0.0
        %3978 = vmatprep.subr.mxu0 0.0
        %3979 = vmatpush1.msra.mxu0 0.0
        %3980 = vmatprep.subr.mxu0 0.0
        %3981 = vmatpush1.msra.mxu0 0.0
        %3982 = vmatprep.subr.mxu0 0.0
        %3983 = vmatpush1.msra.mxu0 0.0
        %3984 = vmatprep.subr.mxu0 0.0
        %3985 = vmatpush1.msra.mxu0 0.0
        %3986 = vmatprep.subr.mxu0 0.0
        %3987 = vmatpush1.msra.mxu0 0.0
        %3988 = vmatprep.subr.mxu0 0.0
        %3989 = vmatpush1.msra.mxu0 0.0
        %3990 = vmatprep.subr.mxu0 0.0
        %3991 = vmatpush1.msra.mxu0 0.0
        %3992 = vmatprep.subr.mxu0 0.0
        %3993 = vmatpush1.msra.mxu0 0.0
        %3994 = vmatprep.subr.mxu0 0.0
        %3995 = vmatpush1.msra.mxu0 0.0
        %3996 = vmatprep.mubr.f32.mxu0 0.0
        %3997 = vmatmul.mubr.f32.gmra.mrb[0].mxu0 %v3883
        %v3998 = vpop.f32.mrb[0].mxu0
        %v3999 = vadd.f32 0.0, %v3998
        %v4000 = vpop.f32.mrb[0].mxu0
        %4001 = vmatprep.mubr.f32.mxu0 0.0
        %4002 = vmatmul.mubr.f32.gmra.mrb[0].mxu0 %v3884
        %v4003 = vpop.f32.mrb[0].mxu0
        %v4004 = vadd.f32 0.0, %v4003
        %v4005 = vpop.f32.mrb[0].mxu0
        %4006 = vmatprep.mubr.f32.mxu0 0.0
        %4007 = vmatmul.mubr.f32.gmra.mrb[0].mxu0 %v3885
        %v4008 = vpop.f32.mrb[0].mxu0
        %v4009 = vadd.f32 0.0, %v4008
        %v4010 = vpop.f32.mrb[0].mxu0
        %4011 = vmatprep.mubr.f32.mxu0 0.0
        %4012 = vmatmul.mubr.f32.gmra.mrb[0].mxu0 %v3886
        %v4013 = vpop.f32.mrb[0].mxu0
        %v4014 = vadd.f32 0.0, %v4013
        %v4015 = vpop.f32.mrb[0].mxu0
        %4016 = vmatprep.mubr.f32.mxu0 0.0
        %4017 = vmatmul.mubr.f32.gmra.mrb[0].mxu0 %v3887
        %v4018 = vpop.f32.mrb[0].mxu0
        %v4019 = vadd.f32 0.0, %v4018
        %v4020 = vpop.f32.mrb[0].mxu0
        %4021 = vmatprep.mubr.f32.mxu0 0.0
        %4022 = vmatmul.mubr.f32.gmra.mrb[0].mxu0 %v3888
        %v4023 = vpop.f32.mrb[0].mxu0
        %v4024 = vadd.f32 0.0, %v4023
        %v4025 = vpop.f32.mrb[0].mxu0
        %4026 = vmatprep.mubr.f32.mxu0 0.0
        %4027 = vmatmul.mubr.f32.gmra.mrb[0].mxu0 %v3889
        %v4028 = vpop.f32.mrb[0].mxu0
        %v4029 = vadd.f32 0.0, %v4028
        %v4030 = vpop.f32.mrb[0].mxu0
        %4031 = vmatprep.mubr.f32.mxu0 0.0
        %4032 = vmatmul.mubr.f32.gmra.mrb[0].mxu0 %v3890
        %v4033 = vpop.f32.mrb[0].mxu0
        %v4034 = vadd.f32 0.0, %v4033
        %v4035 = vpop.f32.mrb[0].mxu0
        %4036 = vmatprep.mubr.f32.mxu0 0.0
        %4037 = vmatmul.mubr.f32.gmra.mrb[0].mxu0 %v3891
        %v4038 = vpop.f32.mrb[0].mxu0
        %v4039 = vadd.f32 0.0, %v4038
        %v4040 = vpop.f32.mrb[0].mxu0
        %4041 = vmatprep.mubr.f32.mxu0 0.0
        %4042 = vmatmul.mubr.f32.gmra.mrb[0].mxu0 %v3892
        %v4043 = vpop.f32.mrb[0].mxu0
        %v4044 = vadd.f32 0.0, %v4043
        %v4045 = vpop.f32.mrb[0].mxu0
        %4046 = vmatprep.mubr.f32.mxu0 0.0
        %4047 = vmatmul.mubr.f32.gmra.mrb[0].mxu0 %v3893
        %v4048 = vpop.f32.mrb[0].mxu0
        %v4049 = vadd.f32 0.0, %v4048
        %v4050 = vpop.f32.mrb[0].mxu0
        %4051 = vmatprep.mubr.f32.mxu0 0.0
        %4052 = vmatmul.mubr.f32.gmra.mrb[0].mxu0 %v3894
        %v4053 = vpop.f32.mrb[0].mxu0
        %v4054 = vadd.f32 0.0, %v4053
        %v4055 = vpop.f32.mrb[0].mxu0
        %4056 = vmatprep.mubr.f32.mxu0 0.0
        %4057 = vmatmul.mubr.f32.gmra.mrb[0].mxu0 %v3895
        %v4058 = vpop.f32.mrb[0].mxu0
        %v4059 = vadd.f32 0.0, %v4058
        %v4060 = vpop.f32.mrb[0].mxu0
        %4061 = vmatprep.mubr.f32.mxu0 0.0
        %4062 = vmatmul.mubr.f32.gmra.mrb[0].mxu0 %v3896
        %v4063 = vpop.f32.mrb[0].mxu0
        %v4064 = vadd.f32 0.0, %v4063
        %v4065 = vpop.f32.mrb[0].mxu0
        %4066 = vmatprep.mubr.f32.mxu0 0.0
        %4067 = vmatmul.mubr.f32.gmra.mrb[0].mxu0 %v3897
        %v4068 = vpop.f32.mrb[0].mxu0
        %v4069 = vadd.f32 0.0, %v4068
        %v4070 = vpop.f32.mrb[0].mxu0
        %4071 = vmatprep.mubr.f32.mxu0 0.0
        %4072 = vmatmul.mubr.f32.gmra.mrb[0].mxu0 %v3898
        %v4073 = vpop.f32.mrb[0].mxu0
        %v4074 = vadd.f32 0.0, %v4073
        %v4075 = vpop.f32.mrb[0].mxu0
        %4076 = vmatprep.mubr.f32.mxu0 0.0
        %4077 = vmatmul.mubr.f32.gmra.mrb[0].mxu0 %v3899
        %v4078 = vpop.f32.mrb[0].mxu0
        %v4079 = vadd.f32 0.0, %v4078
        %v4080 = vpop.f32.mrb[0].mxu0
        %4081 = vmatprep.mubr.f32.mxu0 0.0
        %4082 = vmatmul.mubr.f32.gmra.mrb[0].mxu0 %v3900
        %v4083 = vpop.f32.mrb[0].mxu0
        %v4084 = vadd.f32 0.0, %v4083
        %v4085 = vpop.f32.mrb[0].mxu0
        %4086 = vmatprep.mubr.f32.mxu0 0.0
        %4087 = vmatmul.mubr.f32.gmra.mrb[0].mxu0 %v3901
        %v4088 = vpop.f32.mrb[0].mxu0
        %v4089 = vadd.f32 0.0, %v4088
        %v4090 = vpop.f32.mrb[0].mxu0
        %4091 = vmatprep.mubr.f32.mxu0 0.0
        %4092 = vmatmul.mubr.f32.gmra.mrb[0].mxu0 %v3902
        %v4093 = vpop.f32.mrb[0].mxu0
        %v4094 = vadd.f32 0.0, %v4093
        %v4095 = vpop.f32.mrb[0].mxu0
        %4096 = vmatprep.mubr.f32.mxu0 0.0
        %4097 = vmatmul.mubr.f32.gmra.mrb[0].mxu0 %v3903
        %v4098 = vpop.f32.mrb[0].mxu0
        %v4099 = vadd.f32 0.0, %v4098
        %v4100 = vpop.f32.mrb[0].mxu0
        %4101 = vmatprep.mubr.f32.mxu0 0.0
        %4102 = vmatmul.mubr.f32.gmra.mrb[0].mxu0 %v3904
        %v4103 = vpop.f32.mrb[0].mxu0
        %v4104 = vadd.f32 0.0, %v4103
        %v4105 = vpop.f32.mrb[0].mxu0
        %4106 = vmatprep.mubr.f32.mxu0 0.0
        %4107 = vmatmul.mubr.f32.gmra.mrb[0].mxu0 %v3905
        %v4108 = vpop.f32.mrb[0].mxu0
        %v4109 = vadd.f32 0.0, %v4108
        %v4110 = vpop.f32.mrb[0].mxu0
        %4111 = vmatprep.mubr.f32.mxu0 0.0
        %4112 = vmatmul.mubr.f32.gmra.mrb[0].mxu0 %v3906
        %v4113 = vpop.f32.mrb[0].mxu0
        %v4114 = vadd.f32 0.0, %v4113
        %v4115 = vpop.f32.mrb[0].mxu0
        %4116 = vmatprep.mubr.f32.mxu0 0.0
        %4117 = vmatmul.mubr.f32.gmra.mrb[0].mxu0 %v3907
        %v4118 = vpop.f32.mrb[0].mxu0
        %v4119 = vadd.f32 0.0, %v4118
        %v4120 = vpop.f32.mrb[0].mxu0
        %4121 = vmatprep.mubr.f32.mxu0 0.0
        %4122 = vmatmul.mubr.f32.gmra.mrb[0].mxu0 %v3908
        %v4123 = vpop.f32.mrb[0].mxu0
        %v4124 = vadd.f32 0.0, %v4123
        %v4125 = vpop.f32.mrb[0].mxu0
        %4126 = vmatprep.mubr.f32.mxu0 0.0
        %4127 = vmatmul.mubr.f32.gmra.mrb[0].mxu0 %v3909
        %v4128 = vpop.f32.mrb[0].mxu0
        %v4129 = vadd.f32 0.0, %v4128
        %v4130 = vpop.f32.mrb[0].mxu0
        %4131 = vmatprep.mubr.f32.mxu0 0.0
        %4132 = vmatmul.mubr.f32.gmra.mrb[0].mxu0 %v3910
        %v4133 = vpop.f32.mrb[0].mxu0
        %v4134 = vadd.f32 0.0, %v4133
        %v4135 = vpop.f32.mrb[0].mxu0
        %4136 = vmatprep.mubr.f32.mxu0 0.0
        %4137 = vmatmul.mubr.f32.gmra.mrb[0].mxu0 %v3911
        %v4138 = vpop.f32.mrb[0].mxu0
        %v4139 = vadd.f32 0.0, %v4138
        %v4140 = vpop.f32.mrb[0].mxu0
        %4141 = vmatprep.mubr.f32.mxu0 0.0
        %4142 = vmatmul.mubr.f32.gmra.mrb[0].mxu0 %v3912
        %v4143 = vpop.f32.mrb[0].mxu0
        %v4144 = vadd.f32 0.0, %v4143
        %v4145 = vpop.f32.mrb[0].mxu0
        %4146 = vmatprep.mubr.f32.mxu0 0.0
        %4147 = vmatmul.mubr.f32.gmra.mrb[0].mxu0 %v3913
        %v4148 = vpop.f32.mrb[0].mxu0
        %v4149 = vadd.f32 0.0, %v4148
        %v4150 = vpop.f32.mrb[0].mxu0
        %4151 = vmatprep.mubr.f32.mxu0 0.0
        %4152 = vmatmul.mubr.f32.gmra.mrb[0].mxu0 %v3914
        %v4153 = vpop.f32.mrb[0].mxu0
        %v4154 = vadd.f32 0.0, %v4153
        %v4155 = vpop.f32.mrb[0].mxu0
        %4156 = vdwg.mxu0
        %v4157 = vadd.f32 %v3725, %v3999
        %v4158 = vadd.f32 %v3730, %v4004
        %v4159 = vadd.f32 %v3735, %v4009
        %v4160 = vadd.f32 %v3740, %v4014
        %v4161 = vadd.f32 %v3745, %v4019
        %v4162 = vadd.f32 %v3750, %v4024
        %v4163 = vadd.f32 %v3755, %v4029
        %v4164 = vadd.f32 %v3760, %v4034
        %v4165 = vadd.f32 %v3765, %v4039
        %v4166 = vadd.f32 %v3770, %v4044
        %v4167 = vadd.f32 %v3775, %v4049
        %v4168 = vadd.f32 %v3780, %v4054
        %v4169 = vadd.f32 %v3785, %v4059
        %v4170 = vadd.f32 %v3790, %v4064
        %v4171 = vadd.f32 %v3795, %v4069
        %v4172 = vadd.f32 %v3800, %v4074
        %v4173 = vadd.f32 %v3805, %v4079
        %v4174 = vadd.f32 %v3810, %v4084
        %v4175 = vadd.f32 %v3815, %v4089
        %v4176 = vadd.f32 %v3820, %v4094
        %v4177 = vadd.f32 %v3825, %v4099
        %v4178 = vadd.f32 %v3830, %v4104
        %v4179 = vadd.f32 %v3835, %v4109
        %v4180 = vadd.f32 %v3840, %v4114
        %v4181 = vadd.f32 %v3845, %v4119
        %v4182 = vadd.f32 %v3850, %v4124
        %v4183 = vadd.f32 %v3855, %v4129
        %v4184 = vadd.f32 %v3860, %v4134
        %v4185 = vadd.f32 %v3865, %v4139
        %v4186 = vadd.f32 %v3870, %v4144
        %v4187 = vadd.f32 %v3875, %v4149
        %v4188 = vadd.f32 %v3880, %v4154
        %v4189 = vld [vmem:[%s3303] sm:$0xff]
        %v4190 = vld [vmem:[%s3303 + $0x8] sm:$0xff]
        %v4191 = vld [vmem:[%s3303 + $0x18] sm:$0xff]
        %v4192 = vld [vmem:[%s3303 + $0x20] sm:$0xff]
        %v4193 = vld [vmem:[%s3303 + $0x30] sm:$0xff]
        %v4194 = vld [vmem:[%s3303 + $0x38] sm:$0xff]
        %v4195 = vld [vmem:[%s3303 + $0x48] sm:$0xff]
        %v4196 = vld [vmem:[%s3303 + $0x50] sm:$0xff]
        %v4197 = vld [vmem:[%s3303 + $0x60] sm:$0xff]
        %v4198 = vld [vmem:[%s3303 + $0x68] sm:$0xff]
        %v4199 = vld [vmem:[%s3303 + $0x78] sm:$0xff]
        %v4200 = vld [vmem:[%s3303 + $0x80] sm:$0xff]
        %v4201 = vld [vmem:[%s3303 + $0x90] sm:$0xff]
        %v4202 = vld [vmem:[%s3303 + $0x98] sm:$0xff]
        %v4203 = vld [vmem:[%s3303 + $0xa8] sm:$0xff]
        %v4204 = vld [vmem:[%s3303 + $0xb0] sm:$0xff]
        %v4205 = vld [vmem:[%s3303 + $0xc0] sm:$0xff]
        %v4206 = vld [vmem:[%s3303 + $0xc8] sm:$0xff]
        %v4207 = vld [vmem:[%s3303 + $0xd8] sm:$0xff]
        %v4208 = vld [vmem:[%s3303 + $0xe0] sm:$0xff]
        %v4209 = vld [vmem:[%s3303 + $0xf0] sm:$0xff]
        %v4210 = vld [vmem:[%s3303 + $0xf8] sm:$0xff]
        %v4211 = vld [vmem:[%s3303 + $0x108] sm:$0xff]
        %v4212 = vld [vmem:[%s3303 + $0x110] sm:$0xff]
        %v4213 = vld [vmem:[%s3303 + $0x120] sm:$0xff]
        %v4214 = vld [vmem:[%s3303 + $0x128] sm:$0xff]
        %v4215 = vld [vmem:[%s3303 + $0x138] sm:$0xff]
        %v4216 = vld [vmem:[%s3303 + $0x140] sm:$0xff]
        %v4217 = vld [vmem:[%s3303 + $0x150] sm:$0xff]
        %v4218 = vld [vmem:[%s3303 + $0x158] sm:$0xff]
        %v4219 = vld [vmem:[%s3303 + $0x168] sm:$0xff]
        %v4220 = vld [vmem:[%s3303 + $0x170] sm:$0xff]
        %s4221 = scalar_lea.vmem [#allocation9], 384
        %v4222 = vld [vmem:[%s4221] sm:$0xff]
        %v4223 = vld [vmem:[%s4221 + $0x8] sm:$0xff]
        %v4224 = vld [vmem:[%s4221 + $0x10] sm:$0xff]
        %v4225 = vld [vmem:[%s4221 + $0x18] sm:$0xff]
        %v4226 = vld [vmem:[%s4221 + $0x20] sm:$0xff]
        %v4227 = vld [vmem:[%s4221 + $0x28] sm:$0xff]
        %v4228 = vld [vmem:[%s4221 + $0x30] sm:$0xff]
        %v4229 = vld [vmem:[%s4221 + $0x38] sm:$0xff]
        %v4230 = vld [vmem:[%s4221 + $0x40] sm:$0xff]
        %v4231 = vld [vmem:[%s4221 + $0x48] sm:$0xff]
        %v4232 = vld [vmem:[%s4221 + $0x50] sm:$0xff]
        %v4233 = vld [vmem:[%s4221 + $0x58] sm:$0xff]
        %v4234 = vld [vmem:[%s4221 + $0x60] sm:$0xff]
        %v4235 = vld [vmem:[%s4221 + $0x68] sm:$0xff]
        %v4236 = vld [vmem:[%s4221 + $0x70] sm:$0xff]
        %v4237 = vld [vmem:[%s4221 + $0x78] sm:$0xff]
        %4238 = vmatprep.subr.mxu0 0.0
        %4239 = vmatpush1.msra.mxu0 %v4222
        %4240 = vmatprep.subr.mxu0 0.0
        %4241 = vmatpush1.msra.mxu0 %v4223
        %4242 = vmatprep.subr.mxu0 0.0
        %4243 = vmatpush1.msra.mxu0 %v4224
        %4244 = vmatprep.subr.mxu0 0.0
        %4245 = vmatpush1.msra.mxu0 %v4225
        %4246 = vmatprep.subr.mxu0 0.0
        %4247 = vmatpush1.msra.mxu0 %v4226
        %4248 = vmatprep.subr.mxu0 0.0
        %4249 = vmatpush1.msra.mxu0 %v4227
        %4250 = vmatprep.subr.mxu0 0.0
        %4251 = vmatpush1.msra.mxu0 %v4228
        %4252 = vmatprep.subr.mxu0 0.0
        %4253 = vmatpush1.msra.mxu0 %v4229
        %4254 = vmatprep.subr.mxu0 0.0
        %4255 = vmatpush1.msra.mxu0 %v4230
        %4256 = vmatprep.subr.mxu0 0.0
        %4257 = vmatpush1.msra.mxu0 %v4231
        %4258 = vmatprep.subr.mxu0 0.0
        %4259 = vmatpush1.msra.mxu0 %v4232
        %4260 = vmatprep.subr.mxu0 0.0
        %4261 = vmatpush1.msra.mxu0 %v4233
        %4262 = vmatprep.subr.mxu0 0.0
        %4263 = vmatpush1.msra.mxu0 %v4234
        %4264 = vmatprep.subr.mxu0 0.0
        %4265 = vmatpush1.msra.mxu0 %v4235
        %4266 = vmatprep.subr.mxu0 0.0
        %4267 = vmatpush1.msra.mxu0 %v4236
        %4268 = vmatprep.subr.mxu0 0.0
        %4269 = vmatpush1.msra.mxu0 %v4237
        %4270 = vmatprep.subr.mxu0 0.0
        %4271 = vmatpush1.msra.mxu0 0.0
        %4272 = vmatprep.subr.mxu0 0.0
        %4273 = vmatpush1.msra.mxu0 0.0
        %4274 = vmatprep.subr.mxu0 0.0
        %4275 = vmatpush1.msra.mxu0 0.0
        %4276 = vmatprep.subr.mxu0 0.0
        %4277 = vmatpush1.msra.mxu0 0.0
        %4278 = vmatprep.subr.mxu0 0.0
        %4279 = vmatpush1.msra.mxu0 0.0
        %4280 = vmatprep.subr.mxu0 0.0
        %4281 = vmatpush1.msra.mxu0 0.0
        %4282 = vmatprep.subr.mxu0 0.0
        %4283 = vmatpush1.msra.mxu0 0.0
        %4284 = vmatprep.subr.mxu0 0.0
        %4285 = vmatpush1.msra.mxu0 0.0
        %4286 = vmatprep.subr.mxu0 0.0
        %4287 = vmatpush1.msra.mxu0 0.0
        %4288 = vmatprep.subr.mxu0 0.0
        %4289 = vmatpush1.msra.mxu0 0.0
        %4290 = vmatprep.subr.mxu0 0.0
        %4291 = vmatpush1.msra.mxu0 0.0
        %4292 = vmatprep.subr.mxu0 0.0
        %4293 = vmatpush1.msra.mxu0 0.0
        %4294 = vmatprep.subr.mxu0 0.0
        %4295 = vmatpush1.msra.mxu0 0.0
        %4296 = vmatprep.subr.mxu0 0.0
        %4297 = vmatpush1.msra.mxu0 0.0
        %4298 = vmatprep.subr.mxu0 0.0
        %4299 = vmatpush1.msra.mxu0 0.0
        %4300 = vmatprep.subr.mxu0 0.0
        %4301 = vmatpush1.msra.mxu0 0.0
        %4302 = vmatprep.mubr.f32.mxu0 0.0
        %4303 = vmatmul.mubr.f32.gmra.mrb[0].mxu0 %v4189
        %v4304 = vpop.f32.mrb[0].mxu0
        %v4305 = vadd.f32 0.0, %v4304
        %v4306 = vpop.f32.mrb[0].mxu0
        %4307 = vmatprep.mubr.f32.mxu0 0.0
        %4308 = vmatmul.mubr.f32.gmra.mrb[0].mxu0 %v4190
        %v4309 = vpop.f32.mrb[0].mxu0
        %v4310 = vadd.f32 0.0, %v4309
        %v4311 = vpop.f32.mrb[0].mxu0
        %4312 = vmatprep.mubr.f32.mxu0 0.0
        %4313 = vmatmul.mubr.f32.gmra.mrb[0].mxu0 %v4191
        %v4314 = vpop.f32.mrb[0].mxu0
        %v4315 = vadd.f32 0.0, %v4314
        %v4316 = vpop.f32.mrb[0].mxu0
        %4317 = vmatprep.mubr.f32.mxu0 0.0
        %4318 = vmatmul.mubr.f32.gmra.mrb[0].mxu0 %v4192
        %v4319 = vpop.f32.mrb[0].mxu0
        %v4320 = vadd.f32 0.0, %v4319
        %v4321 = vpop.f32.mrb[0].mxu0
        %4322 = vmatprep.mubr.f32.mxu0 0.0
        %4323 = vmatmul.mubr.f32.gmra.mrb[0].mxu0 %v4193
        %v4324 = vpop.f32.mrb[0].mxu0
        %v4325 = vadd.f32 0.0, %v4324
        %v4326 = vpop.f32.mrb[0].mxu0
        %4327 = vmatprep.mubr.f32.mxu0 0.0
        %4328 = vmatmul.mubr.f32.gmra.mrb[0].mxu0 %v4194
        %v4329 = vpop.f32.mrb[0].mxu0
        %v4330 = vadd.f32 0.0, %v4329
        %v4331 = vpop.f32.mrb[0].mxu0
        %4332 = vmatprep.mubr.f32.mxu0 0.0
        %4333 = vmatmul.mubr.f32.gmra.mrb[0].mxu0 %v4195
        %v4334 = vpop.f32.mrb[0].mxu0
        %v4335 = vadd.f32 0.0, %v4334
        %v4336 = vpop.f32.mrb[0].mxu0
        %4337 = vmatprep.mubr.f32.mxu0 0.0
        %4338 = vmatmul.mubr.f32.gmra.mrb[0].mxu0 %v4196
        %v4339 = vpop.f32.mrb[0].mxu0
        %v4340 = vadd.f32 0.0, %v4339
        %v4341 = vpop.f32.mrb[0].mxu0
        %4342 = vmatprep.mubr.f32.mxu0 0.0
        %4343 = vmatmul.mubr.f32.gmra.mrb[0].mxu0 %v4197
        %v4344 = vpop.f32.mrb[0].mxu0
        %v4345 = vadd.f32 0.0, %v4344
        %v4346 = vpop.f32.mrb[0].mxu0
        %4347 = vmatprep.mubr.f32.mxu0 0.0
        %4348 = vmatmul.mubr.f32.gmra.mrb[0].mxu0 %v4198
        %v4349 = vpop.f32.mrb[0].mxu0
        %v4350 = vadd.f32 0.0, %v4349
        %v4351 = vpop.f32.mrb[0].mxu0
        %4352 = vmatprep.mubr.f32.mxu0 0.0
        %4353 = vmatmul.mubr.f32.gmra.mrb[0].mxu0 %v4199
        %v4354 = vpop.f32.mrb[0].mxu0
        %v4355 = vadd.f32 0.0, %v4354
        %v4356 = vpop.f32.mrb[0].mxu0
        %4357 = vmatprep.mubr.f32.mxu0 0.0
        %4358 = vmatmul.mubr.f32.gmra.mrb[0].mxu0 %v4200
        %v4359 = vpop.f32.mrb[0].mxu0
        %v4360 = vadd.f32 0.0, %v4359
        %v4361 = vpop.f32.mrb[0].mxu0
        %4362 = vmatprep.mubr.f32.mxu0 0.0
        %4363 = vmatmul.mubr.f32.gmra.mrb[0].mxu0 %v4201
        %v4364 = vpop.f32.mrb[0].mxu0
        %v4365 = vadd.f32 0.0, %v4364
        %v4366 = vpop.f32.mrb[0].mxu0
        %4367 = vmatprep.mubr.f32.mxu0 0.0
        %4368 = vmatmul.mubr.f32.gmra.mrb[0].mxu0 %v4202
        %v4369 = vpop.f32.mrb[0].mxu0
        %v4370 = vadd.f32 0.0, %v4369
        %v4371 = vpop.f32.mrb[0].mxu0
        %4372 = vmatprep.mubr.f32.mxu0 0.0
        %4373 = vmatmul.mubr.f32.gmra.mrb[0].mxu0 %v4203
        %v4374 = vpop.f32.mrb[0].mxu0
        %v4375 = vadd.f32 0.0, %v4374
        %v4376 = vpop.f32.mrb[0].mxu0
        %4377 = vmatprep.mubr.f32.mxu0 0.0
        %4378 = vmatmul.mubr.f32.gmra.mrb[0].mxu0 %v4204
        %v4379 = vpop.f32.mrb[0].mxu0
        %v4380 = vadd.f32 0.0, %v4379
        %v4381 = vpop.f32.mrb[0].mxu0
        %4382 = vmatprep.mubr.f32.mxu0 0.0
        %4383 = vmatmul.mubr.f32.gmra.mrb[0].mxu0 %v4205
        %v4384 = vpop.f32.mrb[0].mxu0
        %v4385 = vadd.f32 0.0, %v4384
        %v4386 = vpop.f32.mrb[0].mxu0
        %4387 = vmatprep.mubr.f32.mxu0 0.0
        %4388 = vmatmul.mubr.f32.gmra.mrb[0].mxu0 %v4206
        %v4389 = vpop.f32.mrb[0].mxu0
        %v4390 = vadd.f32 0.0, %v4389
        %v4391 = vpop.f32.mrb[0].mxu0
        %4392 = vmatprep.mubr.f32.mxu0 0.0
        %4393 = vmatmul.mubr.f32.gmra.mrb[0].mxu0 %v4207
        %v4394 = vpop.f32.mrb[0].mxu0
        %v4395 = vadd.f32 0.0, %v4394
        %v4396 = vpop.f32.mrb[0].mxu0
        %4397 = vmatprep.mubr.f32.mxu0 0.0
        %4398 = vmatmul.mubr.f32.gmra.mrb[0].mxu0 %v4208
        %v4399 = vpop.f32.mrb[0].mxu0
        %v4400 = vadd.f32 0.0, %v4399
        %v4401 = vpop.f32.mrb[0].mxu0
        %4402 = vmatprep.mubr.f32.mxu0 0.0
        %4403 = vmatmul.mubr.f32.gmra.mrb[0].mxu0 %v4209
        %v4404 = vpop.f32.mrb[0].mxu0
        %v4405 = vadd.f32 0.0, %v4404
        %v4406 = vpop.f32.mrb[0].mxu0
        %4407 = vmatprep.mubr.f32.mxu0 0.0
        %4408 = vmatmul.mubr.f32.gmra.mrb[0].mxu0 %v4210
        %v4409 = vpop.f32.mrb[0].mxu0
        %v4410 = vadd.f32 0.0, %v4409
        %v4411 = vpop.f32.mrb[0].mxu0
        %4412 = vmatprep.mubr.f32.mxu0 0.0
        %4413 = vmatmul.mubr.f32.gmra.mrb[0].mxu0 %v4211
        %v4414 = vpop.f32.mrb[0].mxu0
        %v4415 = vadd.f32 0.0, %v4414
        %v4416 = vpop.f32.mrb[0].mxu0
        %4417 = vmatprep.mubr.f32.mxu0 0.0
        %4418 = vmatmul.mubr.f32.gmra.mrb[0].mxu0 %v4212
        %v4419 = vpop.f32.mrb[0].mxu0
        %v4420 = vadd.f32 0.0, %v4419
        %v4421 = vpop.f32.mrb[0].mxu0
        %4422 = vmatprep.mubr.f32.mxu0 0.0
        %4423 = vmatmul.mubr.f32.gmra.mrb[0].mxu0 %v4213
        %v4424 = vpop.f32.mrb[0].mxu0
        %v4425 = vadd.f32 0.0, %v4424
        %v4426 = vpop.f32.mrb[0].mxu0
        %4427 = vmatprep.mubr.f32.mxu0 0.0
        %4428 = vmatmul.mubr.f32.gmra.mrb[0].mxu0 %v4214
        %v4429 = vpop.f32.mrb[0].mxu0
        %v4430 = vadd.f32 0.0, %v4429
        %v4431 = vpop.f32.mrb[0].mxu0
        %4432 = vmatprep.mubr.f32.mxu0 0.0
        %4433 = vmatmul.mubr.f32.gmra.mrb[0].mxu0 %v4215
        %v4434 = vpop.f32.mrb[0].mxu0
        %v4435 = vadd.f32 0.0, %v4434
        %v4436 = vpop.f32.mrb[0].mxu0
        %4437 = vmatprep.mubr.f32.mxu0 0.0
        %4438 = vmatmul.mubr.f32.gmra.mrb[0].mxu0 %v4216
        %v4439 = vpop.f32.mrb[0].mxu0
        %v4440 = vadd.f32 0.0, %v4439
        %v4441 = vpop.f32.mrb[0].mxu0
        %4442 = vmatprep.mubr.f32.mxu0 0.0
        %4443 = vmatmul.mubr.f32.gmra.mrb[0].mxu0 %v4217
        %v4444 = vpop.f32.mrb[0].mxu0
        %v4445 = vadd.f32 0.0, %v4444
        %v4446 = vpop.f32.mrb[0].mxu0
        %4447 = vmatprep.mubr.f32.mxu0 0.0
        %4448 = vmatmul.mubr.f32.gmra.mrb[0].mxu0 %v4218
        %v4449 = vpop.f32.mrb[0].mxu0
        %v4450 = vadd.f32 0.0, %v4449
        %v4451 = vpop.f32.mrb[0].mxu0
        %4452 = vmatprep.mubr.f32.mxu0 0.0
        %4453 = vmatmul.mubr.f32.gmra.mrb[0].mxu0 %v4219
        %v4454 = vpop.f32.mrb[0].mxu0
        %v4455 = vadd.f32 0.0, %v4454
        %v4456 = vpop.f32.mrb[0].mxu0
        %4457 = vmatprep.mubr.f32.mxu0 0.0
        %4458 = vmatmul.mubr.f32.gmra.mrb[0].mxu0 %v4220
        %v4459 = vpop.f32.mrb[0].mxu0
        %v4460 = vadd.f32 0.0, %v4459
        %v4461 = vpop.f32.mrb[0].mxu0
        %4462 = vdwg.mxu0
        %v4463 = vadd.f32 %v4157, %v4305
        %v4464 = vadd.f32 %v4158, %v4310
        %v4465 = vadd.f32 %v4159, %v4315
        %v4466 = vadd.f32 %v4160, %v4320
        %v4467 = vadd.f32 %v4161, %v4325
        %v4468 = vadd.f32 %v4162, %v4330
        %v4469 = vadd.f32 %v4163, %v4335
        %v4470 = vadd.f32 %v4164, %v4340
        %v4471 = vadd.f32 %v4165, %v4345
        %v4472 = vadd.f32 %v4166, %v4350
        %v4473 = vadd.f32 %v4167, %v4355
        %v4474 = vadd.f32 %v4168, %v4360
        %v4475 = vadd.f32 %v4169, %v4365
        %v4476 = vadd.f32 %v4170, %v4370
        %v4477 = vadd.f32 %v4171, %v4375
        %v4478 = vadd.f32 %v4172, %v4380
        %v4479 = vadd.f32 %v4173, %v4385
        %v4480 = vadd.f32 %v4174, %v4390
        %v4481 = vadd.f32 %v4175, %v4395
        %v4482 = vadd.f32 %v4176, %v4400
        %v4483 = vadd.f32 %v4177, %v4405
        %v4484 = vadd.f32 %v4178, %v4410
        %v4485 = vadd.f32 %v4179, %v4415
        %v4486 = vadd.f32 %v4180, %v4420
        %v4487 = vadd.f32 %v4181, %v4425
        %v4488 = vadd.f32 %v4182, %v4430
        %v4489 = vadd.f32 %v4183, %v4435
        %v4490 = vadd.f32 %v4184, %v4440
        %v4491 = vadd.f32 %v4185, %v4445
        %v4492 = vadd.f32 %v4186, %v4450
        %v4493 = vadd.f32 %v4187, %v4455
        %v4494 = vadd.f32 %v4188, %v4460
        %v4495 = vld [vmem:[%s3303 + $0x1] sm:$0xff]
        %v4496 = vld [vmem:[%s3303 + $0x9] sm:$0xff]
        %v4497 = vld [vmem:[%s3303 + $0x19] sm:$0xff]
        %v4498 = vld [vmem:[%s3303 + $0x21] sm:$0xff]
        %v4499 = vld [vmem:[%s3303 + $0x31] sm:$0xff]
        %v4500 = vld [vmem:[%s3303 + $0x39] sm:$0xff]
        %v4501 = vld [vmem:[%s3303 + $0x49] sm:$0xff]
        %v4502 = vld [vmem:[%s3303 + $0x51] sm:$0xff]
        %v4503 = vld [vmem:[%s3303 + $0x61] sm:$0xff]
        %v4504 = vld [vmem:[%s3303 + $0x69] sm:$0xff]
        %v4505 = vld [vmem:[%s3303 + $0x79] sm:$0xff]
        %v4506 = vld [vmem:[%s3303 + $0x81] sm:$0xff]
        %v4507 = vld [vmem:[%s3303 + $0x91] sm:$0xff]
        %v4508 = vld [vmem:[%s3303 + $0x99] sm:$0xff]
        %v4509 = vld [vmem:[%s3303 + $0xa9] sm:$0xff]
        %v4510 = vld [vmem:[%s3303 + $0xb1] sm:$0xff]
        %v4511 = vld [vmem:[%s3303 + $0xc1] sm:$0xff]
        %v4512 = vld [vmem:[%s3303 + $0xc9] sm:$0xff]
        %v4513 = vld [vmem:[%s3303 + $0xd9] sm:$0xff]
        %v4514 = vld [vmem:[%s3303 + $0xe1] sm:$0xff]
        %v4515 = vld [vmem:[%s3303 + $0xf1] sm:$0xff]
        %v4516 = vld [vmem:[%s3303 + $0xf9] sm:$0xff]
        %v4517 = vld [vmem:[%s3303 + $0x109] sm:$0xff]
        %v4518 = vld [vmem:[%s3303 + $0x111] sm:$0xff]
        %v4519 = vld [vmem:[%s3303 + $0x121] sm:$0xff]
        %v4520 = vld [vmem:[%s3303 + $0x129] sm:$0xff]
        %v4521 = vld [vmem:[%s3303 + $0x139] sm:$0xff]
        %v4522 = vld [vmem:[%s3303 + $0x141] sm:$0xff]
        %v4523 = vld [vmem:[%s3303 + $0x151] sm:$0xff]
        %v4524 = vld [vmem:[%s3303 + $0x159] sm:$0xff]
        %v4525 = vld [vmem:[%s3303 + $0x169] sm:$0xff]
        %v4526 = vld [vmem:[%s3303 + $0x171] sm:$0xff]
        %s4527 = scalar_lea.vmem [#allocation9], 512
        %v4528 = vld [vmem:[%s4527] sm:$0xff]
        %v4529 = vld [vmem:[%s4527 + $0x8] sm:$0xff]
        %v4530 = vld [vmem:[%s4527 + $0x10] sm:$0xff]
        %v4531 = vld [vmem:[%s4527 + $0x18] sm:$0xff]
        %v4532 = vld [vmem:[%s4527 + $0x20] sm:$0xff]
        %v4533 = vld [vmem:[%s4527 + $0x28] sm:$0xff]
        %v4534 = vld [vmem:[%s4527 + $0x30] sm:$0xff]
        %v4535 = vld [vmem:[%s4527 + $0x38] sm:$0xff]
        %v4536 = vld [vmem:[%s4527 + $0x40] sm:$0xff]
        %v4537 = vld [vmem:[%s4527 + $0x48] sm:$0xff]
        %v4538 = vld [vmem:[%s4527 + $0x50] sm:$0xff]
        %v4539 = vld [vmem:[%s4527 + $0x58] sm:$0xff]
        %v4540 = vld [vmem:[%s4527 + $0x60] sm:$0xff]
        %v4541 = vld [vmem:[%s4527 + $0x68] sm:$0xff]
        %v4542 = vld [vmem:[%s4527 + $0x70] sm:$0xff]
        %v4543 = vld [vmem:[%s4527 + $0x78] sm:$0xff]
        %4544 = vmatprep.subr.mxu0 0.0
        %4545 = vmatpush1.msra.mxu0 %v4528
        %4546 = vmatprep.subr.mxu0 0.0
        %4547 = vmatpush1.msra.mxu0 %v4529
        %4548 = vmatprep.subr.mxu0 0.0
        %4549 = vmatpush1.msra.mxu0 %v4530
        %4550 = vmatprep.subr.mxu0 0.0
        %4551 = vmatpush1.msra.mxu0 %v4531
        %4552 = vmatprep.subr.mxu0 0.0
        %4553 = vmatpush1.msra.mxu0 %v4532
        %4554 = vmatprep.subr.mxu0 0.0
        %4555 = vmatpush1.msra.mxu0 %v4533
        %4556 = vmatprep.subr.mxu0 0.0
        %4557 = vmatpush1.msra.mxu0 %v4534
        %4558 = vmatprep.subr.mxu0 0.0
        %4559 = vmatpush1.msra.mxu0 %v4535
        %4560 = vmatprep.subr.mxu0 0.0
        %4561 = vmatpush1.msra.mxu0 %v4536
        %4562 = vmatprep.subr.mxu0 0.0
        %4563 = vmatpush1.msra.mxu0 %v4537
        %4564 = vmatprep.subr.mxu0 0.0
        %4565 = vmatpush1.msra.mxu0 %v4538
        %4566 = vmatprep.subr.mxu0 0.0
        %4567 = vmatpush1.msra.mxu0 %v4539
        %4568 = vmatprep.subr.mxu0 0.0
        %4569 = vmatpush1.msra.mxu0 %v4540
        %4570 = vmatprep.subr.mxu0 0.0
        %4571 = vmatpush1.msra.mxu0 %v4541
        %4572 = vmatprep.subr.mxu0 0.0
        %4573 = vmatpush1.msra.mxu0 %v4542
        %4574 = vmatprep.subr.mxu0 0.0
        %4575 = vmatpush1.msra.mxu0 %v4543
        %4576 = vmatprep.subr.mxu0 0.0
        %4577 = vmatpush1.msra.mxu0 0.0
        %4578 = vmatprep.subr.mxu0 0.0
        %4579 = vmatpush1.msra.mxu0 0.0
        %4580 = vmatprep.subr.mxu0 0.0
        %4581 = vmatpush1.msra.mxu0 0.0
        %4582 = vmatprep.subr.mxu0 0.0
        %4583 = vmatpush1.msra.mxu0 0.0
        %4584 = vmatprep.subr.mxu0 0.0
        %4585 = vmatpush1.msra.mxu0 0.0
        %4586 = vmatprep.subr.mxu0 0.0
        %4587 = vmatpush1.msra.mxu0 0.0
        %4588 = vmatprep.subr.mxu0 0.0
        %4589 = vmatpush1.msra.mxu0 0.0
        %4590 = vmatprep.subr.mxu0 0.0
        %4591 = vmatpush1.msra.mxu0 0.0
        %4592 = vmatprep.subr.mxu0 0.0
        %4593 = vmatpush1.msra.mxu0 0.0
        %4594 = vmatprep.subr.mxu0 0.0
        %4595 = vmatpush1.msra.mxu0 0.0
        %4596 = vmatprep.subr.mxu0 0.0
        %4597 = vmatpush1.msra.mxu0 0.0
        %4598 = vmatprep.subr.mxu0 0.0
        %4599 = vmatpush1.msra.mxu0 0.0
        %4600 = vmatprep.subr.mxu0 0.0
        %4601 = vmatpush1.msra.mxu0 0.0
        %4602 = vmatprep.subr.mxu0 0.0
        %4603 = vmatpush1.msra.mxu0 0.0
        %4604 = vmatprep.subr.mxu0 0.0
        %4605 = vmatpush1.msra.mxu0 0.0
        %4606 = vmatprep.subr.mxu0 0.0
        %4607 = vmatpush1.msra.mxu0 0.0
        %4608 = vmatprep.mubr.f32.mxu0 0.0
        %4609 = vmatmul.mubr.f32.gmra.mrb[0].mxu0 %v4495
        %v4610 = vpop.f32.mrb[0].mxu0
        %v4611 = vadd.f32 0.0, %v4610
        %v4612 = vpop.f32.mrb[0].mxu0
        %4613 = vmatprep.mubr.f32.mxu0 0.0
        %4614 = vmatmul.mubr.f32.gmra.mrb[0].mxu0 %v4496
        %v4615 = vpop.f32.mrb[0].mxu0
        %v4616 = vadd.f32 0.0, %v4615
        %v4617 = vpop.f32.mrb[0].mxu0
        %4618 = vmatprep.mubr.f32.mxu0 0.0
        %4619 = vmatmul.mubr.f32.gmra.mrb[0].mxu0 %v4497
        %v4620 = vpop.f32.mrb[0].mxu0
        %v4621 = vadd.f32 0.0, %v4620
        %v4622 = vpop.f32.mrb[0].mxu0
        %4623 = vmatprep.mubr.f32.mxu0 0.0
        %4624 = vmatmul.mubr.f32.gmra.mrb[0].mxu0 %v4498
        %v4625 = vpop.f32.mrb[0].mxu0
        %v4626 = vadd.f32 0.0, %v4625
        %v4627 = vpop.f32.mrb[0].mxu0
        %4628 = vmatprep.mubr.f32.mxu0 0.0
        %4629 = vmatmul.mubr.f32.gmra.mrb[0].mxu0 %v4499
        %v4630 = vpop.f32.mrb[0].mxu0
        %v4631 = vadd.f32 0.0, %v4630
        %v4632 = vpop.f32.mrb[0].mxu0
        %4633 = vmatprep.mubr.f32.mxu0 0.0
        %4634 = vmatmul.mubr.f32.gmra.mrb[0].mxu0 %v4500
        %v4635 = vpop.f32.mrb[0].mxu0
        %v4636 = vadd.f32 0.0, %v4635
        %v4637 = vpop.f32.mrb[0].mxu0
        %4638 = vmatprep.mubr.f32.mxu0 0.0
        %4639 = vmatmul.mubr.f32.gmra.mrb[0].mxu0 %v4501
        %v4640 = vpop.f32.mrb[0].mxu0
        %v4641 = vadd.f32 0.0, %v4640
        %v4642 = vpop.f32.mrb[0].mxu0
        %4643 = vmatprep.mubr.f32.mxu0 0.0
        %4644 = vmatmul.mubr.f32.gmra.mrb[0].mxu0 %v4502
        %v4645 = vpop.f32.mrb[0].mxu0
        %v4646 = vadd.f32 0.0, %v4645
        %v4647 = vpop.f32.mrb[0].mxu0
        %4648 = vmatprep.mubr.f32.mxu0 0.0
        %4649 = vmatmul.mubr.f32.gmra.mrb[0].mxu0 %v4503
        %v4650 = vpop.f32.mrb[0].mxu0
        %v4651 = vadd.f32 0.0, %v4650
        %v4652 = vpop.f32.mrb[0].mxu0
        %4653 = vmatprep.mubr.f32.mxu0 0.0
        %4654 = vmatmul.mubr.f32.gmra.mrb[0].mxu0 %v4504
        %v4655 = vpop.f32.mrb[0].mxu0
        %v4656 = vadd.f32 0.0, %v4655
        %v4657 = vpop.f32.mrb[0].mxu0
        %4658 = vmatprep.mubr.f32.mxu0 0.0
        %4659 = vmatmul.mubr.f32.gmra.mrb[0].mxu0 %v4505
        %v4660 = vpop.f32.mrb[0].mxu0
        %v4661 = vadd.f32 0.0, %v4660
        %v4662 = vpop.f32.mrb[0].mxu0
        %4663 = vmatprep.mubr.f32.mxu0 0.0
        %4664 = vmatmul.mubr.f32.gmra.mrb[0].mxu0 %v4506
        %v4665 = vpop.f32.mrb[0].mxu0
        %v4666 = vadd.f32 0.0, %v4665
        %v4667 = vpop.f32.mrb[0].mxu0
        %4668 = vmatprep.mubr.f32.mxu0 0.0
        %4669 = vmatmul.mubr.f32.gmra.mrb[0].mxu0 %v4507
        %v4670 = vpop.f32.mrb[0].mxu0
        %v4671 = vadd.f32 0.0, %v4670
        %v4672 = vpop.f32.mrb[0].mxu0
        %4673 = vmatprep.mubr.f32.mxu0 0.0
        %4674 = vmatmul.mubr.f32.gmra.mrb[0].mxu0 %v4508
        %v4675 = vpop.f32.mrb[0].mxu0
        %v4676 = vadd.f32 0.0, %v4675
        %v4677 = vpop.f32.mrb[0].mxu0
        %4678 = vmatprep.mubr.f32.mxu0 0.0
        %4679 = vmatmul.mubr.f32.gmra.mrb[0].mxu0 %v4509
        %v4680 = vpop.f32.mrb[0].mxu0
        %v4681 = vadd.f32 0.0, %v4680
        %v4682 = vpop.f32.mrb[0].mxu0
        %4683 = vmatprep.mubr.f32.mxu0 0.0
        %4684 = vmatmul.mubr.f32.gmra.mrb[0].mxu0 %v4510
        %v4685 = vpop.f32.mrb[0].mxu0
        %v4686 = vadd.f32 0.0, %v4685
        %v4687 = vpop.f32.mrb[0].mxu0
        %4688 = vmatprep.mubr.f32.mxu0 0.0
        %4689 = vmatmul.mubr.f32.gmra.mrb[0].mxu0 %v4511
        %v4690 = vpop.f32.mrb[0].mxu0
        %v4691 = vadd.f32 0.0, %v4690
        %v4692 = vpop.f32.mrb[0].mxu0
        %4693 = vmatprep.mubr.f32.mxu0 0.0
        %4694 = vmatmul.mubr.f32.gmra.mrb[0].mxu0 %v4512
        %v4695 = vpop.f32.mrb[0].mxu0
        %v4696 = vadd.f32 0.0, %v4695
        %v4697 = vpop.f32.mrb[0].mxu0
        %4698 = vmatprep.mubr.f32.mxu0 0.0
        %4699 = vmatmul.mubr.f32.gmra.mrb[0].mxu0 %v4513
        %v4700 = vpop.f32.mrb[0].mxu0
        %v4701 = vadd.f32 0.0, %v4700
        %v4702 = vpop.f32.mrb[0].mxu0
        %4703 = vmatprep.mubr.f32.mxu0 0.0
        %4704 = vmatmul.mubr.f32.gmra.mrb[0].mxu0 %v4514
        %v4705 = vpop.f32.mrb[0].mxu0
        %v4706 = vadd.f32 0.0, %v4705
        %v4707 = vpop.f32.mrb[0].mxu0
        %4708 = vmatprep.mubr.f32.mxu0 0.0
        %4709 = vmatmul.mubr.f32.gmra.mrb[0].mxu0 %v4515
        %v4710 = vpop.f32.mrb[0].mxu0
        %v4711 = vadd.f32 0.0, %v4710
        %v4712 = vpop.f32.mrb[0].mxu0
        %4713 = vmatprep.mubr.f32.mxu0 0.0
        %4714 = vmatmul.mubr.f32.gmra.mrb[0].mxu0 %v4516
        %v4715 = vpop.f32.mrb[0].mxu0
        %v4716 = vadd.f32 0.0, %v4715
        %v4717 = vpop.f32.mrb[0].mxu0
        %4718 = vmatprep.mubr.f32.mxu0 0.0
        %4719 = vmatmul.mubr.f32.gmra.mrb[0].mxu0 %v4517
        %v4720 = vpop.f32.mrb[0].mxu0
        %v4721 = vadd.f32 0.0, %v4720
        %v4722 = vpop.f32.mrb[0].mxu0
        %4723 = vmatprep.mubr.f32.mxu0 0.0
        %4724 = vmatmul.mubr.f32.gmra.mrb[0].mxu0 %v4518
        %v4725 = vpop.f32.mrb[0].mxu0
        %v4726 = vadd.f32 0.0, %v4725
        %v4727 = vpop.f32.mrb[0].mxu0
        %4728 = vmatprep.mubr.f32.mxu0 0.0
        %4729 = vmatmul.mubr.f32.gmra.mrb[0].mxu0 %v4519
        %v4730 = vpop.f32.mrb[0].mxu0
        %v4731 = vadd.f32 0.0, %v4730
        %v4732 = vpop.f32.mrb[0].mxu0
        %4733 = vmatprep.mubr.f32.mxu0 0.0
        %4734 = vmatmul.mubr.f32.gmra.mrb[0].mxu0 %v4520
        %v4735 = vpop.f32.mrb[0].mxu0
        %v4736 = vadd.f32 0.0, %v4735
        %v4737 = vpop.f32.mrb[0].mxu0
        %4738 = vmatprep.mubr.f32.mxu0 0.0
        %4739 = vmatmul.mubr.f32.gmra.mrb[0].mxu0 %v4521
        %v4740 = vpop.f32.mrb[0].mxu0
        %v4741 = vadd.f32 0.0, %v4740
        %v4742 = vpop.f32.mrb[0].mxu0
        %4743 = vmatprep.mubr.f32.mxu0 0.0
        %4744 = vmatmul.mubr.f32.gmra.mrb[0].mxu0 %v4522
        %v4745 = vpop.f32.mrb[0].mxu0
        %v4746 = vadd.f32 0.0, %v4745
        %v4747 = vpop.f32.mrb[0].mxu0
        %4748 = vmatprep.mubr.f32.mxu0 0.0
        %4749 = vmatmul.mubr.f32.gmra.mrb[0].mxu0 %v4523
        %v4750 = vpop.f32.mrb[0].mxu0
        %v4751 = vadd.f32 0.0, %v4750
        %v4752 = vpop.f32.mrb[0].mxu0
        %4753 = vmatprep.mubr.f32.mxu0 0.0
        %4754 = vmatmul.mubr.f32.gmra.mrb[0].mxu0 %v4524
        %v4755 = vpop.f32.mrb[0].mxu0
        %v4756 = vadd.f32 0.0, %v4755
        %v4757 = vpop.f32.mrb[0].mxu0
        %4758 = vmatprep.mubr.f32.mxu0 0.0
        %4759 = vmatmul.mubr.f32.gmra.mrb[0].mxu0 %v4525
        %v4760 = vpop.f32.mrb[0].mxu0
        %v4761 = vadd.f32 0.0, %v4760
        %v4762 = vpop.f32.mrb[0].mxu0
        %4763 = vmatprep.mubr.f32.mxu0 0.0
        %4764 = vmatmul.mubr.f32.gmra.mrb[0].mxu0 %v4526
        %v4765 = vpop.f32.mrb[0].mxu0
        %v4766 = vadd.f32 0.0, %v4765
        %v4767 = vpop.f32.mrb[0].mxu0
        %4768 = vdwg.mxu0
        %v4769 = vadd.f32 %v4463, %v4611
        %v4770 = vadd.f32 %v4464, %v4616
        %v4771 = vadd.f32 %v4465, %v4621
        %v4772 = vadd.f32 %v4466, %v4626
        %v4773 = vadd.f32 %v4467, %v4631
        %v4774 = vadd.f32 %v4468, %v4636
        %v4775 = vadd.f32 %v4469, %v4641
        %v4776 = vadd.f32 %v4470, %v4646
        %v4777 = vadd.f32 %v4471, %v4651
        %v4778 = vadd.f32 %v4472, %v4656
        %v4779 = vadd.f32 %v4473, %v4661
        %v4780 = vadd.f32 %v4474, %v4666
        %v4781 = vadd.f32 %v4475, %v4671
        %v4782 = vadd.f32 %v4476, %v4676
        %v4783 = vadd.f32 %v4477, %v4681
        %v4784 = vadd.f32 %v4478, %v4686
        %v4785 = vadd.f32 %v4479, %v4691
        %v4786 = vadd.f32 %v4480, %v4696
        %v4787 = vadd.f32 %v4481, %v4701
        %v4788 = vadd.f32 %v4482, %v4706
        %v4789 = vadd.f32 %v4483, %v4711
        %v4790 = vadd.f32 %v4484, %v4716
        %v4791 = vadd.f32 %v4485, %v4721
        %v4792 = vadd.f32 %v4486, %v4726
        %v4793 = vadd.f32 %v4487, %v4731
        %v4794 = vadd.f32 %v4488, %v4736
        %v4795 = vadd.f32 %v4489, %v4741
        %v4796 = vadd.f32 %v4490, %v4746
        %v4797 = vadd.f32 %v4491, %v4751
        %v4798 = vadd.f32 %v4492, %v4756
        %v4799 = vadd.f32 %v4493, %v4761
        %v4800 = vadd.f32 %v4494, %v4766
        %v4801 = vld [vmem:[%s3303 + $0x2] sm:$0xff]
        %v4802 = vld [vmem:[%s3303 + $0xa] sm:$0xff]
        %v4803 = vld [vmem:[%s3303 + $0x1a] sm:$0xff]
        %v4804 = vld [vmem:[%s3303 + $0x22] sm:$0xff]
        %v4805 = vld [vmem:[%s3303 + $0x32] sm:$0xff]
        %v4806 = vld [vmem:[%s3303 + $0x3a] sm:$0xff]
        %v4807 = vld [vmem:[%s3303 + $0x4a] sm:$0xff]
        %v4808 = vld [vmem:[%s3303 + $0x52] sm:$0xff]
        %v4809 = vld [vmem:[%s3303 + $0x62] sm:$0xff]
        %v4810 = vld [vmem:[%s3303 + $0x6a] sm:$0xff]
        %v4811 = vld [vmem:[%s3303 + $0x7a] sm:$0xff]
        %v4812 = vld [vmem:[%s3303 + $0x82] sm:$0xff]
        %v4813 = vld [vmem:[%s3303 + $0x92] sm:$0xff]
        %v4814 = vld [vmem:[%s3303 + $0x9a] sm:$0xff]
        %v4815 = vld [vmem:[%s3303 + $0xaa] sm:$0xff]
        %v4816 = vld [vmem:[%s3303 + $0xb2] sm:$0xff]
        %v4817 = vld [vmem:[%s3303 + $0xc2] sm:$0xff]
        %v4818 = vld [vmem:[%s3303 + $0xca] sm:$0xff]
        %v4819 = vld [vmem:[%s3303 + $0xda] sm:$0xff]
        %v4820 = vld [vmem:[%s3303 + $0xe2] sm:$0xff]
        %v4821 = vld [vmem:[%s3303 + $0xf2] sm:$0xff]
        %v4822 = vld [vmem:[%s3303 + $0xfa] sm:$0xff]
        %v4823 = vld [vmem:[%s3303 + $0x10a] sm:$0xff]
        %v4824 = vld [vmem:[%s3303 + $0x112] sm:$0xff]
        %v4825 = vld [vmem:[%s3303 + $0x122] sm:$0xff]
        %v4826 = vld [vmem:[%s3303 + $0x12a] sm:$0xff]
        %v4827 = vld [vmem:[%s3303 + $0x13a] sm:$0xff]
        %v4828 = vld [vmem:[%s3303 + $0x142] sm:$0xff]
        %v4829 = vld [vmem:[%s3303 + $0x152] sm:$0xff]
        %v4830 = vld [vmem:[%s3303 + $0x15a] sm:$0xff]
        %v4831 = vld [vmem:[%s3303 + $0x16a] sm:$0xff]
        %v4832 = vld [vmem:[%s3303 + $0x172] sm:$0xff]
        %s4833 = scalar_lea.vmem [#allocation9], 640
        %v4834 = vld [vmem:[%s4833] sm:$0xff]
        %v4835 = vld [vmem:[%s4833 + $0x8] sm:$0xff]
        %v4836 = vld [vmem:[%s4833 + $0x10] sm:$0xff]
        %v4837 = vld [vmem:[%s4833 + $0x18] sm:$0xff]
        %v4838 = vld [vmem:[%s4833 + $0x20] sm:$0xff]
        %v4839 = vld [vmem:[%s4833 + $0x28] sm:$0xff]
        %v4840 = vld [vmem:[%s4833 + $0x30] sm:$0xff]
        %v4841 = vld [vmem:[%s4833 + $0x38] sm:$0xff]
        %v4842 = vld [vmem:[%s4833 + $0x40] sm:$0xff]
        %v4843 = vld [vmem:[%s4833 + $0x48] sm:$0xff]
        %v4844 = vld [vmem:[%s4833 + $0x50] sm:$0xff]
        %v4845 = vld [vmem:[%s4833 + $0x58] sm:$0xff]
        %v4846 = vld [vmem:[%s4833 + $0x60] sm:$0xff]
        %v4847 = vld [vmem:[%s4833 + $0x68] sm:$0xff]
        %v4848 = vld [vmem:[%s4833 + $0x70] sm:$0xff]
        %v4849 = vld [vmem:[%s4833 + $0x78] sm:$0xff]
        %4850 = vmatprep.subr.mxu0 0.0
        %4851 = vmatpush1.msra.mxu0 %v4834
        %4852 = vmatprep.subr.mxu0 0.0
        %4853 = vmatpush1.msra.mxu0 %v4835
        %4854 = vmatprep.subr.mxu0 0.0
        %4855 = vmatpush1.msra.mxu0 %v4836
        %4856 = vmatprep.subr.mxu0 0.0
        %4857 = vmatpush1.msra.mxu0 %v4837
        %4858 = vmatprep.subr.mxu0 0.0
        %4859 = vmatpush1.msra.mxu0 %v4838
        %4860 = vmatprep.subr.mxu0 0.0
        %4861 = vmatpush1.msra.mxu0 %v4839
        %4862 = vmatprep.subr.mxu0 0.0
        %4863 = vmatpush1.msra.mxu0 %v4840
        %4864 = vmatprep.subr.mxu0 0.0
        %4865 = vmatpush1.msra.mxu0 %v4841
        %4866 = vmatprep.subr.mxu0 0.0
        %4867 = vmatpush1.msra.mxu0 %v4842
        %4868 = vmatprep.subr.mxu0 0.0
        %4869 = vmatpush1.msra.mxu0 %v4843
        %4870 = vmatprep.subr.mxu0 0.0
        %4871 = vmatpush1.msra.mxu0 %v4844
        %4872 = vmatprep.subr.mxu0 0.0
        %4873 = vmatpush1.msra.mxu0 %v4845
        %4874 = vmatprep.subr.mxu0 0.0
        %4875 = vmatpush1.msra.mxu0 %v4846
        %4876 = vmatprep.subr.mxu0 0.0
        %4877 = vmatpush1.msra.mxu0 %v4847
        %4878 = vmatprep.subr.mxu0 0.0
        %4879 = vmatpush1.msra.mxu0 %v4848
        %4880 = vmatprep.subr.mxu0 0.0
        %4881 = vmatpush1.msra.mxu0 %v4849
        %4882 = vmatprep.subr.mxu0 0.0
        %4883 = vmatpush1.msra.mxu0 0.0
        %4884 = vmatprep.subr.mxu0 0.0
        %4885 = vmatpush1.msra.mxu0 0.0
        %4886 = vmatprep.subr.mxu0 0.0
        %4887 = vmatpush1.msra.mxu0 0.0
        %4888 = vmatprep.subr.mxu0 0.0
        %4889 = vmatpush1.msra.mxu0 0.0
        %4890 = vmatprep.subr.mxu0 0.0
        %4891 = vmatpush1.msra.mxu0 0.0
        %4892 = vmatprep.subr.mxu0 0.0
        %4893 = vmatpush1.msra.mxu0 0.0
        %4894 = vmatprep.subr.mxu0 0.0
        %4895 = vmatpush1.msra.mxu0 0.0
        %4896 = vmatprep.subr.mxu0 0.0
        %4897 = vmatpush1.msra.mxu0 0.0
        %4898 = vmatprep.subr.mxu0 0.0
        %4899 = vmatpush1.msra.mxu0 0.0
        %4900 = vmatprep.subr.mxu0 0.0
        %4901 = vmatpush1.msra.mxu0 0.0
        %4902 = vmatprep.subr.mxu0 0.0
        %4903 = vmatpush1.msra.mxu0 0.0
        %4904 = vmatprep.subr.mxu0 0.0
        %4905 = vmatpush1.msra.mxu0 0.0
        %4906 = vmatprep.subr.mxu0 0.0
        %4907 = vmatpush1.msra.mxu0 0.0
        %4908 = vmatprep.subr.mxu0 0.0
        %4909 = vmatpush1.msra.mxu0 0.0
        %4910 = vmatprep.subr.mxu0 0.0
        %4911 = vmatpush1.msra.mxu0 0.0
        %4912 = vmatprep.subr.mxu0 0.0
        %4913 = vmatpush1.msra.mxu0 0.0
        %4914 = vmatprep.mubr.f32.mxu0 0.0
        %4915 = vmatmul.mubr.f32.gmra.mrb[0].mxu0 %v4801
        %v4916 = vpop.f32.mrb[0].mxu0
        %v4917 = vadd.f32 0.0, %v4916
        %v4918 = vpop.f32.mrb[0].mxu0
        %4919 = vmatprep.mubr.f32.mxu0 0.0
        %4920 = vmatmul.mubr.f32.gmra.mrb[0].mxu0 %v4802
        %v4921 = vpop.f32.mrb[0].mxu0
        %v4922 = vadd.f32 0.0, %v4921
        %v4923 = vpop.f32.mrb[0].mxu0
        %4924 = vmatprep.mubr.f32.mxu0 0.0
        %4925 = vmatmul.mubr.f32.gmra.mrb[0].mxu0 %v4803
        %v4926 = vpop.f32.mrb[0].mxu0
        %v4927 = vadd.f32 0.0, %v4926
        %v4928 = vpop.f32.mrb[0].mxu0
        %4929 = vmatprep.mubr.f32.mxu0 0.0
        %4930 = vmatmul.mubr.f32.gmra.mrb[0].mxu0 %v4804
        %v4931 = vpop.f32.mrb[0].mxu0
        %v4932 = vadd.f32 0.0, %v4931
        %v4933 = vpop.f32.mrb[0].mxu0
        %4934 = vmatprep.mubr.f32.mxu0 0.0
        %4935 = vmatmul.mubr.f32.gmra.mrb[0].mxu0 %v4805
        %v4936 = vpop.f32.mrb[0].mxu0
        %v4937 = vadd.f32 0.0, %v4936
        %v4938 = vpop.f32.mrb[0].mxu0
        %4939 = vmatprep.mubr.f32.mxu0 0.0
        %4940 = vmatmul.mubr.f32.gmra.mrb[0].mxu0 %v4806
        %v4941 = vpop.f32.mrb[0].mxu0
        %v4942 = vadd.f32 0.0, %v4941
        %v4943 = vpop.f32.mrb[0].mxu0
        %4944 = vmatprep.mubr.f32.mxu0 0.0
        %4945 = vmatmul.mubr.f32.gmra.mrb[0].mxu0 %v4807
        %v4946 = vpop.f32.mrb[0].mxu0
        %v4947 = vadd.f32 0.0, %v4946
        %v4948 = vpop.f32.mrb[0].mxu0
        %4949 = vmatprep.mubr.f32.mxu0 0.0
        %4950 = vmatmul.mubr.f32.gmra.mrb[0].mxu0 %v4808
        %v4951 = vpop.f32.mrb[0].mxu0
        %v4952 = vadd.f32 0.0, %v4951
        %v4953 = vpop.f32.mrb[0].mxu0
        %4954 = vmatprep.mubr.f32.mxu0 0.0
        %4955 = vmatmul.mubr.f32.gmra.mrb[0].mxu0 %v4809
        %v4956 = vpop.f32.mrb[0].mxu0
        %v4957 = vadd.f32 0.0, %v4956
        %v4958 = vpop.f32.mrb[0].mxu0
        %4959 = vmatprep.mubr.f32.mxu0 0.0
        %4960 = vmatmul.mubr.f32.gmra.mrb[0].mxu0 %v4810
        %v4961 = vpop.f32.mrb[0].mxu0
        %v4962 = vadd.f32 0.0, %v4961
        %v4963 = vpop.f32.mrb[0].mxu0
        %4964 = vmatprep.mubr.f32.mxu0 0.0
        %4965 = vmatmul.mubr.f32.gmra.mrb[0].mxu0 %v4811
        %v4966 = vpop.f32.mrb[0].mxu0
        %v4967 = vadd.f32 0.0, %v4966
        %v4968 = vpop.f32.mrb[0].mxu0
        %4969 = vmatprep.mubr.f32.mxu0 0.0
        %4970 = vmatmul.mubr.f32.gmra.mrb[0].mxu0 %v4812
        %v4971 = vpop.f32.mrb[0].mxu0
        %v4972 = vadd.f32 0.0, %v4971
        %v4973 = vpop.f32.mrb[0].mxu0
        %4974 = vmatprep.mubr.f32.mxu0 0.0
        %4975 = vmatmul.mubr.f32.gmra.mrb[0].mxu0 %v4813
        %v4976 = vpop.f32.mrb[0].mxu0
        %v4977 = vadd.f32 0.0, %v4976
        %v4978 = vpop.f32.mrb[0].mxu0
        %4979 = vmatprep.mubr.f32.mxu0 0.0
        %4980 = vmatmul.mubr.f32.gmra.mrb[0].mxu0 %v4814
        %v4981 = vpop.f32.mrb[0].mxu0
        %v4982 = vadd.f32 0.0, %v4981
        %v4983 = vpop.f32.mrb[0].mxu0
        %4984 = vmatprep.mubr.f32.mxu0 0.0
        %4985 = vmatmul.mubr.f32.gmra.mrb[0].mxu0 %v4815
        %v4986 = vpop.f32.mrb[0].mxu0
        %v4987 = vadd.f32 0.0, %v4986
        %v4988 = vpop.f32.mrb[0].mxu0
        %4989 = vmatprep.mubr.f32.mxu0 0.0
        %4990 = vmatmul.mubr.f32.gmra.mrb[0].mxu0 %v4816
        %v4991 = vpop.f32.mrb[0].mxu0
        %v4992 = vadd.f32 0.0, %v4991
        %v4993 = vpop.f32.mrb[0].mxu0
        %4994 = vmatprep.mubr.f32.mxu0 0.0
        %4995 = vmatmul.mubr.f32.gmra.mrb[0].mxu0 %v4817
        %v4996 = vpop.f32.mrb[0].mxu0
        %v4997 = vadd.f32 0.0, %v4996
        %v4998 = vpop.f32.mrb[0].mxu0
        %4999 = vmatprep.mubr.f32.mxu0 0.0
        %5000 = vmatmul.mubr.f32.gmra.mrb[0].mxu0 %v4818
        %v5001 = vpop.f32.mrb[0].mxu0
        %v5002 = vadd.f32 0.0, %v5001
        %v5003 = vpop.f32.mrb[0].mxu0
        %5004 = vmatprep.mubr.f32.mxu0 0.0
        %5005 = vmatmul.mubr.f32.gmra.mrb[0].mxu0 %v4819
        %v5006 = vpop.f32.mrb[0].mxu0
        %v5007 = vadd.f32 0.0, %v5006
        %v5008 = vpop.f32.mrb[0].mxu0
        %5009 = vmatprep.mubr.f32.mxu0 0.0
        %5010 = vmatmul.mubr.f32.gmra.mrb[0].mxu0 %v4820
        %v5011 = vpop.f32.mrb[0].mxu0
        %v5012 = vadd.f32 0.0, %v5011
        %v5013 = vpop.f32.mrb[0].mxu0
        %5014 = vmatprep.mubr.f32.mxu0 0.0
        %5015 = vmatmul.mubr.f32.gmra.mrb[0].mxu0 %v4821
        %v5016 = vpop.f32.mrb[0].mxu0
        %v5017 = vadd.f32 0.0, %v5016
        %v5018 = vpop.f32.mrb[0].mxu0
        %5019 = vmatprep.mubr.f32.mxu0 0.0
        %5020 = vmatmul.mubr.f32.gmra.mrb[0].mxu0 %v4822
        %v5021 = vpop.f32.mrb[0].mxu0
        %v5022 = vadd.f32 0.0, %v5021
        %v5023 = vpop.f32.mrb[0].mxu0
        %5024 = vmatprep.mubr.f32.mxu0 0.0
        %5025 = vmatmul.mubr.f32.gmra.mrb[0].mxu0 %v4823
        %v5026 = vpop.f32.mrb[0].mxu0
        %v5027 = vadd.f32 0.0, %v5026
        %v5028 = vpop.f32.mrb[0].mxu0
        %5029 = vmatprep.mubr.f32.mxu0 0.0
        %5030 = vmatmul.mubr.f32.gmra.mrb[0].mxu0 %v4824
        %v5031 = vpop.f32.mrb[0].mxu0
        %v5032 = vadd.f32 0.0, %v5031
        %v5033 = vpop.f32.mrb[0].mxu0
        %5034 = vmatprep.mubr.f32.mxu0 0.0
        %5035 = vmatmul.mubr.f32.gmra.mrb[0].mxu0 %v4825
        %v5036 = vpop.f32.mrb[0].mxu0
        %v5037 = vadd.f32 0.0, %v5036
        %v5038 = vpop.f32.mrb[0].mxu0
        %5039 = vmatprep.mubr.f32.mxu0 0.0
        %5040 = vmatmul.mubr.f32.gmra.mrb[0].mxu0 %v4826
        %v5041 = vpop.f32.mrb[0].mxu0
        %v5042 = vadd.f32 0.0, %v5041
        %v5043 = vpop.f32.mrb[0].mxu0
        %5044 = vmatprep.mubr.f32.mxu0 0.0
        %5045 = vmatmul.mubr.f32.gmra.mrb[0].mxu0 %v4827
        %v5046 = vpop.f32.mrb[0].mxu0
        %v5047 = vadd.f32 0.0, %v5046
        %v5048 = vpop.f32.mrb[0].mxu0
        %5049 = vmatprep.mubr.f32.mxu0 0.0
        %5050 = vmatmul.mubr.f32.gmra.mrb[0].mxu0 %v4828
        %v5051 = vpop.f32.mrb[0].mxu0
        %v5052 = vadd.f32 0.0, %v5051
        %v5053 = vpop.f32.mrb[0].mxu0
        %5054 = vmatprep.mubr.f32.mxu0 0.0
        %5055 = vmatmul.mubr.f32.gmra.mrb[0].mxu0 %v4829
        %v5056 = vpop.f32.mrb[0].mxu0
        %v5057 = vadd.f32 0.0, %v5056
        %v5058 = vpop.f32.mrb[0].mxu0
        %5059 = vmatprep.mubr.f32.mxu0 0.0
        %5060 = vmatmul.mubr.f32.gmra.mrb[0].mxu0 %v4830
        %v5061 = vpop.f32.mrb[0].mxu0
        %v5062 = vadd.f32 0.0, %v5061
        %v5063 = vpop.f32.mrb[0].mxu0
        %5064 = vmatprep.mubr.f32.mxu0 0.0
        %5065 = vmatmul.mubr.f32.gmra.mrb[0].mxu0 %v4831
        %v5066 = vpop.f32.mrb[0].mxu0
        %v5067 = vadd.f32 0.0, %v5066
        %v5068 = vpop.f32.mrb[0].mxu0
        %5069 = vmatprep.mubr.f32.mxu0 0.0
        %5070 = vmatmul.mubr.f32.gmra.mrb[0].mxu0 %v4832
        %v5071 = vpop.f32.mrb[0].mxu0
        %v5072 = vadd.f32 0.0, %v5071
        %v5073 = vpop.f32.mrb[0].mxu0
        %5074 = vdwg.mxu0
        %v5075 = vadd.f32 %v4769, %v4917
        %v5076 = vadd.f32 %v4770, %v4922
        %v5077 = vadd.f32 %v4771, %v4927
        %v5078 = vadd.f32 %v4772, %v4932
        %v5079 = vadd.f32 %v4773, %v4937
        %v5080 = vadd.f32 %v4774, %v4942
        %v5081 = vadd.f32 %v4775, %v4947
        %v5082 = vadd.f32 %v4776, %v4952
        %v5083 = vadd.f32 %v4777, %v4957
        %v5084 = vadd.f32 %v4778, %v4962
        %v5085 = vadd.f32 %v4779, %v4967
        %v5086 = vadd.f32 %v4780, %v4972
        %v5087 = vadd.f32 %v4781, %v4977
        %v5088 = vadd.f32 %v4782, %v4982
        %v5089 = vadd.f32 %v4783, %v4987
        %v5090 = vadd.f32 %v4784, %v4992
        %v5091 = vadd.f32 %v4785, %v4997
        %v5092 = vadd.f32 %v4786, %v5002
        %v5093 = vadd.f32 %v4787, %v5007
        %v5094 = vadd.f32 %v4788, %v5012
        %v5095 = vadd.f32 %v4789, %v5017
        %v5096 = vadd.f32 %v4790, %v5022
        %v5097 = vadd.f32 %v4791, %v5027
        %v5098 = vadd.f32 %v4792, %v5032
        %v5099 = vadd.f32 %v4793, %v5037
        %v5100 = vadd.f32 %v4794, %v5042
        %v5101 = vadd.f32 %v4795, %v5047
        %v5102 = vadd.f32 %v4796, %v5052
        %v5103 = vadd.f32 %v4797, %v5057
        %v5104 = vadd.f32 %v4798, %v5062
        %v5105 = vadd.f32 %v4799, %v5067
        %v5106 = vadd.f32 %v4800, %v5072
        %s5107 = scalar_lea.vmem [#allocation3], 48
        %v5108 = vld [vmem:[%s5107] sm:$0xff]
        %v5109 = vld [vmem:[%s5107 + $0x8] sm:$0xff]
        %v5110 = vld [vmem:[%s5107 + $0x18] sm:$0xff]
        %v5111 = vld [vmem:[%s5107 + $0x20] sm:$0xff]
        %v5112 = vld [vmem:[%s5107 + $0x30] sm:$0xff]
        %v5113 = vld [vmem:[%s5107 + $0x38] sm:$0xff]
        %v5114 = vld [vmem:[%s5107 + $0x48] sm:$0xff]
        %v5115 = vld [vmem:[%s5107 + $0x50] sm:$0xff]
        %v5116 = vld [vmem:[%s5107 + $0x60] sm:$0xff]
        %v5117 = vld [vmem:[%s5107 + $0x68] sm:$0xff]
        %v5118 = vld [vmem:[%s5107 + $0x78] sm:$0xff]
        %v5119 = vld [vmem:[%s5107 + $0x80] sm:$0xff]
        %v5120 = vld [vmem:[%s5107 + $0x90] sm:$0xff]
        %v5121 = vld [vmem:[%s5107 + $0x98] sm:$0xff]
        %v5122 = vld [vmem:[%s5107 + $0xa8] sm:$0xff]
        %v5123 = vld [vmem:[%s5107 + $0xb0] sm:$0xff]
        %v5124 = vld [vmem:[%s5107 + $0xc0] sm:$0xff]
        %v5125 = vld [vmem:[%s5107 + $0xc8] sm:$0xff]
        %v5126 = vld [vmem:[%s5107 + $0xd8] sm:$0xff]
        %v5127 = vld [vmem:[%s5107 + $0xe0] sm:$0xff]
        %v5128 = vld [vmem:[%s5107 + $0xf0] sm:$0xff]
        %v5129 = vld [vmem:[%s5107 + $0xf8] sm:$0xff]
        %v5130 = vld [vmem:[%s5107 + $0x108] sm:$0xff]
        %v5131 = vld [vmem:[%s5107 + $0x110] sm:$0xff]
        %v5132 = vld [vmem:[%s5107 + $0x120] sm:$0xff]
        %v5133 = vld [vmem:[%s5107 + $0x128] sm:$0xff]
        %v5134 = vld [vmem:[%s5107 + $0x138] sm:$0xff]
        %v5135 = vld [vmem:[%s5107 + $0x140] sm:$0xff]
        %v5136 = vld [vmem:[%s5107 + $0x150] sm:$0xff]
        %v5137 = vld [vmem:[%s5107 + $0x158] sm:$0xff]
        %v5138 = vld [vmem:[%s5107 + $0x168] sm:$0xff]
        %v5139 = vld [vmem:[%s5107 + $0x170] sm:$0xff]
        %s5140 = scalar_lea.vmem [#allocation9], 768
        %v5141 = vld [vmem:[%s5140] sm:$0xff]
        %v5142 = vld [vmem:[%s5140 + $0x8] sm:$0xff]
        %v5143 = vld [vmem:[%s5140 + $0x10] sm:$0xff]
        %v5144 = vld [vmem:[%s5140 + $0x18] sm:$0xff]
        %v5145 = vld [vmem:[%s5140 + $0x20] sm:$0xff]
        %v5146 = vld [vmem:[%s5140 + $0x28] sm:$0xff]
        %v5147 = vld [vmem:[%s5140 + $0x30] sm:$0xff]
        %v5148 = vld [vmem:[%s5140 + $0x38] sm:$0xff]
        %v5149 = vld [vmem:[%s5140 + $0x40] sm:$0xff]
        %v5150 = vld [vmem:[%s5140 + $0x48] sm:$0xff]
        %v5151 = vld [vmem:[%s5140 + $0x50] sm:$0xff]
        %v5152 = vld [vmem:[%s5140 + $0x58] sm:$0xff]
        %v5153 = vld [vmem:[%s5140 + $0x60] sm:$0xff]
        %v5154 = vld [vmem:[%s5140 + $0x68] sm:$0xff]
        %v5155 = vld [vmem:[%s5140 + $0x70] sm:$0xff]
        %v5156 = vld [vmem:[%s5140 + $0x78] sm:$0xff]
        %5157 = vmatprep.subr.mxu0 0.0
        %5158 = vmatpush1.msra.mxu0 %v5141
        %5159 = vmatprep.subr.mxu0 0.0
        %5160 = vmatpush1.msra.mxu0 %v5142
        %5161 = vmatprep.subr.mxu0 0.0
        %5162 = vmatpush1.msra.mxu0 %v5143
        %5163 = vmatprep.subr.mxu0 0.0
        %5164 = vmatpush1.msra.mxu0 %v5144
        %5165 = vmatprep.subr.mxu0 0.0
        %5166 = vmatpush1.msra.mxu0 %v5145
        %5167 = vmatprep.subr.mxu0 0.0
        %5168 = vmatpush1.msra.mxu0 %v5146
        %5169 = vmatprep.subr.mxu0 0.0
        %5170 = vmatpush1.msra.mxu0 %v5147
        %5171 = vmatprep.subr.mxu0 0.0
        %5172 = vmatpush1.msra.mxu0 %v5148
        %5173 = vmatprep.subr.mxu0 0.0
        %5174 = vmatpush1.msra.mxu0 %v5149
        %5175 = vmatprep.subr.mxu0 0.0
        %5176 = vmatpush1.msra.mxu0 %v5150
        %5177 = vmatprep.subr.mxu0 0.0
        %5178 = vmatpush1.msra.mxu0 %v5151
        %5179 = vmatprep.subr.mxu0 0.0
        %5180 = vmatpush1.msra.mxu0 %v5152
        %5181 = vmatprep.subr.mxu0 0.0
        %5182 = vmatpush1.msra.mxu0 %v5153
        %5183 = vmatprep.subr.mxu0 0.0
        %5184 = vmatpush1.msra.mxu0 %v5154
        %5185 = vmatprep.subr.mxu0 0.0
        %5186 = vmatpush1.msra.mxu0 %v5155
        %5187 = vmatprep.subr.mxu0 0.0
        %5188 = vmatpush1.msra.mxu0 %v5156
        %5189 = vmatprep.subr.mxu0 0.0
        %5190 = vmatpush1.msra.mxu0 0.0
        %5191 = vmatprep.subr.mxu0 0.0
        %5192 = vmatpush1.msra.mxu0 0.0
        %5193 = vmatprep.subr.mxu0 0.0
        %5194 = vmatpush1.msra.mxu0 0.0
        %5195 = vmatprep.subr.mxu0 0.0
        %5196 = vmatpush1.msra.mxu0 0.0
        %5197 = vmatprep.subr.mxu0 0.0
        %5198 = vmatpush1.msra.mxu0 0.0
        %5199 = vmatprep.subr.mxu0 0.0
        %5200 = vmatpush1.msra.mxu0 0.0
        %5201 = vmatprep.subr.mxu0 0.0
        %5202 = vmatpush1.msra.mxu0 0.0
        %5203 = vmatprep.subr.mxu0 0.0
        %5204 = vmatpush1.msra.mxu0 0.0
        %5205 = vmatprep.subr.mxu0 0.0
        %5206 = vmatpush1.msra.mxu0 0.0
        %5207 = vmatprep.subr.mxu0 0.0
        %5208 = vmatpush1.msra.mxu0 0.0
        %5209 = vmatprep.subr.mxu0 0.0
        %5210 = vmatpush1.msra.mxu0 0.0
        %5211 = vmatprep.subr.mxu0 0.0
        %5212 = vmatpush1.msra.mxu0 0.0
        %5213 = vmatprep.subr.mxu0 0.0
        %5214 = vmatpush1.msra.mxu0 0.0
        %5215 = vmatprep.subr.mxu0 0.0
        %5216 = vmatpush1.msra.mxu0 0.0
        %5217 = vmatprep.subr.mxu0 0.0
        %5218 = vmatpush1.msra.mxu0 0.0
        %5219 = vmatprep.subr.mxu0 0.0
        %5220 = vmatpush1.msra.mxu0 0.0
        %5221 = vmatprep.mubr.f32.mxu0 0.0
        %5222 = vmatmul.mubr.f32.gmra.mrb[0].mxu0 %v5108
        %v5223 = vpop.f32.mrb[0].mxu0
        %v5224 = vadd.f32 0.0, %v5223
        %v5225 = vpop.f32.mrb[0].mxu0
        %5226 = vmatprep.mubr.f32.mxu0 0.0
        %5227 = vmatmul.mubr.f32.gmra.mrb[0].mxu0 %v5109
        %v5228 = vpop.f32.mrb[0].mxu0
        %v5229 = vadd.f32 0.0, %v5228
        %v5230 = vpop.f32.mrb[0].mxu0
        %5231 = vmatprep.mubr.f32.mxu0 0.0
        %5232 = vmatmul.mubr.f32.gmra.mrb[0].mxu0 %v5110
        %v5233 = vpop.f32.mrb[0].mxu0
        %v5234 = vadd.f32 0.0, %v5233
        %v5235 = vpop.f32.mrb[0].mxu0
        %5236 = vmatprep.mubr.f32.mxu0 0.0
        %5237 = vmatmul.mubr.f32.gmra.mrb[0].mxu0 %v5111
        %v5238 = vpop.f32.mrb[0].mxu0
        %v5239 = vadd.f32 0.0, %v5238
        %v5240 = vpop.f32.mrb[0].mxu0
        %5241 = vmatprep.mubr.f32.mxu0 0.0
        %5242 = vmatmul.mubr.f32.gmra.mrb[0].mxu0 %v5112
        %v5243 = vpop.f32.mrb[0].mxu0
        %v5244 = vadd.f32 0.0, %v5243
        %v5245 = vpop.f32.mrb[0].mxu0
        %5246 = vmatprep.mubr.f32.mxu0 0.0
        %5247 = vmatmul.mubr.f32.gmra.mrb[0].mxu0 %v5113
        %v5248 = vpop.f32.mrb[0].mxu0
        %v5249 = vadd.f32 0.0, %v5248
        %v5250 = vpop.f32.mrb[0].mxu0
        %5251 = vmatprep.mubr.f32.mxu0 0.0
        %5252 = vmatmul.mubr.f32.gmra.mrb[0].mxu0 %v5114
        %v5253 = vpop.f32.mrb[0].mxu0
        %v5254 = vadd.f32 0.0, %v5253
        %v5255 = vpop.f32.mrb[0].mxu0
        %5256 = vmatprep.mubr.f32.mxu0 0.0
        %5257 = vmatmul.mubr.f32.gmra.mrb[0].mxu0 %v5115
        %v5258 = vpop.f32.mrb[0].mxu0
        %v5259 = vadd.f32 0.0, %v5258
        %v5260 = vpop.f32.mrb[0].mxu0
        %5261 = vmatprep.mubr.f32.mxu0 0.0
        %5262 = vmatmul.mubr.f32.gmra.mrb[0].mxu0 %v5116
        %v5263 = vpop.f32.mrb[0].mxu0
        %v5264 = vadd.f32 0.0, %v5263
        %v5265 = vpop.f32.mrb[0].mxu0
        %5266 = vmatprep.mubr.f32.mxu0 0.0
        %5267 = vmatmul.mubr.f32.gmra.mrb[0].mxu0 %v5117
        %v5268 = vpop.f32.mrb[0].mxu0
        %v5269 = vadd.f32 0.0, %v5268
        %v5270 = vpop.f32.mrb[0].mxu0
        %5271 = vmatprep.mubr.f32.mxu0 0.0
        %5272 = vmatmul.mubr.f32.gmra.mrb[0].mxu0 %v5118
        %v5273 = vpop.f32.mrb[0].mxu0
        %v5274 = vadd.f32 0.0, %v5273
        %v5275 = vpop.f32.mrb[0].mxu0
        %5276 = vmatprep.mubr.f32.mxu0 0.0
        %5277 = vmatmul.mubr.f32.gmra.mrb[0].mxu0 %v5119
        %v5278 = vpop.f32.mrb[0].mxu0
        %v5279 = vadd.f32 0.0, %v5278
        %v5280 = vpop.f32.mrb[0].mxu0
        %5281 = vmatprep.mubr.f32.mxu0 0.0
        %5282 = vmatmul.mubr.f32.gmra.mrb[0].mxu0 %v5120
        %v5283 = vpop.f32.mrb[0].mxu0
        %v5284 = vadd.f32 0.0, %v5283
        %v5285 = vpop.f32.mrb[0].mxu0
        %5286 = vmatprep.mubr.f32.mxu0 0.0
        %5287 = vmatmul.mubr.f32.gmra.mrb[0].mxu0 %v5121
        %v5288 = vpop.f32.mrb[0].mxu0
        %v5289 = vadd.f32 0.0, %v5288
        %v5290 = vpop.f32.mrb[0].mxu0
        %5291 = vmatprep.mubr.f32.mxu0 0.0
        %5292 = vmatmul.mubr.f32.gmra.mrb[0].mxu0 %v5122
        %v5293 = vpop.f32.mrb[0].mxu0
        %v5294 = vadd.f32 0.0, %v5293
        %v5295 = vpop.f32.mrb[0].mxu0
        %5296 = vmatprep.mubr.f32.mxu0 0.0
        %5297 = vmatmul.mubr.f32.gmra.mrb[0].mxu0 %v5123
        %v5298 = vpop.f32.mrb[0].mxu0
        %v5299 = vadd.f32 0.0, %v5298
        %v5300 = vpop.f32.mrb[0].mxu0
        %5301 = vmatprep.mubr.f32.mxu0 0.0
        %5302 = vmatmul.mubr.f32.gmra.mrb[0].mxu0 %v5124
        %v5303 = vpop.f32.mrb[0].mxu0
        %v5304 = vadd.f32 0.0, %v5303
        %v5305 = vpop.f32.mrb[0].mxu0
        %5306 = vmatprep.mubr.f32.mxu0 0.0
        %5307 = vmatmul.mubr.f32.gmra.mrb[0].mxu0 %v5125
        %v5308 = vpop.f32.mrb[0].mxu0
        %v5309 = vadd.f32 0.0, %v5308
        %v5310 = vpop.f32.mrb[0].mxu0
        %5311 = vmatprep.mubr.f32.mxu0 0.0
        %5312 = vmatmul.mubr.f32.gmra.mrb[0].mxu0 %v5126
        %v5313 = vpop.f32.mrb[0].mxu0
        %v5314 = vadd.f32 0.0, %v5313
        %v5315 = vpop.f32.mrb[0].mxu0
        %5316 = vmatprep.mubr.f32.mxu0 0.0
        %5317 = vmatmul.mubr.f32.gmra.mrb[0].mxu0 %v5127
        %v5318 = vpop.f32.mrb[0].mxu0
        %v5319 = vadd.f32 0.0, %v5318
        %v5320 = vpop.f32.mrb[0].mxu0
        %5321 = vmatprep.mubr.f32.mxu0 0.0
        %5322 = vmatmul.mubr.f32.gmra.mrb[0].mxu0 %v5128
        %v5323 = vpop.f32.mrb[0].mxu0
        %v5324 = vadd.f32 0.0, %v5323
        %v5325 = vpop.f32.mrb[0].mxu0
        %5326 = vmatprep.mubr.f32.mxu0 0.0
        %5327 = vmatmul.mubr.f32.gmra.mrb[0].mxu0 %v5129
        %v5328 = vpop.f32.mrb[0].mxu0
        %v5329 = vadd.f32 0.0, %v5328
        %v5330 = vpop.f32.mrb[0].mxu0
        %5331 = vmatprep.mubr.f32.mxu0 0.0
        %5332 = vmatmul.mubr.f32.gmra.mrb[0].mxu0 %v5130
        %v5333 = vpop.f32.mrb[0].mxu0
        %v5334 = vadd.f32 0.0, %v5333
        %v5335 = vpop.f32.mrb[0].mxu0
        %5336 = vmatprep.mubr.f32.mxu0 0.0
        %5337 = vmatmul.mubr.f32.gmra.mrb[0].mxu0 %v5131
        %v5338 = vpop.f32.mrb[0].mxu0
        %v5339 = vadd.f32 0.0, %v5338
        %v5340 = vpop.f32.mrb[0].mxu0
        %5341 = vmatprep.mubr.f32.mxu0 0.0
        %5342 = vmatmul.mubr.f32.gmra.mrb[0].mxu0 %v5132
        %v5343 = vpop.f32.mrb[0].mxu0
        %v5344 = vadd.f32 0.0, %v5343
        %v5345 = vpop.f32.mrb[0].mxu0
        %5346 = vmatprep.mubr.f32.mxu0 0.0
        %5347 = vmatmul.mubr.f32.gmra.mrb[0].mxu0 %v5133
        %v5348 = vpop.f32.mrb[0].mxu0
        %v5349 = vadd.f32 0.0, %v5348
        %v5350 = vpop.f32.mrb[0].mxu0
        %5351 = vmatprep.mubr.f32.mxu0 0.0
        %5352 = vmatmul.mubr.f32.gmra.mrb[0].mxu0 %v5134
        %v5353 = vpop.f32.mrb[0].mxu0
        %v5354 = vadd.f32 0.0, %v5353
        %v5355 = vpop.f32.mrb[0].mxu0
        %5356 = vmatprep.mubr.f32.mxu0 0.0
        %5357 = vmatmul.mubr.f32.gmra.mrb[0].mxu0 %v5135
        %v5358 = vpop.f32.mrb[0].mxu0
        %v5359 = vadd.f32 0.0, %v5358
        %v5360 = vpop.f32.mrb[0].mxu0
        %5361 = vmatprep.mubr.f32.mxu0 0.0
        %5362 = vmatmul.mubr.f32.gmra.mrb[0].mxu0 %v5136
        %v5363 = vpop.f32.mrb[0].mxu0
        %v5364 = vadd.f32 0.0, %v5363
        %v5365 = vpop.f32.mrb[0].mxu0
        %5366 = vmatprep.mubr.f32.mxu0 0.0
        %5367 = vmatmul.mubr.f32.gmra.mrb[0].mxu0 %v5137
        %v5368 = vpop.f32.mrb[0].mxu0
        %v5369 = vadd.f32 0.0, %v5368
        %v5370 = vpop.f32.mrb[0].mxu0
        %5371 = vmatprep.mubr.f32.mxu0 0.0
        %5372 = vmatmul.mubr.f32.gmra.mrb[0].mxu0 %v5138
        %v5373 = vpop.f32.mrb[0].mxu0
        %v5374 = vadd.f32 0.0, %v5373
        %v5375 = vpop.f32.mrb[0].mxu0
        %5376 = vmatprep.mubr.f32.mxu0 0.0
        %5377 = vmatmul.mubr.f32.gmra.mrb[0].mxu0 %v5139
        %v5378 = vpop.f32.mrb[0].mxu0
        %v5379 = vadd.f32 0.0, %v5378
        %v5380 = vpop.f32.mrb[0].mxu0
        %5381 = vdwg.mxu0
        %v5382 = vadd.f32 %v5075, %v5224
        %v5383 = vadd.f32 %v5076, %v5229
        %v5384 = vadd.f32 %v5077, %v5234
        %v5385 = vadd.f32 %v5078, %v5239
        %v5386 = vadd.f32 %v5079, %v5244
        %v5387 = vadd.f32 %v5080, %v5249
        %v5388 = vadd.f32 %v5081, %v5254
        %v5389 = vadd.f32 %v5082, %v5259
        %v5390 = vadd.f32 %v5083, %v5264
        %v5391 = vadd.f32 %v5084, %v5269
        %v5392 = vadd.f32 %v5085, %v5274
        %v5393 = vadd.f32 %v5086, %v5279
        %v5394 = vadd.f32 %v5087, %v5284
        %v5395 = vadd.f32 %v5088, %v5289
        %v5396 = vadd.f32 %v5089, %v5294
        %v5397 = vadd.f32 %v5090, %v5299
        %v5398 = vadd.f32 %v5091, %v5304
        %v5399 = vadd.f32 %v5092, %v5309
        %v5400 = vadd.f32 %v5093, %v5314
        %v5401 = vadd.f32 %v5094, %v5319
        %v5402 = vadd.f32 %v5095, %v5324
        %v5403 = vadd.f32 %v5096, %v5329
        %v5404 = vadd.f32 %v5097, %v5334
        %v5405 = vadd.f32 %v5098, %v5339
        %v5406 = vadd.f32 %v5099, %v5344
        %v5407 = vadd.f32 %v5100, %v5349
        %v5408 = vadd.f32 %v5101, %v5354
        %v5409 = vadd.f32 %v5102, %v5359
        %v5410 = vadd.f32 %v5103, %v5364
        %v5411 = vadd.f32 %v5104, %v5369
        %v5412 = vadd.f32 %v5105, %v5374
        %v5413 = vadd.f32 %v5106, %v5379
        %v5414 = vld [vmem:[%s5107 + $0x1] sm:$0xff]
        %v5415 = vld [vmem:[%s5107 + $0x9] sm:$0xff]
        %v5416 = vld [vmem:[%s5107 + $0x19] sm:$0xff]
        %v5417 = vld [vmem:[%s5107 + $0x21] sm:$0xff]
        %v5418 = vld [vmem:[%s5107 + $0x31] sm:$0xff]
        %v5419 = vld [vmem:[%s5107 + $0x39] sm:$0xff]
        %v5420 = vld [vmem:[%s5107 + $0x49] sm:$0xff]
        %v5421 = vld [vmem:[%s5107 + $0x51] sm:$0xff]
        %v5422 = vld [vmem:[%s5107 + $0x61] sm:$0xff]
        %v5423 = vld [vmem:[%s5107 + $0x69] sm:$0xff]
        %v5424 = vld [vmem:[%s5107 + $0x79] sm:$0xff]
        %v5425 = vld [vmem:[%s5107 + $0x81] sm:$0xff]
        %v5426 = vld [vmem:[%s5107 + $0x91] sm:$0xff]
        %v5427 = vld [vmem:[%s5107 + $0x99] sm:$0xff]
        %v5428 = vld [vmem:[%s5107 + $0xa9] sm:$0xff]
        %v5429 = vld [vmem:[%s5107 + $0xb1] sm:$0xff]
        %v5430 = vld [vmem:[%s5107 + $0xc1] sm:$0xff]
        %v5431 = vld [vmem:[%s5107 + $0xc9] sm:$0xff]
        %v5432 = vld [vmem:[%s5107 + $0xd9] sm:$0xff]
        %v5433 = vld [vmem:[%s5107 + $0xe1] sm:$0xff]
        %v5434 = vld [vmem:[%s5107 + $0xf1] sm:$0xff]
        %v5435 = vld [vmem:[%s5107 + $0xf9] sm:$0xff]
        %v5436 = vld [vmem:[%s5107 + $0x109] sm:$0xff]
        %v5437 = vld [vmem:[%s5107 + $0x111] sm:$0xff]
        %v5438 = vld [vmem:[%s5107 + $0x121] sm:$0xff]
        %v5439 = vld [vmem:[%s5107 + $0x129] sm:$0xff]
        %v5440 = vld [vmem:[%s5107 + $0x139] sm:$0xff]
        %v5441 = vld [vmem:[%s5107 + $0x141] sm:$0xff]
        %v5442 = vld [vmem:[%s5107 + $0x151] sm:$0xff]
        %v5443 = vld [vmem:[%s5107 + $0x159] sm:$0xff]
        %v5444 = vld [vmem:[%s5107 + $0x169] sm:$0xff]
        %v5445 = vld [vmem:[%s5107 + $0x171] sm:$0xff]
        %s5446 = scalar_lea.vmem [#allocation9], 896
        %v5447 = vld [vmem:[%s5446] sm:$0xff]
        %v5448 = vld [vmem:[%s5446 + $0x8] sm:$0xff]
        %v5449 = vld [vmem:[%s5446 + $0x10] sm:$0xff]
        %v5450 = vld [vmem:[%s5446 + $0x18] sm:$0xff]
        %v5451 = vld [vmem:[%s5446 + $0x20] sm:$0xff]
        %v5452 = vld [vmem:[%s5446 + $0x28] sm:$0xff]
        %v5453 = vld [vmem:[%s5446 + $0x30] sm:$0xff]
        %v5454 = vld [vmem:[%s5446 + $0x38] sm:$0xff]
        %v5455 = vld [vmem:[%s5446 + $0x40] sm:$0xff]
        %v5456 = vld [vmem:[%s5446 + $0x48] sm:$0xff]
        %v5457 = vld [vmem:[%s5446 + $0x50] sm:$0xff]
        %v5458 = vld [vmem:[%s5446 + $0x58] sm:$0xff]
        %v5459 = vld [vmem:[%s5446 + $0x60] sm:$0xff]
        %v5460 = vld [vmem:[%s5446 + $0x68] sm:$0xff]
        %v5461 = vld [vmem:[%s5446 + $0x70] sm:$0xff]
        %v5462 = vld [vmem:[%s5446 + $0x78] sm:$0xff]
        %5463 = vmatprep.subr.mxu0 0.0
        %5464 = vmatpush1.msra.mxu0 %v5447
        %5465 = vmatprep.subr.mxu0 0.0
        %5466 = vmatpush1.msra.mxu0 %v5448
        %5467 = vmatprep.subr.mxu0 0.0
        %5468 = vmatpush1.msra.mxu0 %v5449
        %5469 = vmatprep.subr.mxu0 0.0
        %5470 = vmatpush1.msra.mxu0 %v5450
        %5471 = vmatprep.subr.mxu0 0.0
        %5472 = vmatpush1.msra.mxu0 %v5451
        %5473 = vmatprep.subr.mxu0 0.0
        %5474 = vmatpush1.msra.mxu0 %v5452
        %5475 = vmatprep.subr.mxu0 0.0
        %5476 = vmatpush1.msra.mxu0 %v5453
        %5477 = vmatprep.subr.mxu0 0.0
        %5478 = vmatpush1.msra.mxu0 %v5454
        %5479 = vmatprep.subr.mxu0 0.0
        %5480 = vmatpush1.msra.mxu0 %v5455
        %5481 = vmatprep.subr.mxu0 0.0
        %5482 = vmatpush1.msra.mxu0 %v5456
        %5483 = vmatprep.subr.mxu0 0.0
        %5484 = vmatpush1.msra.mxu0 %v5457
        %5485 = vmatprep.subr.mxu0 0.0
        %5486 = vmatpush1.msra.mxu0 %v5458
        %5487 = vmatprep.subr.mxu0 0.0
        %5488 = vmatpush1.msra.mxu0 %v5459
        %5489 = vmatprep.subr.mxu0 0.0
        %5490 = vmatpush1.msra.mxu0 %v5460
        %5491 = vmatprep.subr.mxu0 0.0
        %5492 = vmatpush1.msra.mxu0 %v5461
        %5493 = vmatprep.subr.mxu0 0.0
        %5494 = vmatpush1.msra.mxu0 %v5462
        %5495 = vmatprep.subr.mxu0 0.0
        %5496 = vmatpush1.msra.mxu0 0.0
        %5497 = vmatprep.subr.mxu0 0.0
        %5498 = vmatpush1.msra.mxu0 0.0
        %5499 = vmatprep.subr.mxu0 0.0
        %5500 = vmatpush1.msra.mxu0 0.0
        %5501 = vmatprep.subr.mxu0 0.0
        %5502 = vmatpush1.msra.mxu0 0.0
        %5503 = vmatprep.subr.mxu0 0.0
        %5504 = vmatpush1.msra.mxu0 0.0
        %5505 = vmatprep.subr.mxu0 0.0
        %5506 = vmatpush1.msra.mxu0 0.0
        %5507 = vmatprep.subr.mxu0 0.0
        %5508 = vmatpush1.msra.mxu0 0.0
        %5509 = vmatprep.subr.mxu0 0.0
        %5510 = vmatpush1.msra.mxu0 0.0
        %5511 = vmatprep.subr.mxu0 0.0
        %5512 = vmatpush1.msra.mxu0 0.0
        %5513 = vmatprep.subr.mxu0 0.0
        %5514 = vmatpush1.msra.mxu0 0.0
        %5515 = vmatprep.subr.mxu0 0.0
        %5516 = vmatpush1.msra.mxu0 0.0
        %5517 = vmatprep.subr.mxu0 0.0
        %5518 = vmatpush1.msra.mxu0 0.0
        %5519 = vmatprep.subr.mxu0 0.0
        %5520 = vmatpush1.msra.mxu0 0.0
        %5521 = vmatprep.subr.mxu0 0.0
        %5522 = vmatpush1.msra.mxu0 0.0
        %5523 = vmatprep.subr.mxu0 0.0
        %5524 = vmatpush1.msra.mxu0 0.0
        %5525 = vmatprep.subr.mxu0 0.0
        %5526 = vmatpush1.msra.mxu0 0.0
        %5527 = vmatprep.mubr.f32.mxu0 0.0
        %5528 = vmatmul.mubr.f32.gmra.mrb[0].mxu0 %v5414
        %v5529 = vpop.f32.mrb[0].mxu0
        %v5530 = vadd.f32 0.0, %v5529
        %v5531 = vpop.f32.mrb[0].mxu0
        %5532 = vmatprep.mubr.f32.mxu0 0.0
        %5533 = vmatmul.mubr.f32.gmra.mrb[0].mxu0 %v5415
        %v5534 = vpop.f32.mrb[0].mxu0
        %v5535 = vadd.f32 0.0, %v5534
        %v5536 = vpop.f32.mrb[0].mxu0
        %5537 = vmatprep.mubr.f32.mxu0 0.0
        %5538 = vmatmul.mubr.f32.gmra.mrb[0].mxu0 %v5416
        %v5539 = vpop.f32.mrb[0].mxu0
        %v5540 = vadd.f32 0.0, %v5539
        %v5541 = vpop.f32.mrb[0].mxu0
        %5542 = vmatprep.mubr.f32.mxu0 0.0
        %5543 = vmatmul.mubr.f32.gmra.mrb[0].mxu0 %v5417
        %v5544 = vpop.f32.mrb[0].mxu0
        %v5545 = vadd.f32 0.0, %v5544
        %v5546 = vpop.f32.mrb[0].mxu0
        %5547 = vmatprep.mubr.f32.mxu0 0.0
        %5548 = vmatmul.mubr.f32.gmra.mrb[0].mxu0 %v5418
        %v5549 = vpop.f32.mrb[0].mxu0
        %v5550 = vadd.f32 0.0, %v5549
        %v5551 = vpop.f32.mrb[0].mxu0
        %5552 = vmatprep.mubr.f32.mxu0 0.0
        %5553 = vmatmul.mubr.f32.gmra.mrb[0].mxu0 %v5419
        %v5554 = vpop.f32.mrb[0].mxu0
        %v5555 = vadd.f32 0.0, %v5554
        %v5556 = vpop.f32.mrb[0].mxu0
        %5557 = vmatprep.mubr.f32.mxu0 0.0
        %5558 = vmatmul.mubr.f32.gmra.mrb[0].mxu0 %v5420
        %v5559 = vpop.f32.mrb[0].mxu0
        %v5560 = vadd.f32 0.0, %v5559
        %v5561 = vpop.f32.mrb[0].mxu0
        %5562 = vmatprep.mubr.f32.mxu0 0.0
        %5563 = vmatmul.mubr.f32.gmra.mrb[0].mxu0 %v5421
        %v5564 = vpop.f32.mrb[0].mxu0
        %v5565 = vadd.f32 0.0, %v5564
        %v5566 = vpop.f32.mrb[0].mxu0
        %5567 = vmatprep.mubr.f32.mxu0 0.0
        %5568 = vmatmul.mubr.f32.gmra.mrb[0].mxu0 %v5422
        %v5569 = vpop.f32.mrb[0].mxu0
        %v5570 = vadd.f32 0.0, %v5569
        %v5571 = vpop.f32.mrb[0].mxu0
        %5572 = vmatprep.mubr.f32.mxu0 0.0
        %5573 = vmatmul.mubr.f32.gmra.mrb[0].mxu0 %v5423
        %v5574 = vpop.f32.mrb[0].mxu0
        %v5575 = vadd.f32 0.0, %v5574
        %v5576 = vpop.f32.mrb[0].mxu0
        %5577 = vmatprep.mubr.f32.mxu0 0.0
        %5578 = vmatmul.mubr.f32.gmra.mrb[0].mxu0 %v5424
        %v5579 = vpop.f32.mrb[0].mxu0
        %v5580 = vadd.f32 0.0, %v5579
        %v5581 = vpop.f32.mrb[0].mxu0
        %5582 = vmatprep.mubr.f32.mxu0 0.0
        %5583 = vmatmul.mubr.f32.gmra.mrb[0].mxu0 %v5425
        %v5584 = vpop.f32.mrb[0].mxu0
        %v5585 = vadd.f32 0.0, %v5584
        %v5586 = vpop.f32.mrb[0].mxu0
        %5587 = vmatprep.mubr.f32.mxu0 0.0
        %5588 = vmatmul.mubr.f32.gmra.mrb[0].mxu0 %v5426
        %v5589 = vpop.f32.mrb[0].mxu0
        %v5590 = vadd.f32 0.0, %v5589
        %v5591 = vpop.f32.mrb[0].mxu0
        %5592 = vmatprep.mubr.f32.mxu0 0.0
        %5593 = vmatmul.mubr.f32.gmra.mrb[0].mxu0 %v5427
        %v5594 = vpop.f32.mrb[0].mxu0
        %v5595 = vadd.f32 0.0, %v5594
        %v5596 = vpop.f32.mrb[0].mxu0
        %5597 = vmatprep.mubr.f32.mxu0 0.0
        %5598 = vmatmul.mubr.f32.gmra.mrb[0].mxu0 %v5428
        %v5599 = vpop.f32.mrb[0].mxu0
        %v5600 = vadd.f32 0.0, %v5599
        %v5601 = vpop.f32.mrb[0].mxu0
        %5602 = vmatprep.mubr.f32.mxu0 0.0
        %5603 = vmatmul.mubr.f32.gmra.mrb[0].mxu0 %v5429
        %v5604 = vpop.f32.mrb[0].mxu0
        %v5605 = vadd.f32 0.0, %v5604
        %v5606 = vpop.f32.mrb[0].mxu0
        %5607 = vmatprep.mubr.f32.mxu0 0.0
        %5608 = vmatmul.mubr.f32.gmra.mrb[0].mxu0 %v5430
        %v5609 = vpop.f32.mrb[0].mxu0
        %v5610 = vadd.f32 0.0, %v5609
        %v5611 = vpop.f32.mrb[0].mxu0
        %5612 = vmatprep.mubr.f32.mxu0 0.0
        %5613 = vmatmul.mubr.f32.gmra.mrb[0].mxu0 %v5431
        %v5614 = vpop.f32.mrb[0].mxu0
        %v5615 = vadd.f32 0.0, %v5614
        %v5616 = vpop.f32.mrb[0].mxu0
        %5617 = vmatprep.mubr.f32.mxu0 0.0
        %5618 = vmatmul.mubr.f32.gmra.mrb[0].mxu0 %v5432
        %v5619 = vpop.f32.mrb[0].mxu0
        %v5620 = vadd.f32 0.0, %v5619
        %v5621 = vpop.f32.mrb[0].mxu0
        %5622 = vmatprep.mubr.f32.mxu0 0.0
        %5623 = vmatmul.mubr.f32.gmra.mrb[0].mxu0 %v5433
        %v5624 = vpop.f32.mrb[0].mxu0
        %v5625 = vadd.f32 0.0, %v5624
        %v5626 = vpop.f32.mrb[0].mxu0
        %5627 = vmatprep.mubr.f32.mxu0 0.0
        %5628 = vmatmul.mubr.f32.gmra.mrb[0].mxu0 %v5434
        %v5629 = vpop.f32.mrb[0].mxu0
        %v5630 = vadd.f32 0.0, %v5629
        %v5631 = vpop.f32.mrb[0].mxu0
        %5632 = vmatprep.mubr.f32.mxu0 0.0
        %5633 = vmatmul.mubr.f32.gmra.mrb[0].mxu0 %v5435
        %v5634 = vpop.f32.mrb[0].mxu0
        %v5635 = vadd.f32 0.0, %v5634
        %v5636 = vpop.f32.mrb[0].mxu0
        %5637 = vmatprep.mubr.f32.mxu0 0.0
        %5638 = vmatmul.mubr.f32.gmra.mrb[0].mxu0 %v5436
        %v5639 = vpop.f32.mrb[0].mxu0
        %v5640 = vadd.f32 0.0, %v5639
        %v5641 = vpop.f32.mrb[0].mxu0
        %5642 = vmatprep.mubr.f32.mxu0 0.0
        %5643 = vmatmul.mubr.f32.gmra.mrb[0].mxu0 %v5437
        %v5644 = vpop.f32.mrb[0].mxu0
        %v5645 = vadd.f32 0.0, %v5644
        %v5646 = vpop.f32.mrb[0].mxu0
        %5647 = vmatprep.mubr.f32.mxu0 0.0
        %5648 = vmatmul.mubr.f32.gmra.mrb[0].mxu0 %v5438
        %v5649 = vpop.f32.mrb[0].mxu0
        %v5650 = vadd.f32 0.0, %v5649
        %v5651 = vpop.f32.mrb[0].mxu0
        %5652 = vmatprep.mubr.f32.mxu0 0.0
        %5653 = vmatmul.mubr.f32.gmra.mrb[0].mxu0 %v5439
        %v5654 = vpop.f32.mrb[0].mxu0
        %v5655 = vadd.f32 0.0, %v5654
        %v5656 = vpop.f32.mrb[0].mxu0
        %5657 = vmatprep.mubr.f32.mxu0 0.0
        %5658 = vmatmul.mubr.f32.gmra.mrb[0].mxu0 %v5440
        %v5659 = vpop.f32.mrb[0].mxu0
        %v5660 = vadd.f32 0.0, %v5659
        %v5661 = vpop.f32.mrb[0].mxu0
        %5662 = vmatprep.mubr.f32.mxu0 0.0
        %5663 = vmatmul.mubr.f32.gmra.mrb[0].mxu0 %v5441
        %v5664 = vpop.f32.mrb[0].mxu0
        %v5665 = vadd.f32 0.0, %v5664
        %v5666 = vpop.f32.mrb[0].mxu0
        %5667 = vmatprep.mubr.f32.mxu0 0.0
        %5668 = vmatmul.mubr.f32.gmra.mrb[0].mxu0 %v5442
        %v5669 = vpop.f32.mrb[0].mxu0
        %v5670 = vadd.f32 0.0, %v5669
        %v5671 = vpop.f32.mrb[0].mxu0
        %5672 = vmatprep.mubr.f32.mxu0 0.0
        %5673 = vmatmul.mubr.f32.gmra.mrb[0].mxu0 %v5443
        %v5674 = vpop.f32.mrb[0].mxu0
        %v5675 = vadd.f32 0.0, %v5674
        %v5676 = vpop.f32.mrb[0].mxu0
        %5677 = vmatprep.mubr.f32.mxu0 0.0
        %5678 = vmatmul.mubr.f32.gmra.mrb[0].mxu0 %v5444
        %v5679 = vpop.f32.mrb[0].mxu0
        %v5680 = vadd.f32 0.0, %v5679
        %v5681 = vpop.f32.mrb[0].mxu0
        %5682 = vmatprep.mubr.f32.mxu0 0.0
        %5683 = vmatmul.mubr.f32.gmra.mrb[0].mxu0 %v5445
        %v5684 = vpop.f32.mrb[0].mxu0
        %v5685 = vadd.f32 0.0, %v5684
        %v5686 = vpop.f32.mrb[0].mxu0
        %5687 = vdwg.mxu0
        %v5688 = vadd.f32 %v5382, %v5530
        %v5689 = vadd.f32 %v5383, %v5535
        %v5690 = vadd.f32 %v5384, %v5540
        %v5691 = vadd.f32 %v5385, %v5545
        %v5692 = vadd.f32 %v5386, %v5550
        %v5693 = vadd.f32 %v5387, %v5555
        %v5694 = vadd.f32 %v5388, %v5560
        %v5695 = vadd.f32 %v5389, %v5565
        %v5696 = vadd.f32 %v5390, %v5570
        %v5697 = vadd.f32 %v5391, %v5575
        %v5698 = vadd.f32 %v5392, %v5580
        %v5699 = vadd.f32 %v5393, %v5585
        %v5700 = vadd.f32 %v5394, %v5590
        %v5701 = vadd.f32 %v5395, %v5595
        %v5702 = vadd.f32 %v5396, %v5600
        %v5703 = vadd.f32 %v5397, %v5605
        %v5704 = vadd.f32 %v5398, %v5610
        %v5705 = vadd.f32 %v5399, %v5615
        %v5706 = vadd.f32 %v5400, %v5620
        %v5707 = vadd.f32 %v5401, %v5625
        %v5708 = vadd.f32 %v5402, %v5630
        %v5709 = vadd.f32 %v5403, %v5635
        %v5710 = vadd.f32 %v5404, %v5640
        %v5711 = vadd.f32 %v5405, %v5645
        %v5712 = vadd.f32 %v5406, %v5650
        %v5713 = vadd.f32 %v5407, %v5655
        %v5714 = vadd.f32 %v5408, %v5660
        %v5715 = vadd.f32 %v5409, %v5665
        %v5716 = vadd.f32 %v5410, %v5670
        %v5717 = vadd.f32 %v5411, %v5675
        %v5718 = vadd.f32 %v5412, %v5680
        %v5719 = vadd.f32 %v5413, %v5685
        %v5720 = vld [vmem:[%s5107 + $0x2] sm:$0xff]
        %v5721 = vld [vmem:[%s5107 + $0xa] sm:$0xff]
        %v5722 = vld [vmem:[%s5107 + $0x1a] sm:$0xff]
        %v5723 = vld [vmem:[%s5107 + $0x22] sm:$0xff]
        %v5724 = vld [vmem:[%s5107 + $0x32] sm:$0xff]
        %v5725 = vld [vmem:[%s5107 + $0x3a] sm:$0xff]
        %v5726 = vld [vmem:[%s5107 + $0x4a] sm:$0xff]
        %v5727 = vld [vmem:[%s5107 + $0x52] sm:$0xff]
        %v5728 = vld [vmem:[%s5107 + $0x62] sm:$0xff]
        %v5729 = vld [vmem:[%s5107 + $0x6a] sm:$0xff]
        %v5730 = vld [vmem:[%s5107 + $0x7a] sm:$0xff]
        %v5731 = vld [vmem:[%s5107 + $0x82] sm:$0xff]
        %v5732 = vld [vmem:[%s5107 + $0x92] sm:$0xff]
        %v5733 = vld [vmem:[%s5107 + $0x9a] sm:$0xff]
        %v5734 = vld [vmem:[%s5107 + $0xaa] sm:$0xff]
        %v5735 = vld [vmem:[%s5107 + $0xb2] sm:$0xff]
        %v5736 = vld [vmem:[%s5107 + $0xc2] sm:$0xff]
        %v5737 = vld [vmem:[%s5107 + $0xca] sm:$0xff]
        %v5738 = vld [vmem:[%s5107 + $0xda] sm:$0xff]
        %v5739 = vld [vmem:[%s5107 + $0xe2] sm:$0xff]
        %v5740 = vld [vmem:[%s5107 + $0xf2] sm:$0xff]
        %v5741 = vld [vmem:[%s5107 + $0xfa] sm:$0xff]
        %v5742 = vld [vmem:[%s5107 + $0x10a] sm:$0xff]
        %v5743 = vld [vmem:[%s5107 + $0x112] sm:$0xff]
        %v5744 = vld [vmem:[%s5107 + $0x122] sm:$0xff]
        %v5745 = vld [vmem:[%s5107 + $0x12a] sm:$0xff]
        %v5746 = vld [vmem:[%s5107 + $0x13a] sm:$0xff]
        %v5747 = vld [vmem:[%s5107 + $0x142] sm:$0xff]
        %v5748 = vld [vmem:[%s5107 + $0x152] sm:$0xff]
        %v5749 = vld [vmem:[%s5107 + $0x15a] sm:$0xff]
        %v5750 = vld [vmem:[%s5107 + $0x16a] sm:$0xff]
        %v5751 = vld [vmem:[%s5107 + $0x172] sm:$0xff]
        %s5752 = scalar_lea.vmem [#allocation9], 1024
        %v5753 = vld [vmem:[%s5752] sm:$0xff]
        %v5754 = vld [vmem:[%s5752 + $0x8] sm:$0xff]
        %v5755 = vld [vmem:[%s5752 + $0x10] sm:$0xff]
        %v5756 = vld [vmem:[%s5752 + $0x18] sm:$0xff]
        %v5757 = vld [vmem:[%s5752 + $0x20] sm:$0xff]
        %v5758 = vld [vmem:[%s5752 + $0x28] sm:$0xff]
        %v5759 = vld [vmem:[%s5752 + $0x30] sm:$0xff]
        %v5760 = vld [vmem:[%s5752 + $0x38] sm:$0xff]
        %v5761 = vld [vmem:[%s5752 + $0x40] sm:$0xff]
        %v5762 = vld [vmem:[%s5752 + $0x48] sm:$0xff]
        %v5763 = vld [vmem:[%s5752 + $0x50] sm:$0xff]
        %v5764 = vld [vmem:[%s5752 + $0x58] sm:$0xff]
        %v5765 = vld [vmem:[%s5752 + $0x60] sm:$0xff]
        %v5766 = vld [vmem:[%s5752 + $0x68] sm:$0xff]
        %v5767 = vld [vmem:[%s5752 + $0x70] sm:$0xff]
        %v5768 = vld [vmem:[%s5752 + $0x78] sm:$0xff]
        %5769 = vmatprep.subr.mxu0 0.0
        %5770 = vmatpush1.msra.mxu0 %v5753
        %5771 = vmatprep.subr.mxu0 0.0
        %5772 = vmatpush1.msra.mxu0 %v5754
        %5773 = vmatprep.subr.mxu0 0.0
        %5774 = vmatpush1.msra.mxu0 %v5755
        %5775 = vmatprep.subr.mxu0 0.0
        %5776 = vmatpush1.msra.mxu0 %v5756
        %5777 = vmatprep.subr.mxu0 0.0
        %5778 = vmatpush1.msra.mxu0 %v5757
        %5779 = vmatprep.subr.mxu0 0.0
        %5780 = vmatpush1.msra.mxu0 %v5758
        %5781 = vmatprep.subr.mxu0 0.0
        %5782 = vmatpush1.msra.mxu0 %v5759
        %5783 = vmatprep.subr.mxu0 0.0
        %5784 = vmatpush1.msra.mxu0 %v5760
        %5785 = vmatprep.subr.mxu0 0.0
        %5786 = vmatpush1.msra.mxu0 %v5761
        %5787 = vmatprep.subr.mxu0 0.0
        %5788 = vmatpush1.msra.mxu0 %v5762
        %5789 = vmatprep.subr.mxu0 0.0
        %5790 = vmatpush1.msra.mxu0 %v5763
        %5791 = vmatprep.subr.mxu0 0.0
        %5792 = vmatpush1.msra.mxu0 %v5764
        %5793 = vmatprep.subr.mxu0 0.0
        %5794 = vmatpush1.msra.mxu0 %v5765
        %5795 = vmatprep.subr.mxu0 0.0
        %5796 = vmatpush1.msra.mxu0 %v5766
        %5797 = vmatprep.subr.mxu0 0.0
        %5798 = vmatpush1.msra.mxu0 %v5767
        %5799 = vmatprep.subr.mxu0 0.0
        %5800 = vmatpush1.msra.mxu0 %v5768
        %5801 = vmatprep.subr.mxu0 0.0
        %5802 = vmatpush1.msra.mxu0 0.0
        %5803 = vmatprep.subr.mxu0 0.0
        %5804 = vmatpush1.msra.mxu0 0.0
        %5805 = vmatprep.subr.mxu0 0.0
        %5806 = vmatpush1.msra.mxu0 0.0
        %5807 = vmatprep.subr.mxu0 0.0
        %5808 = vmatpush1.msra.mxu0 0.0
        %5809 = vmatprep.subr.mxu0 0.0
        %5810 = vmatpush1.msra.mxu0 0.0
        %5811 = vmatprep.subr.mxu0 0.0
        %5812 = vmatpush1.msra.mxu0 0.0
        %5813 = vmatprep.subr.mxu0 0.0
        %5814 = vmatpush1.msra.mxu0 0.0
        %5815 = vmatprep.subr.mxu0 0.0
        %5816 = vmatpush1.msra.mxu0 0.0
        %5817 = vmatprep.subr.mxu0 0.0
        %5818 = vmatpush1.msra.mxu0 0.0
        %5819 = vmatprep.subr.mxu0 0.0
        %5820 = vmatpush1.msra.mxu0 0.0
        %5821 = vmatprep.subr.mxu0 0.0
        %5822 = vmatpush1.msra.mxu0 0.0
        %5823 = vmatprep.subr.mxu0 0.0
        %5824 = vmatpush1.msra.mxu0 0.0
        %5825 = vmatprep.subr.mxu0 0.0
        %5826 = vmatpush1.msra.mxu0 0.0
        %5827 = vmatprep.subr.mxu0 0.0
        %5828 = vmatpush1.msra.mxu0 0.0
        %5829 = vmatprep.subr.mxu0 0.0
        %5830 = vmatpush1.msra.mxu0 0.0
        %5831 = vmatprep.subr.mxu0 0.0
        %5832 = vmatpush1.msra.mxu0 0.0
        %5833 = vmatprep.mubr.f32.mxu0 0.0
        %5834 = vmatmul.mubr.f32.gmra.mrb[0].mxu0 %v5720
        %v5835 = vpop.f32.mrb[0].mxu0
        %v5836 = vadd.f32 0.0, %v5835
        %v5837 = vpop.f32.mrb[0].mxu0
        %5838 = vmatprep.mubr.f32.mxu0 0.0
        %5839 = vmatmul.mubr.f32.gmra.mrb[0].mxu0 %v5721
        %v5840 = vpop.f32.mrb[0].mxu0
        %v5841 = vadd.f32 0.0, %v5840
        %v5842 = vpop.f32.mrb[0].mxu0
        %5843 = vmatprep.mubr.f32.mxu0 0.0
        %5844 = vmatmul.mubr.f32.gmra.mrb[0].mxu0 %v5722
        %v5845 = vpop.f32.mrb[0].mxu0
        %v5846 = vadd.f32 0.0, %v5845
        %v5847 = vpop.f32.mrb[0].mxu0
        %5848 = vmatprep.mubr.f32.mxu0 0.0
        %5849 = vmatmul.mubr.f32.gmra.mrb[0].mxu0 %v5723
        %v5850 = vpop.f32.mrb[0].mxu0
        %v5851 = vadd.f32 0.0, %v5850
        %v5852 = vpop.f32.mrb[0].mxu0
        %5853 = vmatprep.mubr.f32.mxu0 0.0
        %5854 = vmatmul.mubr.f32.gmra.mrb[0].mxu0 %v5724
        %v5855 = vpop.f32.mrb[0].mxu0
        %v5856 = vadd.f32 0.0, %v5855
        %v5857 = vpop.f32.mrb[0].mxu0
        %5858 = vmatprep.mubr.f32.mxu0 0.0
        %5859 = vmatmul.mubr.f32.gmra.mrb[0].mxu0 %v5725
        %v5860 = vpop.f32.mrb[0].mxu0
        %v5861 = vadd.f32 0.0, %v5860
        %v5862 = vpop.f32.mrb[0].mxu0
        %5863 = vmatprep.mubr.f32.mxu0 0.0
        %5864 = vmatmul.mubr.f32.gmra.mrb[0].mxu0 %v5726
        %v5865 = vpop.f32.mrb[0].mxu0
        %v5866 = vadd.f32 0.0, %v5865
        %v5867 = vpop.f32.mrb[0].mxu0
        %5868 = vmatprep.mubr.f32.mxu0 0.0
        %5869 = vmatmul.mubr.f32.gmra.mrb[0].mxu0 %v5727
        %v5870 = vpop.f32.mrb[0].mxu0
        %v5871 = vadd.f32 0.0, %v5870
        %v5872 = vpop.f32.mrb[0].mxu0
        %5873 = vmatprep.mubr.f32.mxu0 0.0
        %5874 = vmatmul.mubr.f32.gmra.mrb[0].mxu0 %v5728
        %v5875 = vpop.f32.mrb[0].mxu0
        %v5876 = vadd.f32 0.0, %v5875
        %v5877 = vpop.f32.mrb[0].mxu0
        %5878 = vmatprep.mubr.f32.mxu0 0.0
        %5879 = vmatmul.mubr.f32.gmra.mrb[0].mxu0 %v5729
        %v5880 = vpop.f32.mrb[0].mxu0
        %v5881 = vadd.f32 0.0, %v5880
        %v5882 = vpop.f32.mrb[0].mxu0
        %5883 = vmatprep.mubr.f32.mxu0 0.0
        %5884 = vmatmul.mubr.f32.gmra.mrb[0].mxu0 %v5730
        %v5885 = vpop.f32.mrb[0].mxu0
        %v5886 = vadd.f32 0.0, %v5885
        %v5887 = vpop.f32.mrb[0].mxu0
        %5888 = vmatprep.mubr.f32.mxu0 0.0
        %5889 = vmatmul.mubr.f32.gmra.mrb[0].mxu0 %v5731
        %v5890 = vpop.f32.mrb[0].mxu0
        %v5891 = vadd.f32 0.0, %v5890
        %v5892 = vpop.f32.mrb[0].mxu0
        %5893 = vmatprep.mubr.f32.mxu0 0.0
        %5894 = vmatmul.mubr.f32.gmra.mrb[0].mxu0 %v5732
        %v5895 = vpop.f32.mrb[0].mxu0
        %v5896 = vadd.f32 0.0, %v5895
        %v5897 = vpop.f32.mrb[0].mxu0
        %5898 = vmatprep.mubr.f32.mxu0 0.0
        %5899 = vmatmul.mubr.f32.gmra.mrb[0].mxu0 %v5733
        %v5900 = vpop.f32.mrb[0].mxu0
        %v5901 = vadd.f32 0.0, %v5900
        %v5902 = vpop.f32.mrb[0].mxu0
        %5903 = vmatprep.mubr.f32.mxu0 0.0
        %5904 = vmatmul.mubr.f32.gmra.mrb[0].mxu0 %v5734
        %v5905 = vpop.f32.mrb[0].mxu0
        %v5906 = vadd.f32 0.0, %v5905
        %v5907 = vpop.f32.mrb[0].mxu0
        %5908 = vmatprep.mubr.f32.mxu0 0.0
        %5909 = vmatmul.mubr.f32.gmra.mrb[0].mxu0 %v5735
        %v5910 = vpop.f32.mrb[0].mxu0
        %v5911 = vadd.f32 0.0, %v5910
        %v5912 = vpop.f32.mrb[0].mxu0
        %5913 = vmatprep.mubr.f32.mxu0 0.0
        %5914 = vmatmul.mubr.f32.gmra.mrb[0].mxu0 %v5736
        %v5915 = vpop.f32.mrb[0].mxu0
        %v5916 = vadd.f32 0.0, %v5915
        %v5917 = vpop.f32.mrb[0].mxu0
        %5918 = vmatprep.mubr.f32.mxu0 0.0
        %5919 = vmatmul.mubr.f32.gmra.mrb[0].mxu0 %v5737
        %v5920 = vpop.f32.mrb[0].mxu0
        %v5921 = vadd.f32 0.0, %v5920
        %v5922 = vpop.f32.mrb[0].mxu0
        %5923 = vmatprep.mubr.f32.mxu0 0.0
        %5924 = vmatmul.mubr.f32.gmra.mrb[0].mxu0 %v5738
        %v5925 = vpop.f32.mrb[0].mxu0
        %v5926 = vadd.f32 0.0, %v5925
        %v5927 = vpop.f32.mrb[0].mxu0
        %5928 = vmatprep.mubr.f32.mxu0 0.0
        %5929 = vmatmul.mubr.f32.gmra.mrb[0].mxu0 %v5739
        %v5930 = vpop.f32.mrb[0].mxu0
        %v5931 = vadd.f32 0.0, %v5930
        %v5932 = vpop.f32.mrb[0].mxu0
        %5933 = vmatprep.mubr.f32.mxu0 0.0
        %5934 = vmatmul.mubr.f32.gmra.mrb[0].mxu0 %v5740
        %v5935 = vpop.f32.mrb[0].mxu0
        %v5936 = vadd.f32 0.0, %v5935
        %v5937 = vpop.f32.mrb[0].mxu0
        %5938 = vmatprep.mubr.f32.mxu0 0.0
        %5939 = vmatmul.mubr.f32.gmra.mrb[0].mxu0 %v5741
        %v5940 = vpop.f32.mrb[0].mxu0
        %v5941 = vadd.f32 0.0, %v5940
        %v5942 = vpop.f32.mrb[0].mxu0
        %5943 = vmatprep.mubr.f32.mxu0 0.0
        %5944 = vmatmul.mubr.f32.gmra.mrb[0].mxu0 %v5742
        %v5945 = vpop.f32.mrb[0].mxu0
        %v5946 = vadd.f32 0.0, %v5945
        %v5947 = vpop.f32.mrb[0].mxu0
        %5948 = vmatprep.mubr.f32.mxu0 0.0
        %5949 = vmatmul.mubr.f32.gmra.mrb[0].mxu0 %v5743
        %v5950 = vpop.f32.mrb[0].mxu0
        %v5951 = vadd.f32 0.0, %v5950
        %v5952 = vpop.f32.mrb[0].mxu0
        %5953 = vmatprep.mubr.f32.mxu0 0.0
        %5954 = vmatmul.mubr.f32.gmra.mrb[0].mxu0 %v5744
        %v5955 = vpop.f32.mrb[0].mxu0
        %v5956 = vadd.f32 0.0, %v5955
        %v5957 = vpop.f32.mrb[0].mxu0
        %5958 = vmatprep.mubr.f32.mxu0 0.0
        %5959 = vmatmul.mubr.f32.gmra.mrb[0].mxu0 %v5745
        %v5960 = vpop.f32.mrb[0].mxu0
        %v5961 = vadd.f32 0.0, %v5960
        %v5962 = vpop.f32.mrb[0].mxu0
        %5963 = vmatprep.mubr.f32.mxu0 0.0
        %5964 = vmatmul.mubr.f32.gmra.mrb[0].mxu0 %v5746
        %v5965 = vpop.f32.mrb[0].mxu0
        %v5966 = vadd.f32 0.0, %v5965
        %v5967 = vpop.f32.mrb[0].mxu0
        %5968 = vmatprep.mubr.f32.mxu0 0.0
        %5969 = vmatmul.mubr.f32.gmra.mrb[0].mxu0 %v5747
        %v5970 = vpop.f32.mrb[0].mxu0
        %v5971 = vadd.f32 0.0, %v5970
        %v5972 = vpop.f32.mrb[0].mxu0
        %5973 = vmatprep.mubr.f32.mxu0 0.0
        %5974 = vmatmul.mubr.f32.gmra.mrb[0].mxu0 %v5748
        %v5975 = vpop.f32.mrb[0].mxu0
        %v5976 = vadd.f32 0.0, %v5975
        %v5977 = vpop.f32.mrb[0].mxu0
        %5978 = vmatprep.mubr.f32.mxu0 0.0
        %5979 = vmatmul.mubr.f32.gmra.mrb[0].mxu0 %v5749
        %v5980 = vpop.f32.mrb[0].mxu0
        %v5981 = vadd.f32 0.0, %v5980
        %v5982 = vpop.f32.mrb[0].mxu0
        %5983 = vmatprep.mubr.f32.mxu0 0.0
        %5984 = vmatmul.mubr.f32.gmra.mrb[0].mxu0 %v5750
        %v5985 = vpop.f32.mrb[0].mxu0
        %v5986 = vadd.f32 0.0, %v5985
        %v5987 = vpop.f32.mrb[0].mxu0
        %5988 = vmatprep.mubr.f32.mxu0 0.0
        %5989 = vmatmul.mubr.f32.gmra.mrb[0].mxu0 %v5751
        %v5990 = vpop.f32.mrb[0].mxu0
        %v5991 = vadd.f32 0.0, %v5990
        %v5992 = vpop.f32.mrb[0].mxu0
        %5993 = vdwg.mxu0
        %v5994 = vadd.f32 %v5688, %v5836
        %v5995 = vadd.f32 %v5689, %v5841
        %v5996 = vadd.f32 %v5690, %v5846
        %v5997 = vadd.f32 %v5691, %v5851
        %v5998 = vadd.f32 %v5692, %v5856
        %v5999 = vadd.f32 %v5693, %v5861
        %v6000 = vadd.f32 %v5694, %v5866
        %v6001 = vadd.f32 %v5695, %v5871
        %v6002 = vadd.f32 %v5696, %v5876
        %v6003 = vadd.f32 %v5697, %v5881
        %v6004 = vadd.f32 %v5698, %v5886
        %v6005 = vadd.f32 %v5699, %v5891
        %v6006 = vadd.f32 %v5700, %v5896
        %v6007 = vadd.f32 %v5701, %v5901
        %v6008 = vadd.f32 %v5702, %v5906
        %v6009 = vadd.f32 %v5703, %v5911
        %v6010 = vadd.f32 %v5704, %v5916
        %v6011 = vadd.f32 %v5705, %v5921
        %v6012 = vadd.f32 %v5706, %v5926
        %v6013 = vadd.f32 %v5707, %v5931
        %v6014 = vadd.f32 %v5708, %v5936
        %v6015 = vadd.f32 %v5709, %v5941
        %v6016 = vadd.f32 %v5710, %v5946
        %v6017 = vadd.f32 %v5711, %v5951
        %v6018 = vadd.f32 %v5712, %v5956
        %v6019 = vadd.f32 %v5713, %v5961
        %v6020 = vadd.f32 %v5714, %v5966
        %v6021 = vadd.f32 %v5715, %v5971
        %v6022 = vadd.f32 %v5716, %v5976
        %v6023 = vadd.f32 %v5717, %v5981
        %v6024 = vadd.f32 %v5718, %v5986
        %v6025 = vadd.f32 %v5719, %v5991
        %v6026 = vld [vmem:[%s5] sm:$0x1]
        %v6028 = vlaneseq
        %v6029 = vshrl.u32 %v6028, 7
        %v6030 = vsub.s32 0, %v6029
        %v6031 = vrot.slane %v6026, %v6030
        %v6033 = vmul.f32 %v5994, %v6031
        %v6034 = vmul.f32 %v5995, %v6031
        %v6035 = vmul.f32 %v5996, %v6031
        %v6036 = vmul.f32 %v5997, %v6031
        %v6037 = vmul.f32 %v5998, %v6031
        %v6038 = vmul.f32 %v5999, %v6031
        %v6039 = vmul.f32 %v6000, %v6031
        %v6040 = vmul.f32 %v6001, %v6031
        %v6041 = vmul.f32 %v6002, %v6031
        %v6042 = vmul.f32 %v6003, %v6031
        %v6043 = vmul.f32 %v6004, %v6031
        %v6044 = vmul.f32 %v6005, %v6031
        %v6045 = vmul.f32 %v6006, %v6031
        %v6046 = vmul.f32 %v6007, %v6031
        %v6047 = vmul.f32 %v6008, %v6031
        %v6048 = vmul.f32 %v6009, %v6031
        %v6049 = vmul.f32 %v6010, %v6031
        %v6050 = vmul.f32 %v6011, %v6031
        %v6051 = vmul.f32 %v6012, %v6031
        %v6052 = vmul.f32 %v6013, %v6031
        %v6053 = vmul.f32 %v6014, %v6031
        %v6054 = vmul.f32 %v6015, %v6031
        %v6055 = vmul.f32 %v6016, %v6031
        %v6056 = vmul.f32 %v6017, %v6031
        %v6057 = vmul.f32 %v6018, %v6031
        %v6058 = vmul.f32 %v6019, %v6031
        %v6059 = vmul.f32 %v6020, %v6031
        %v6060 = vmul.f32 %v6021, %v6031
        %v6061 = vmul.f32 %v6022, %v6031
        %v6062 = vmul.f32 %v6023, %v6031
        %v6063 = vmul.f32 %v6024, %v6031
        %v6064 = vmul.f32 %v6025, %v6031
        %v6065 = vld [vmem:[%s6] sm:$0x1]
        %v6067 = vlaneseq
        %v6068 = vshrl.u32 %v6067, 7
        %v6069 = vsub.s32 0, %v6068
        %v6070 = vrot.slane %v6065, %v6069
        %v6072 = vadd.f32 %v6033, %v6070
        %v6073 = vadd.f32 %v6034, %v6070
        %v6074 = vadd.f32 %v6035, %v6070
        %v6075 = vadd.f32 %v6036, %v6070
        %v6076 = vadd.f32 %v6037, %v6070
        %v6077 = vadd.f32 %v6038, %v6070
        %v6078 = vadd.f32 %v6039, %v6070
        %v6079 = vadd.f32 %v6040, %v6070
        %v6080 = vadd.f32 %v6041, %v6070
        %v6081 = vadd.f32 %v6042, %v6070
        %v6082 = vadd.f32 %v6043, %v6070
        %v6083 = vadd.f32 %v6044, %v6070
        %v6084 = vadd.f32 %v6045, %v6070
        %v6085 = vadd.f32 %v6046, %v6070
        %v6086 = vadd.f32 %v6047, %v6070
        %v6087 = vadd.f32 %v6048, %v6070
        %v6088 = vadd.f32 %v6049, %v6070
        %v6089 = vadd.f32 %v6050, %v6070
        %v6090 = vadd.f32 %v6051, %v6070
        %v6091 = vadd.f32 %v6052, %v6070
        %v6092 = vadd.f32 %v6053, %v6070
        %v6093 = vadd.f32 %v6054, %v6070
        %v6094 = vadd.f32 %v6055, %v6070
        %v6095 = vadd.f32 %v6056, %v6070
        %v6096 = vadd.f32 %v6057, %v6070
        %v6097 = vadd.f32 %v6058, %v6070
        %v6098 = vadd.f32 %v6059, %v6070
        %v6099 = vadd.f32 %v6060, %v6070
        %v6100 = vadd.f32 %v6061, %v6070
        %v6101 = vadd.f32 %v6062, %v6070
        %v6102 = vadd.f32 %v6063, %v6070
        %v6103 = vadd.f32 %v6064, %v6070
        %v6104 = vld [vmem:[%s287] sm:$0xff]
        %v6105 = vld [vmem:[%s287 + $0x8] sm:$0xff]
        %v6106 = vld [vmem:[%s287 + $0x10] sm:$0xff]
        %v6107 = vld [vmem:[%s287 + $0x18] sm:$0xff]
        %v6108 = vld [vmem:[%s287 + $0x20] sm:$0xff]
        %v6109 = vld [vmem:[%s287 + $0x28] sm:$0xff]
        %v6110 = vld [vmem:[%s287 + $0x30] sm:$0xff]
        %v6111 = vld [vmem:[%s287 + $0x38] sm:$0xff]
        %v6112 = vld [vmem:[%s287 + $0x40] sm:$0xff]
        %v6113 = vld [vmem:[%s287 + $0x48] sm:$0xff]
        %v6114 = vld [vmem:[%s287 + $0x50] sm:$0xff]
        %v6115 = vld [vmem:[%s287 + $0x58] sm:$0xff]
        %v6116 = vld [vmem:[%s287 + $0x60] sm:$0xff]
        %v6117 = vld [vmem:[%s287 + $0x68] sm:$0xff]
        %v6118 = vld [vmem:[%s287 + $0x70] sm:$0xff]
        %v6119 = vld [vmem:[%s287 + $0x78] sm:$0xff]
        %v6120 = vld [vmem:[%s287 + $0x80] sm:$0xff]
        %v6121 = vld [vmem:[%s287 + $0x88] sm:$0xff]
        %v6122 = vld [vmem:[%s287 + $0x90] sm:$0xff]
        %v6123 = vld [vmem:[%s287 + $0x98] sm:$0xff]
        %v6124 = vld [vmem:[%s287 + $0xa0] sm:$0xff]
        %v6125 = vld [vmem:[%s287 + $0xa8] sm:$0xff]
        %v6126 = vld [vmem:[%s287 + $0xb0] sm:$0xff]
        %v6127 = vld [vmem:[%s287 + $0xb8] sm:$0xff]
        %v6128 = vld [vmem:[%s287 + $0xc0] sm:$0xff]
        %v6129 = vld [vmem:[%s287 + $0xc8] sm:$0xff]
        %v6130 = vld [vmem:[%s287 + $0xd0] sm:$0xff]
        %v6131 = vld [vmem:[%s287 + $0xd8] sm:$0xff]
        %v6132 = vld [vmem:[%s287 + $0xe0] sm:$0xff]
        %v6133 = vld [vmem:[%s287 + $0xe8] sm:$0xff]
        %v6134 = vld [vmem:[%s287 + $0xf0] sm:$0xff]
        %v6135 = vld [vmem:[%s287 + $0xf8] sm:$0xff]
        %v6136 = vadd.f32 %v6072, %v6104
        %v6137 = vadd.f32 %v6073, %v6105
        %v6138 = vadd.f32 %v6074, %v6106
        %v6139 = vadd.f32 %v6075, %v6107
        %v6140 = vadd.f32 %v6076, %v6108
        %v6141 = vadd.f32 %v6077, %v6109
        %v6142 = vadd.f32 %v6078, %v6110
        %v6143 = vadd.f32 %v6079, %v6111
        %v6144 = vadd.f32 %v6080, %v6112
        %v6145 = vadd.f32 %v6081, %v6113
        %v6146 = vadd.f32 %v6082, %v6114
        %v6147 = vadd.f32 %v6083, %v6115
        %v6148 = vadd.f32 %v6084, %v6116
        %v6149 = vadd.f32 %v6085, %v6117
        %v6150 = vadd.f32 %v6086, %v6118
        %v6151 = vadd.f32 %v6087, %v6119
        %v6152 = vadd.f32 %v6088, %v6120
        %v6153 = vadd.f32 %v6089, %v6121
        %v6154 = vadd.f32 %v6090, %v6122
        %v6155 = vadd.f32 %v6091, %v6123
        %v6156 = vadd.f32 %v6092, %v6124
        %v6157 = vadd.f32 %v6093, %v6125
        %v6158 = vadd.f32 %v6094, %v6126
        %v6159 = vadd.f32 %v6095, %v6127
        %v6160 = vadd.f32 %v6096, %v6128
        %v6161 = vadd.f32 %v6097, %v6129
        %v6162 = vadd.f32 %v6098, %v6130
        %v6163 = vadd.f32 %v6099, %v6131
        %v6164 = vadd.f32 %v6100, %v6132
        %v6165 = vadd.f32 %v6101, %v6133
        %v6166 = vadd.f32 %v6102, %v6134
        %v6167 = vadd.f32 %v6103, %v6135
        %v6168 = vmax.f32 %v6136, 0.0
        %v6169 = vmax.f32 %v6137, 0.0
        %v6170 = vmax.f32 %v6138, 0.0
        %v6171 = vmax.f32 %v6139, 0.0
        %v6172 = vmax.f32 %v6140, 0.0
        %v6173 = vmax.f32 %v6141, 0.0
        %v6174 = vmax.f32 %v6142, 0.0
        %v6175 = vmax.f32 %v6143, 0.0
        %v6176 = vmax.f32 %v6144, 0.0
        %v6177 = vmax.f32 %v6145, 0.0
        %v6178 = vmax.f32 %v6146, 0.0
        %v6179 = vmax.f32 %v6147, 0.0
        %v6180 = vmax.f32 %v6148, 0.0
        %v6181 = vmax.f32 %v6149, 0.0
        %v6182 = vmax.f32 %v6150, 0.0
        %v6183 = vmax.f32 %v6151, 0.0
        %v6184 = vmax.f32 %v6152, 0.0
        %v6185 = vmax.f32 %v6153, 0.0
        %v6186 = vmax.f32 %v6154, 0.0
        %v6187 = vmax.f32 %v6155, 0.0
        %v6188 = vmax.f32 %v6156, 0.0
        %v6189 = vmax.f32 %v6157, 0.0
        %v6190 = vmax.f32 %v6158, 0.0
        %v6191 = vmax.f32 %v6159, 0.0
        %v6192 = vmax.f32 %v6160, 0.0
        %v6193 = vmax.f32 %v6161, 0.0
        %v6194 = vmax.f32 %v6162, 0.0
        %v6195 = vmax.f32 %v6163, 0.0
        %v6196 = vmax.f32 %v6164, 0.0
        %v6197 = vmax.f32 %v6165, 0.0
        %v6198 = vmax.f32 %v6166, 0.0
        %v6199 = vmax.f32 %v6167, 0.0
        %6200 = vst [vmem:[%s325] sm:$0xff] %v6168
        %6201 = vst [vmem:[%s325 + $0x8] sm:$0xff] %v6169
        %6202 = vst [vmem:[%s325 + $0x10] sm:$0xff] %v6170
        %6203 = vst [vmem:[%s325 + $0x18] sm:$0xff] %v6171
        %6204 = vst [vmem:[%s325 + $0x20] sm:$0xff] %v6172
        %6205 = vst [vmem:[%s325 + $0x28] sm:$0xff] %v6173
        %6206 = vst [vmem:[%s325 + $0x30] sm:$0xff] %v6174
        %6207 = vst [vmem:[%s325 + $0x38] sm:$0xff] %v6175
        %6208 = vst [vmem:[%s325 + $0x40] sm:$0xff] %v6176
        %6209 = vst [vmem:[%s325 + $0x48] sm:$0xff] %v6177
        %6210 = vst [vmem:[%s325 + $0x50] sm:$0xff] %v6178
        %6211 = vst [vmem:[%s325 + $0x58] sm:$0xff] %v6179
        %6212 = vst [vmem:[%s325 + $0x60] sm:$0xff] %v6180
        %6213 = vst [vmem:[%s325 + $0x68] sm:$0xff] %v6181
        %6214 = vst [vmem:[%s325 + $0x70] sm:$0xff] %v6182
        %6215 = vst [vmem:[%s325 + $0x78] sm:$0xff] %v6183
        %6216 = vst [vmem:[%s325 + $0x80] sm:$0xff] %v6184
        %6217 = vst [vmem:[%s325 + $0x88] sm:$0xff] %v6185
        %6218 = vst [vmem:[%s325 + $0x90] sm:$0xff] %v6186
        %6219 = vst [vmem:[%s325 + $0x98] sm:$0xff] %v6187
        %6220 = vst [vmem:[%s325 + $0xa0] sm:$0xff] %v6188
        %6221 = vst [vmem:[%s325 + $0xa8] sm:$0xff] %v6189
        %6222 = vst [vmem:[%s325 + $0xb0] sm:$0xff] %v6190
        %6223 = vst [vmem:[%s325 + $0xb8] sm:$0xff] %v6191
        %6224 = vst [vmem:[%s325 + $0xc0] sm:$0xff] %v6192
        %6225 = vst [vmem:[%s325 + $0xc8] sm:$0xff] %v6193
        %6226 = vst [vmem:[%s325 + $0xd0] sm:$0xff] %v6194
        %6227 = vst [vmem:[%s325 + $0xd8] sm:$0xff] %v6195
        %6228 = vst [vmem:[%s325 + $0xe0] sm:$0xff] %v6196
        %6229 = vst [vmem:[%s325 + $0xe8] sm:$0xff] %v6197
        %6230 = vst [vmem:[%s325 + $0xf0] sm:$0xff] %v6198
        %6231 = vst [vmem:[%s325 + $0xf8] sm:$0xff] %v6199
        %s6232 = sand.u32 %s185, 1
        %s6233 = scalar_lea.sflag [#allocation6], %s6232
        %s6234 = sand.u32 %s185, 1
        %s6235 = smul.addr %s6234, 256
        %s6236 = scalar_lea.vmem [#allocation10], %s6235
        // Predicated region
        $region65: #{tpu_custom_call.1} parent=47 // pred_check
          %p6237 = pneg %p195
        $region66: #{tpu_custom_call.1} parent=47 // pred_check_branch
          %6239 = sbr.rel (%p6237) target = $region68
        $region67: #{tpu_custom_call.1} parent=47 // pred_region
          %s6241 = ssub.s32 4096, 4096
          %6242 = vsyncadd %s6233, %s6241
          %s6243 = smul.addr %s25, 32
          %s6244 = smul.addr %s6243, 128
          %s6245 = scalar_lea.hbm %s7, %s6244
          %s6246 = sshll.u32 %s6236, 4
          %s6247 = int_to_ptr.vmem [resolvable:$true] %s6246
          %6252 = dma.vmem_to_hbm [thread:$0]  %s6247, 4096, %s6245, %s6233, 128, 128, 8
        $region68: #{tpu_custom_call.1} parent=47 // pred_fallthru
          _
      $region48: #{tpu_custom_call.1} parent=5 // pred_fallthru
        _
      %p6253 = scmp.le.s32.totalorder 2, %s20
      // Predicated region
      $region69: #{tpu_custom_call.1} parent=5 // pred_check
        %p6254 = pneg %p6253
      $region70: #{tpu_custom_call.1} parent=5 // pred_check_branch
        %6256 = sbr.rel (%p6254) target = $region72
      $region71: #{tpu_custom_call.1} parent=5 // pred_region
        %s6257 = ssub.s32 %s20, 2
        // Predicated region
        $region73: #{tpu_custom_call.1} parent=71 // pred_check
          %p6258 = pneg %p201
        $region74: #{tpu_custom_call.1} parent=71 // pred_check_branch
          %6260 = sbr.rel (%p6258) target = $region76
        $region75: #{tpu_custom_call.1} parent=71 // pred_region
          %s6261 = sand.u32 %s186, 1
          %s6262 = scalar_lea.sflag [#allocation6], %s6261
          %s6263 = sand.u32 %s186, 1
          %s6264 = smul.addr %s6263, 256
          %s6265 = scalar_lea.vmem [#allocation10], %s6264
          %6266 = dma.done %s6262, 4096
        $region76: #{tpu_custom_call.1} parent=71 // pred_fallthru
          _
      $region72: #{tpu_custom_call.1} parent=5 // pred_fallthru
        _
    $region6: #{tpu_custom_call.1} parent=1 // loop_footer
      %s24 = sadd.s32 1, %s20
    $region7: #{tpu_custom_call.1} parent=1 // loop_footer_branch
      %19 = sbr.rel target = $region3
    $region8: #{tpu_custom_call.1} parent=1 // loop_exit
      _
    %6267 = vsyncpa [#allocation5], 1
    %s6268 = scalar_lea.sflag [#allocation5], 1
    %6269 = vsyncpa %s6268, 1
    %6270 = vsyncpa [#allocation8], 1
    %6271 = vsyncpa [#allocation6], 1
    %s6272 = scalar_lea.sflag [#allocation6], 1
    %6273 = vsyncpa %s6272, 1

</llo_original>
